<compile_context>
chip_gen: v5e
topology: v5e:2x2
jax: 0.10.0
libtpu: 0.0.40
codegen_flags: <defaults>
</compile_context>

<pallas_src>
from functools import partial

import jax
import jax.numpy as jnp
from jax import lax
from jax.experimental import pallas as pl
from jax.experimental.pallas import tpu as pltpu

K = 7          # depthwise kernel size
PAD = 3        # conv padding
WL = 8         # sublane-aligned column where the interior starts in the halo scratch
GN_EPS = 1e-5  # nn.GroupNorm default eps


def _gelu_tanh(x):
    # tanh-approx GELU (one EUP tanh + a few VALU ops).  PyTorch nn.GELU() is
    # erf-exact; max deviation ~1e-3, well inside the kernel's bf16-matmul
    # tolerance.
    # TODO(synk): if bit-closer parity is needed, check whether Mosaic lowers
    # lax.erf natively and switch to exact GELU.
    c = 0.7978845608028654  # sqrt(2/pi)
    return 0.5 * x * (1.0 + jnp.tanh(c * (x + 0.044715 * (x * x * x))))


# ---------------------------------------------------------------------------
# Fused kernel (one sample per grid step).
#   x_ref      : (H, W, Cp)   f32   input (channels zero-padded to Cp)
#   wdw_ref    : (K, K, Cp)   f32   depthwise weights (zero on padded channels)
#   bdw_ref    : (1, Cp)      f32   depthwise bias    (zero on padded channels)
#   gnw/gnb    : (1, Cp)      f32   GroupNorm affine  (zero on padded channels)
#   w1_ref     : (Cp, Hidp)   bf16  pwconv1 weight^T (zero-padded rows/cols)
#   b1_ref     : (1, Hidp)    f32
#   w2_ref     : (Hidp, Cp)   bf16  pwconv2 weight^T (zero-padded rows/cols)
#   b2_ref     : (1, Cp)      f32
#   gamma_ref  : (1, Cp)      f32   layer scale (zero on padded channels)
#   o_ref      : (H, W, Cp)   f32
#   xp_s       : VMEM (H+6, WL+W+3, Cp) f32  halo buffer (interior at col WL)
#   conv_s     : VMEM (H, W, Cp)        f32  dwconv output (feeds GN + MLP)
# ---------------------------------------------------------------------------
def _convnext_kernel(x_ref, wdw_ref, bdw_ref, gnw_ref, gnb_ref,
                     w1_ref, b1_ref, w2_ref, b2_ref, gamma_ref,
                     o_ref, xp_s, conv_s, *, H, W, C_real, Cp, HR):
    Wsp = WL + W + PAD                                  # scratch column extent

    # ---- zero ONLY the halo border (every step: safe under megacore batch
    #      sharding; interior is fully overwritten; cols 0..WL-PAD-1 unread) --
    xp_s[0:PAD, :, :] = jnp.zeros((PAD, Wsp, Cp), jnp.float32)
    xp_s[PAD + H:PAD + H + PAD, :, :] = jnp.zeros((PAD, Wsp, Cp), jnp.float32)
    xp_s[PAD:PAD + H, WL - PAD:WL, :] = jnp.zeros((H, PAD, Cp), jnp.float32)
    xp_s[PAD:PAD + H, WL + W:Wsp, :] = jnp.zeros((H, PAD, Cp), jnp.float32)

    # ---- interior copy; column start WL=8 -> sublane-aligned dense stores ---
    xp_s[PAD:PAD + H, WL:WL + W, :] = x_ref[...]

    wdw = wdw_ref[...]                                  # (7, 7, Cp)
    # Hoist per-tap weight rows out of the strip loop (no broadcast CSE in JAX)
    w_tap = [[wdw[dy, dx].reshape(1, 1, Cp) for dx in range(K)]
             for dy in range(K)]
    bdw = bdw_ref[...].reshape(1, 1, Cp)

    # ---- pass 1: depthwise 7x7 conv in row strips (in-register strip acc,
    #      one store per strip) + per-strip partial sums for GroupNorm --------
    # NOTE: padded channels are exactly zero after the conv (dw weights/bias
    # are zero-padded), so the sums below only see the C_real real channels.
    s_acc = jnp.zeros((1, 1), jnp.float32)
    ss_acc = jnp.zeros((1, 1), jnp.float32)
    row = 0
    while row < H:
        hr = min(HR, H - row)
        acc = jnp.zeros((hr, W, Cp), jnp.float32)
        for dx in range(K):
            # strip rows + 6-row halo, shifted by dx along W: one unaligned
            # sublane relayout per dx per strip, reused across the 7 dy taps.
            x_dx = xp_s[row:row + hr + 2 * PAD,
                        WL - PAD + dx:WL - PAD + dx + W, :]
            for dy in range(K):
                acc = acc + x_dx[dy:dy + hr] * w_tap[dy][dx]
        acc = acc + bdw
        conv_s[row:row + hr, :, :] = acc                # one store per strip
        s_acc = s_acc + jnp.sum(jnp.sum(acc, axis=0), keepdims=True)
        ss_acc = ss_acc + jnp.sum(jnp.sum(acc * acc, axis=0), keepdims=True)
        row += hr

    # ---- GroupNorm(1 group) stats over (C_real, H, W); fused scale/shift ----
    n_real = float(C_real * H * W)
    mean = s_acc / n_real                               # (1, 1)
    var = ss_acc / n_real - mean * mean
    inv_std = lax.rsqrt(var + GN_EPS)                   # (1, 1)
    a_aff = gnw_ref[...] * inv_std                      # (1, Cp)
    b_aff = gnb_ref[...] - mean * a_aff                 # (1, Cp)

    w1 = w1_ref[...]
    b1 = b1_ref[...]
    w2 = w2_ref[...]
    b2 = b2_ref[...]
    gamma = gamma_ref[...]

    # ---- pass 2 (row-strip tiled): normalize -> MLP (bf16 MXU, f32 acc) ->
    #      GELU -> layer scale -> residual -> lane-dense store ---------------
    row = 0
    while row < H:
        hr = min(HR, H - row)
        xf = conv_s[row:row + hr, :, :].reshape(hr * W, Cp)
        xn = xf * a_aff + b_aff                         # fused GN scale/shift
        h = jnp.dot(xn.astype(jnp.bfloat16), w1,
                    preferred_element_type=jnp.float32) + b1
        h = _gelu_tanh(h)
        y = jnp.dot(h.astype(jnp.bfloat16), w2,
                    preferred_element_type=jnp.float32) + b2
        y = y * gamma                                   # layer scale
        out = x_ref[row:row + hr, :, :].reshape(hr * W, Cp) + y   # residual
        o_ref[row:row + hr, :, :] = out.reshape(hr, W, Cp)        # dense store
        row += hr


def _vmem_limit_bytes():
    cap = None
    try:
        cap = getattr(pltpu.get_tpu_info(), "vmem_capacity_bytes", None)
    except Exception:
        cap = None
    if not cap:
        cap = 64 * 1024 * 1024
    # Footprint is modest (~10 MB at ConvNeXt stage-1 56x56x128) after strip
    # tiling; keep a moderate raised limit instead of 3/4 of physical VMEM.
    return int(min(cap * 3 // 4, 64 * 1024 * 1024))


# ---------------------------------------------------------------------------
# Wrapper: NCHW <-> NHWC, channel & hidden padding to multiples of 128,
# weight prep.
# ---------------------------------------------------------------------------
def convnext_block(x_nchw, params):
    wdw, bdw, gnw, gnb, w1, b1, w2, b2, gamma = params
    N, C, H, W = x_nchw.shape
    Hid = w1.shape[0]                                   # 4 * C
    Cp = ((C + 127) // 128) * 128                       # lane-dense channels
    Hidp = ((Hid + 127) // 128) * 128                   # lane-dense hidden dim

    def pad_to(a, axis, new):
        old = a.shape[axis]
        if new == old:
            return a
        widths = [(0, 0)] * a.ndim
        widths[axis] = (0, new - old)
        return jnp.pad(a, widths)

    x = jnp.transpose(x_nchw, (0, 2, 3, 1)).astype(jnp.float32)   # NHWC
    x = pad_to(x, 3, Cp)                                          # (N,H,W,Cp)

    # INVARIANT (GroupNorm/padding correctness): every padded channel of
    # wdw/bdw/gnw/gnb/gamma and every padded row/col of w1/b1/w2 below MUST be
    # zero — the GN statistics and matmuls rely on padded lanes contributing 0.
    wdw_hwc = pad_to(jnp.transpose(wdw[:, 0], (1, 2, 0)), 2, Cp)  # (7,7,Cp)
    bdw_p = pad_to(bdw.reshape(1, C), 1, Cp)
    gnw_p = pad_to(gnw.reshape(1, C), 1, Cp)
    gnb_p = pad_to(gnb.reshape(1, C), 1, Cp)
    w1_p = pad_to(pad_to(w1.T, 0, Cp), 1, Hidp).astype(jnp.bfloat16)   # (Cp,Hidp)
    b1_p = pad_to(b1.reshape(1, Hid), 1, Hidp).astype(jnp.float32)
    w2_p = pad_to(pad_to(w2.T, 0, Hidp), 1, Cp).astype(jnp.bfloat16)   # (Hidp,Cp)
    b2_p = pad_to(b2.reshape(1, C), 1, Cp)
    gamma_p = pad_to(gamma.reshape(1, C), 1, Cp)

    # Conv row-strip height: keep the strip accumulator around <=32 f32 vregs.
    HR = max(1, min(8, 32768 // (W * Cp)))

    # TODO(synk): v5e option — carry x/out as bf16 through HBM to halve the
    # per-step DMA (kept f32 here so the residual path stays bit-exact).
    # TODO(synk): v7x / batch==1 — add an H-tile grid axis (stats pass +
    # tiled normalize/MLP pass) so both TensorCores get work from one sample.
    out = pl.pallas_call(
        partial(_convnext_kernel, H=H, W=W, C_real=C, Cp=Cp, HR=HR),
        out_shape=jax.ShapeDtypeStruct((N, H, W, Cp), jnp.float32),
        grid=(N,),
        in_specs=[
            pl.BlockSpec((None, H, W, Cp), lambda n: (n, 0, 0, 0)),  # x (+residual)
            pl.BlockSpec((K, K, Cp), lambda n: (0, 0, 0)),           # dwconv W
            pl.BlockSpec((1, Cp), lambda n: (0, 0)),                 # dwconv b
            pl.BlockSpec((1, Cp), lambda n: (0, 0)),                 # GN weight
            pl.BlockSpec((1, Cp), lambda n: (0, 0)),                 # GN bias
            pl.BlockSpec((Cp, Hidp), lambda n: (0, 0)),              # pwconv1 W^T
            pl.BlockSpec((1, Hidp), lambda n: (0, 0)),               # pwconv1 b
            pl.BlockSpec((Hidp, Cp), lambda n: (0, 0)),              # pwconv2 W^T
            pl.BlockSpec((1, Cp), lambda n: (0, 0)),                 # pwconv2 b
            pl.BlockSpec((1, Cp), lambda n: (0, 0)),                 # gamma
        ],
        out_specs=pl.BlockSpec((None, H, W, Cp), lambda n: (n, 0, 0, 0)),
        scratch_shapes=[
            pltpu.VMEM((H + 2 * PAD, WL + W + PAD, Cp), jnp.float32),  # halo
            pltpu.VMEM((H, W, Cp), jnp.float32),                       # dwconv out
        ],
        compiler_params=pltpu.CompilerParams(
            dimension_semantics=("parallel",),
            vmem_limit_bytes=_vmem_limit_bytes(),
        ),
    )(x, wdw_hwc, bdw_p, gnw_p, gnb_p, w1_p, b1_p, w2_p, b2_p, gamma_p)

    if Cp != C:
        out = out[..., :C]
    return jnp.transpose(out, (0, 3, 1, 2)).astype(x_nchw.dtype)   # back to NCHW


# ---------------------------------------------------------------------------
# Pure-JAX reference of the PyTorch forward (for verification).
# ---------------------------------------------------------------------------
def ref_forward(x, params, matmul_dtype=jnp.float32):
    wdw, bdw, gnw, gnb, w1, b1, w2, b2, gamma = params
    N, C, H, W = x.shape
    dw = lax.conv_general_dilated(
        x, wdw, window_strides=(1, 1), padding=((PAD, PAD), (PAD, PAD)),
        dimension_numbers=("NCHW", "OIHW", "NCHW"), feature_group_count=C)
    dw = dw + bdw[None, :, None, None]
    mean = dw.mean(axis=(1, 2, 3), keepdims=True)
    var = ((dw - mean) ** 2).mean(axis=(1, 2, 3), keepdims=True)
    xn = (dw - mean) / jnp.sqrt(var + GN_EPS)
    xn = xn * gnw[None, :, None, None] + gnb[None, :, None, None]
    t = jnp.transpose(xn, (0, 2, 3, 1))
    h = jnp.dot(t.astype(matmul_dtype), w1.T.astype(matmul_dtype),
                preferred_element_type=jnp.float32) + b1
    h = jax.nn.gelu(h, approximate=False)
    y = jnp.dot(h.astype(matmul_dtype), w2.T.astype(matmul_dtype),
                preferred_element_type=jnp.float32) + b2
    y = gamma * y
    return x + jnp.transpose(y, (0, 3, 1, 2))


if __name__ == "__main__":
    import numpy as np

    N, C, H, W = 2, 8, 16, 16          # dim = 8
    key = jax.random.PRNGKey(0)
    ks = jax.random.split(key, 10)

    x = jax.random.normal(ks[0], (N, C, H, W), jnp.float32)

    # Deterministic synthetic parameters (PyTorch shapes).
    wdw = 0.1 * jax.random.normal(ks[1], (C, 1, K, K), jnp.float32)   # dwconv weight
    bdw = 0.1 * jax.random.normal(ks[2], (C,), jnp.float32)           # dwconv bias
    gnw = 1.0 + 0.1 * jax.random.normal(ks[3], (C,), jnp.float32)     # GN weight
    gnb = 0.1 * jax.random.normal(ks[4], (C,), jnp.float32)           # GN bias
    w1 = jax.random.normal(ks[5], (4 * C, C), jnp.float32) / jnp.sqrt(C)
    b1 = 0.1 * jax.random.normal(ks[6], (4 * C,), jnp.float32)
    w2 = jax.random.normal(ks[7], (C, 4 * C), jnp.float32) / jnp.sqrt(4 * C)
    b2 = 0.1 * jax.random.normal(ks[8], (C,), jnp.float32)
    gamma_init = 1e-6 * jnp.ones((C,), jnp.float32)                   # layer_scale_init_value

    # 1) Module as initialized (gamma = 1e-6): branch contribution ~1e-6, so
    #    the exact f32 reference must match tightly (residual path is exact).
    params = (wdw, bdw, gnw, gnb, w1, b1, w2, b2, gamma_init)
    out = jax.block_until_ready(convnext_block(x, params))
    assert out.shape == x.shape and out.dtype == x.dtype
    np.testing.assert_allclose(np.asarray(out),
                               np.asarray(ref_forward(x, params)),
                               rtol=1e-4, atol=1e-4)

    # 2) gamma = 1 so the MLP branch is numerically exercised.  The kernel runs
    #    its matmuls in bf16 on the MXU (and tanh-approx GELU), so compare
    #    against a bf16-matmul reference and loosely against exact f32.
    params_g1 = (wdw, bdw, gnw, gnb, w1, b1, w2, b2, jnp.ones((C,), jnp.float32))
    out_g1 = jax.block_until_ready(convnext_block(x, params_g1))
    np.testing.assert_allclose(np.asarray(out_g1),
                               np.asarray(ref_forward(x, params_g1, jnp.bfloat16)),
                               rtol=1e-2, atol=1e-2)
    np.testing.assert_allclose(np.asarray(out_g1),
                               np.asarray(ref_forward(x, params_g1)),
                               rtol=5e-2, atol=5e-2)

    print("KERNEL_OK")
</pallas_src>

<mosaic_0001>
module attributes {stable_mosaic.version = 11 : i64} {
  func.func @_convnext_kernel(%arg0: i32, %arg1: memref<1x16x16x128xf32, #tpu.memory_space<vmem>>, %arg2: memref<7x7x128xf32, #tpu.memory_space<vmem>>, %arg3: memref<1x128xf32, #tpu.memory_space<vmem>>, %arg4: memref<1x128xf32, #tpu.memory_space<vmem>>, %arg5: memref<1x128xf32, #tpu.memory_space<vmem>>, %arg6: memref<128x128xbf16, #tpu.memory_space<vmem>>, %arg7: memref<1x128xf32, #tpu.memory_space<vmem>>, %arg8: memref<128x128xbf16, #tpu.memory_space<vmem>>, %arg9: memref<1x128xf32, #tpu.memory_space<vmem>>, %arg10: memref<1x128xf32, #tpu.memory_space<vmem>>, %arg11: memref<1x16x16x128xf32, #tpu.memory_space<vmem>>, %arg12: memref<22x27x128xf32, #tpu.memory_space<vmem>>, %arg13: memref<16x16x128xf32, #tpu.memory_space<vmem>>) attributes {dimension_semantics = [#tpu.dimension_semantics<parallel>], iteration_bounds = array<i64: 2>, scalar_prefetch = 0 : i64, scratch_operands = 2 : i64, tpu.core_type = #tpu.core_type<tc>, window_params = [{transform_indices = @transform_0, window_bounds = array<i64: 1, 16, 16, 128>}, {pipeline_mode = #tpu.pipeline_mode<synchronous>, transform_indices = @transform_1, window_bounds = array<i64: 7, 7, 128>}, {pipeline_mode = #tpu.pipeline_mode<synchronous>, transform_indices = @transform_2, window_bounds = array<i64: 1, 128>}, {pipeline_mode = #tpu.pipeline_mode<synchronous>, transform_indices = @transform_3, window_bounds = array<i64: 1, 128>}, {pipeline_mode = #tpu.pipeline_mode<synchronous>, transform_indices = @transform_4, window_bounds = array<i64: 1, 128>}, {pipeline_mode = #tpu.pipeline_mode<synchronous>, transform_indices = @transform_5, window_bounds = array<i64: 128, 128>}, {pipeline_mode = #tpu.pipeline_mode<synchronous>, transform_indices = @transform_6, window_bounds = array<i64: 1, 128>}, {pipeline_mode = #tpu.pipeline_mode<synchronous>, transform_indices = @transform_7, window_bounds = array<i64: 128, 128>}, {pipeline_mode = #tpu.pipeline_mode<synchronous>, transform_indices = @transform_8, window_bounds = array<i64: 1, 128>}, {pipeline_mode = #tpu.pipeline_mode<synchronous>, transform_indices = @transform_9, window_bounds = array<i64: 1, 128>}, {transform_indices = @transform_10, window_bounds = array<i64: 1, 16, 16, 128>}]} {
    %cst = arith.constant 0.000000e+00 : f32
    %0 = vector.broadcast %cst : f32 to vector<3x27x128xf32>
    %c0 = arith.constant 0 : index
    %c0_0 = arith.constant 0 : index
    %c0_1 = arith.constant 0 : index
    %1 = vector.load %arg12[%c0, %c0_0, %c0_1] : memref<22x27x128xf32, #tpu.memory_space<vmem>>, vector<3x27x128xf32>
    tpu.vector_store %arg12[%c0, %c0_0, %c0_1], %0 {strides = array<i32>} : memref<22x27x128xf32, #tpu.memory_space<vmem>>, vector<3x27x128xf32>,
    %cst_2 = arith.constant 0.000000e+00 : f32
    %2 = vector.broadcast %cst_2 : f32 to vector<3x27x128xf32>
    %c19 = arith.constant 19 : index
    %c0_3 = arith.constant 0 : index
    %c0_4 = arith.constant 0 : index
    %3 = vector.load %arg12[%c19, %c0_3, %c0_4] : memref<22x27x128xf32, #tpu.memory_space<vmem>>, vector<3x27x128xf32>
    tpu.vector_store %arg12[%c19, %c0_3, %c0_4], %2 {strides = array<i32>} : memref<22x27x128xf32, #tpu.memory_space<vmem>>, vector<3x27x128xf32>,
    %cst_5 = arith.constant 0.000000e+00 : f32
    %4 = vector.broadcast %cst_5 : f32 to vector<16x3x128xf32>
    %c3 = arith.constant 3 : index
    %c5 = arith.constant 5 : index
    %c0_6 = arith.constant 0 : index
    %5 = vector.load %arg12[%c3, %c5, %c0_6] : memref<22x27x128xf32, #tpu.memory_space<vmem>>, vector<16x3x128xf32>
    tpu.vector_store %arg12[%c3, %c5, %c0_6], %4 {strides = array<i32>} : memref<22x27x128xf32, #tpu.memory_space<vmem>>, vector<16x3x128xf32>,
    %cst_7 = arith.constant 0.000000e+00 : f32
    %6 = vector.broadcast %cst_7 : f32 to vector<16x3x128xf32>
    %c3_8 = arith.constant 3 : index
    %c24 = arith.constant 24 : index
    %c0_9 = arith.constant 0 : index
    %7 = vector.load %arg12[%c3_8, %c24, %c0_9] : memref<22x27x128xf32, #tpu.memory_space<vmem>>, vector<16x3x128xf32>
    tpu.vector_store %arg12[%c3_8, %c24, %c0_9], %6 {strides = array<i32>} : memref<22x27x128xf32, #tpu.memory_space<vmem>>, vector<16x3x128xf32>,
    %c0_10 = arith.constant 0 : index
    %c0_11 = arith.constant 0 : index
    %c0_12 = arith.constant 0 : index
    %c0_13 = arith.constant 0 : index
    %8 = vector.load %arg1[%c0_10, %c0_11, %c0_12, %c0_13] : memref<1x16x16x128xf32, #tpu.memory_space<vmem>>, vector<1x16x16x128xf32>
    %9 = vector.shape_cast %8 : vector<1x16x16x128xf32> to vector<16x16x128xf32>
    %c3_14 = arith.constant 3 : index
    %c8 = arith.constant 8 : index
    %c0_15 = arith.constant 0 : index
    %10 = vector.load %arg12[%c3_14, %c8, %c0_15] : memref<22x27x128xf32, #tpu.memory_space<vmem>>, vector<16x16x128xf32>
    tpu.vector_store %arg12[%c3_14, %c8, %c0_15], %9 {strides = array<i32>} : memref<22x27x128xf32, #tpu.memory_space<vmem>>, vector<16x16x128xf32>,
    %c0_16 = arith.constant 0 : index
    %c0_17 = arith.constant 0 : index
    %c0_18 = arith.constant 0 : index
    %11 = vector.load %arg2[%c0_16, %c0_17, %c0_18] : memref<7x7x128xf32, #tpu.memory_space<vmem>>, vector<7x7x128xf32>
    %12 = vector.extract_strided_slice %11 {offsets = [0, 0, 0], sizes = [1, 1, 128], strides = [1, 1, 1]} : vector<7x7x128xf32> to vector<1x1x128xf32>
    %13 = vector.shape_cast %12 : vector<1x1x128xf32> to vector<128xf32>
    %14 = vector.shape_cast %13 : vector<128xf32> to vector<1x1x128xf32>
    %15 = vector.extract_strided_slice %11 {offsets = [0, 1, 0], sizes = [1, 1, 128], strides = [1, 1, 1]} : vector<7x7x128xf32> to vector<1x1x128xf32>
    %16 = vector.shape_cast %15 : vector<1x1x128xf32> to vector<128xf32>
    %17 = vector.shape_cast %16 : vector<128xf32> to vector<1x1x128xf32>
    %18 = vector.extract_strided_slice %11 {offsets = [0, 2, 0], sizes = [1, 1, 128], strides = [1, 1, 1]} : vector<7x7x128xf32> to vector<1x1x128xf32>
    %19 = vector.shape_cast %18 : vector<1x1x128xf32> to vector<128xf32>
    %20 = vector.shape_cast %19 : vector<128xf32> to vector<1x1x128xf32>
    %21 = vector.extract_strided_slice %11 {offsets = [0, 3, 0], sizes = [1, 1, 128], strides = [1, 1, 1]} : vector<7x7x128xf32> to vector<1x1x128xf32>
    %22 = vector.shape_cast %21 : vector<1x1x128xf32> to vector<128xf32>
    %23 = vector.shape_cast %22 : vector<128xf32> to vector<1x1x128xf32>
    %24 = vector.extract_strided_slice %11 {offsets = [0, 4, 0], sizes = [1, 1, 128], strides = [1, 1, 1]} : vector<7x7x128xf32> to vector<1x1x128xf32>
    %25 = vector.shape_cast %24 : vector<1x1x128xf32> to vector<128xf32>
    %26 = vector.shape_cast %25 : vector<128xf32> to vector<1x1x128xf32>
    %27 = vector.extract_strided_slice %11 {offsets = [0, 5, 0], sizes = [1, 1, 128], strides = [1, 1, 1]} : vector<7x7x128xf32> to vector<1x1x128xf32>
    %28 = vector.shape_cast %27 : vector<1x1x128xf32> to vector<128xf32>
    %29 = vector.shape_cast %28 : vector<128xf32> to vector<1x1x128xf32>
    %30 = vector.extract_strided_slice %11 {offsets = [0, 6, 0], sizes = [1, 1, 128], strides = [1, 1, 1]} : vector<7x7x128xf32> to vector<1x1x128xf32>
    %31 = vector.shape_cast %30 : vector<1x1x128xf32> to vector<128xf32>
    %32 = vector.shape_cast %31 : vector<128xf32> to vector<1x1x128xf32>
    %33 = vector.extract_strided_slice %11 {offsets = [1, 0, 0], sizes = [1, 1, 128], strides = [1, 1, 1]} : vector<7x7x128xf32> to vector<1x1x128xf32>
    %34 = vector.shape_cast %33 : vector<1x1x128xf32> to vector<128xf32>
    %35 = vector.shape_cast %34 : vector<128xf32> to vector<1x1x128xf32>
    %36 = vector.extract_strided_slice %11 {offsets = [1, 1, 0], sizes = [1, 1, 128], strides = [1, 1, 1]} : vector<7x7x128xf32> to vector<1x1x128xf32>
    %37 = vector.shape_cast %36 : vector<1x1x128xf32> to vector<128xf32>
    %38 = vector.shape_cast %37 : vector<128xf32> to vector<1x1x128xf32>
    %39 = vector.extract_strided_slice %11 {offsets = [1, 2, 0], sizes = [1, 1, 128], strides = [1, 1, 1]} : vector<7x7x128xf32> to vector<1x1x128xf32>
    %40 = vector.shape_cast %39 : vector<1x1x128xf32> to vector<128xf32>
    %41 = vector.shape_cast %40 : vector<128xf32> to vector<1x1x128xf32>
    %42 = vector.extract_strided_slice %11 {offsets = [1, 3, 0], sizes = [1, 1, 128], strides = [1, 1, 1]} : vector<7x7x128xf32> to vector<1x1x128xf32>
    %43 = vector.shape_cast %42 : vector<1x1x128xf32> to vector<128xf32>
    %44 = vector.shape_cast %43 : vector<128xf32> to vector<1x1x128xf32>
    %45 = vector.extract_strided_slice %11 {offsets = [1, 4, 0], sizes = [1, 1, 128], strides = [1, 1, 1]} : vector<7x7x128xf32> to vector<1x1x128xf32>
    %46 = vector.shape_cast %45 : vector<1x1x128xf32> to vector<128xf32>
    %47 = vector.shape_cast %46 : vector<128xf32> to vector<1x1x128xf32>
    %48 = vector.extract_strided_slice %11 {offsets = [1, 5, 0], sizes = [1, 1, 128], strides = [1, 1, 1]} : vector<7x7x128xf32> to vector<1x1x128xf32>
    %49 = vector.shape_cast %48 : vector<1x1x128xf32> to vector<128xf32>
    %50 = vector.shape_cast %49 : vector<128xf32> to vector<1x1x128xf32>
    %51 = vector.extract_strided_slice %11 {offsets = [1, 6, 0], sizes = [1, 1, 128], strides = [1, 1, 1]} : vector<7x7x128xf32> to vector<1x1x128xf32>
    %52 = vector.shape_cast %51 : vector<1x1x128xf32> to vector<128xf32>
    %53 = vector.shape_cast %52 : vector<128xf32> to vector<1x1x128xf32>
    %54 = vector.extract_strided_slice %11 {offsets = [2, 0, 0], sizes = [1, 1, 128], strides = [1, 1, 1]} : vector<7x7x128xf32> to vector<1x1x128xf32>
    %55 = vector.shape_cast %54 : vector<1x1x128xf32> to vector<128xf32>
    %56 = vector.shape_cast %55 : vector<128xf32> to vector<1x1x128xf32>
    %57 = vector.extract_strided_slice %11 {offsets = [2, 1, 0], sizes = [1, 1, 128], strides = [1, 1, 1]} : vector<7x7x128xf32> to vector<1x1x128xf32>
    %58 = vector.shape_cast %57 : vector<1x1x128xf32> to vector<128xf32>
    %59 = vector.shape_cast %58 : vector<128xf32> to vector<1x1x128xf32>
    %60 = vector.extract_strided_slice %11 {offsets = [2, 2, 0], sizes = [1, 1, 128], strides = [1, 1, 1]} : vector<7x7x128xf32> to vector<1x1x128xf32>
    %61 = vector.shape_cast %60 : vector<1x1x128xf32> to vector<128xf32>
    %62 = vector.shape_cast %61 : vector<128xf32> to vector<1x1x128xf32>
    %63 = vector.extract_strided_slice %11 {offsets = [2, 3, 0], sizes = [1, 1, 128], strides = [1, 1, 1]} : vector<7x7x128xf32> to vector<1x1x128xf32>
    %64 = vector.shape_cast %63 : vector<1x1x128xf32> to vector<128xf32>
    %65 = vector.shape_cast %64 : vector<128xf32> to vector<1x1x128xf32>
    %66 = vector.extract_strided_slice %11 {offsets = [2, 4, 0], sizes = [1, 1, 128], strides = [1, 1, 1]} : vector<7x7x128xf32> to vector<1x1x128xf32>
    %67 = vector.shape_cast %66 : vector<1x1x128xf32> to vector<128xf32>
    %68 = vector.shape_cast %67 : vector<128xf32> to vector<1x1x128xf32>
    %69 = vector.extract_strided_slice %11 {offsets = [2, 5, 0], sizes = [1, 1, 128], strides = [1, 1, 1]} : vector<7x7x128xf32> to vector<1x1x128xf32>
    %70 = vector.shape_cast %69 : vector<1x1x128xf32> to vector<128xf32>
    %71 = vector.shape_cast %70 : vector<128xf32> to vector<1x1x128xf32>
    %72 = vector.extract_strided_slice %11 {offsets = [2, 6, 0], sizes = [1, 1, 128], strides = [1, 1, 1]} : vector<7x7x128xf32> to vector<1x1x128xf32>
    %73 = vector.shape_cast %72 : vector<1x1x128xf32> to vector<128xf32>
    %74 = vector.shape_cast %73 : vector<128xf32> to vector<1x1x128xf32>
    %75 = vector.extract_strided_slice %11 {offsets = [3, 0, 0], sizes = [1, 1, 128], strides = [1, 1, 1]} : vector<7x7x128xf32> to vector<1x1x128xf32>
    %76 = vector.shape_cast %75 : vector<1x1x128xf32> to vector<128xf32>
    %77 = vector.shape_cast %76 : vector<128xf32> to vector<1x1x128xf32>
    %78 = vector.extract_strided_slice %11 {offsets = [3, 1, 0], sizes = [1, 1, 128], strides = [1, 1, 1]} : vector<7x7x128xf32> to vector<1x1x128xf32>
    %79 = vector.shape_cast %78 : vector<1x1x128xf32> to vector<128xf32>
    %80 = vector.shape_cast %79 : vector<128xf32> to vector<1x1x128xf32>
    %81 = vector.extract_strided_slice %11 {offsets = [3, 2, 0], sizes = [1, 1, 128], strides = [1, 1, 1]} : vector<7x7x128xf32> to vector<1x1x128xf32>
    %82 = vector.shape_cast %81 : vector<1x1x128xf32> to vector<128xf32>
    %83 = vector.shape_cast %82 : vector<128xf32> to vector<1x1x128xf32>
    %84 = vector.extract_strided_slice %11 {offsets = [3, 3, 0], sizes = [1, 1, 128], strides = [1, 1, 1]} : vector<7x7x128xf32> to vector<1x1x128xf32>
    %85 = vector.shape_cast %84 : vector<1x1x128xf32> to vector<128xf32>
    %86 = vector.shape_cast %85 : vector<128xf32> to vector<1x1x128xf32>
    %87 = vector.extract_strided_slice %11 {offsets = [3, 4, 0], sizes = [1, 1, 128], strides = [1, 1, 1]} : vector<7x7x128xf32> to vector<1x1x128xf32>
    %88 = vector.shape_cast %87 : vector<1x1x128xf32> to vector<128xf32>
    %89 = vector.shape_cast %88 : vector<128xf32> to vector<1x1x128xf32>
    %90 = vector.extract_strided_slice %11 {offsets = [3, 5, 0], sizes = [1, 1, 128], strides = [1, 1, 1]} : vector<7x7x128xf32> to vector<1x1x128xf32>
    %91 = vector.shape_cast %90 : vector<1x1x128xf32> to vector<128xf32>
    %92 = vector.shape_cast %91 : vector<128xf32> to vector<1x1x128xf32>
    %93 = vector.extract_strided_slice %11 {offsets = [3, 6, 0], sizes = [1, 1, 128], strides = [1, 1, 1]} : vector<7x7x128xf32> to vector<1x1x128xf32>
    %94 = vector.shape_cast %93 : vector<1x1x128xf32> to vector<128xf32>
    %95 = vector.shape_cast %94 : vector<128xf32> to vector<1x1x128xf32>
    %96 = vector.extract_strided_slice %11 {offsets = [4, 0, 0], sizes = [1, 1, 128], strides = [1, 1, 1]} : vector<7x7x128xf32> to vector<1x1x128xf32>
    %97 = vector.shape_cast %96 : vector<1x1x128xf32> to vector<128xf32>
    %98 = vector.shape_cast %97 : vector<128xf32> to vector<1x1x128xf32>
    %99 = vector.extract_strided_slice %11 {offsets = [4, 1, 0], sizes = [1, 1, 128], strides = [1, 1, 1]} : vector<7x7x128xf32> to vector<1x1x128xf32>
    %100 = vector.shape_cast %99 : vector<1x1x128xf32> to vector<128xf32>
    %101 = vector.shape_cast %100 : vector<128xf32> to vector<1x1x128xf32>
    %102 = vector.extract_strided_slice %11 {offsets = [4, 2, 0], sizes = [1, 1, 128], strides = [1, 1, 1]} : vector<7x7x128xf32> to vector<1x1x128xf32>
    %103 = vector.shape_cast %102 : vector<1x1x128xf32> to vector<128xf32>
    %104 = vector.shape_cast %103 : vector<128xf32> to vector<1x1x128xf32>
    %105 = vector.extract_strided_slice %11 {offsets = [4, 3, 0], sizes = [1, 1, 128], strides = [1, 1, 1]} : vector<7x7x128xf32> to vector<1x1x128xf32>
    %106 = vector.shape_cast %105 : vector<1x1x128xf32> to vector<128xf32>
    %107 = vector.shape_cast %106 : vector<128xf32> to vector<1x1x128xf32>
    %108 = vector.extract_strided_slice %11 {offsets = [4, 4, 0], sizes = [1, 1, 128], strides = [1, 1, 1]} : vector<7x7x128xf32> to vector<1x1x128xf32>
    %109 = vector.shape_cast %108 : vector<1x1x128xf32> to vector<128xf32>
    %110 = vector.shape_cast %109 : vector<128xf32> to vector<1x1x128xf32>
    %111 = vector.extract_strided_slice %11 {offsets = [4, 5, 0], sizes = [1, 1, 128], strides = [1, 1, 1]} : vector<7x7x128xf32> to vector<1x1x128xf32>
    %112 = vector.shape_cast %111 : vector<1x1x128xf32> to vector<128xf32>
    %113 = vector.shape_cast %112 : vector<128xf32> to vector<1x1x128xf32>
    %114 = vector.extract_strided_slice %11 {offsets = [4, 6, 0], sizes = [1, 1, 128], strides = [1, 1, 1]} : vector<7x7x128xf32> to vector<1x1x128xf32>
    %115 = vector.shape_cast %114 : vector<1x1x128xf32> to vector<128xf32>
    %116 = vector.shape_cast %115 : vector<128xf32> to vector<1x1x128xf32>
    %117 = vector.extract_strided_slice %11 {offsets = [5, 0, 0], sizes = [1, 1, 128], strides = [1, 1, 1]} : vector<7x7x128xf32> to vector<1x1x128xf32>
    %118 = vector.shape_cast %117 : vector<1x1x128xf32> to vector<128xf32>
    %119 = vector.shape_cast %118 : vector<128xf32> to vector<1x1x128xf32>
    %120 = vector.extract_strided_slice %11 {offsets = [5, 1, 0], sizes = [1, 1, 128], strides = [1, 1, 1]} : vector<7x7x128xf32> to vector<1x1x128xf32>
    %121 = vector.shape_cast %120 : vector<1x1x128xf32> to vector<128xf32>
    %122 = vector.shape_cast %121 : vector<128xf32> to vector<1x1x128xf32>
    %123 = vector.extract_strided_slice %11 {offsets = [5, 2, 0], sizes = [1, 1, 128], strides = [1, 1, 1]} : vector<7x7x128xf32> to vector<1x1x128xf32>
    %124 = vector.shape_cast %123 : vector<1x1x128xf32> to vector<128xf32>
    %125 = vector.shape_cast %124 : vector<128xf32> to vector<1x1x128xf32>
    %126 = vector.extract_strided_slice %11 {offsets = [5, 3, 0], sizes = [1, 1, 128], strides = [1, 1, 1]} : vector<7x7x128xf32> to vector<1x1x128xf32>
    %127 = vector.shape_cast %126 : vector<1x1x128xf32> to vector<128xf32>
    %128 = vector.shape_cast %127 : vector<128xf32> to vector<1x1x128xf32>
    %129 = vector.extract_strided_slice %11 {offsets = [5, 4, 0], sizes = [1, 1, 128], strides = [1, 1, 1]} : vector<7x7x128xf32> to vector<1x1x128xf32>
    %130 = vector.shape_cast %129 : vector<1x1x128xf32> to vector<128xf32>
    %131 = vector.shape_cast %130 : vector<128xf32> to vector<1x1x128xf32>
    %132 = vector.extract_strided_slice %11 {offsets = [5, 5, 0], sizes = [1, 1, 128], strides = [1, 1, 1]} : vector<7x7x128xf32> to vector<1x1x128xf32>
    %133 = vector.shape_cast %132 : vector<1x1x128xf32> to vector<128xf32>
    %134 = vector.shape_cast %133 : vector<128xf32> to vector<1x1x128xf32>
    %135 = vector.extract_strided_slice %11 {offsets = [5, 6, 0], sizes = [1, 1, 128], strides = [1, 1, 1]} : vector<7x7x128xf32> to vector<1x1x128xf32>
    %136 = vector.shape_cast %135 : vector<1x1x128xf32> to vector<128xf32>
    %137 = vector.shape_cast %136 : vector<128xf32> to vector<1x1x128xf32>
    %138 = vector.extract_strided_slice %11 {offsets = [6, 0, 0], sizes = [1, 1, 128], strides = [1, 1, 1]} : vector<7x7x128xf32> to vector<1x1x128xf32>
    %139 = vector.shape_cast %138 : vector<1x1x128xf32> to vector<128xf32>
    %140 = vector.shape_cast %139 : vector<128xf32> to vector<1x1x128xf32>
    %141 = vector.extract_strided_slice %11 {offsets = [6, 1, 0], sizes = [1, 1, 128], strides = [1, 1, 1]} : vector<7x7x128xf32> to vector<1x1x128xf32>
    %142 = vector.shape_cast %141 : vector<1x1x128xf32> to vector<128xf32>
    %143 = vector.shape_cast %142 : vector<128xf32> to vector<1x1x128xf32>
    %144 = vector.extract_strided_slice %11 {offsets = [6, 2, 0], sizes = [1, 1, 128], strides = [1, 1, 1]} : vector<7x7x128xf32> to vector<1x1x128xf32>
    %145 = vector.shape_cast %144 : vector<1x1x128xf32> to vector<128xf32>
    %146 = vector.shape_cast %145 : vector<128xf32> to vector<1x1x128xf32>
    %147 = vector.extract_strided_slice %11 {offsets = [6, 3, 0], sizes = [1, 1, 128], strides = [1, 1, 1]} : vector<7x7x128xf32> to vector<1x1x128xf32>
    %148 = vector.shape_cast %147 : vector<1x1x128xf32> to vector<128xf32>
    %149 = vector.shape_cast %148 : vector<128xf32> to vector<1x1x128xf32>
    %150 = vector.extract_strided_slice %11 {offsets = [6, 4, 0], sizes = [1, 1, 128], strides = [1, 1, 1]} : vector<7x7x128xf32> to vector<1x1x128xf32>
    %151 = vector.shape_cast %150 : vector<1x1x128xf32> to vector<128xf32>
    %152 = vector.shape_cast %151 : vector<128xf32> to vector<1x1x128xf32>
    %153 = vector.extract_strided_slice %11 {offsets = [6, 5, 0], sizes = [1, 1, 128], strides = [1, 1, 1]} : vector<7x7x128xf32> to vector<1x1x128xf32>
    %154 = vector.shape_cast %153 : vector<1x1x128xf32> to vector<128xf32>
    %155 = vector.shape_cast %154 : vector<128xf32> to vector<1x1x128xf32>
    %156 = vector.extract_strided_slice %11 {offsets = [6, 6, 0], sizes = [1, 1, 128], strides = [1, 1, 1]} : vector<7x7x128xf32> to vector<1x1x128xf32>
    %157 = vector.shape_cast %156 : vector<1x1x128xf32> to vector<128xf32>
    %158 = vector.shape_cast %157 : vector<128xf32> to vector<1x1x128xf32>
    %c0_19 = arith.constant 0 : index
    %c0_20 = arith.constant 0 : index
    %159 = vector.load %arg3[%c0_19, %c0_20] : memref<1x128xf32, #tpu.memory_space<vmem>>, vector<1x128xf32>
    %160 = vector.shape_cast %159 : vector<1x128xf32> to vector<1x1x128xf32>
    %cst_21 = arith.constant 0.000000e+00 : f32
    %161 = vector.broadcast %cst_21 : f32 to vector<1x1xf32>
    %cst_22 = arith.constant 0.000000e+00 : f32
    %162 = vector.broadcast %cst_22 : f32 to vector<1x1xf32>
    %cst_23 = arith.constant 0.000000e+00 : f32
    %163 = vector.broadcast %cst_23 : f32 to vector<8x16x128xf32>
    %c0_24 = arith.constant 0 : index
    %c5_25 = arith.constant 5 : index
    %c0_26 = arith.constant 0 : index
    %164 = vector.load %arg12[%c0_24, %c5_25, %c0_26] : memref<22x27x128xf32, #tpu.memory_space<vmem>>, vector<14x16x128xf32>
    %165 = vector.extract_strided_slice %164 {offsets = [0, 0, 0], sizes = [8, 16, 128], strides = [1, 1, 1]} : vector<14x16x128xf32> to vector<8x16x128xf32>
    %166 = vector.broadcast %14 : vector<1x1x128xf32> to vector<8x16x128xf32>
    %167 = arith.mulf %165, %166 : vector<8x16x128xf32>
    %168 = arith.addf %163, %167 : vector<8x16x128xf32>
    %169 = vector.extract_strided_slice %164 {offsets = [1, 0, 0], sizes = [8, 16, 128], strides = [1, 1, 1]} : vector<14x16x128xf32> to vector<8x16x128xf32>
    %170 = vector.broadcast %35 : vector<1x1x128xf32> to vector<8x16x128xf32>
    %171 = arith.mulf %169, %170 : vector<8x16x128xf32>
    %172 = arith.addf %168, %171 : vector<8x16x128xf32>
    %173 = vector.extract_strided_slice %164 {offsets = [2, 0, 0], sizes = [8, 16, 128], strides = [1, 1, 1]} : vector<14x16x128xf32> to vector<8x16x128xf32>
    %174 = vector.broadcast %56 : vector<1x1x128xf32> to vector<8x16x128xf32>
    %175 = arith.mulf %173, %174 : vector<8x16x128xf32>
    %176 = arith.addf %172, %175 : vector<8x16x128xf32>
    %177 = vector.extract_strided_slice %164 {offsets = [3, 0, 0], sizes = [8, 16, 128], strides = [1, 1, 1]} : vector<14x16x128xf32> to vector<8x16x128xf32>
    %178 = vector.broadcast %77 : vector<1x1x128xf32> to vector<8x16x128xf32>
    %179 = arith.mulf %177, %178 : vector<8x16x128xf32>
    %180 = arith.addf %176, %179 : vector<8x16x128xf32>
    %181 = vector.extract_strided_slice %164 {offsets = [4, 0, 0], sizes = [8, 16, 128], strides = [1, 1, 1]} : vector<14x16x128xf32> to vector<8x16x128xf32>
    %182 = vector.broadcast %98 : vector<1x1x128xf32> to vector<8x16x128xf32>
    %183 = arith.mulf %181, %182 : vector<8x16x128xf32>
    %184 = arith.addf %180, %183 : vector<8x16x128xf32>
    %185 = vector.extract_strided_slice %164 {offsets = [5, 0, 0], sizes = [8, 16, 128], strides = [1, 1, 1]} : vector<14x16x128xf32> to vector<8x16x128xf32>
    %186 = vector.broadcast %119 : vector<1x1x128xf32> to vector<8x16x128xf32>
    %187 = arith.mulf %185, %186 : vector<8x16x128xf32>
    %188 = arith.addf %184, %187 : vector<8x16x128xf32>
    %189 = vector.extract_strided_slice %164 {offsets = [6, 0, 0], sizes = [8, 16, 128], strides = [1, 1, 1]} : vector<14x16x128xf32> to vector<8x16x128xf32>
    %190 = vector.broadcast %140 : vector<1x1x128xf32> to vector<8x16x128xf32>
    %191 = arith.mulf %189, %190 : vector<8x16x128xf32>
    %192 = arith.addf %188, %191 : vector<8x16x128xf32>
    %c0_27 = arith.constant 0 : index
    %c6 = arith.constant 6 : index
    %c0_28 = arith.constant 0 : index
    %193 = vector.load %arg12[%c0_27, %c6, %c0_28] : memref<22x27x128xf32, #tpu.memory_space<vmem>>, vector<14x16x128xf32>
    %194 = vector.extract_strided_slice %193 {offsets = [0, 0, 0], sizes = [8, 16, 128], strides = [1, 1, 1]} : vector<14x16x128xf32> to vector<8x16x128xf32>
    %195 = vector.broadcast %17 : vector<1x1x128xf32> to vector<8x16x128xf32>
    %196 = arith.mulf %194, %195 : vector<8x16x128xf32>
    %197 = arith.addf %192, %196 : vector<8x16x128xf32>
    %198 = vector.extract_strided_slice %193 {offsets = [1, 0, 0], sizes = [8, 16, 128], strides = [1, 1, 1]} : vector<14x16x128xf32> to vector<8x16x128xf32>
    %199 = vector.broadcast %38 : vector<1x1x128xf32> to vector<8x16x128xf32>
    %200 = arith.mulf %198, %199 : vector<8x16x128xf32>
    %201 = arith.addf %197, %200 : vector<8x16x128xf32>
    %202 = vector.extract_strided_slice %193 {offsets = [2, 0, 0], sizes = [8, 16, 128], strides = [1, 1, 1]} : vector<14x16x128xf32> to vector<8x16x128xf32>
    %203 = vector.broadcast %59 : vector<1x1x128xf32> to vector<8x16x128xf32>
    %204 = arith.mulf %202, %203 : vector<8x16x128xf32>
    %205 = arith.addf %201, %204 : vector<8x16x128xf32>
    %206 = vector.extract_strided_slice %193 {offsets = [3, 0, 0], sizes = [8, 16, 128], strides = [1, 1, 1]} : vector<14x16x128xf32> to vector<8x16x128xf32>
    %207 = vector.broadcast %80 : vector<1x1x128xf32> to vector<8x16x128xf32>
    %208 = arith.mulf %206, %207 : vector<8x16x128xf32>
    %209 = arith.addf %205, %208 : vector<8x16x128xf32>
    %210 = vector.extract_strided_slice %193 {offsets = [4, 0, 0], sizes = [8, 16, 128], strides = [1, 1, 1]} : vector<14x16x128xf32> to vector<8x16x128xf32>
    %211 = vector.broadcast %101 : vector<1x1x128xf32> to vector<8x16x128xf32>
    %212 = arith.mulf %210, %211 : vector<8x16x128xf32>
    %213 = arith.addf %209, %212 : vector<8x16x128xf32>
    %214 = vector.extract_strided_slice %193 {offsets = [5, 0, 0], sizes = [8, 16, 128], strides = [1, 1, 1]} : vector<14x16x128xf32> to vector<8x16x128xf32>
    %215 = vector.broadcast %122 : vector<1x1x128xf32> to vector<8x16x128xf32>
    %216 = arith.mulf %214, %215 : vector<8x16x128xf32>
    %217 = arith.addf %213, %216 : vector<8x16x128xf32>
    %218 = vector.extract_strided_slice %193 {offsets = [6, 0, 0], sizes = [8, 16, 128], strides = [1, 1, 1]} : vector<14x16x128xf32> to vector<8x16x128xf32>
    %219 = vector.broadcast %143 : vector<1x1x128xf32> to vector<8x16x128xf32>
    %220 = arith.mulf %218, %219 : vector<8x16x128xf32>
    %221 = arith.addf %217, %220 : vector<8x16x128xf32>
    %c0_29 = arith.constant 0 : index
    %c7 = arith.constant 7 : index
    %c0_30 = arith.constant 0 : index
    %222 = vector.load %arg12[%c0_29, %c7, %c0_30] : memref<22x27x128xf32, #tpu.memory_space<vmem>>, vector<14x16x128xf32>
    %223 = vector.extract_strided_slice %222 {offsets = [0, 0, 0], sizes = [8, 16, 128], strides = [1, 1, 1]} : vector<14x16x128xf32> to vector<8x16x128xf32>
    %224 = vector.broadcast %20 : vector<1x1x128xf32> to vector<8x16x128xf32>
    %225 = arith.mulf %223, %224 : vector<8x16x128xf32>
    %226 = arith.addf %221, %225 : vector<8x16x128xf32>
    %227 = vector.extract_strided_slice %222 {offsets = [1, 0, 0], sizes = [8, 16, 128], strides = [1, 1, 1]} : vector<14x16x128xf32> to vector<8x16x128xf32>
    %228 = vector.broadcast %41 : vector<1x1x128xf32> to vector<8x16x128xf32>
    %229 = arith.mulf %227, %228 : vector<8x16x128xf32>
    %230 = arith.addf %226, %229 : vector<8x16x128xf32>
    %231 = vector.extract_strided_slice %222 {offsets = [2, 0, 0], sizes = [8, 16, 128], strides = [1, 1, 1]} : vector<14x16x128xf32> to vector<8x16x128xf32>
    %232 = vector.broadcast %62 : vector<1x1x128xf32> to vector<8x16x128xf32>
    %233 = arith.mulf %231, %232 : vector<8x16x128xf32>
    %234 = arith.addf %230, %233 : vector<8x16x128xf32>
    %235 = vector.extract_strided_slice %222 {offsets = [3, 0, 0], sizes = [8, 16, 128], strides = [1, 1, 1]} : vector<14x16x128xf32> to vector<8x16x128xf32>
    %236 = vector.broadcast %83 : vector<1x1x128xf32> to vector<8x16x128xf32>
    %237 = arith.mulf %235, %236 : vector<8x16x128xf32>
    %238 = arith.addf %234, %237 : vector<8x16x128xf32>
    %239 = vector.extract_strided_slice %222 {offsets = [4, 0, 0], sizes = [8, 16, 128], strides = [1, 1, 1]} : vector<14x16x128xf32> to vector<8x16x128xf32>
    %240 = vector.broadcast %104 : vector<1x1x128xf32> to vector<8x16x128xf32>
    %241 = arith.mulf %239, %240 : vector<8x16x128xf32>
    %242 = arith.addf %238, %241 : vector<8x16x128xf32>
    %243 = vector.extract_strided_slice %222 {offsets = [5, 0, 0], sizes = [8, 16, 128], strides = [1, 1, 1]} : vector<14x16x128xf32> to vector<8x16x128xf32>
    %244 = vector.broadcast %125 : vector<1x1x128xf32> to vector<8x16x128xf32>
    %245 = arith.mulf %243, %244 : vector<8x16x128xf32>
    %246 = arith.addf %242, %245 : vector<8x16x128xf32>
    %247 = vector.extract_strided_slice %222 {offsets = [6, 0, 0], sizes = [8, 16, 128], strides = [1, 1, 1]} : vector<14x16x128xf32> to vector<8x16x128xf32>
    %248 = vector.broadcast %146 : vector<1x1x128xf32> to vector<8x16x128xf32>
    %249 = arith.mulf %247, %248 : vector<8x16x128xf32>
    %250 = arith.addf %246, %249 : vector<8x16x128xf32>
    %c0_31 = arith.constant 0 : index
    %c8_32 = arith.constant 8 : index
    %c0_33 = arith.constant 0 : index
    %251 = vector.load %arg12[%c0_31, %c8_32, %c0_33] : memref<22x27x128xf32, #tpu.memory_space<vmem>>, vector<14x16x128xf32>
    %252 = vector.extract_strided_slice %251 {offsets = [0, 0, 0], sizes = [8, 16, 128], strides = [1, 1, 1]} : vector<14x16x128xf32> to vector<8x16x128xf32>
    %253 = vector.broadcast %23 : vector<1x1x128xf32> to vector<8x16x128xf32>
    %254 = arith.mulf %252, %253 : vector<8x16x128xf32>
    %255 = arith.addf %250, %254 : vector<8x16x128xf32>
    %256 = vector.extract_strided_slice %251 {offsets = [1, 0, 0], sizes = [8, 16, 128], strides = [1, 1, 1]} : vector<14x16x128xf32> to vector<8x16x128xf32>
    %257 = vector.broadcast %44 : vector<1x1x128xf32> to vector<8x16x128xf32>
    %258 = arith.mulf %256, %257 : vector<8x16x128xf32>
    %259 = arith.addf %255, %258 : vector<8x16x128xf32>
    %260 = vector.extract_strided_slice %251 {offsets = [2, 0, 0], sizes = [8, 16, 128], strides = [1, 1, 1]} : vector<14x16x128xf32> to vector<8x16x128xf32>
    %261 = vector.broadcast %65 : vector<1x1x128xf32> to vector<8x16x128xf32>
    %262 = arith.mulf %260, %261 : vector<8x16x128xf32>
    %263 = arith.addf %259, %262 : vector<8x16x128xf32>
    %264 = vector.extract_strided_slice %251 {offsets = [3, 0, 0], sizes = [8, 16, 128], strides = [1, 1, 1]} : vector<14x16x128xf32> to vector<8x16x128xf32>
    %265 = vector.broadcast %86 : vector<1x1x128xf32> to vector<8x16x128xf32>
    %266 = arith.mulf %264, %265 : vector<8x16x128xf32>
    %267 = arith.addf %263, %266 : vector<8x16x128xf32>
    %268 = vector.extract_strided_slice %251 {offsets = [4, 0, 0], sizes = [8, 16, 128], strides = [1, 1, 1]} : vector<14x16x128xf32> to vector<8x16x128xf32>
    %269 = vector.broadcast %107 : vector<1x1x128xf32> to vector<8x16x128xf32>
    %270 = arith.mulf %268, %269 : vector<8x16x128xf32>
    %271 = arith.addf %267, %270 : vector<8x16x128xf32>
    %272 = vector.extract_strided_slice %251 {offsets = [5, 0, 0], sizes = [8, 16, 128], strides = [1, 1, 1]} : vector<14x16x128xf32> to vector<8x16x128xf32>
    %273 = vector.broadcast %128 : vector<1x1x128xf32> to vector<8x16x128xf32>
    %274 = arith.mulf %272, %273 : vector<8x16x128xf32>
    %275 = arith.addf %271, %274 : vector<8x16x128xf32>
    %276 = vector.extract_strided_slice %251 {offsets = [6, 0, 0], sizes = [8, 16, 128], strides = [1, 1, 1]} : vector<14x16x128xf32> to vector<8x16x128xf32>
    %277 = vector.broadcast %149 : vector<1x1x128xf32> to vector<8x16x128xf32>
    %278 = arith.mulf %276, %277 : vector<8x16x128xf32>
    %279 = arith.addf %275, %278 : vector<8x16x128xf32>
    %c0_34 = arith.constant 0 : index
    %c9 = arith.constant 9 : index
    %c0_35 = arith.constant 0 : index
    %280 = vector.load %arg12[%c0_34, %c9, %c0_35] : memref<22x27x128xf32, #tpu.memory_space<vmem>>, vector<14x16x128xf32>
    %281 = vector.extract_strided_slice %280 {offsets = [0, 0, 0], sizes = [8, 16, 128], strides = [1, 1, 1]} : vector<14x16x128xf32> to vector<8x16x128xf32>
    %282 = vector.broadcast %26 : vector<1x1x128xf32> to vector<8x16x128xf32>
    %283 = arith.mulf %281, %282 : vector<8x16x128xf32>
    %284 = arith.addf %279, %283 : vector<8x16x128xf32>
    %285 = vector.extract_strided_slice %280 {offsets = [1, 0, 0], sizes = [8, 16, 128], strides = [1, 1, 1]} : vector<14x16x128xf32> to vector<8x16x128xf32>
    %286 = vector.broadcast %47 : vector<1x1x128xf32> to vector<8x16x128xf32>
    %287 = arith.mulf %285, %286 : vector<8x16x128xf32>
    %288 = arith.addf %284, %287 : vector<8x16x128xf32>
    %289 = vector.extract_strided_slice %280 {offsets = [2, 0, 0], sizes = [8, 16, 128], strides = [1, 1, 1]} : vector<14x16x128xf32> to vector<8x16x128xf32>
    %290 = vector.broadcast %68 : vector<1x1x128xf32> to vector<8x16x128xf32>
    %291 = arith.mulf %289, %290 : vector<8x16x128xf32>
    %292 = arith.addf %288, %291 : vector<8x16x128xf32>
    %293 = vector.extract_strided_slice %280 {offsets = [3, 0, 0], sizes = [8, 16, 128], strides = [1, 1, 1]} : vector<14x16x128xf32> to vector<8x16x128xf32>
    %294 = vector.broadcast %89 : vector<1x1x128xf32> to vector<8x16x128xf32>
    %295 = arith.mulf %293, %294 : vector<8x16x128xf32>
    %296 = arith.addf %292, %295 : vector<8x16x128xf32>
    %297 = vector.extract_strided_slice %280 {offsets = [4, 0, 0], sizes = [8, 16, 128], strides = [1, 1, 1]} : vector<14x16x128xf32> to vector<8x16x128xf32>
    %298 = vector.broadcast %110 : vector<1x1x128xf32> to vector<8x16x128xf32>
    %299 = arith.mulf %297, %298 : vector<8x16x128xf32>
    %300 = arith.addf %296, %299 : vector<8x16x128xf32>
    %301 = vector.extract_strided_slice %280 {offsets = [5, 0, 0], sizes = [8, 16, 128], strides = [1, 1, 1]} : vector<14x16x128xf32> to vector<8x16x128xf32>
    %302 = vector.broadcast %131 : vector<1x1x128xf32> to vector<8x16x128xf32>
    %303 = arith.mulf %301, %302 : vector<8x16x128xf32>
    %304 = arith.addf %300, %303 : vector<8x16x128xf32>
    %305 = vector.extract_strided_slice %280 {offsets = [6, 0, 0], sizes = [8, 16, 128], strides = [1, 1, 1]} : vector<14x16x128xf32> to vector<8x16x128xf32>
    %306 = vector.broadcast %152 : vector<1x1x128xf32> to vector<8x16x128xf32>
    %307 = arith.mulf %305, %306 : vector<8x16x128xf32>
    %308 = arith.addf %304, %307 : vector<8x16x128xf32>
    %c0_36 = arith.constant 0 : index
    %c10 = arith.constant 10 : index
    %c0_37 = arith.constant 0 : index
    %309 = vector.load %arg12[%c0_36, %c10, %c0_37] : memref<22x27x128xf32, #tpu.memory_space<vmem>>, vector<14x16x128xf32>
    %310 = vector.extract_strided_slice %309 {offsets = [0, 0, 0], sizes = [8, 16, 128], strides = [1, 1, 1]} : vector<14x16x128xf32> to vector<8x16x128xf32>
    %311 = vector.broadcast %29 : vector<1x1x128xf32> to vector<8x16x128xf32>
    %312 = arith.mulf %310, %311 : vector<8x16x128xf32>
    %313 = arith.addf %308, %312 : vector<8x16x128xf32>
    %314 = vector.extract_strided_slice %309 {offsets = [1, 0, 0], sizes = [8, 16, 128], strides = [1, 1, 1]} : vector<14x16x128xf32> to vector<8x16x128xf32>
    %315 = vector.broadcast %50 : vector<1x1x128xf32> to vector<8x16x128xf32>
    %316 = arith.mulf %314, %315 : vector<8x16x128xf32>
    %317 = arith.addf %313, %316 : vector<8x16x128xf32>
    %318 = vector.extract_strided_slice %309 {offsets = [2, 0, 0], sizes = [8, 16, 128], strides = [1, 1, 1]} : vector<14x16x128xf32> to vector<8x16x128xf32>
    %319 = vector.broadcast %71 : vector<1x1x128xf32> to vector<8x16x128xf32>
    %320 = arith.mulf %318, %319 : vector<8x16x128xf32>
    %321 = arith.addf %317, %320 : vector<8x16x128xf32>
    %322 = vector.extract_strided_slice %309 {offsets = [3, 0, 0], sizes = [8, 16, 128], strides = [1, 1, 1]} : vector<14x16x128xf32> to vector<8x16x128xf32>
    %323 = vector.broadcast %92 : vector<1x1x128xf32> to vector<8x16x128xf32>
    %324 = arith.mulf %322, %323 : vector<8x16x128xf32>
    %325 = arith.addf %321, %324 : vector<8x16x128xf32>
    %326 = vector.extract_strided_slice %309 {offsets = [4, 0, 0], sizes = [8, 16, 128], strides = [1, 1, 1]} : vector<14x16x128xf32> to vector<8x16x128xf32>
    %327 = vector.broadcast %113 : vector<1x1x128xf32> to vector<8x16x128xf32>
    %328 = arith.mulf %326, %327 : vector<8x16x128xf32>
    %329 = arith.addf %325, %328 : vector<8x16x128xf32>
    %330 = vector.extract_strided_slice %309 {offsets = [5, 0, 0], sizes = [8, 16, 128], strides = [1, 1, 1]} : vector<14x16x128xf32> to vector<8x16x128xf32>
    %331 = vector.broadcast %134 : vector<1x1x128xf32> to vector<8x16x128xf32>
    %332 = arith.mulf %330, %331 : vector<8x16x128xf32>
    %333 = arith.addf %329, %332 : vector<8x16x128xf32>
    %334 = vector.extract_strided_slice %309 {offsets = [6, 0, 0], sizes = [8, 16, 128], strides = [1, 1, 1]} : vector<14x16x128xf32> to vector<8x16x128xf32>
    %335 = vector.broadcast %155 : vector<1x1x128xf32> to vector<8x16x128xf32>
    %336 = arith.mulf %334, %335 : vector<8x16x128xf32>
    %337 = arith.addf %333, %336 : vector<8x16x128xf32>
    %c0_38 = arith.constant 0 : index
    %c11 = arith.constant 11 : index
    %c0_39 = arith.constant 0 : index
    %338 = vector.load %arg12[%c0_38, %c11, %c0_39] : memref<22x27x128xf32, #tpu.memory_space<vmem>>, vector<14x16x128xf32>
    %339 = vector.extract_strided_slice %338 {offsets = [0, 0, 0], sizes = [8, 16, 128], strides = [1, 1, 1]} : vector<14x16x128xf32> to vector<8x16x128xf32>
    %340 = vector.broadcast %32 : vector<1x1x128xf32> to vector<8x16x128xf32>
    %341 = arith.mulf %339, %340 : vector<8x16x128xf32>
    %342 = arith.addf %337, %341 : vector<8x16x128xf32>
    %343 = vector.extract_strided_slice %338 {offsets = [1, 0, 0], sizes = [8, 16, 128], strides = [1, 1, 1]} : vector<14x16x128xf32> to vector<8x16x128xf32>
    %344 = vector.broadcast %53 : vector<1x1x128xf32> to vector<8x16x128xf32>
    %345 = arith.mulf %343, %344 : vector<8x16x128xf32>
    %346 = arith.addf %342, %345 : vector<8x16x128xf32>
    %347 = vector.extract_strided_slice %338 {offsets = [2, 0, 0], sizes = [8, 16, 128], strides = [1, 1, 1]} : vector<14x16x128xf32> to vector<8x16x128xf32>
    %348 = vector.broadcast %74 : vector<1x1x128xf32> to vector<8x16x128xf32>
    %349 = arith.mulf %347, %348 : vector<8x16x128xf32>
    %350 = arith.addf %346, %349 : vector<8x16x128xf32>
    %351 = vector.extract_strided_slice %338 {offsets = [3, 0, 0], sizes = [8, 16, 128], strides = [1, 1, 1]} : vector<14x16x128xf32> to vector<8x16x128xf32>
    %352 = vector.broadcast %95 : vector<1x1x128xf32> to vector<8x16x128xf32>
    %353 = arith.mulf %351, %352 : vector<8x16x128xf32>
    %354 = arith.addf %350, %353 : vector<8x16x128xf32>
    %355 = vector.extract_strided_slice %338 {offsets = [4, 0, 0], sizes = [8, 16, 128], strides = [1, 1, 1]} : vector<14x16x128xf32> to vector<8x16x128xf32>
    %356 = vector.broadcast %116 : vector<1x1x128xf32> to vector<8x16x128xf32>
    %357 = arith.mulf %355, %356 : vector<8x16x128xf32>
    %358 = arith.addf %354, %357 : vector<8x16x128xf32>
    %359 = vector.extract_strided_slice %338 {offsets = [5, 0, 0], sizes = [8, 16, 128], strides = [1, 1, 1]} : vector<14x16x128xf32> to vector<8x16x128xf32>
    %360 = vector.broadcast %137 : vector<1x1x128xf32> to vector<8x16x128xf32>
    %361 = arith.mulf %359, %360 : vector<8x16x128xf32>
    %362 = arith.addf %358, %361 : vector<8x16x128xf32>
    %363 = vector.extract_strided_slice %338 {offsets = [6, 0, 0], sizes = [8, 16, 128], strides = [1, 1, 1]} : vector<14x16x128xf32> to vector<8x16x128xf32>
    %364 = vector.broadcast %158 : vector<1x1x128xf32> to vector<8x16x128xf32>
    %365 = arith.mulf %363, %364 : vector<8x16x128xf32>
    %366 = arith.addf %362, %365 : vector<8x16x128xf32>
    %367 = vector.broadcast %160 : vector<1x1x128xf32> to vector<8x16x128xf32>
    %368 = arith.addf %366, %367 : vector<8x16x128xf32>
    %c0_40 = arith.constant 0 : index
    %c0_41 = arith.constant 0 : index
    %c0_42 = arith.constant 0 : index
    %369 = vector.load %arg13[%c0_40, %c0_41, %c0_42] : memref<16x16x128xf32, #tpu.memory_space<vmem>>, vector<8x16x128xf32>
    tpu.vector_store %arg13[%c0_40, %c0_41, %c0_42], %368 {strides = array<i32>} : memref<16x16x128xf32, #tpu.memory_space<vmem>>, vector<8x16x128xf32>,
    %cst_43 = arith.constant dense<0.000000e+00> : vector<16x128xf32>
    %370 = vector.multi_reduction <add>, %368, %cst_43 [0] : vector<8x16x128xf32> to vector<16x128xf32>
    %371 = vector.shape_cast %370 : vector<16x128xf32> to vector<1x16x128xf32>
    %cst_44 = arith.constant dense<0.000000e+00> : vector<1xf32>
    %372 = vector.multi_reduction <add>, %371, %cst_44 [1, 2] : vector<1x16x128xf32> to vector<1xf32>
    %373 = vector.shape_cast %372 : vector<1xf32> to vector<1x1x1xf32>
    %374 = vector.extract %373[0, 0, 0] : f32 from vector<1x1x1xf32>
    %375 = vector.broadcast %374 : f32 to vector<1x1xf32>
    %376 = arith.addf %161, %375 : vector<1x1xf32>
    %377 = arith.mulf %368, %368 : vector<8x16x128xf32>
    %cst_45 = arith.constant dense<0.000000e+00> : vector<16x128xf32>
    %378 = vector.multi_reduction <add>, %377, %cst_45 [0] : vector<8x16x128xf32> to vector<16x128xf32>
    %379 = vector.shape_cast %378 : vector<16x128xf32> to vector<1x16x128xf32>
    %cst_46 = arith.constant dense<0.000000e+00> : vector<1xf32>
    %380 = vector.multi_reduction <add>, %379, %cst_46 [1, 2] : vector<1x16x128xf32> to vector<1xf32>
    %381 = vector.shape_cast %380 : vector<1xf32> to vector<1x1x1xf32>
    %382 = vector.extract %381[0, 0, 0] : f32 from vector<1x1x1xf32>
    %383 = vector.broadcast %382 : f32 to vector<1x1xf32>
    %384 = arith.addf %162, %383 : vector<1x1xf32>
    %cst_47 = arith.constant 0.000000e+00 : f32
    %385 = vector.broadcast %cst_47 : f32 to vector<8x16x128xf32>
    %c8_48 = arith.constant 8 : index
    %c5_49 = arith.constant 5 : index
    %c0_50 = arith.constant 0 : index
    %386 = vector.load %arg12[%c8_48, %c5_49, %c0_50] : memref<22x27x128xf32, #tpu.memory_space<vmem>>, vector<14x16x128xf32>
    %387 = vector.extract_strided_slice %386 {offsets = [0, 0, 0], sizes = [8, 16, 128], strides = [1, 1, 1]} : vector<14x16x128xf32> to vector<8x16x128xf32>
    %388 = vector.broadcast %14 : vector<1x1x128xf32> to vector<8x16x128xf32>
    %389 = arith.mulf %387, %388 : vector<8x16x128xf32>
    %390 = arith.addf %385, %389 : vector<8x16x128xf32>
    %391 = vector.extract_strided_slice %386 {offsets = [1, 0, 0], sizes = [8, 16, 128], strides = [1, 1, 1]} : vector<14x16x128xf32> to vector<8x16x128xf32>
    %392 = vector.broadcast %35 : vector<1x1x128xf32> to vector<8x16x128xf32>
    %393 = arith.mulf %391, %392 : vector<8x16x128xf32>
    %394 = arith.addf %390, %393 : vector<8x16x128xf32>
    %395 = vector.extract_strided_slice %386 {offsets = [2, 0, 0], sizes = [8, 16, 128], strides = [1, 1, 1]} : vector<14x16x128xf32> to vector<8x16x128xf32>
    %396 = vector.broadcast %56 : vector<1x1x128xf32> to vector<8x16x128xf32>
    %397 = arith.mulf %395, %396 : vector<8x16x128xf32>
    %398 = arith.addf %394, %397 : vector<8x16x128xf32>
    %399 = vector.extract_strided_slice %386 {offsets = [3, 0, 0], sizes = [8, 16, 128], strides = [1, 1, 1]} : vector<14x16x128xf32> to vector<8x16x128xf32>
    %400 = vector.broadcast %77 : vector<1x1x128xf32> to vector<8x16x128xf32>
    %401 = arith.mulf %399, %400 : vector<8x16x128xf32>
    %402 = arith.addf %398, %401 : vector<8x16x128xf32>
    %403 = vector.extract_strided_slice %386 {offsets = [4, 0, 0], sizes = [8, 16, 128], strides = [1, 1, 1]} : vector<14x16x128xf32> to vector<8x16x128xf32>
    %404 = vector.broadcast %98 : vector<1x1x128xf32> to vector<8x16x128xf32>
    %405 = arith.mulf %403, %404 : vector<8x16x128xf32>
    %406 = arith.addf %402, %405 : vector<8x16x128xf32>
    %407 = vector.extract_strided_slice %386 {offsets = [5, 0, 0], sizes = [8, 16, 128], strides = [1, 1, 1]} : vector<14x16x128xf32> to vector<8x16x128xf32>
    %408 = vector.broadcast %119 : vector<1x1x128xf32> to vector<8x16x128xf32>
    %409 = arith.mulf %407, %408 : vector<8x16x128xf32>
    %410 = arith.addf %406, %409 : vector<8x16x128xf32>
    %411 = vector.extract_strided_slice %386 {offsets = [6, 0, 0], sizes = [8, 16, 128], strides = [1, 1, 1]} : vector<14x16x128xf32> to vector<8x16x128xf32>
    %412 = vector.broadcast %140 : vector<1x1x128xf32> to vector<8x16x128xf32>
    %413 = arith.mulf %411, %412 : vector<8x16x128xf32>
    %414 = arith.addf %410, %413 : vector<8x16x128xf32>
    %c8_51 = arith.constant 8 : index
    %c6_52 = arith.constant 6 : index
    %c0_53 = arith.constant 0 : index
    %415 = vector.load %arg12[%c8_51, %c6_52, %c0_53] : memref<22x27x128xf32, #tpu.memory_space<vmem>>, vector<14x16x128xf32>
    %416 = vector.extract_strided_slice %415 {offsets = [0, 0, 0], sizes = [8, 16, 128], strides = [1, 1, 1]} : vector<14x16x128xf32> to vector<8x16x128xf32>
    %417 = vector.broadcast %17 : vector<1x1x128xf32> to vector<8x16x128xf32>
    %418 = arith.mulf %416, %417 : vector<8x16x128xf32>
    %419 = arith.addf %414, %418 : vector<8x16x128xf32>
    %420 = vector.extract_strided_slice %415 {offsets = [1, 0, 0], sizes = [8, 16, 128], strides = [1, 1, 1]} : vector<14x16x128xf32> to vector<8x16x128xf32>
    %421 = vector.broadcast %38 : vector<1x1x128xf32> to vector<8x16x128xf32>
    %422 = arith.mulf %420, %421 : vector<8x16x128xf32>
    %423 = arith.addf %419, %422 : vector<8x16x128xf32>
    %424 = vector.extract_strided_slice %415 {offsets = [2, 0, 0], sizes = [8, 16, 128], strides = [1, 1, 1]} : vector<14x16x128xf32> to vector<8x16x128xf32>
    %425 = vector.broadcast %59 : vector<1x1x128xf32> to vector<8x16x128xf32>
    %426 = arith.mulf %424, %425 : vector<8x16x128xf32>
    %427 = arith.addf %423, %426 : vector<8x16x128xf32>
    %428 = vector.extract_strided_slice %415 {offsets = [3, 0, 0], sizes = [8, 16, 128], strides = [1, 1, 1]} : vector<14x16x128xf32> to vector<8x16x128xf32>
    %429 = vector.broadcast %80 : vector<1x1x128xf32> to vector<8x16x128xf32>
    %430 = arith.mulf %428, %429 : vector<8x16x128xf32>
    %431 = arith.addf %427, %430 : vector<8x16x128xf32>
    %432 = vector.extract_strided_slice %415 {offsets = [4, 0, 0], sizes = [8, 16, 128], strides = [1, 1, 1]} : vector<14x16x128xf32> to vector<8x16x128xf32>
    %433 = vector.broadcast %101 : vector<1x1x128xf32> to vector<8x16x128xf32>
    %434 = arith.mulf %432, %433 : vector<8x16x128xf32>
    %435 = arith.addf %431, %434 : vector<8x16x128xf32>
    %436 = vector.extract_strided_slice %415 {offsets = [5, 0, 0], sizes = [8, 16, 128], strides = [1, 1, 1]} : vector<14x16x128xf32> to vector<8x16x128xf32>
    %437 = vector.broadcast %122 : vector<1x1x128xf32> to vector<8x16x128xf32>
    %438 = arith.mulf %436, %437 : vector<8x16x128xf32>
    %439 = arith.addf %435, %438 : vector<8x16x128xf32>
    %440 = vector.extract_strided_slice %415 {offsets = [6, 0, 0], sizes = [8, 16, 128], strides = [1, 1, 1]} : vector<14x16x128xf32> to vector<8x16x128xf32>
    %441 = vector.broadcast %143 : vector<1x1x128xf32> to vector<8x16x128xf32>
    %442 = arith.mulf %440, %441 : vector<8x16x128xf32>
    %443 = arith.addf %439, %442 : vector<8x16x128xf32>
    %c8_54 = arith.constant 8 : index
    %c7_55 = arith.constant 7 : index
    %c0_56 = arith.constant 0 : index
    %444 = vector.load %arg12[%c8_54, %c7_55, %c0_56] : memref<22x27x128xf32, #tpu.memory_space<vmem>>, vector<14x16x128xf32>
    %445 = vector.extract_strided_slice %444 {offsets = [0, 0, 0], sizes = [8, 16, 128], strides = [1, 1, 1]} : vector<14x16x128xf32> to vector<8x16x128xf32>
    %446 = vector.broadcast %20 : vector<1x1x128xf32> to vector<8x16x128xf32>
    %447 = arith.mulf %445, %446 : vector<8x16x128xf32>
    %448 = arith.addf %443, %447 : vector<8x16x128xf32>
    %449 = vector.extract_strided_slice %444 {offsets = [1, 0, 0], sizes = [8, 16, 128], strides = [1, 1, 1]} : vector<14x16x128xf32> to vector<8x16x128xf32>
    %450 = vector.broadcast %41 : vector<1x1x128xf32> to vector<8x16x128xf32>
    %451 = arith.mulf %449, %450 : vector<8x16x128xf32>
    %452 = arith.addf %448, %451 : vector<8x16x128xf32>
    %453 = vector.extract_strided_slice %444 {offsets = [2, 0, 0], sizes = [8, 16, 128], strides = [1, 1, 1]} : vector<14x16x128xf32> to vector<8x16x128xf32>
    %454 = vector.broadcast %62 : vector<1x1x128xf32> to vector<8x16x128xf32>
    %455 = arith.mulf %453, %454 : vector<8x16x128xf32>
    %456 = arith.addf %452, %455 : vector<8x16x128xf32>
    %457 = vector.extract_strided_slice %444 {offsets = [3, 0, 0], sizes = [8, 16, 128], strides = [1, 1, 1]} : vector<14x16x128xf32> to vector<8x16x128xf32>
    %458 = vector.broadcast %83 : vector<1x1x128xf32> to vector<8x16x128xf32>
    %459 = arith.mulf %457, %458 : vector<8x16x128xf32>
    %460 = arith.addf %456, %459 : vector<8x16x128xf32>
    %461 = vector.extract_strided_slice %444 {offsets = [4, 0, 0], sizes = [8, 16, 128], strides = [1, 1, 1]} : vector<14x16x128xf32> to vector<8x16x128xf32>
    %462 = vector.broadcast %104 : vector<1x1x128xf32> to vector<8x16x128xf32>
    %463 = arith.mulf %461, %462 : vector<8x16x128xf32>
    %464 = arith.addf %460, %463 : vector<8x16x128xf32>
    %465 = vector.extract_strided_slice %444 {offsets = [5, 0, 0], sizes = [8, 16, 128], strides = [1, 1, 1]} : vector<14x16x128xf32> to vector<8x16x128xf32>
    %466 = vector.broadcast %125 : vector<1x1x128xf32> to vector<8x16x128xf32>
    %467 = arith.mulf %465, %466 : vector<8x16x128xf32>
    %468 = arith.addf %464, %467 : vector<8x16x128xf32>
    %469 = vector.extract_strided_slice %444 {offsets = [6, 0, 0], sizes = [8, 16, 128], strides = [1, 1, 1]} : vector<14x16x128xf32> to vector<8x16x128xf32>
    %470 = vector.broadcast %146 : vector<1x1x128xf32> to vector<8x16x128xf32>
    %471 = arith.mulf %469, %470 : vector<8x16x128xf32>
    %472 = arith.addf %468, %471 : vector<8x16x128xf32>
    %c8_57 = arith.constant 8 : index
    %c8_58 = arith.constant 8 : index
    %c0_59 = arith.constant 0 : index
    %473 = vector.load %arg12[%c8_57, %c8_58, %c0_59] : memref<22x27x128xf32, #tpu.memory_space<vmem>>, vector<14x16x128xf32>
    %474 = vector.extract_strided_slice %473 {offsets = [0, 0, 0], sizes = [8, 16, 128], strides = [1, 1, 1]} : vector<14x16x128xf32> to vector<8x16x128xf32>
    %475 = vector.broadcast %23 : vector<1x1x128xf32> to vector<8x16x128xf32>
    %476 = arith.mulf %474, %475 : vector<8x16x128xf32>
    %477 = arith.addf %472, %476 : vector<8x16x128xf32>
    %478 = vector.extract_strided_slice %473 {offsets = [1, 0, 0], sizes = [8, 16, 128], strides = [1, 1, 1]} : vector<14x16x128xf32> to vector<8x16x128xf32>
    %479 = vector.broadcast %44 : vector<1x1x128xf32> to vector<8x16x128xf32>
    %480 = arith.mulf %478, %479 : vector<8x16x128xf32>
    %481 = arith.addf %477, %480 : vector<8x16x128xf32>
    %482 = vector.extract_strided_slice %473 {offsets = [2, 0, 0], sizes = [8, 16, 128], strides = [1, 1, 1]} : vector<14x16x128xf32> to vector<8x16x128xf32>
    %483 = vector.broadcast %65 : vector<1x1x128xf32> to vector<8x16x128xf32>
    %484 = arith.mulf %482, %483 : vector<8x16x128xf32>
    %485 = arith.addf %481, %484 : vector<8x16x128xf32>
    %486 = vector.extract_strided_slice %473 {offsets = [3, 0, 0], sizes = [8, 16, 128], strides = [1, 1, 1]} : vector<14x16x128xf32> to vector<8x16x128xf32>
    %487 = vector.broadcast %86 : vector<1x1x128xf32> to vector<8x16x128xf32>
    %488 = arith.mulf %486, %487 : vector<8x16x128xf32>
    %489 = arith.addf %485, %488 : vector<8x16x128xf32>
    %490 = vector.extract_strided_slice %473 {offsets = [4, 0, 0], sizes = [8, 16, 128], strides = [1, 1, 1]} : vector<14x16x128xf32> to vector<8x16x128xf32>
    %491 = vector.broadcast %107 : vector<1x1x128xf32> to vector<8x16x128xf32>
    %492 = arith.mulf %490, %491 : vector<8x16x128xf32>
    %493 = arith.addf %489, %492 : vector<8x16x128xf32>
    %494 = vector.extract_strided_slice %473 {offsets = [5, 0, 0], sizes = [8, 16, 128], strides = [1, 1, 1]} : vector<14x16x128xf32> to vector<8x16x128xf32>
    %495 = vector.broadcast %128 : vector<1x1x128xf32> to vector<8x16x128xf32>
    %496 = arith.mulf %494, %495 : vector<8x16x128xf32>
    %497 = arith.addf %493, %496 : vector<8x16x128xf32>
    %498 = vector.extract_strided_slice %473 {offsets = [6, 0, 0], sizes = [8, 16, 128], strides = [1, 1, 1]} : vector<14x16x128xf32> to vector<8x16x128xf32>
    %499 = vector.broadcast %149 : vector<1x1x128xf32> to vector<8x16x128xf32>
    %500 = arith.mulf %498, %499 : vector<8x16x128xf32>
    %501 = arith.addf %497, %500 : vector<8x16x128xf32>
    %c8_60 = arith.constant 8 : index
    %c9_61 = arith.constant 9 : index
    %c0_62 = arith.constant 0 : index
    %502 = vector.load %arg12[%c8_60, %c9_61, %c0_62] : memref<22x27x128xf32, #tpu.memory_space<vmem>>, vector<14x16x128xf32>
    %503 = vector.extract_strided_slice %502 {offsets = [0, 0, 0], sizes = [8, 16, 128], strides = [1, 1, 1]} : vector<14x16x128xf32> to vector<8x16x128xf32>
    %504 = vector.broadcast %26 : vector<1x1x128xf32> to vector<8x16x128xf32>
    %505 = arith.mulf %503, %504 : vector<8x16x128xf32>
    %506 = arith.addf %501, %505 : vector<8x16x128xf32>
    %507 = vector.extract_strided_slice %502 {offsets = [1, 0, 0], sizes = [8, 16, 128], strides = [1, 1, 1]} : vector<14x16x128xf32> to vector<8x16x128xf32>
    %508 = vector.broadcast %47 : vector<1x1x128xf32> to vector<8x16x128xf32>
    %509 = arith.mulf %507, %508 : vector<8x16x128xf32>
    %510 = arith.addf %506, %509 : vector<8x16x128xf32>
    %511 = vector.extract_strided_slice %502 {offsets = [2, 0, 0], sizes = [8, 16, 128], strides = [1, 1, 1]} : vector<14x16x128xf32> to vector<8x16x128xf32>
    %512 = vector.broadcast %68 : vector<1x1x128xf32> to vector<8x16x128xf32>
    %513 = arith.mulf %511, %512 : vector<8x16x128xf32>
    %514 = arith.addf %510, %513 : vector<8x16x128xf32>
    %515 = vector.extract_strided_slice %502 {offsets = [3, 0, 0], sizes = [8, 16, 128], strides = [1, 1, 1]} : vector<14x16x128xf32> to vector<8x16x128xf32>
    %516 = vector.broadcast %89 : vector<1x1x128xf32> to vector<8x16x128xf32>
    %517 = arith.mulf %515, %516 : vector<8x16x128xf32>
    %518 = arith.addf %514, %517 : vector<8x16x128xf32>
    %519 = vector.extract_strided_slice %502 {offsets = [4, 0, 0], sizes = [8, 16, 128], strides = [1, 1, 1]} : vector<14x16x128xf32> to vector<8x16x128xf32>
    %520 = vector.broadcast %110 : vector<1x1x128xf32> to vector<8x16x128xf32>
    %521 = arith.mulf %519, %520 : vector<8x16x128xf32>
    %522 = arith.addf %518, %521 : vector<8x16x128xf32>
    %523 = vector.extract_strided_slice %502 {offsets = [5, 0, 0], sizes = [8, 16, 128], strides = [1, 1, 1]} : vector<14x16x128xf32> to vector<8x16x128xf32>
    %524 = vector.broadcast %131 : vector<1x1x128xf32> to vector<8x16x128xf32>
    %525 = arith.mulf %523, %524 : vector<8x16x128xf32>
    %526 = arith.addf %522, %525 : vector<8x16x128xf32>
    %527 = vector.extract_strided_slice %502 {offsets = [6, 0, 0], sizes = [8, 16, 128], strides = [1, 1, 1]} : vector<14x16x128xf32> to vector<8x16x128xf32>
    %528 = vector.broadcast %152 : vector<1x1x128xf32> to vector<8x16x128xf32>
    %529 = arith.mulf %527, %528 : vector<8x16x128xf32>
    %530 = arith.addf %526, %529 : vector<8x16x128xf32>
    %c8_63 = arith.constant 8 : index
    %c10_64 = arith.constant 10 : index
    %c0_65 = arith.constant 0 : index
    %531 = vector.load %arg12[%c8_63, %c10_64, %c0_65] : memref<22x27x128xf32, #tpu.memory_space<vmem>>, vector<14x16x128xf32>
    %532 = vector.extract_strided_slice %531 {offsets = [0, 0, 0], sizes = [8, 16, 128], strides = [1, 1, 1]} : vector<14x16x128xf32> to vector<8x16x128xf32>
    %533 = vector.broadcast %29 : vector<1x1x128xf32> to vector<8x16x128xf32>
    %534 = arith.mulf %532, %533 : vector<8x16x128xf32>
    %535 = arith.addf %530, %534 : vector<8x16x128xf32>
    %536 = vector.extract_strided_slice %531 {offsets = [1, 0, 0], sizes = [8, 16, 128], strides = [1, 1, 1]} : vector<14x16x128xf32> to vector<8x16x128xf32>
    %537 = vector.broadcast %50 : vector<1x1x128xf32> to vector<8x16x128xf32>
    %538 = arith.mulf %536, %537 : vector<8x16x128xf32>
    %539 = arith.addf %535, %538 : vector<8x16x128xf32>
    %540 = vector.extract_strided_slice %531 {offsets = [2, 0, 0], sizes = [8, 16, 128], strides = [1, 1, 1]} : vector<14x16x128xf32> to vector<8x16x128xf32>
    %541 = vector.broadcast %71 : vector<1x1x128xf32> to vector<8x16x128xf32>
    %542 = arith.mulf %540, %541 : vector<8x16x128xf32>
    %543 = arith.addf %539, %542 : vector<8x16x128xf32>
    %544 = vector.extract_strided_slice %531 {offsets = [3, 0, 0], sizes = [8, 16, 128], strides = [1, 1, 1]} : vector<14x16x128xf32> to vector<8x16x128xf32>
    %545 = vector.broadcast %92 : vector<1x1x128xf32> to vector<8x16x128xf32>
    %546 = arith.mulf %544, %545 : vector<8x16x128xf32>
    %547 = arith.addf %543, %546 : vector<8x16x128xf32>
    %548 = vector.extract_strided_slice %531 {offsets = [4, 0, 0], sizes = [8, 16, 128], strides = [1, 1, 1]} : vector<14x16x128xf32> to vector<8x16x128xf32>
    %549 = vector.broadcast %113 : vector<1x1x128xf32> to vector<8x16x128xf32>
    %550 = arith.mulf %548, %549 : vector<8x16x128xf32>
    %551 = arith.addf %547, %550 : vector<8x16x128xf32>
    %552 = vector.extract_strided_slice %531 {offsets = [5, 0, 0], sizes = [8, 16, 128], strides = [1, 1, 1]} : vector<14x16x128xf32> to vector<8x16x128xf32>
    %553 = vector.broadcast %134 : vector<1x1x128xf32> to vector<8x16x128xf32>
    %554 = arith.mulf %552, %553 : vector<8x16x128xf32>
    %555 = arith.addf %551, %554 : vector<8x16x128xf32>
    %556 = vector.extract_strided_slice %531 {offsets = [6, 0, 0], sizes = [8, 16, 128], strides = [1, 1, 1]} : vector<14x16x128xf32> to vector<8x16x128xf32>
    %557 = vector.broadcast %155 : vector<1x1x128xf32> to vector<8x16x128xf32>
    %558 = arith.mulf %556, %557 : vector<8x16x128xf32>
    %559 = arith.addf %555, %558 : vector<8x16x128xf32>
    %c8_66 = arith.constant 8 : index
    %c11_67 = arith.constant 11 : index
    %c0_68 = arith.constant 0 : index
    %560 = vector.load %arg12[%c8_66, %c11_67, %c0_68] : memref<22x27x128xf32, #tpu.memory_space<vmem>>, vector<14x16x128xf32>
    %561 = vector.extract_strided_slice %560 {offsets = [0, 0, 0], sizes = [8, 16, 128], strides = [1, 1, 1]} : vector<14x16x128xf32> to vector<8x16x128xf32>
    %562 = vector.broadcast %32 : vector<1x1x128xf32> to vector<8x16x128xf32>
    %563 = arith.mulf %561, %562 : vector<8x16x128xf32>
    %564 = arith.addf %559, %563 : vector<8x16x128xf32>
    %565 = vector.extract_strided_slice %560 {offsets = [1, 0, 0], sizes = [8, 16, 128], strides = [1, 1, 1]} : vector<14x16x128xf32> to vector<8x16x128xf32>
    %566 = vector.broadcast %53 : vector<1x1x128xf32> to vector<8x16x128xf32>
    %567 = arith.mulf %565, %566 : vector<8x16x128xf32>
    %568 = arith.addf %564, %567 : vector<8x16x128xf32>
    %569 = vector.extract_strided_slice %560 {offsets = [2, 0, 0], sizes = [8, 16, 128], strides = [1, 1, 1]} : vector<14x16x128xf32> to vector<8x16x128xf32>
    %570 = vector.broadcast %74 : vector<1x1x128xf32> to vector<8x16x128xf32>
    %571 = arith.mulf %569, %570 : vector<8x16x128xf32>
    %572 = arith.addf %568, %571 : vector<8x16x128xf32>
    %573 = vector.extract_strided_slice %560 {offsets = [3, 0, 0], sizes = [8, 16, 128], strides = [1, 1, 1]} : vector<14x16x128xf32> to vector<8x16x128xf32>
    %574 = vector.broadcast %95 : vector<1x1x128xf32> to vector<8x16x128xf32>
    %575 = arith.mulf %573, %574 : vector<8x16x128xf32>
    %576 = arith.addf %572, %575 : vector<8x16x128xf32>
    %577 = vector.extract_strided_slice %560 {offsets = [4, 0, 0], sizes = [8, 16, 128], strides = [1, 1, 1]} : vector<14x16x128xf32> to vector<8x16x128xf32>
    %578 = vector.broadcast %116 : vector<1x1x128xf32> to vector<8x16x128xf32>
    %579 = arith.mulf %577, %578 : vector<8x16x128xf32>
    %580 = arith.addf %576, %579 : vector<8x16x128xf32>
    %581 = vector.extract_strided_slice %560 {offsets = [5, 0, 0], sizes = [8, 16, 128], strides = [1, 1, 1]} : vector<14x16x128xf32> to vector<8x16x128xf32>
    %582 = vector.broadcast %137 : vector<1x1x128xf32> to vector<8x16x128xf32>
    %583 = arith.mulf %581, %582 : vector<8x16x128xf32>
    %584 = arith.addf %580, %583 : vector<8x16x128xf32>
    %585 = vector.extract_strided_slice %560 {offsets = [6, 0, 0], sizes = [8, 16, 128], strides = [1, 1, 1]} : vector<14x16x128xf32> to vector<8x16x128xf32>
    %586 = vector.broadcast %158 : vector<1x1x128xf32> to vector<8x16x128xf32>
    %587 = arith.mulf %585, %586 : vector<8x16x128xf32>
    %588 = arith.addf %584, %587 : vector<8x16x128xf32>
    %589 = vector.broadcast %160 : vector<1x1x128xf32> to vector<8x16x128xf32>
    %590 = arith.addf %588, %589 : vector<8x16x128xf32>
    %c8_69 = arith.constant 8 : index
    %c0_70 = arith.constant 0 : index
    %c0_71 = arith.constant 0 : index
    %591 = vector.load %arg13[%c8_69, %c0_70, %c0_71] : memref<16x16x128xf32, #tpu.memory_space<vmem>>, vector<8x16x128xf32>
    tpu.vector_store %arg13[%c8_69, %c0_70, %c0_71], %590 {strides = array<i32>} : memref<16x16x128xf32, #tpu.memory_space<vmem>>, vector<8x16x128xf32>,
    %cst_72 = arith.constant dense<0.000000e+00> : vector<16x128xf32>
    %592 = vector.multi_reduction <add>, %590, %cst_72 [0] : vector<8x16x128xf32> to vector<16x128xf32>
    %593 = vector.shape_cast %592 : vector<16x128xf32> to vector<1x16x128xf32>
    %cst_73 = arith.constant dense<0.000000e+00> : vector<1xf32>
    %594 = vector.multi_reduction <add>, %593, %cst_73 [1, 2] : vector<1x16x128xf32> to vector<1xf32>
    %595 = vector.shape_cast %594 : vector<1xf32> to vector<1x1x1xf32>
    %596 = vector.extract %595[0, 0, 0] : f32 from vector<1x1x1xf32>
    %597 = vector.broadcast %596 : f32 to vector<1x1xf32>
    %598 = arith.addf %376, %597 : vector<1x1xf32>
    %599 = arith.mulf %590, %590 : vector<8x16x128xf32>
    %cst_74 = arith.constant dense<0.000000e+00> : vector<16x128xf32>
    %600 = vector.multi_reduction <add>, %599, %cst_74 [0] : vector<8x16x128xf32> to vector<16x128xf32>
    %601 = vector.shape_cast %600 : vector<16x128xf32> to vector<1x16x128xf32>
    %cst_75 = arith.constant dense<0.000000e+00> : vector<1xf32>
    %602 = vector.multi_reduction <add>, %601, %cst_75 [1, 2] : vector<1x16x128xf32> to vector<1xf32>
    %603 = vector.shape_cast %602 : vector<1xf32> to vector<1x1x1xf32>
    %604 = vector.extract %603[0, 0, 0] : f32 from vector<1x1x1xf32>
    %605 = vector.broadcast %604 : f32 to vector<1x1xf32>
    %606 = arith.addf %384, %605 : vector<1x1xf32>
    %cst_76 = arith.constant 2.048000e+03 : f32
    %607 = vector.broadcast %cst_76 : f32 to vector<1x1xf32>
    %608 = arith.divf %598, %607 : vector<1x1xf32>
    %cst_77 = arith.constant 2.048000e+03 : f32
    %609 = vector.broadcast %cst_77 : f32 to vector<1x1xf32>
    %610 = arith.divf %606, %609 : vector<1x1xf32>
    %611 = arith.mulf %608, %608 : vector<1x1xf32>
    %612 = arith.subf %610, %611 : vector<1x1xf32>
    %cst_78 = arith.constant 9.99999974E-6 : f32
    %613 = vector.broadcast %cst_78 : f32 to vector<1x1xf32>
    %614 = arith.addf %612, %613 : vector<1x1xf32>
    %615 = math.rsqrt %614 : vector<1x1xf32>
    %c0_79 = arith.constant 0 : index
    %c0_80 = arith.constant 0 : index
    %616 = vector.load %arg4[%c0_79, %c0_80] : memref<1x128xf32, #tpu.memory_space<vmem>>, vector<1x128xf32>
    %617 = vector.broadcast %615 : vector<1x1xf32> to vector<1x128xf32>
    %618 = arith.mulf %616, %617 : vector<1x128xf32>
    %c0_81 = arith.constant 0 : index
    %c0_82 = arith.constant 0 : index
    %619 = vector.load %arg5[%c0_81, %c0_82] : memref<1x128xf32, #tpu.memory_space<vmem>>, vector<1x128xf32>
    %620 = vector.broadcast %608 : vector<1x1xf32> to vector<1x128xf32>
    %621 = arith.mulf %620, %618 : vector<1x128xf32>
    %622 = arith.subf %619, %621 : vector<1x128xf32>
    %c0_83 = arith.constant 0 : index
    %c0_84 = arith.constant 0 : index
    %623 = vector.load %arg6[%c0_83, %c0_84] : memref<128x128xbf16, #tpu.memory_space<vmem>>, vector<128x128xbf16>
    %c0_85 = arith.constant 0 : index
    %c0_86 = arith.constant 0 : index
    %624 = vector.load %arg7[%c0_85, %c0_86] : memref<1x128xf32, #tpu.memory_space<vmem>>, vector<1x128xf32>
    %c0_87 = arith.constant 0 : index
    %c0_88 = arith.constant 0 : index
    %625 = vector.load %arg8[%c0_87, %c0_88] : memref<128x128xbf16, #tpu.memory_space<vmem>>, vector<128x128xbf16>
    %c0_89 = arith.constant 0 : index
    %c0_90 = arith.constant 0 : index
    %626 = vector.load %arg9[%c0_89, %c0_90] : memref<1x128xf32, #tpu.memory_space<vmem>>, vector<1x128xf32>
    %c0_91 = arith.constant 0 : index
    %c0_92 = arith.constant 0 : index
    %627 = vector.load %arg10[%c0_91, %c0_92] : memref<1x128xf32, #tpu.memory_space<vmem>>, vector<1x128xf32>
    %c0_93 = arith.constant 0 : index
    %c0_94 = arith.constant 0 : index
    %c0_95 = arith.constant 0 : index
    %628 = vector.load %arg13[%c0_93, %c0_94, %c0_95] : memref<16x16x128xf32, #tpu.memory_space<vmem>>, vector<8x16x128xf32>
    %629 = vector.shape_cast %628 : vector<8x16x128xf32> to vector<128x128xf32>
    %630 = vector.broadcast %618 : vector<1x128xf32> to vector<128x128xf32>
    %631 = arith.mulf %629, %630 : vector<128x128xf32>
    %632 = vector.broadcast %622 : vector<1x128xf32> to vector<128x128xf32>
    %633 = arith.addf %631, %632 : vector<128x128xf32>
    %634 = arith.truncf %633 : vector<128x128xf32> to vector<128x128xbf16>
    %cst_96 = arith.constant dense<0.000000e+00> : vector<128x128xf32>
    %635 = tpu.matmul %634, %623, %cst_96 {dimension_numbers = #tpu.dot_dimension_numbers<[1], [0], [0], [1], [0, 0, 1, 1], [], []>} : vector<128x128xbf16>, vector<128x128xbf16>, vector<128x128xf32> -> vector<128x128xf32>
    %636 = vector.broadcast %624 : vector<1x128xf32> to vector<128x128xf32>
    %637 = arith.addf %635, %636 : vector<128x128xf32>
    %cst_97 = arith.constant 5.000000e-01 : f32
    %638 = vector.broadcast %cst_97 : f32 to vector<128x128xf32>
    %639 = arith.mulf %638, %637 : vector<128x128xf32>
    %640 = arith.mulf %637, %637 : vector<128x128xf32>
    %641 = arith.mulf %640, %637 : vector<128x128xf32>
    %cst_98 = arith.constant 4.471500e-02 : f32
    %642 = vector.broadcast %cst_98 : f32 to vector<128x128xf32>
    %643 = arith.mulf %642, %641 : vector<128x128xf32>
    %644 = arith.addf %637, %643 : vector<128x128xf32>
    %cst_99 = arith.constant 0.797884583 : f32
    %645 = vector.broadcast %cst_99 : f32 to vector<128x128xf32>
    %646 = arith.mulf %645, %644 : vector<128x128xf32>
    %647 = math.tanh %646 : vector<128x128xf32>
    %cst_100 = arith.constant 1.000000e+00 : f32
    %648 = vector.broadcast %cst_100 : f32 to vector<128x128xf32>
    %649 = arith.addf %648, %647 : vector<128x128xf32>
    %650 = arith.mulf %639, %649 : vector<128x128xf32>
    %651 = arith.truncf %650 : vector<128x128xf32> to vector<128x128xbf16>
    %cst_101 = arith.constant dense<0.000000e+00> : vector<128x128xf32>
    %652 = tpu.matmul %651, %625, %cst_101 {dimension_numbers = #tpu.dot_dimension_numbers<[1], [0], [0], [1], [0, 0, 1, 1], [], []>} : vector<128x128xbf16>, vector<128x128xbf16>, vector<128x128xf32> -> vector<128x128xf32>
    %653 = vector.broadcast %626 : vector<1x128xf32> to vector<128x128xf32>
    %654 = arith.addf %652, %653 : vector<128x128xf32>
    %655 = vector.broadcast %627 : vector<1x128xf32> to vector<128x128xf32>
    %656 = arith.mulf %654, %655 : vector<128x128xf32>
    %c0_102 = arith.constant 0 : index
    %c0_103 = arith.constant 0 : index
    %c0_104 = arith.constant 0 : index
    %c0_105 = arith.constant 0 : index
    %657 = vector.load %arg1[%c0_102, %c0_103, %c0_104, %c0_105] : memref<1x16x16x128xf32, #tpu.memory_space<vmem>>, vector<1x8x16x128xf32>
    %658 = vector.shape_cast %657 : vector<1x8x16x128xf32> to vector<8x16x128xf32>
    %659 = vector.shape_cast %658 : vector<8x16x128xf32> to vector<128x128xf32>
    %660 = arith.addf %659, %656 : vector<128x128xf32>
    %661 = vector.shape_cast %660 : vector<128x128xf32> to vector<8x16x128xf32>
    %c0_106 = arith.constant 0 : index
    %c0_107 = arith.constant 0 : index
    %c0_108 = arith.constant 0 : index
    %c0_109 = arith.constant 0 : index
    %662 = vector.load %arg11[%c0_106, %c0_107, %c0_108, %c0_109] : memref<1x16x16x128xf32, #tpu.memory_space<vmem>>, vector<1x8x16x128xf32>
    %663 = vector.shape_cast %662 : vector<1x8x16x128xf32> to vector<8x16x128xf32>
    %664 = vector.shape_cast %661 : vector<8x16x128xf32> to vector<1x8x16x128xf32>
    tpu.vector_store %arg11[%c0_106, %c0_107, %c0_108, %c0_109], %664 {strides = array<i32>} : memref<1x16x16x128xf32, #tpu.memory_space<vmem>>, vector<1x8x16x128xf32>,
    %c8_110 = arith.constant 8 : index
    %c0_111 = arith.constant 0 : index
    %c0_112 = arith.constant 0 : index
    %665 = vector.load %arg13[%c8_110, %c0_111, %c0_112] : memref<16x16x128xf32, #tpu.memory_space<vmem>>, vector<8x16x128xf32>
    %666 = vector.shape_cast %665 : vector<8x16x128xf32> to vector<128x128xf32>
    %667 = vector.broadcast %618 : vector<1x128xf32> to vector<128x128xf32>
    %668 = arith.mulf %666, %667 : vector<128x128xf32>
    %669 = vector.broadcast %622 : vector<1x128xf32> to vector<128x128xf32>
    %670 = arith.addf %668, %669 : vector<128x128xf32>
    %671 = arith.truncf %670 : vector<128x128xf32> to vector<128x128xbf16>
    %cst_113 = arith.constant dense<0.000000e+00> : vector<128x128xf32>
    %672 = tpu.matmul %671, %623, %cst_113 {dimension_numbers = #tpu.dot_dimension_numbers<[1], [0], [0], [1], [0, 0, 1, 1], [], []>} : vector<128x128xbf16>, vector<128x128xbf16>, vector<128x128xf32> -> vector<128x128xf32>
    %673 = vector.broadcast %624 : vector<1x128xf32> to vector<128x128xf32>
    %674 = arith.addf %672, %673 : vector<128x128xf32>
    %cst_114 = arith.constant 5.000000e-01 : f32
    %675 = vector.broadcast %cst_114 : f32 to vector<128x128xf32>
    %676 = arith.mulf %675, %674 : vector<128x128xf32>
    %677 = arith.mulf %674, %674 : vector<128x128xf32>
    %678 = arith.mulf %677, %674 : vector<128x128xf32>
    %cst_115 = arith.constant 4.471500e-02 : f32
    %679 = vector.broadcast %cst_115 : f32 to vector<128x128xf32>
    %680 = arith.mulf %679, %678 : vector<128x128xf32>
    %681 = arith.addf %674, %680 : vector<128x128xf32>
    %cst_116 = arith.constant 0.797884583 : f32
    %682 = vector.broadcast %cst_116 : f32 to vector<128x128xf32>
    %683 = arith.mulf %682, %681 : vector<128x128xf32>
    %684 = math.tanh %683 : vector<128x128xf32>
    %cst_117 = arith.constant 1.000000e+00 : f32
    %685 = vector.broadcast %cst_117 : f32 to vector<128x128xf32>
    %686 = arith.addf %685, %684 : vector<128x128xf32>
    %687 = arith.mulf %676, %686 : vector<128x128xf32>
    %688 = arith.truncf %687 : vector<128x128xf32> to vector<128x128xbf16>
    %cst_118 = arith.constant dense<0.000000e+00> : vector<128x128xf32>
    %689 = tpu.matmul %688, %625, %cst_118 {dimension_numbers = #tpu.dot_dimension_numbers<[1], [0], [0], [1], [0, 0, 1, 1], [], []>} : vector<128x128xbf16>, vector<128x128xbf16>, vector<128x128xf32> -> vector<128x128xf32>
    %690 = vector.broadcast %626 : vector<1x128xf32> to vector<128x128xf32>
    %691 = arith.addf %689, %690 : vector<128x128xf32>
    %692 = vector.broadcast %627 : vector<1x128xf32> to vector<128x128xf32>
    %693 = arith.mulf %691, %692 : vector<128x128xf32>
    %c0_119 = arith.constant 0 : index
    %c8_120 = arith.constant 8 : index
    %c0_121 = arith.constant 0 : index
    %c0_122 = arith.constant 0 : index
    %694 = vector.load %arg1[%c0_119, %c8_120, %c0_121, %c0_122] : memref<1x16x16x128xf32, #tpu.memory_space<vmem>>, vector<1x8x16x128xf32>
    %695 = vector.shape_cast %694 : vector<1x8x16x128xf32> to vector<8x16x128xf32>
    %696 = vector.shape_cast %695 : vector<8x16x128xf32> to vector<128x128xf32>
    %697 = arith.addf %696, %693 : vector<128x128xf32>
    %698 = vector.shape_cast %697 : vector<128x128xf32> to vector<8x16x128xf32>
    %c0_123 = arith.constant 0 : index
    %c8_124 = arith.constant 8 : index
    %c0_125 = arith.constant 0 : index
    %c0_126 = arith.constant 0 : index
    %699 = vector.load %arg11[%c0_123, %c8_124, %c0_125, %c0_126] : memref<1x16x16x128xf32, #tpu.memory_space<vmem>>, vector<1x8x16x128xf32>
    %700 = vector.shape_cast %699 : vector<1x8x16x128xf32> to vector<8x16x128xf32>
    %701 = vector.shape_cast %698 : vector<8x16x128xf32> to vector<1x8x16x128xf32>
    tpu.vector_store %arg11[%c0_123, %c8_124, %c0_125, %c0_126], %701 {strides = array<i32>} : memref<1x16x16x128xf32, #tpu.memory_space<vmem>>, vector<1x8x16x128xf32>,
    return
  }
  func.func @transform_0(%arg0: i32) -> (i32, i32, i32, i32) {
    %c0_i32 = arith.constant 0 : i32
    %c0_i32_0 = arith.constant 0 : i32
    %c0_i32_1 = arith.constant 0 : i32
    %c0_i32_2 = arith.constant 0 : i32
    return %arg0, %c0_i32, %c0_i32_0, %c0_i32_1 : i32, i32, i32, i32
  }
  func.func @transform_1(%arg0: i32) -> (i32, i32, i32) {
    %c0_i32 = arith.constant 0 : i32
    %c0_i32_0 = arith.constant 0 : i32
    %c0_i32_1 = arith.constant 0 : i32
    %c0_i32_2 = arith.constant 0 : i32
    return %c0_i32, %c0_i32_0, %c0_i32_1 : i32, i32, i32
  }
  func.func @transform_2(%arg0: i32) -> (i32, i32) {
    %c0_i32 = arith.constant 0 : i32
    %c0_i32_0 = arith.constant 0 : i32
    %c0_i32_1 = arith.constant 0 : i32
    return %c0_i32, %c0_i32_0 : i32, i32
  }
  func.func @transform_3(%arg0: i32) -> (i32, i32) {
    %c0_i32 = arith.constant 0 : i32
    %c0_i32_0 = arith.constant 0 : i32
    %c0_i32_1 = arith.constant 0 : i32
    return %c0_i32, %c0_i32_0 : i32, i32
  }
  func.func @transform_4(%arg0: i32) -> (i32, i32) {
    %c0_i32 = arith.constant 0 : i32
    %c0_i32_0 = arith.constant 0 : i32
    %c0_i32_1 = arith.constant 0 : i32
    return %c0_i32, %c0_i32_0 : i32, i32
  }
  func.func @transform_5(%arg0: i32) -> (i32, i32) {
    %c0_i32 = arith.constant 0 : i32
    %c0_i32_0 = arith.constant 0 : i32
    %c0_i32_1 = arith.constant 0 : i32
    return %c0_i32, %c0_i32_0 : i32, i32
  }
  func.func @transform_6(%arg0: i32) -> (i32, i32) {
    %c0_i32 = arith.constant 0 : i32
    %c0_i32_0 = arith.constant 0 : i32
    %c0_i32_1 = arith.constant 0 : i32
    return %c0_i32, %c0_i32_0 : i32, i32
  }
  func.func @transform_7(%arg0: i32) -> (i32, i32) {
    %c0_i32 = arith.constant 0 : i32
    %c0_i32_0 = arith.constant 0 : i32
    %c0_i32_1 = arith.constant 0 : i32
    return %c0_i32, %c0_i32_0 : i32, i32
  }
  func.func @transform_8(%arg0: i32) -> (i32, i32) {
    %c0_i32 = arith.constant 0 : i32
    %c0_i32_0 = arith.constant 0 : i32
    %c0_i32_1 = arith.constant 0 : i32
    return %c0_i32, %c0_i32_0 : i32, i32
  }
  func.func @transform_9(%arg0: i32) -> (i32, i32) {
    %c0_i32 = arith.constant 0 : i32
    %c0_i32_0 = arith.constant 0 : i32
    %c0_i32_1 = arith.constant 0 : i32
    return %c0_i32, %c0_i32_0 : i32, i32
  }
  func.func @transform_10(%arg0: i32) -> (i32, i32, i32, i32) {
    %c0_i32 = arith.constant 0 : i32
    %c0_i32_0 = arith.constant 0 : i32
    %c0_i32_1 = arith.constant 0 : i32
    %c0_i32_2 = arith.constant 0 : i32
    return %arg0, %c0_i32, %c0_i32_0, %c0_i32_1 : i32, i32, i32, i32
  }
}

</mosaic_0001>

<llo_original>
// kernel: tpu_custom_call.1
$region0: #{tpu_custom_call.1}
  #allocation0 [shape = 'u32[]', space=smem, size = 0x4, offset = 0x4, fixed_abs, tag = 'smem constant byte address 0x4 - core index']
  #allocation1 [shape = 'u32[72,128]{1,0:T(1,128)}', space=vmem, size = 0x9000, scoped, tag = 'internal scratch']
  #allocation2 [shape = 'f32[22,27,128]{2,1,0:T(8,128)}', space=vmem, size = 0x58000, scoped, tag = 'scratch operand']
  #allocation3 [shape = 'f32[16,16,128]{2,1,0:T(8,128)}', space=vmem, size = 0x20000, scoped, tag = 'scratch operand']
  %s0 = inlined_call_operand.hbm [shape: f32[2,16,16,128], index: 0, kind: input, shape index: {}]
  %s1 = inlined_call_operand.hbm [shape: f32[7,7,128], index: 1, kind: input, shape index: {}]
  %s2 = inlined_call_operand.vmem [shape: f32[1,128], index: 2, kind: input, shape index: {}]
  %s3 = inlined_call_operand.vmem [shape: f32[1,128], index: 3, kind: input, shape index: {}]
  %s4 = inlined_call_operand.vmem [shape: f32[1,128], index: 4, kind: input, shape index: {}]
  %s5 = inlined_call_operand.hbm [shape: bf16[128,128], index: 5, kind: input, shape index: {}]
  %s6 = inlined_call_operand.vmem [shape: f32[1,128], index: 6, kind: input, shape index: {}]
  %s7 = inlined_call_operand.hbm [shape: bf16[128,128], index: 7, kind: input, shape index: {}]
  %s8 = inlined_call_operand.vmem [shape: f32[1,128], index: 8, kind: input, shape index: {}]
  %s9 = inlined_call_operand.vmem [shape: f32[1,128], index: 9, kind: input, shape index: {}]
  %s10 = inlined_call_operand.hbm [shape: f32[2,16,16,128], index: 10, kind: output, shape index: {}]
  %s11 = sld [smem:[#allocation0]]
  $region89: #{tpu_custom_call.1} parent=0
    _
  %s13 = ssub.s32 1, %s11
  %s14 = scalar_select 0, %s13, %s11
  $region1: #{tpu_custom_call.1} parent=0
    #allocation4 [shape = 'u8[262144]{0}', space=vmem, size = 0x40000, scoped, tag = 'input window, operand 0']
    #allocation5 [shape = 's32[2]{0}', space=sflag, size = 0x8, scoped, tag = 'scoped memory for tpu_custom_call.1']
    #allocation6 [shape = 's32[2]{0}', space=sflag, size = 0x8, scoped, tag = 'scoped memory for tpu_custom_call.1']
    #allocation7 [shape = 'u8[28672]{0}', space=vmem, size = 0x7000, scoped, tag = 'input window, operand 1, single buffered']
    #allocation8 [shape = 's32[1]{0}', space=sflag, size = 0x4, scoped, tag = 'scoped memory for tpu_custom_call.1']
    #allocation9 [shape = 'u8[32768]{0}', space=vmem, size = 0x8000, scoped, tag = 'input window, operand 5, single buffered']
    #allocation10 [shape = 'u8[32768]{0}', space=vmem, size = 0x8000, scoped, tag = 'input window, operand 7, single buffered']
    #allocation11 [shape = 's32[1]{0}', space=sflag, size = 0x4, scoped, tag = 'scoped memory for tpu_custom_call.1']
    #allocation12 [shape = 'u8[262144]{0}', space=vmem, size = 0x40000, scoped, tag = 'output window, operand 0']
    %15 = vsyncpa [#allocation5], 0
    %s16 = scalar_lea.sflag [#allocation5], 1
    %17 = vsyncpa %s16, 0
    %18 = vsyncpa [#allocation8], 0
    %19 = vsyncpa [#allocation11], 0
    %20 = vsyncpa [#allocation6], 0
    %s21 = scalar_lea.sflag [#allocation6], 1
    %22 = vsyncpa %s21, 0
    loop: start=0, step=1, limit=4
    $region2: #{tpu_custom_call.1} parent=1 // loop_pre_header
      _
    $region3: #{tpu_custom_call.1} parent=1 // loop_header
      %s24 = sphi 0, %s28
      %p25 = scmp.ge.s32.totalorder %s24, 4
      %s34 = sphi 0, %s36
      %s37 = sphi 0, %s34
      %s38 = sphi 0, %s37
      %s54 = sphi 0, %s38
      %s58 = sphi 0, %s58
      %s60 = sphi 0, %s58
      %s61 = sphi 0, %s60
      %s75 = sphi 0, %s61
      %s79 = sphi 0, %s79
      %s81 = sphi 0, %s79
      %s82 = sphi 0, %s81
      %s96 = sphi 0, %s82
      %s100 = sphi 0, %s100
      %s102 = sphi 0, %s100
      %s103 = sphi 0, %s102
      %s117 = sphi 0, %s103
      %s121 = sphi 0, %s121
      %s123 = sphi 0, %s121
      %s124 = sphi 0, %s123
      %s138 = sphi 0, %s124
      %s142 = sphi 0, %s142
      %s144 = sphi 0, %s142
      %s145 = sphi 0, %s144
      %s159 = sphi 0, %s145
      %s163 = sphi 0, %s163
      %s165 = sphi 0, %s163
      %s166 = sphi 0, %s165
      %s180 = sphi 0, %s166
      %s184 = sphi 0, %s184
      %s186 = sphi 0, %s184
      %s187 = sphi 0, %s186
      %s201 = sphi 0, %s187
      %s205 = sphi 0, %s205
      %s207 = sphi 0, %s205
      %s208 = sphi 0, %s207
      %s222 = sphi 0, %s208
      %s226 = sphi 0, %s226
      %s228 = sphi 0, %s226
      %s229 = sphi 0, %s228
      %s243 = sphi 0, %s229
      %s249 = sphi 0, %s251
      %s252 = sphi 0, %s249
      %s253 = sphi 0, %s252
      %s269 = sphi 0, %s253
    $region4: #{tpu_custom_call.1} parent=1 // loop_header_branch
      %27 = sbr.rel (%p25) target = $region8
    $region5: #{tpu_custom_call.1} parent=1 // loop_body
      %s29 = ssub.s32 %s24, 1
      %s30 = ssub.s32 %s24, 2
      %s31 = sadd.s32 %s24, 1
      %s32 = ssub.s32 %s24, %s31
      %p33 = scmp.eq.s32.totalorder %s32, 0
      %s35 = sadd.s32 %s34, 1
      %s36 = scalar_select %p33, %s34, %s35
      %p39 = pneg %p33
      %p40 = scmp.eq.s32.totalorder %s24, 1
      %p41 = por %p39, %p40
      %p42 = scmp.ne.s32.totalorder %s34, %s37
      %p43 = scmp.eq.s32.totalorder %s24, 0
      %p44 = por %p42, %p43
      %p45 = scmp.ne.s32.totalorder %s34, %s37
      %p46 = scmp.eq.s32.totalorder %s29, 1
      %p47 = por %p45, %p46
      %p48 = scmp.ne.s32.totalorder %s37, %s38
      %p49 = scmp.eq.s32.totalorder %s29, 0
      %p50 = por %p48, %p49
      %p51 = scmp.ne.s32.totalorder %s37, %s38
      %p52 = scmp.eq.s32.totalorder %s30, 1
      %p53 = por %p51, %p52
      %p55 = scmp.ne.s32.totalorder %s38, %s54
      %p56 = scmp.eq.s32.totalorder %s30, 0
      %p57 = por %p55, %p56
      %s59 = sadd.s32 %s58, 1
      %p62 = scmp.eq.s32.totalorder %s24, 1
      %p63 = scmp.ne.s32.totalorder %s58, %s60
      %p64 = scmp.eq.s32.totalorder %s24, 0
      %p65 = por %p63, %p64
      %p66 = scmp.ne.s32.totalorder %s58, %s60
      %p67 = scmp.eq.s32.totalorder %s29, 1
      %p68 = por %p66, %p67
      %p69 = scmp.ne.s32.totalorder %s60, %s61
      %p70 = scmp.eq.s32.totalorder %s29, 0
      %p71 = por %p69, %p70
      %p72 = scmp.ne.s32.totalorder %s60, %s61
      %p73 = scmp.eq.s32.totalorder %s30, 1
      %p74 = por %p72, %p73
      %p76 = scmp.ne.s32.totalorder %s61, %s75
      %p77 = scmp.eq.s32.totalorder %s30, 0
      %p78 = por %p76, %p77
      %s80 = sadd.s32 %s79, 1
      %p83 = scmp.eq.s32.totalorder %s24, 1
      %p84 = scmp.ne.s32.totalorder %s79, %s81
      %p85 = scmp.eq.s32.totalorder %s24, 0
      %p86 = por %p84, %p85
      %p87 = scmp.ne.s32.totalorder %s79, %s81
      %p88 = scmp.eq.s32.totalorder %s29, 1
      %p89 = por %p87, %p88
      %p90 = scmp.ne.s32.totalorder %s81, %s82
      %p91 = scmp.eq.s32.totalorder %s29, 0
      %p92 = por %p90, %p91
      %p93 = scmp.ne.s32.totalorder %s81, %s82
      %p94 = scmp.eq.s32.totalorder %s30, 1
      %p95 = por %p93, %p94
      %p97 = scmp.ne.s32.totalorder %s82, %s96
      %p98 = scmp.eq.s32.totalorder %s30, 0
      %p99 = por %p97, %p98
      %s101 = sadd.s32 %s100, 1
      %p104 = scmp.eq.s32.totalorder %s24, 1
      %p105 = scmp.ne.s32.totalorder %s100, %s102
      %p106 = scmp.eq.s32.totalorder %s24, 0
      %p107 = por %p105, %p106
      %p108 = scmp.ne.s32.totalorder %s100, %s102
      %p109 = scmp.eq.s32.totalorder %s29, 1
      %p110 = por %p108, %p109
      %p111 = scmp.ne.s32.totalorder %s102, %s103
      %p112 = scmp.eq.s32.totalorder %s29, 0
      %p113 = por %p111, %p112
      %p114 = scmp.ne.s32.totalorder %s102, %s103
      %p115 = scmp.eq.s32.totalorder %s30, 1
      %p116 = por %p114, %p115
      %p118 = scmp.ne.s32.totalorder %s103, %s117
      %p119 = scmp.eq.s32.totalorder %s30, 0
      %p120 = por %p118, %p119
      %s122 = sadd.s32 %s121, 1
      %p125 = scmp.eq.s32.totalorder %s24, 1
      %p126 = scmp.ne.s32.totalorder %s121, %s123
      %p127 = scmp.eq.s32.totalorder %s24, 0
      %p128 = por %p126, %p127
      %p129 = scmp.ne.s32.totalorder %s121, %s123
      %p130 = scmp.eq.s32.totalorder %s29, 1
      %p131 = por %p129, %p130
      %p132 = scmp.ne.s32.totalorder %s123, %s124
      %p133 = scmp.eq.s32.totalorder %s29, 0
      %p134 = por %p132, %p133
      %p135 = scmp.ne.s32.totalorder %s123, %s124
      %p136 = scmp.eq.s32.totalorder %s30, 1
      %p137 = por %p135, %p136
      %p139 = scmp.ne.s32.totalorder %s124, %s138
      %p140 = scmp.eq.s32.totalorder %s30, 0
      %p141 = por %p139, %p140
      %s143 = sadd.s32 %s142, 1
      %p146 = scmp.eq.s32.totalorder %s24, 1
      %p147 = scmp.ne.s32.totalorder %s142, %s144
      %p148 = scmp.eq.s32.totalorder %s24, 0
      %p149 = por %p147, %p148
      %p150 = scmp.ne.s32.totalorder %s142, %s144
      %p151 = scmp.eq.s32.totalorder %s29, 1
      %p152 = por %p150, %p151
      %p153 = scmp.ne.s32.totalorder %s144, %s145
      %p154 = scmp.eq.s32.totalorder %s29, 0
      %p155 = por %p153, %p154
      %p156 = scmp.ne.s32.totalorder %s144, %s145
      %p157 = scmp.eq.s32.totalorder %s30, 1
      %p158 = por %p156, %p157
      %p160 = scmp.ne.s32.totalorder %s145, %s159
      %p161 = scmp.eq.s32.totalorder %s30, 0
      %p162 = por %p160, %p161
      %s164 = sadd.s32 %s163, 1
      %p167 = scmp.eq.s32.totalorder %s24, 1
      %p168 = scmp.ne.s32.totalorder %s163, %s165
      %p169 = scmp.eq.s32.totalorder %s24, 0
      %p170 = por %p168, %p169
      %p171 = scmp.ne.s32.totalorder %s163, %s165
      %p172 = scmp.eq.s32.totalorder %s29, 1
      %p173 = por %p171, %p172
      %p174 = scmp.ne.s32.totalorder %s165, %s166
      %p175 = scmp.eq.s32.totalorder %s29, 0
      %p176 = por %p174, %p175
      %p177 = scmp.ne.s32.totalorder %s165, %s166
      %p178 = scmp.eq.s32.totalorder %s30, 1
      %p179 = por %p177, %p178
      %p181 = scmp.ne.s32.totalorder %s166, %s180
      %p182 = scmp.eq.s32.totalorder %s30, 0
      %p183 = por %p181, %p182
      %s185 = sadd.s32 %s184, 1
      %p188 = scmp.eq.s32.totalorder %s24, 1
      %p189 = scmp.ne.s32.totalorder %s184, %s186
      %p190 = scmp.eq.s32.totalorder %s24, 0
      %p191 = por %p189, %p190
      %p192 = scmp.ne.s32.totalorder %s184, %s186
      %p193 = scmp.eq.s32.totalorder %s29, 1
      %p194 = por %p192, %p193
      %p195 = scmp.ne.s32.totalorder %s186, %s187
      %p196 = scmp.eq.s32.totalorder %s29, 0
      %p197 = por %p195, %p196
      %p198 = scmp.ne.s32.totalorder %s186, %s187
      %p199 = scmp.eq.s32.totalorder %s30, 1
      %p200 = por %p198, %p199
      %p202 = scmp.ne.s32.totalorder %s187, %s201
      %p203 = scmp.eq.s32.totalorder %s30, 0
      %p204 = por %p202, %p203
      %s206 = sadd.s32 %s205, 1
      %p209 = scmp.eq.s32.totalorder %s24, 1
      %p210 = scmp.ne.s32.totalorder %s205, %s207
      %p211 = scmp.eq.s32.totalorder %s24, 0
      %p212 = por %p210, %p211
      %p213 = scmp.ne.s32.totalorder %s205, %s207
      %p214 = scmp.eq.s32.totalorder %s29, 1
      %p215 = por %p213, %p214
      %p216 = scmp.ne.s32.totalorder %s207, %s208
      %p217 = scmp.eq.s32.totalorder %s29, 0
      %p218 = por %p216, %p217
      %p219 = scmp.ne.s32.totalorder %s207, %s208
      %p220 = scmp.eq.s32.totalorder %s30, 1
      %p221 = por %p219, %p220
      %p223 = scmp.ne.s32.totalorder %s208, %s222
      %p224 = scmp.eq.s32.totalorder %s30, 0
      %p225 = por %p223, %p224
      %s227 = sadd.s32 %s226, 1
      %p230 = scmp.eq.s32.totalorder %s24, 1
      %p231 = scmp.ne.s32.totalorder %s226, %s228
      %p232 = scmp.eq.s32.totalorder %s24, 0
      %p233 = por %p231, %p232
      %p234 = scmp.ne.s32.totalorder %s226, %s228
      %p235 = scmp.eq.s32.totalorder %s29, 1
      %p236 = por %p234, %p235
      %p237 = scmp.ne.s32.totalorder %s228, %s229
      %p238 = scmp.eq.s32.totalorder %s29, 0
      %p239 = por %p237, %p238
      %p240 = scmp.ne.s32.totalorder %s228, %s229
      %p241 = scmp.eq.s32.totalorder %s30, 1
      %p242 = por %p240, %p241
      %p244 = scmp.ne.s32.totalorder %s229, %s243
      %p245 = scmp.eq.s32.totalorder %s30, 0
      %p246 = por %p244, %p245
      %s247 = ssub.s32 %s24, %s31
      %p248 = scmp.eq.s32.totalorder %s247, 0
      %s250 = sadd.s32 %s249, 1
      %s251 = scalar_select %p248, %s249, %s250
      %p254 = pneg %p248
      %p255 = scmp.eq.s32.totalorder %s24, 1
      %p256 = por %p254, %p255
      %p257 = scmp.ne.s32.totalorder %s249, %s252
      %p258 = scmp.eq.s32.totalorder %s24, 0
      %p259 = por %p257, %p258
      %p260 = scmp.ne.s32.totalorder %s249, %s252
      %p261 = scmp.eq.s32.totalorder %s29, 1
      %p262 = por %p260, %p261
      %p263 = scmp.ne.s32.totalorder %s252, %s253
      %p264 = scmp.eq.s32.totalorder %s29, 0
      %p265 = por %p263, %p264
      %p266 = scmp.ne.s32.totalorder %s252, %s253
      %p267 = scmp.eq.s32.totalorder %s30, 1
      %p268 = por %p266, %p267
      %p270 = scmp.ne.s32.totalorder %s253, %s269
      %p271 = scmp.eq.s32.totalorder %s30, 0
      %p272 = por %p270, %p271
      %p273 = scmp.le.s32.totalorder 1, %s24
      %p274 = scmp.lt.s32.totalorder %s24, 3
      %p275 = pnand %p273, %p274
      %p276 = pneg %p275
      // Predicated region
      $region9: #{tpu_custom_call.1} parent=5 // pred_check
        _
      $region10: #{tpu_custom_call.1} parent=5 // pred_check_branch
        %278 = sbr.rel (%p275) target = $region12
      $region11: #{tpu_custom_call.1} parent=5 // pred_region
        %s279 = ssub.s32 %s24, 1
        // Predicated region
        $region13: #{tpu_custom_call.1} parent=11 // pred_check
          %p280 = pneg %p71
        $region14: #{tpu_custom_call.1} parent=11 // pred_check_branch
          %282 = sbr.rel (%p280) target = $region16
        $region15: #{tpu_custom_call.1} parent=11 // pred_region
          %284 = vsyncadd [#allocation8], 0
          %s285 = sshll.u32 %s1, 4
          %s286 = int_to_ptr.hbm [resolvable:$true] %s285
          %s287 = sshll.u32 [#allocation7], 4
          %s288 = int_to_ptr.vmem [resolvable:$true] %s287
          %293 = dma.hbm_to_vmem [thread:$0]  %s286, 896, %s288, [#allocation8], 128, 128, 8
        $region16: #{tpu_custom_call.1} parent=11 // pred_fallthru
          _
        // Predicated region
        $region17: #{tpu_custom_call.1} parent=11 // pred_check
          %p294 = pneg %p92
        $region18: #{tpu_custom_call.1} parent=11 // pred_check_branch
          %296 = sbr.rel (%p294) target = $region20
        $region19: #{tpu_custom_call.1} parent=11 // pred_region
          _
        $region20: #{tpu_custom_call.1} parent=11 // pred_fallthru
          _
        // Predicated region
        $region21: #{tpu_custom_call.1} parent=11 // pred_check
          %p297 = pneg %p113
        $region22: #{tpu_custom_call.1} parent=11 // pred_check_branch
          %299 = sbr.rel (%p297) target = $region24
        $region23: #{tpu_custom_call.1} parent=11 // pred_region
          _
        $region24: #{tpu_custom_call.1} parent=11 // pred_fallthru
          _
        // Predicated region
        $region25: #{tpu_custom_call.1} parent=11 // pred_check
          %p300 = pneg %p134
        $region26: #{tpu_custom_call.1} parent=11 // pred_check_branch
          %302 = sbr.rel (%p300) target = $region28
        $region27: #{tpu_custom_call.1} parent=11 // pred_region
          _
        $region28: #{tpu_custom_call.1} parent=11 // pred_fallthru
          _
        // Predicated region
        $region29: #{tpu_custom_call.1} parent=11 // pred_check
          %p303 = pneg %p155
        $region30: #{tpu_custom_call.1} parent=11 // pred_check_branch
          %305 = sbr.rel (%p303) target = $region32
        $region31: #{tpu_custom_call.1} parent=11 // pred_region
          %307 = vsyncadd [#allocation8], 0
          %s308 = sshll.u32 %s5, 4
          %s309 = int_to_ptr.hbm [resolvable:$true] %s308
          %s310 = sshll.u32 [#allocation9], 4
          %s311 = int_to_ptr.vmem [resolvable:$true] %s310
          %316 = dma.hbm_to_vmem [thread:$0]  %s309, 1024, %s311, [#allocation8], 64, 64, 4
        $region32: #{tpu_custom_call.1} parent=11 // pred_fallthru
          _
        // Predicated region
        $region33: #{tpu_custom_call.1} parent=11 // pred_check
          %p317 = pneg %p176
        $region34: #{tpu_custom_call.1} parent=11 // pred_check_branch
          %319 = sbr.rel (%p317) target = $region36
        $region35: #{tpu_custom_call.1} parent=11 // pred_region
          _
        $region36: #{tpu_custom_call.1} parent=11 // pred_fallthru
          _
        // Predicated region
        $region37: #{tpu_custom_call.1} parent=11 // pred_check
          %p320 = pneg %p197
        $region38: #{tpu_custom_call.1} parent=11 // pred_check_branch
          %322 = sbr.rel (%p320) target = $region40
        $region39: #{tpu_custom_call.1} parent=11 // pred_region
          %324 = vsyncadd [#allocation11], 0
          %s325 = sshll.u32 %s7, 4
          %s326 = int_to_ptr.hbm [resolvable:$true] %s325
          %s327 = sshll.u32 [#allocation10], 4
          %s328 = int_to_ptr.vmem [resolvable:$true] %s327
          %333 = dma.hbm_to_vmem [thread:$0]  %s326, 1024, %s328, [#allocation11], 64, 64, 4
        $region40: #{tpu_custom_call.1} parent=11 // pred_fallthru
          _
        // Predicated region
        $region41: #{tpu_custom_call.1} parent=11 // pred_check
          %p334 = pneg %p218
        $region42: #{tpu_custom_call.1} parent=11 // pred_check_branch
          %336 = sbr.rel (%p334) target = $region44
        $region43: #{tpu_custom_call.1} parent=11 // pred_region
          _
        $region44: #{tpu_custom_call.1} parent=11 // pred_fallthru
          _
        // Predicated region
        $region45: #{tpu_custom_call.1} parent=11 // pred_check
          %p337 = pneg %p239
        $region46: #{tpu_custom_call.1} parent=11 // pred_check_branch
          %339 = sbr.rel (%p337) target = $region48
        $region47: #{tpu_custom_call.1} parent=11 // pred_region
          _
        $region48: #{tpu_custom_call.1} parent=11 // pred_fallthru
          _
      $region12: #{tpu_custom_call.1} parent=5 // pred_fallthru
        _
      %p340 = scmp.lt.s32.totalorder %s24, 2
      // Predicated region
      $region49: #{tpu_custom_call.1} parent=5 // pred_check
        %p341 = pneg %p340
      $region50: #{tpu_custom_call.1} parent=5 // pred_check_branch
        %343 = sbr.rel (%p341) target = $region52
      $region51: #{tpu_custom_call.1} parent=5 // pred_region
        // Predicated region
        $region53: #{tpu_custom_call.1} parent=51 // pred_check
          %p344 = pneg %p44
        $region54: #{tpu_custom_call.1} parent=51 // pred_check_branch
          %346 = sbr.rel (%p344) target = $region56
        $region55: #{tpu_custom_call.1} parent=51 // pred_region
          %s347 = sand.u32 %s34, 1
          %s348 = scalar_lea.sflag [#allocation5], %s347
          %s349 = sand.u32 %s34, 1
          %s350 = smul.addr %s349, 256
          %s351 = scalar_lea.vmem [#allocation4], %s350
          %353 = vsyncadd %s348, 0
          %s354 = smul.addr %s24, 32
          %s355 = smul.addr %s354, 8
          %s356 = scalar_lea.hbm %s0, %s355
          %s357 = sshll.u32 %s356, 4
          %s358 = int_to_ptr.hbm [resolvable:$true] %s357
          %s359 = sshll.u32 %s351, 4
          %s360 = int_to_ptr.vmem [resolvable:$true] %s359
          %365 = dma.hbm_to_vmem [thread:$0]  %s358, 4096, %s360, %s348, 128, 128, 8
        $region56: #{tpu_custom_call.1} parent=51 // pred_fallthru
          _
      $region52: #{tpu_custom_call.1} parent=5 // pred_fallthru
        _
      %p366 = scmp.le.s32.totalorder 1, %s24
      %p367 = scmp.lt.s32.totalorder %s24, 3
      %p368 = pnand %p366, %p367
      %p369 = pneg %p368
      // Predicated region
      $region57: #{tpu_custom_call.1} parent=5 // pred_check
        _
      $region58: #{tpu_custom_call.1} parent=5 // pred_check_branch
        %371 = sbr.rel (%p368) target = $region60
      $region59: #{tpu_custom_call.1} parent=5 // pred_region
        %s372 = ssub.s32 %s24, 1
        %s373 = sand.u32 %s37, 1
        %s374 = scalar_lea.sflag [#allocation5], %s373
        %s375 = sand.u32 %s37, 1
        %s376 = smul.addr %s375, 256
        %s377 = scalar_lea.vmem [#allocation4], %s376
        // Predicated region
        $region61: #{tpu_custom_call.1} parent=59 // pred_check
          %p378 = pneg %p50
        $region62: #{tpu_custom_call.1} parent=59 // pred_check_branch
          %380 = sbr.rel (%p378) target = $region64
        $region63: #{tpu_custom_call.1} parent=59 // pred_region
          %382 = dma.done %s374, 4096
        $region64: #{tpu_custom_call.1} parent=59 // pred_fallthru
          _
        // Predicated region
        $region65: #{tpu_custom_call.1} parent=59 // pred_check
          %p383 = pneg %p71
        $region66: #{tpu_custom_call.1} parent=59 // pred_check_branch
          %385 = sbr.rel (%p383) target = $region68
        $region67: #{tpu_custom_call.1} parent=59 // pred_region
          %387 = dma.done [#allocation8], 896
        $region68: #{tpu_custom_call.1} parent=59 // pred_fallthru
          _
        // Predicated region
        $region69: #{tpu_custom_call.1} parent=59 // pred_check
          %p388 = pneg %p155
        $region70: #{tpu_custom_call.1} parent=59 // pred_check_branch
          %390 = sbr.rel (%p388) target = $region72
        $region71: #{tpu_custom_call.1} parent=59 // pred_region
          %392 = dma.done [#allocation8], 1024
        $region72: #{tpu_custom_call.1} parent=59 // pred_fallthru
          _
        // Predicated region
        $region73: #{tpu_custom_call.1} parent=59 // pred_check
          %p393 = pneg %p197
        $region74: #{tpu_custom_call.1} parent=59 // pred_check_branch
          %395 = sbr.rel (%p393) target = $region76
        $region75: #{tpu_custom_call.1} parent=59 // pred_region
          %397 = dma.done [#allocation11], 1024
        $region76: #{tpu_custom_call.1} parent=59 // pred_fallthru
          _
        %s398 = sand.u32 %s37, 1
        %s399 = scalar_lea.sflag [#allocation5], %s398
        %s400 = sand.u32 %s37, 1
        %s401 = smul.addr %s400, 256
        %s402 = scalar_lea.vmem [#allocation4], %s401
        %p403 = pneg %p50
        %p404 = pneg %p47
        %p405 = pneg %p71
        %p406 = pneg %p68
        %p407 = pneg %p92
        %p408 = pneg %p89
        %p409 = pneg %p113
        %p410 = pneg %p110
        %p411 = pneg %p134
        %p412 = pneg %p131
        %p413 = pneg %p155
        %p414 = pneg %p152
        %p415 = pneg %p176
        %p416 = pneg %p173
        %p417 = pneg %p197
        %p418 = pneg %p194
        %p419 = pneg %p218
        %p420 = pneg %p215
        %p421 = pneg %p239
        %p422 = pneg %p236
        %p423 = pneg %p265
        %p424 = pneg %p262
        %s425 = sand.u32 %s252, 1
        %s426 = scalar_lea.sflag [#allocation6], %s425
        %s427 = sand.u32 %s252, 1
        %s428 = smul.addr %s427, 256
        %s429 = scalar_lea.vmem [#allocation12], %s428
        %430 = vst [vmem:[#allocation2] sm:$0xff] 0.0
        %431 = vst [vmem:[#allocation2 + $0x8] sm:$0xff] 0.0
        %432 = vst [vmem:[#allocation2 + $0x10] sm:$0xff] 0.0
        %433 = vst [vmem:[#allocation2 + $0x18] sm:$0x7] 0.0
        %434 = vst [vmem:[#allocation2 + $0x20] sm:$0xff] 0.0
        %435 = vst [vmem:[#allocation2 + $0x28] sm:$0xff] 0.0
        %436 = vst [vmem:[#allocation2 + $0x30] sm:$0xff] 0.0
        %437 = vst [vmem:[#allocation2 + $0x38] sm:$0x7] 0.0
        %438 = vst [vmem:[#allocation2 + $0x40] sm:$0xff] 0.0
        %439 = vst [vmem:[#allocation2 + $0x48] sm:$0xff] 0.0
        %440 = vst [vmem:[#allocation2 + $0x50] sm:$0xff] 0.0
        %441 = vst [vmem:[#allocation2 + $0x58] sm:$0x7] 0.0
        %s442 = scalar_lea.vmem [#allocation2], 608
        %443 = vst [vmem:[%s442] sm:$0xff] 0.0
        %444 = vst [vmem:[%s442 + $0x8] sm:$0xff] 0.0
        %445 = vst [vmem:[%s442 + $0x10] sm:$0xff] 0.0
        %446 = vst [vmem:[%s442 + $0x18] sm:$0x7] 0.0
        %447 = vst [vmem:[%s442 + $0x20] sm:$0xff] 0.0
        %448 = vst [vmem:[%s442 + $0x28] sm:$0xff] 0.0
        %449 = vst [vmem:[%s442 + $0x30] sm:$0xff] 0.0
        %450 = vst [vmem:[%s442 + $0x38] sm:$0x7] 0.0
        %451 = vst [vmem:[%s442 + $0x40] sm:$0xff] 0.0
        %452 = vst [vmem:[%s442 + $0x48] sm:$0xff] 0.0
        %453 = vst [vmem:[%s442 + $0x50] sm:$0xff] 0.0
        %454 = vst [vmem:[%s442 + $0x58] sm:$0x7] 0.0
        %s455 = scalar_lea.vmem [#allocation2], 96
        %456 = vst [vmem:[%s455 + $0x5] sm:$0x7] 0.0
        %457 = vst [vmem:[%s455 + $0x25] sm:$0x7] 0.0
        %458 = vst [vmem:[%s455 + $0x45] sm:$0x7] 0.0
        %459 = vst [vmem:[%s455 + $0x65] sm:$0x7] 0.0
        %460 = vst [vmem:[%s455 + $0x85] sm:$0x7] 0.0
        %461 = vst [vmem:[%s455 + $0xa5] sm:$0x7] 0.0
        %462 = vst [vmem:[%s455 + $0xc5] sm:$0x7] 0.0
        %463 = vst [vmem:[%s455 + $0xe5] sm:$0x7] 0.0
        %464 = vst [vmem:[%s455 + $0x105] sm:$0x7] 0.0
        %465 = vst [vmem:[%s455 + $0x125] sm:$0x7] 0.0
        %466 = vst [vmem:[%s455 + $0x145] sm:$0x7] 0.0
        %467 = vst [vmem:[%s455 + $0x165] sm:$0x7] 0.0
        %468 = vst [vmem:[%s455 + $0x185] sm:$0x7] 0.0
        %469 = vst [vmem:[%s455 + $0x1a5] sm:$0x7] 0.0
        %470 = vst [vmem:[%s455 + $0x1c5] sm:$0x7] 0.0
        %471 = vst [vmem:[%s455 + $0x1e5] sm:$0x7] 0.0
        %472 = vst [vmem:[%s455 + $0x18] sm:$0x7] 0.0
        %473 = vst [vmem:[%s455 + $0x38] sm:$0x7] 0.0
        %474 = vst [vmem:[%s455 + $0x58] sm:$0x7] 0.0
        %475 = vst [vmem:[%s455 + $0x78] sm:$0x7] 0.0
        %476 = vst [vmem:[%s455 + $0x98] sm:$0x7] 0.0
        %477 = vst [vmem:[%s455 + $0xb8] sm:$0x7] 0.0
        %478 = vst [vmem:[%s455 + $0xd8] sm:$0x7] 0.0
        %479 = vst [vmem:[%s455 + $0xf8] sm:$0x7] 0.0
        %480 = vst [vmem:[%s455 + $0x118] sm:$0x7] 0.0
        %481 = vst [vmem:[%s455 + $0x138] sm:$0x7] 0.0
        %482 = vst [vmem:[%s455 + $0x158] sm:$0x7] 0.0
        %483 = vst [vmem:[%s455 + $0x178] sm:$0x7] 0.0
        %484 = vst [vmem:[%s455 + $0x198] sm:$0x7] 0.0
        %485 = vst [vmem:[%s455 + $0x1b8] sm:$0x7] 0.0
        %486 = vst [vmem:[%s455 + $0x1d8] sm:$0x7] 0.0
        %487 = vst [vmem:[%s455 + $0x1f8] sm:$0x7] 0.0
        %v488 = vld [vmem:[%s377] sm:$0xff]
        %v489 = vld [vmem:[%s377 + $0x8] sm:$0xff]
        %v490 = vld [vmem:[%s377 + $0x10] sm:$0xff]
        %v491 = vld [vmem:[%s377 + $0x18] sm:$0xff]
        %v492 = vld [vmem:[%s377 + $0x20] sm:$0xff]
        %v493 = vld [vmem:[%s377 + $0x28] sm:$0xff]
        %v494 = vld [vmem:[%s377 + $0x30] sm:$0xff]
        %v495 = vld [vmem:[%s377 + $0x38] sm:$0xff]
        %v496 = vld [vmem:[%s377 + $0x40] sm:$0xff]
        %v497 = vld [vmem:[%s377 + $0x48] sm:$0xff]
        %v498 = vld [vmem:[%s377 + $0x50] sm:$0xff]
        %v499 = vld [vmem:[%s377 + $0x58] sm:$0xff]
        %v500 = vld [vmem:[%s377 + $0x60] sm:$0xff]
        %v501 = vld [vmem:[%s377 + $0x68] sm:$0xff]
        %v502 = vld [vmem:[%s377 + $0x70] sm:$0xff]
        %v503 = vld [vmem:[%s377 + $0x78] sm:$0xff]
        %v504 = vld [vmem:[%s377 + $0x80] sm:$0xff]
        %v505 = vld [vmem:[%s377 + $0x88] sm:$0xff]
        %v506 = vld [vmem:[%s377 + $0x90] sm:$0xff]
        %v507 = vld [vmem:[%s377 + $0x98] sm:$0xff]
        %v508 = vld [vmem:[%s377 + $0xa0] sm:$0xff]
        %v509 = vld [vmem:[%s377 + $0xa8] sm:$0xff]
        %v510 = vld [vmem:[%s377 + $0xb0] sm:$0xff]
        %v511 = vld [vmem:[%s377 + $0xb8] sm:$0xff]
        %v512 = vld [vmem:[%s377 + $0xc0] sm:$0xff]
        %v513 = vld [vmem:[%s377 + $0xc8] sm:$0xff]
        %v514 = vld [vmem:[%s377 + $0xd0] sm:$0xff]
        %v515 = vld [vmem:[%s377 + $0xd8] sm:$0xff]
        %v516 = vld [vmem:[%s377 + $0xe0] sm:$0xff]
        %v517 = vld [vmem:[%s377 + $0xe8] sm:$0xff]
        %v518 = vld [vmem:[%s377 + $0xf0] sm:$0xff]
        %v519 = vld [vmem:[%s377 + $0xf8] sm:$0xff]
        %520 = vst [vmem:[%s455 + $0x8] sm:$0xff] %v488
        %521 = vst [vmem:[%s455 + $0x10] sm:$0xff] %v489
        %522 = vst [vmem:[%s455 + $0x28] sm:$0xff] %v490
        %523 = vst [vmem:[%s455 + $0x30] sm:$0xff] %v491
        %524 = vst [vmem:[%s455 + $0x48] sm:$0xff] %v492
        %525 = vst [vmem:[%s455 + $0x50] sm:$0xff] %v493
        %526 = vst [vmem:[%s455 + $0x68] sm:$0xff] %v494
        %527 = vst [vmem:[%s455 + $0x70] sm:$0xff] %v495
        %528 = vst [vmem:[%s455 + $0x88] sm:$0xff] %v496
        %529 = vst [vmem:[%s455 + $0x90] sm:$0xff] %v497
        %530 = vst [vmem:[%s455 + $0xa8] sm:$0xff] %v498
        %531 = vst [vmem:[%s455 + $0xb0] sm:$0xff] %v499
        %532 = vst [vmem:[%s455 + $0xc8] sm:$0xff] %v500
        %533 = vst [vmem:[%s455 + $0xd0] sm:$0xff] %v501
        %534 = vst [vmem:[%s455 + $0xe8] sm:$0xff] %v502
        %535 = vst [vmem:[%s455 + $0xf0] sm:$0xff] %v503
        %536 = vst [vmem:[%s455 + $0x108] sm:$0xff] %v504
        %537 = vst [vmem:[%s455 + $0x110] sm:$0xff] %v505
        %538 = vst [vmem:[%s455 + $0x128] sm:$0xff] %v506
        %539 = vst [vmem:[%s455 + $0x130] sm:$0xff] %v507
        %540 = vst [vmem:[%s455 + $0x148] sm:$0xff] %v508
        %541 = vst [vmem:[%s455 + $0x150] sm:$0xff] %v509
        %542 = vst [vmem:[%s455 + $0x168] sm:$0xff] %v510
        %543 = vst [vmem:[%s455 + $0x170] sm:$0xff] %v511
        %544 = vst [vmem:[%s455 + $0x188] sm:$0xff] %v512
        %545 = vst [vmem:[%s455 + $0x190] sm:$0xff] %v513
        %546 = vst [vmem:[%s455 + $0x1a8] sm:$0xff] %v514
        %547 = vst [vmem:[%s455 + $0x1b0] sm:$0xff] %v515
        %548 = vst [vmem:[%s455 + $0x1c8] sm:$0xff] %v516
        %549 = vst [vmem:[%s455 + $0x1d0] sm:$0xff] %v517
        %550 = vst [vmem:[%s455 + $0x1e8] sm:$0xff] %v518
        %551 = vst [vmem:[%s455 + $0x1f0] sm:$0xff] %v519
        %v552 = vld [vmem:[#allocation7] sm:$0x7f]
        %v553 = vld [vmem:[#allocation7 + $0x8] sm:$0x7f]
        %v554 = vld [vmem:[#allocation7 + $0x10] sm:$0x7f]
        %v555 = vld [vmem:[#allocation7 + $0x18] sm:$0x7f]
        %v556 = vld [vmem:[#allocation7 + $0x20] sm:$0x7f]
        %v557 = vld [vmem:[#allocation7 + $0x28] sm:$0x7f]
        %v558 = vld [vmem:[#allocation7 + $0x30] sm:$0x7f]
        %v559 = vld [vmem:[%s2] sm:$0x1]
        %v560 = vld [vmem:[#allocation2 + $0x5] sm:$0xff]
        %v561 = vld [vmem:[#allocation2 + $0xd] sm:$0xff]
        %v562 = vld [vmem:[#allocation2 + $0x25] sm:$0xff]
        %v563 = vld [vmem:[#allocation2 + $0x2d] sm:$0xff]
        %v564 = vld [vmem:[#allocation2 + $0x45] sm:$0xff]
        %v565 = vld [vmem:[#allocation2 + $0x4d] sm:$0xff]
        %v566 = vld [vmem:[#allocation2 + $0x65] sm:$0xff]
        %v567 = vld [vmem:[#allocation2 + $0x6d] sm:$0xff]
        %v568 = vld [vmem:[#allocation2 + $0x85] sm:$0xff]
        %v569 = vld [vmem:[#allocation2 + $0x8d] sm:$0xff]
        %v570 = vld [vmem:[#allocation2 + $0xa5] sm:$0xff]
        %v571 = vld [vmem:[#allocation2 + $0xad] sm:$0xff]
        %v572 = vld [vmem:[#allocation2 + $0xc5] sm:$0xff]
        %v573 = vld [vmem:[#allocation2 + $0xcd] sm:$0xff]
        %v574 = vld [vmem:[#allocation2 + $0xe5] sm:$0xff]
        %v575 = vld [vmem:[#allocation2 + $0xed] sm:$0xff]
        %v576 = vld [vmem:[#allocation2 + $0x105] sm:$0xff]
        %v577 = vld [vmem:[#allocation2 + $0x10d] sm:$0xff]
        %v578 = vld [vmem:[#allocation2 + $0x125] sm:$0xff]
        %v579 = vld [vmem:[#allocation2 + $0x12d] sm:$0xff]
        %v580 = vld [vmem:[#allocation2 + $0x145] sm:$0xff]
        %v581 = vld [vmem:[#allocation2 + $0x14d] sm:$0xff]
        %v582 = vld [vmem:[#allocation2 + $0x165] sm:$0xff]
        %v583 = vld [vmem:[#allocation2 + $0x16d] sm:$0xff]
        %v584 = vld [vmem:[#allocation2 + $0x185] sm:$0xff]
        %v585 = vld [vmem:[#allocation2 + $0x18d] sm:$0xff]
        %v586 = vld [vmem:[#allocation2 + $0x1a5] sm:$0xff]
        %v587 = vld [vmem:[#allocation2 + $0x1ad] sm:$0xff]
        %v588 = vperm.slane %v552, 0
        %v589 = vmul.f32 %v560, %v588
        %v590 = vmul.f32 %v561, %v588
        %v591 = vmul.f32 %v562, %v588
        %v592 = vmul.f32 %v563, %v588
        %v593 = vmul.f32 %v564, %v588
        %v594 = vmul.f32 %v565, %v588
        %v595 = vmul.f32 %v566, %v588
        %v596 = vmul.f32 %v567, %v588
        %v597 = vmul.f32 %v568, %v588
        %v598 = vmul.f32 %v569, %v588
        %v599 = vmul.f32 %v570, %v588
        %v600 = vmul.f32 %v571, %v588
        %v601 = vmul.f32 %v572, %v588
        %v602 = vmul.f32 %v573, %v588
        %v603 = vmul.f32 %v574, %v588
        %v604 = vmul.f32 %v575, %v588
        %v605 = vadd.f32 %v589, 0.0
        %v606 = vadd.f32 %v590, 0.0
        %v607 = vadd.f32 %v591, 0.0
        %v608 = vadd.f32 %v592, 0.0
        %v609 = vadd.f32 %v593, 0.0
        %v610 = vadd.f32 %v594, 0.0
        %v611 = vadd.f32 %v595, 0.0
        %v612 = vadd.f32 %v596, 0.0
        %v613 = vadd.f32 %v597, 0.0
        %v614 = vadd.f32 %v598, 0.0
        %v615 = vadd.f32 %v599, 0.0
        %v616 = vadd.f32 %v600, 0.0
        %v617 = vadd.f32 %v601, 0.0
        %v618 = vadd.f32 %v602, 0.0
        %v619 = vadd.f32 %v603, 0.0
        %v620 = vadd.f32 %v604, 0.0
        %v621 = vperm.slane %v553, 0
        %v622 = vmul.f32 %v562, %v621
        %v623 = vmul.f32 %v563, %v621
        %v624 = vmul.f32 %v564, %v621
        %v625 = vmul.f32 %v565, %v621
        %v626 = vmul.f32 %v566, %v621
        %v627 = vmul.f32 %v567, %v621
        %v628 = vmul.f32 %v568, %v621
        %v629 = vmul.f32 %v569, %v621
        %v630 = vmul.f32 %v570, %v621
        %v631 = vmul.f32 %v571, %v621
        %v632 = vmul.f32 %v572, %v621
        %v633 = vmul.f32 %v573, %v621
        %v634 = vmul.f32 %v574, %v621
        %v635 = vmul.f32 %v575, %v621
        %v636 = vmul.f32 %v576, %v621
        %v637 = vmul.f32 %v577, %v621
        %v638 = vadd.f32 %v605, %v622
        %v639 = vadd.f32 %v606, %v623
        %v640 = vadd.f32 %v607, %v624
        %v641 = vadd.f32 %v608, %v625
        %v642 = vadd.f32 %v609, %v626
        %v643 = vadd.f32 %v610, %v627
        %v644 = vadd.f32 %v611, %v628
        %v645 = vadd.f32 %v612, %v629
        %v646 = vadd.f32 %v613, %v630
        %v647 = vadd.f32 %v614, %v631
        %v648 = vadd.f32 %v615, %v632
        %v649 = vadd.f32 %v616, %v633
        %v650 = vadd.f32 %v617, %v634
        %v651 = vadd.f32 %v618, %v635
        %v652 = vadd.f32 %v619, %v636
        %v653 = vadd.f32 %v620, %v637
        %v654 = vperm.slane %v554, 0
        %v655 = vmul.f32 %v564, %v654
        %v656 = vmul.f32 %v565, %v654
        %v657 = vmul.f32 %v566, %v654
        %v658 = vmul.f32 %v567, %v654
        %v659 = vmul.f32 %v568, %v654
        %v660 = vmul.f32 %v569, %v654
        %v661 = vmul.f32 %v570, %v654
        %v662 = vmul.f32 %v571, %v654
        %v663 = vmul.f32 %v572, %v654
        %v664 = vmul.f32 %v573, %v654
        %v665 = vmul.f32 %v574, %v654
        %v666 = vmul.f32 %v575, %v654
        %v667 = vmul.f32 %v576, %v654
        %v668 = vmul.f32 %v577, %v654
        %v669 = vmul.f32 %v578, %v654
        %v670 = vmul.f32 %v579, %v654
        %v671 = vadd.f32 %v638, %v655
        %v672 = vadd.f32 %v639, %v656
        %v673 = vadd.f32 %v640, %v657
        %v674 = vadd.f32 %v641, %v658
        %v675 = vadd.f32 %v642, %v659
        %v676 = vadd.f32 %v643, %v660
        %v677 = vadd.f32 %v644, %v661
        %v678 = vadd.f32 %v645, %v662
        %v679 = vadd.f32 %v646, %v663
        %v680 = vadd.f32 %v647, %v664
        %v681 = vadd.f32 %v648, %v665
        %v682 = vadd.f32 %v649, %v666
        %v683 = vadd.f32 %v650, %v667
        %v684 = vadd.f32 %v651, %v668
        %v685 = vadd.f32 %v652, %v669
        %v686 = vadd.f32 %v653, %v670
        %v687 = vperm.slane %v555, 0
        %v688 = vmul.f32 %v566, %v687
        %v689 = vmul.f32 %v567, %v687
        %v690 = vmul.f32 %v568, %v687
        %v691 = vmul.f32 %v569, %v687
        %v692 = vmul.f32 %v570, %v687
        %v693 = vmul.f32 %v571, %v687
        %v694 = vmul.f32 %v572, %v687
        %v695 = vmul.f32 %v573, %v687
        %v696 = vmul.f32 %v574, %v687
        %v697 = vmul.f32 %v575, %v687
        %v698 = vmul.f32 %v576, %v687
        %v699 = vmul.f32 %v577, %v687
        %v700 = vmul.f32 %v578, %v687
        %v701 = vmul.f32 %v579, %v687
        %v702 = vmul.f32 %v580, %v687
        %v703 = vmul.f32 %v581, %v687
        %v704 = vadd.f32 %v671, %v688
        %v705 = vadd.f32 %v672, %v689
        %v706 = vadd.f32 %v673, %v690
        %v707 = vadd.f32 %v674, %v691
        %v708 = vadd.f32 %v675, %v692
        %v709 = vadd.f32 %v676, %v693
        %v710 = vadd.f32 %v677, %v694
        %v711 = vadd.f32 %v678, %v695
        %v712 = vadd.f32 %v679, %v696
        %v713 = vadd.f32 %v680, %v697
        %v714 = vadd.f32 %v681, %v698
        %v715 = vadd.f32 %v682, %v699
        %v716 = vadd.f32 %v683, %v700
        %v717 = vadd.f32 %v684, %v701
        %v718 = vadd.f32 %v685, %v702
        %v719 = vadd.f32 %v686, %v703
        %v720 = vperm.slane %v556, 0
        %v721 = vmul.f32 %v568, %v720
        %v722 = vmul.f32 %v569, %v720
        %v723 = vmul.f32 %v570, %v720
        %v724 = vmul.f32 %v571, %v720
        %v725 = vmul.f32 %v572, %v720
        %v726 = vmul.f32 %v573, %v720
        %v727 = vmul.f32 %v574, %v720
        %v728 = vmul.f32 %v575, %v720
        %v729 = vmul.f32 %v576, %v720
        %v730 = vmul.f32 %v577, %v720
        %v731 = vmul.f32 %v578, %v720
        %v732 = vmul.f32 %v579, %v720
        %v733 = vmul.f32 %v580, %v720
        %v734 = vmul.f32 %v581, %v720
        %v735 = vmul.f32 %v582, %v720
        %v736 = vmul.f32 %v583, %v720
        %v737 = vadd.f32 %v704, %v721
        %v738 = vadd.f32 %v705, %v722
        %v739 = vadd.f32 %v706, %v723
        %v740 = vadd.f32 %v707, %v724
        %v741 = vadd.f32 %v708, %v725
        %v742 = vadd.f32 %v709, %v726
        %v743 = vadd.f32 %v710, %v727
        %v744 = vadd.f32 %v711, %v728
        %v745 = vadd.f32 %v712, %v729
        %v746 = vadd.f32 %v713, %v730
        %v747 = vadd.f32 %v714, %v731
        %v748 = vadd.f32 %v715, %v732
        %v749 = vadd.f32 %v716, %v733
        %v750 = vadd.f32 %v717, %v734
        %v751 = vadd.f32 %v718, %v735
        %v752 = vadd.f32 %v719, %v736
        %v753 = vperm.slane %v557, 0
        %v754 = vmul.f32 %v570, %v753
        %v755 = vmul.f32 %v571, %v753
        %v756 = vmul.f32 %v572, %v753
        %v757 = vmul.f32 %v573, %v753
        %v758 = vmul.f32 %v574, %v753
        %v759 = vmul.f32 %v575, %v753
        %v760 = vmul.f32 %v576, %v753
        %v761 = vmul.f32 %v577, %v753
        %v762 = vmul.f32 %v578, %v753
        %v763 = vmul.f32 %v579, %v753
        %v764 = vmul.f32 %v580, %v753
        %v765 = vmul.f32 %v581, %v753
        %v766 = vmul.f32 %v582, %v753
        %v767 = vmul.f32 %v583, %v753
        %v768 = vmul.f32 %v584, %v753
        %v769 = vmul.f32 %v585, %v753
        %v770 = vadd.f32 %v737, %v754
        %v771 = vadd.f32 %v738, %v755
        %v772 = vadd.f32 %v739, %v756
        %v773 = vadd.f32 %v740, %v757
        %v774 = vadd.f32 %v741, %v758
        %v775 = vadd.f32 %v742, %v759
        %v776 = vadd.f32 %v743, %v760
        %v777 = vadd.f32 %v744, %v761
        %v778 = vadd.f32 %v745, %v762
        %v779 = vadd.f32 %v746, %v763
        %v780 = vadd.f32 %v747, %v764
        %v781 = vadd.f32 %v748, %v765
        %v782 = vadd.f32 %v749, %v766
        %v783 = vadd.f32 %v750, %v767
        %v784 = vadd.f32 %v751, %v768
        %v785 = vadd.f32 %v752, %v769
        %v786 = vperm.slane %v558, 0
        %v787 = vmul.f32 %v572, %v786
        %v788 = vmul.f32 %v573, %v786
        %v789 = vmul.f32 %v574, %v786
        %v790 = vmul.f32 %v575, %v786
        %v791 = vmul.f32 %v576, %v786
        %v792 = vmul.f32 %v577, %v786
        %v793 = vmul.f32 %v578, %v786
        %v794 = vmul.f32 %v579, %v786
        %v795 = vmul.f32 %v580, %v786
        %v796 = vmul.f32 %v581, %v786
        %v797 = vmul.f32 %v582, %v786
        %v798 = vmul.f32 %v583, %v786
        %v799 = vmul.f32 %v584, %v786
        %v800 = vmul.f32 %v585, %v786
        %v801 = vmul.f32 %v586, %v786
        %v802 = vmul.f32 %v587, %v786
        %v803 = vadd.f32 %v770, %v787
        %v804 = vadd.f32 %v771, %v788
        %v805 = vadd.f32 %v772, %v789
        %v806 = vadd.f32 %v773, %v790
        %v807 = vadd.f32 %v774, %v791
        %v808 = vadd.f32 %v775, %v792
        %v809 = vadd.f32 %v776, %v793
        %v810 = vadd.f32 %v777, %v794
        %v811 = vadd.f32 %v778, %v795
        %v812 = vadd.f32 %v779, %v796
        %v813 = vadd.f32 %v780, %v797
        %v814 = vadd.f32 %v781, %v798
        %v815 = vadd.f32 %v782, %v799
        %v816 = vadd.f32 %v783, %v800
        %v817 = vadd.f32 %v784, %v801
        %v818 = vadd.f32 %v785, %v802
        %v819 = vld [vmem:[#allocation2 + $0x6] sm:$0xff]
        %v820 = vld [vmem:[#allocation2 + $0xe] sm:$0xff]
        %v821 = vld [vmem:[#allocation2 + $0x26] sm:$0xff]
        %v822 = vld [vmem:[#allocation2 + $0x2e] sm:$0xff]
        %v823 = vld [vmem:[#allocation2 + $0x46] sm:$0xff]
        %v824 = vld [vmem:[#allocation2 + $0x4e] sm:$0xff]
        %v825 = vld [vmem:[#allocation2 + $0x66] sm:$0xff]
        %v826 = vld [vmem:[#allocation2 + $0x6e] sm:$0xff]
        %v827 = vld [vmem:[#allocation2 + $0x86] sm:$0xff]
        %v828 = vld [vmem:[#allocation2 + $0x8e] sm:$0xff]
        %v829 = vld [vmem:[#allocation2 + $0xa6] sm:$0xff]
        %v830 = vld [vmem:[#allocation2 + $0xae] sm:$0xff]
        %v831 = vld [vmem:[#allocation2 + $0xc6] sm:$0xff]
        %v832 = vld [vmem:[#allocation2 + $0xce] sm:$0xff]
        %v833 = vld [vmem:[#allocation2 + $0xe6] sm:$0xff]
        %v834 = vld [vmem:[#allocation2 + $0xee] sm:$0xff]
        %v835 = vld [vmem:[#allocation2 + $0x106] sm:$0xff]
        %v836 = vld [vmem:[#allocation2 + $0x10e] sm:$0xff]
        %v837 = vld [vmem:[#allocation2 + $0x126] sm:$0xff]
        %v838 = vld [vmem:[#allocation2 + $0x12e] sm:$0xff]
        %v839 = vld [vmem:[#allocation2 + $0x146] sm:$0xff]
        %v840 = vld [vmem:[#allocation2 + $0x14e] sm:$0xff]
        %v841 = vld [vmem:[#allocation2 + $0x166] sm:$0xff]
        %v842 = vld [vmem:[#allocation2 + $0x16e] sm:$0xff]
        %v843 = vld [vmem:[#allocation2 + $0x186] sm:$0xff]
        %v844 = vld [vmem:[#allocation2 + $0x18e] sm:$0xff]
        %v845 = vld [vmem:[#allocation2 + $0x1a6] sm:$0xff]
        %v846 = vld [vmem:[#allocation2 + $0x1ae] sm:$0xff]
        %v847 = vperm.slane %v552, 1
        %v848 = vmul.f32 %v819, %v847
        %v849 = vmul.f32 %v820, %v847
        %v850 = vmul.f32 %v821, %v847
        %v851 = vmul.f32 %v822, %v847
        %v852 = vmul.f32 %v823, %v847
        %v853 = vmul.f32 %v824, %v847
        %v854 = vmul.f32 %v825, %v847
        %v855 = vmul.f32 %v826, %v847
        %v856 = vmul.f32 %v827, %v847
        %v857 = vmul.f32 %v828, %v847
        %v858 = vmul.f32 %v829, %v847
        %v859 = vmul.f32 %v830, %v847
        %v860 = vmul.f32 %v831, %v847
        %v861 = vmul.f32 %v832, %v847
        %v862 = vmul.f32 %v833, %v847
        %v863 = vmul.f32 %v834, %v847
        %v864 = vadd.f32 %v803, %v848
        %v865 = vadd.f32 %v804, %v849
        %v866 = vadd.f32 %v805, %v850
        %v867 = vadd.f32 %v806, %v851
        %v868 = vadd.f32 %v807, %v852
        %v869 = vadd.f32 %v808, %v853
        %v870 = vadd.f32 %v809, %v854
        %v871 = vadd.f32 %v810, %v855
        %v872 = vadd.f32 %v811, %v856
        %v873 = vadd.f32 %v812, %v857
        %v874 = vadd.f32 %v813, %v858
        %v875 = vadd.f32 %v814, %v859
        %v876 = vadd.f32 %v815, %v860
        %v877 = vadd.f32 %v816, %v861
        %v878 = vadd.f32 %v817, %v862
        %v879 = vadd.f32 %v818, %v863
        %v880 = vperm.slane %v553, 1
        %v881 = vmul.f32 %v821, %v880
        %v882 = vmul.f32 %v822, %v880
        %v883 = vmul.f32 %v823, %v880
        %v884 = vmul.f32 %v824, %v880
        %v885 = vmul.f32 %v825, %v880
        %v886 = vmul.f32 %v826, %v880
        %v887 = vmul.f32 %v827, %v880
        %v888 = vmul.f32 %v828, %v880
        %v889 = vmul.f32 %v829, %v880
        %v890 = vmul.f32 %v830, %v880
        %v891 = vmul.f32 %v831, %v880
        %v892 = vmul.f32 %v832, %v880
        %v893 = vmul.f32 %v833, %v880
        %v894 = vmul.f32 %v834, %v880
        %v895 = vmul.f32 %v835, %v880
        %v896 = vmul.f32 %v836, %v880
        %v897 = vadd.f32 %v864, %v881
        %v898 = vadd.f32 %v865, %v882
        %v899 = vadd.f32 %v866, %v883
        %v900 = vadd.f32 %v867, %v884
        %v901 = vadd.f32 %v868, %v885
        %v902 = vadd.f32 %v869, %v886
        %v903 = vadd.f32 %v870, %v887
        %v904 = vadd.f32 %v871, %v888
        %v905 = vadd.f32 %v872, %v889
        %v906 = vadd.f32 %v873, %v890
        %v907 = vadd.f32 %v874, %v891
        %v908 = vadd.f32 %v875, %v892
        %v909 = vadd.f32 %v876, %v893
        %v910 = vadd.f32 %v877, %v894
        %v911 = vadd.f32 %v878, %v895
        %v912 = vadd.f32 %v879, %v896
        %v913 = vperm.slane %v554, 1
        %v914 = vmul.f32 %v823, %v913
        %v915 = vmul.f32 %v824, %v913
        %v916 = vmul.f32 %v825, %v913
        %v917 = vmul.f32 %v826, %v913
        %v918 = vmul.f32 %v827, %v913
        %v919 = vmul.f32 %v828, %v913
        %v920 = vmul.f32 %v829, %v913
        %v921 = vmul.f32 %v830, %v913
        %v922 = vmul.f32 %v831, %v913
        %v923 = vmul.f32 %v832, %v913
        %v924 = vmul.f32 %v833, %v913
        %v925 = vmul.f32 %v834, %v913
        %v926 = vmul.f32 %v835, %v913
        %v927 = vmul.f32 %v836, %v913
        %v928 = vmul.f32 %v837, %v913
        %v929 = vmul.f32 %v838, %v913
        %v930 = vadd.f32 %v897, %v914
        %v931 = vadd.f32 %v898, %v915
        %v932 = vadd.f32 %v899, %v916
        %v933 = vadd.f32 %v900, %v917
        %v934 = vadd.f32 %v901, %v918
        %v935 = vadd.f32 %v902, %v919
        %v936 = vadd.f32 %v903, %v920
        %v937 = vadd.f32 %v904, %v921
        %v938 = vadd.f32 %v905, %v922
        %v939 = vadd.f32 %v906, %v923
        %v940 = vadd.f32 %v907, %v924
        %v941 = vadd.f32 %v908, %v925
        %v942 = vadd.f32 %v909, %v926
        %v943 = vadd.f32 %v910, %v927
        %v944 = vadd.f32 %v911, %v928
        %v945 = vadd.f32 %v912, %v929
        %v946 = vperm.slane %v555, 1
        %v947 = vmul.f32 %v825, %v946
        %v948 = vmul.f32 %v826, %v946
        %v949 = vmul.f32 %v827, %v946
        %v950 = vmul.f32 %v828, %v946
        %v951 = vmul.f32 %v829, %v946
        %v952 = vmul.f32 %v830, %v946
        %v953 = vmul.f32 %v831, %v946
        %v954 = vmul.f32 %v832, %v946
        %v955 = vmul.f32 %v833, %v946
        %v956 = vmul.f32 %v834, %v946
        %v957 = vmul.f32 %v835, %v946
        %v958 = vmul.f32 %v836, %v946
        %v959 = vmul.f32 %v837, %v946
        %v960 = vmul.f32 %v838, %v946
        %v961 = vmul.f32 %v839, %v946
        %v962 = vmul.f32 %v840, %v946
        %v963 = vadd.f32 %v930, %v947
        %v964 = vadd.f32 %v931, %v948
        %v965 = vadd.f32 %v932, %v949
        %v966 = vadd.f32 %v933, %v950
        %v967 = vadd.f32 %v934, %v951
        %v968 = vadd.f32 %v935, %v952
        %v969 = vadd.f32 %v936, %v953
        %v970 = vadd.f32 %v937, %v954
        %v971 = vadd.f32 %v938, %v955
        %v972 = vadd.f32 %v939, %v956
        %v973 = vadd.f32 %v940, %v957
        %v974 = vadd.f32 %v941, %v958
        %v975 = vadd.f32 %v942, %v959
        %v976 = vadd.f32 %v943, %v960
        %v977 = vadd.f32 %v944, %v961
        %v978 = vadd.f32 %v945, %v962
        %v979 = vperm.slane %v556, 1
        %v980 = vmul.f32 %v827, %v979
        %v981 = vmul.f32 %v828, %v979
        %v982 = vmul.f32 %v829, %v979
        %v983 = vmul.f32 %v830, %v979
        %v984 = vmul.f32 %v831, %v979
        %v985 = vmul.f32 %v832, %v979
        %v986 = vmul.f32 %v833, %v979
        %v987 = vmul.f32 %v834, %v979
        %v988 = vmul.f32 %v835, %v979
        %v989 = vmul.f32 %v836, %v979
        %v990 = vmul.f32 %v837, %v979
        %v991 = vmul.f32 %v838, %v979
        %v992 = vmul.f32 %v839, %v979
        %v993 = vmul.f32 %v840, %v979
        %v994 = vmul.f32 %v841, %v979
        %v995 = vmul.f32 %v842, %v979
        %v996 = vadd.f32 %v963, %v980
        %v997 = vadd.f32 %v964, %v981
        %v998 = vadd.f32 %v965, %v982
        %v999 = vadd.f32 %v966, %v983
        %v1000 = vadd.f32 %v967, %v984
        %v1001 = vadd.f32 %v968, %v985
        %v1002 = vadd.f32 %v969, %v986
        %v1003 = vadd.f32 %v970, %v987
        %v1004 = vadd.f32 %v971, %v988
        %v1005 = vadd.f32 %v972, %v989
        %v1006 = vadd.f32 %v973, %v990
        %v1007 = vadd.f32 %v974, %v991
        %v1008 = vadd.f32 %v975, %v992
        %v1009 = vadd.f32 %v976, %v993
        %v1010 = vadd.f32 %v977, %v994
        %v1011 = vadd.f32 %v978, %v995
        %v1012 = vperm.slane %v557, 1
        %v1013 = vmul.f32 %v829, %v1012
        %v1014 = vmul.f32 %v830, %v1012
        %v1015 = vmul.f32 %v831, %v1012
        %v1016 = vmul.f32 %v832, %v1012
        %v1017 = vmul.f32 %v833, %v1012
        %v1018 = vmul.f32 %v834, %v1012
        %v1019 = vmul.f32 %v835, %v1012
        %v1020 = vmul.f32 %v836, %v1012
        %v1021 = vmul.f32 %v837, %v1012
        %v1022 = vmul.f32 %v838, %v1012
        %v1023 = vmul.f32 %v839, %v1012
        %v1024 = vmul.f32 %v840, %v1012
        %v1025 = vmul.f32 %v841, %v1012
        %v1026 = vmul.f32 %v842, %v1012
        %v1027 = vmul.f32 %v843, %v1012
        %v1028 = vmul.f32 %v844, %v1012
        %v1029 = vadd.f32 %v996, %v1013
        %v1030 = vadd.f32 %v997, %v1014
        %v1031 = vadd.f32 %v998, %v1015
        %v1032 = vadd.f32 %v999, %v1016
        %v1033 = vadd.f32 %v1000, %v1017
        %v1034 = vadd.f32 %v1001, %v1018
        %v1035 = vadd.f32 %v1002, %v1019
        %v1036 = vadd.f32 %v1003, %v1020
        %v1037 = vadd.f32 %v1004, %v1021
        %v1038 = vadd.f32 %v1005, %v1022
        %v1039 = vadd.f32 %v1006, %v1023
        %v1040 = vadd.f32 %v1007, %v1024
        %v1041 = vadd.f32 %v1008, %v1025
        %v1042 = vadd.f32 %v1009, %v1026
        %v1043 = vadd.f32 %v1010, %v1027
        %v1044 = vadd.f32 %v1011, %v1028
        %v1045 = vperm.slane %v558, 1
        %v1046 = vmul.f32 %v831, %v1045
        %v1047 = vmul.f32 %v832, %v1045
        %v1048 = vmul.f32 %v833, %v1045
        %v1049 = vmul.f32 %v834, %v1045
        %v1050 = vmul.f32 %v835, %v1045
        %v1051 = vmul.f32 %v836, %v1045
        %v1052 = vmul.f32 %v837, %v1045
        %v1053 = vmul.f32 %v838, %v1045
        %v1054 = vmul.f32 %v839, %v1045
        %v1055 = vmul.f32 %v840, %v1045
        %v1056 = vmul.f32 %v841, %v1045
        %v1057 = vmul.f32 %v842, %v1045
        %v1058 = vmul.f32 %v843, %v1045
        %v1059 = vmul.f32 %v844, %v1045
        %v1060 = vmul.f32 %v845, %v1045
        %v1061 = vmul.f32 %v846, %v1045
        %v1062 = vadd.f32 %v1029, %v1046
        %v1063 = vadd.f32 %v1030, %v1047
        %v1064 = vadd.f32 %v1031, %v1048
        %v1065 = vadd.f32 %v1032, %v1049
        %v1066 = vadd.f32 %v1033, %v1050
        %v1067 = vadd.f32 %v1034, %v1051
        %v1068 = vadd.f32 %v1035, %v1052
        %v1069 = vadd.f32 %v1036, %v1053
        %v1070 = vadd.f32 %v1037, %v1054
        %v1071 = vadd.f32 %v1038, %v1055
        %v1072 = vadd.f32 %v1039, %v1056
        %v1073 = vadd.f32 %v1040, %v1057
        %v1074 = vadd.f32 %v1041, %v1058
        %v1075 = vadd.f32 %v1042, %v1059
        %v1076 = vadd.f32 %v1043, %v1060
        %v1077 = vadd.f32 %v1044, %v1061
        %v1078 = vld [vmem:[#allocation2 + $0x7] sm:$0xff]
        %v1079 = vld [vmem:[#allocation2 + $0xf] sm:$0xff]
        %v1080 = vld [vmem:[#allocation2 + $0x27] sm:$0xff]
        %v1081 = vld [vmem:[#allocation2 + $0x2f] sm:$0xff]
        %v1082 = vld [vmem:[#allocation2 + $0x47] sm:$0xff]
        %v1083 = vld [vmem:[#allocation2 + $0x4f] sm:$0xff]
        %v1084 = vld [vmem:[#allocation2 + $0x67] sm:$0xff]
        %v1085 = vld [vmem:[#allocation2 + $0x6f] sm:$0xff]
        %v1086 = vld [vmem:[#allocation2 + $0x87] sm:$0xff]
        %v1087 = vld [vmem:[#allocation2 + $0x8f] sm:$0xff]
        %v1088 = vld [vmem:[#allocation2 + $0xa7] sm:$0xff]
        %v1089 = vld [vmem:[#allocation2 + $0xaf] sm:$0xff]
        %v1090 = vld [vmem:[#allocation2 + $0xc7] sm:$0xff]
        %v1091 = vld [vmem:[#allocation2 + $0xcf] sm:$0xff]
        %v1092 = vld [vmem:[#allocation2 + $0xe7] sm:$0xff]
        %v1093 = vld [vmem:[#allocation2 + $0xef] sm:$0xff]
        %v1094 = vld [vmem:[#allocation2 + $0x107] sm:$0xff]
        %v1095 = vld [vmem:[#allocation2 + $0x10f] sm:$0xff]
        %v1096 = vld [vmem:[#allocation2 + $0x127] sm:$0xff]
        %v1097 = vld [vmem:[#allocation2 + $0x12f] sm:$0xff]
        %v1098 = vld [vmem:[#allocation2 + $0x147] sm:$0xff]
        %v1099 = vld [vmem:[#allocation2 + $0x14f] sm:$0xff]
        %v1100 = vld [vmem:[#allocation2 + $0x167] sm:$0xff]
        %v1101 = vld [vmem:[#allocation2 + $0x16f] sm:$0xff]
        %v1102 = vld [vmem:[#allocation2 + $0x187] sm:$0xff]
        %v1103 = vld [vmem:[#allocation2 + $0x18f] sm:$0xff]
        %v1104 = vld [vmem:[#allocation2 + $0x1a7] sm:$0xff]
        %v1105 = vld [vmem:[#allocation2 + $0x1af] sm:$0xff]
        %v1106 = vperm.slane %v552, 2
        %v1107 = vmul.f32 %v1078, %v1106
        %v1108 = vmul.f32 %v1079, %v1106
        %v1109 = vmul.f32 %v1080, %v1106
        %v1110 = vmul.f32 %v1081, %v1106
        %v1111 = vmul.f32 %v1082, %v1106
        %v1112 = vmul.f32 %v1083, %v1106
        %v1113 = vmul.f32 %v1084, %v1106
        %v1114 = vmul.f32 %v1085, %v1106
        %v1115 = vmul.f32 %v1086, %v1106
        %v1116 = vmul.f32 %v1087, %v1106
        %v1117 = vmul.f32 %v1088, %v1106
        %v1118 = vmul.f32 %v1089, %v1106
        %v1119 = vmul.f32 %v1090, %v1106
        %v1120 = vmul.f32 %v1091, %v1106
        %v1121 = vmul.f32 %v1092, %v1106
        %v1122 = vmul.f32 %v1093, %v1106
        %v1123 = vadd.f32 %v1062, %v1107
        %v1124 = vadd.f32 %v1063, %v1108
        %v1125 = vadd.f32 %v1064, %v1109
        %v1126 = vadd.f32 %v1065, %v1110
        %v1127 = vadd.f32 %v1066, %v1111
        %v1128 = vadd.f32 %v1067, %v1112
        %v1129 = vadd.f32 %v1068, %v1113
        %v1130 = vadd.f32 %v1069, %v1114
        %v1131 = vadd.f32 %v1070, %v1115
        %v1132 = vadd.f32 %v1071, %v1116
        %v1133 = vadd.f32 %v1072, %v1117
        %v1134 = vadd.f32 %v1073, %v1118
        %v1135 = vadd.f32 %v1074, %v1119
        %v1136 = vadd.f32 %v1075, %v1120
        %v1137 = vadd.f32 %v1076, %v1121
        %v1138 = vadd.f32 %v1077, %v1122
        %v1139 = vperm.slane %v553, 2
        %v1140 = vmul.f32 %v1080, %v1139
        %v1141 = vmul.f32 %v1081, %v1139
        %v1142 = vmul.f32 %v1082, %v1139
        %v1143 = vmul.f32 %v1083, %v1139
        %v1144 = vmul.f32 %v1084, %v1139
        %v1145 = vmul.f32 %v1085, %v1139
        %v1146 = vmul.f32 %v1086, %v1139
        %v1147 = vmul.f32 %v1087, %v1139
        %v1148 = vmul.f32 %v1088, %v1139
        %v1149 = vmul.f32 %v1089, %v1139
        %v1150 = vmul.f32 %v1090, %v1139
        %v1151 = vmul.f32 %v1091, %v1139
        %v1152 = vmul.f32 %v1092, %v1139
        %v1153 = vmul.f32 %v1093, %v1139
        %v1154 = vmul.f32 %v1094, %v1139
        %v1155 = vmul.f32 %v1095, %v1139
        %v1156 = vadd.f32 %v1123, %v1140
        %v1157 = vadd.f32 %v1124, %v1141
        %v1158 = vadd.f32 %v1125, %v1142
        %v1159 = vadd.f32 %v1126, %v1143
        %v1160 = vadd.f32 %v1127, %v1144
        %v1161 = vadd.f32 %v1128, %v1145
        %v1162 = vadd.f32 %v1129, %v1146
        %v1163 = vadd.f32 %v1130, %v1147
        %v1164 = vadd.f32 %v1131, %v1148
        %v1165 = vadd.f32 %v1132, %v1149
        %v1166 = vadd.f32 %v1133, %v1150
        %v1167 = vadd.f32 %v1134, %v1151
        %v1168 = vadd.f32 %v1135, %v1152
        %v1169 = vadd.f32 %v1136, %v1153
        %v1170 = vadd.f32 %v1137, %v1154
        %v1171 = vadd.f32 %v1138, %v1155
        %v1172 = vperm.slane %v554, 2
        %v1173 = vmul.f32 %v1082, %v1172
        %v1174 = vmul.f32 %v1083, %v1172
        %v1175 = vmul.f32 %v1084, %v1172
        %v1176 = vmul.f32 %v1085, %v1172
        %v1177 = vmul.f32 %v1086, %v1172
        %v1178 = vmul.f32 %v1087, %v1172
        %v1179 = vmul.f32 %v1088, %v1172
        %v1180 = vmul.f32 %v1089, %v1172
        %v1181 = vmul.f32 %v1090, %v1172
        %v1182 = vmul.f32 %v1091, %v1172
        %v1183 = vmul.f32 %v1092, %v1172
        %v1184 = vmul.f32 %v1093, %v1172
        %v1185 = vmul.f32 %v1094, %v1172
        %v1186 = vmul.f32 %v1095, %v1172
        %v1187 = vmul.f32 %v1096, %v1172
        %v1188 = vmul.f32 %v1097, %v1172
        %v1189 = vadd.f32 %v1156, %v1173
        %v1190 = vadd.f32 %v1157, %v1174
        %v1191 = vadd.f32 %v1158, %v1175
        %v1192 = vadd.f32 %v1159, %v1176
        %v1193 = vadd.f32 %v1160, %v1177
        %v1194 = vadd.f32 %v1161, %v1178
        %v1195 = vadd.f32 %v1162, %v1179
        %v1196 = vadd.f32 %v1163, %v1180
        %v1197 = vadd.f32 %v1164, %v1181
        %v1198 = vadd.f32 %v1165, %v1182
        %v1199 = vadd.f32 %v1166, %v1183
        %v1200 = vadd.f32 %v1167, %v1184
        %v1201 = vadd.f32 %v1168, %v1185
        %v1202 = vadd.f32 %v1169, %v1186
        %v1203 = vadd.f32 %v1170, %v1187
        %v1204 = vadd.f32 %v1171, %v1188
        %v1205 = vperm.slane %v555, 2
        %v1206 = vmul.f32 %v1084, %v1205
        %v1207 = vmul.f32 %v1085, %v1205
        %v1208 = vmul.f32 %v1086, %v1205
        %v1209 = vmul.f32 %v1087, %v1205
        %v1210 = vmul.f32 %v1088, %v1205
        %v1211 = vmul.f32 %v1089, %v1205
        %v1212 = vmul.f32 %v1090, %v1205
        %v1213 = vmul.f32 %v1091, %v1205
        %v1214 = vmul.f32 %v1092, %v1205
        %v1215 = vmul.f32 %v1093, %v1205
        %v1216 = vmul.f32 %v1094, %v1205
        %v1217 = vmul.f32 %v1095, %v1205
        %v1218 = vmul.f32 %v1096, %v1205
        %v1219 = vmul.f32 %v1097, %v1205
        %v1220 = vmul.f32 %v1098, %v1205
        %v1221 = vmul.f32 %v1099, %v1205
        %v1222 = vadd.f32 %v1189, %v1206
        %v1223 = vadd.f32 %v1190, %v1207
        %v1224 = vadd.f32 %v1191, %v1208
        %v1225 = vadd.f32 %v1192, %v1209
        %v1226 = vadd.f32 %v1193, %v1210
        %v1227 = vadd.f32 %v1194, %v1211
        %v1228 = vadd.f32 %v1195, %v1212
        %v1229 = vadd.f32 %v1196, %v1213
        %v1230 = vadd.f32 %v1197, %v1214
        %v1231 = vadd.f32 %v1198, %v1215
        %v1232 = vadd.f32 %v1199, %v1216
        %v1233 = vadd.f32 %v1200, %v1217
        %v1234 = vadd.f32 %v1201, %v1218
        %v1235 = vadd.f32 %v1202, %v1219
        %v1236 = vadd.f32 %v1203, %v1220
        %v1237 = vadd.f32 %v1204, %v1221
        %v1238 = vperm.slane %v556, 2
        %v1239 = vmul.f32 %v1086, %v1238
        %v1240 = vmul.f32 %v1087, %v1238
        %v1241 = vmul.f32 %v1088, %v1238
        %v1242 = vmul.f32 %v1089, %v1238
        %v1243 = vmul.f32 %v1090, %v1238
        %v1244 = vmul.f32 %v1091, %v1238
        %v1245 = vmul.f32 %v1092, %v1238
        %v1246 = vmul.f32 %v1093, %v1238
        %v1247 = vmul.f32 %v1094, %v1238
        %v1248 = vmul.f32 %v1095, %v1238
        %v1249 = vmul.f32 %v1096, %v1238
        %v1250 = vmul.f32 %v1097, %v1238
        %v1251 = vmul.f32 %v1098, %v1238
        %v1252 = vmul.f32 %v1099, %v1238
        %v1253 = vmul.f32 %v1100, %v1238
        %v1254 = vmul.f32 %v1101, %v1238
        %v1255 = vadd.f32 %v1222, %v1239
        %v1256 = vadd.f32 %v1223, %v1240
        %v1257 = vadd.f32 %v1224, %v1241
        %v1258 = vadd.f32 %v1225, %v1242
        %v1259 = vadd.f32 %v1226, %v1243
        %v1260 = vadd.f32 %v1227, %v1244
        %v1261 = vadd.f32 %v1228, %v1245
        %v1262 = vadd.f32 %v1229, %v1246
        %v1263 = vadd.f32 %v1230, %v1247
        %v1264 = vadd.f32 %v1231, %v1248
        %v1265 = vadd.f32 %v1232, %v1249
        %v1266 = vadd.f32 %v1233, %v1250
        %v1267 = vadd.f32 %v1234, %v1251
        %v1268 = vadd.f32 %v1235, %v1252
        %v1269 = vadd.f32 %v1236, %v1253
        %v1270 = vadd.f32 %v1237, %v1254
        %v1271 = vperm.slane %v557, 2
        %v1272 = vmul.f32 %v1088, %v1271
        %v1273 = vmul.f32 %v1089, %v1271
        %v1274 = vmul.f32 %v1090, %v1271
        %v1275 = vmul.f32 %v1091, %v1271
        %v1276 = vmul.f32 %v1092, %v1271
        %v1277 = vmul.f32 %v1093, %v1271
        %v1278 = vmul.f32 %v1094, %v1271
        %v1279 = vmul.f32 %v1095, %v1271
        %v1280 = vmul.f32 %v1096, %v1271
        %v1281 = vmul.f32 %v1097, %v1271
        %v1282 = vmul.f32 %v1098, %v1271
        %v1283 = vmul.f32 %v1099, %v1271
        %v1284 = vmul.f32 %v1100, %v1271
        %v1285 = vmul.f32 %v1101, %v1271
        %v1286 = vmul.f32 %v1102, %v1271
        %v1287 = vmul.f32 %v1103, %v1271
        %v1288 = vadd.f32 %v1255, %v1272
        %v1289 = vadd.f32 %v1256, %v1273
        %v1290 = vadd.f32 %v1257, %v1274
        %v1291 = vadd.f32 %v1258, %v1275
        %v1292 = vadd.f32 %v1259, %v1276
        %v1293 = vadd.f32 %v1260, %v1277
        %v1294 = vadd.f32 %v1261, %v1278
        %v1295 = vadd.f32 %v1262, %v1279
        %v1296 = vadd.f32 %v1263, %v1280
        %v1297 = vadd.f32 %v1264, %v1281
        %v1298 = vadd.f32 %v1265, %v1282
        %v1299 = vadd.f32 %v1266, %v1283
        %v1300 = vadd.f32 %v1267, %v1284
        %v1301 = vadd.f32 %v1268, %v1285
        %v1302 = vadd.f32 %v1269, %v1286
        %v1303 = vadd.f32 %v1270, %v1287
        %v1304 = vperm.slane %v558, 2
        %v1305 = vmul.f32 %v1090, %v1304
        %v1306 = vmul.f32 %v1091, %v1304
        %v1307 = vmul.f32 %v1092, %v1304
        %v1308 = vmul.f32 %v1093, %v1304
        %v1309 = vmul.f32 %v1094, %v1304
        %v1310 = vmul.f32 %v1095, %v1304
        %v1311 = vmul.f32 %v1096, %v1304
        %v1312 = vmul.f32 %v1097, %v1304
        %v1313 = vmul.f32 %v1098, %v1304
        %v1314 = vmul.f32 %v1099, %v1304
        %v1315 = vmul.f32 %v1100, %v1304
        %v1316 = vmul.f32 %v1101, %v1304
        %v1317 = vmul.f32 %v1102, %v1304
        %v1318 = vmul.f32 %v1103, %v1304
        %v1319 = vmul.f32 %v1104, %v1304
        %v1320 = vmul.f32 %v1105, %v1304
        %v1321 = vadd.f32 %v1288, %v1305
        %v1322 = vadd.f32 %v1289, %v1306
        %v1323 = vadd.f32 %v1290, %v1307
        %v1324 = vadd.f32 %v1291, %v1308
        %v1325 = vadd.f32 %v1292, %v1309
        %v1326 = vadd.f32 %v1293, %v1310
        %v1327 = vadd.f32 %v1294, %v1311
        %v1328 = vadd.f32 %v1295, %v1312
        %v1329 = vadd.f32 %v1296, %v1313
        %v1330 = vadd.f32 %v1297, %v1314
        %v1331 = vadd.f32 %v1298, %v1315
        %v1332 = vadd.f32 %v1299, %v1316
        %v1333 = vadd.f32 %v1300, %v1317
        %v1334 = vadd.f32 %v1301, %v1318
        %v1335 = vadd.f32 %v1302, %v1319
        %v1336 = vadd.f32 %v1303, %v1320
        %v1337 = vld [vmem:[#allocation2 + $0x8] sm:$0xff]
        %v1338 = vld [vmem:[#allocation2 + $0x10] sm:$0xff]
        %v1339 = vld [vmem:[#allocation2 + $0x28] sm:$0xff]
        %v1340 = vld [vmem:[#allocation2 + $0x30] sm:$0xff]
        %v1341 = vld [vmem:[#allocation2 + $0x48] sm:$0xff]
        %v1342 = vld [vmem:[#allocation2 + $0x50] sm:$0xff]
        %v1343 = vld [vmem:[#allocation2 + $0x68] sm:$0xff]
        %v1344 = vld [vmem:[#allocation2 + $0x70] sm:$0xff]
        %v1345 = vld [vmem:[#allocation2 + $0x88] sm:$0xff]
        %v1346 = vld [vmem:[#allocation2 + $0x90] sm:$0xff]
        %v1347 = vld [vmem:[#allocation2 + $0xa8] sm:$0xff]
        %v1348 = vld [vmem:[#allocation2 + $0xb0] sm:$0xff]
        %v1349 = vld [vmem:[#allocation2 + $0xc8] sm:$0xff]
        %v1350 = vld [vmem:[#allocation2 + $0xd0] sm:$0xff]
        %v1351 = vld [vmem:[#allocation2 + $0xe8] sm:$0xff]
        %v1352 = vld [vmem:[#allocation2 + $0xf0] sm:$0xff]
        %v1353 = vld [vmem:[#allocation2 + $0x108] sm:$0xff]
        %v1354 = vld [vmem:[#allocation2 + $0x110] sm:$0xff]
        %v1355 = vld [vmem:[#allocation2 + $0x128] sm:$0xff]
        %v1356 = vld [vmem:[#allocation2 + $0x130] sm:$0xff]
        %v1357 = vld [vmem:[#allocation2 + $0x148] sm:$0xff]
        %v1358 = vld [vmem:[#allocation2 + $0x150] sm:$0xff]
        %v1359 = vld [vmem:[#allocation2 + $0x168] sm:$0xff]
        %v1360 = vld [vmem:[#allocation2 + $0x170] sm:$0xff]
        %v1361 = vld [vmem:[#allocation2 + $0x188] sm:$0xff]
        %v1362 = vld [vmem:[#allocation2 + $0x190] sm:$0xff]
        %v1363 = vld [vmem:[#allocation2 + $0x1a8] sm:$0xff]
        %v1364 = vld [vmem:[#allocation2 + $0x1b0] sm:$0xff]
        %v1365 = vperm.slane %v552, 3
        %v1366 = vmul.f32 %v1337, %v1365
        %v1367 = vmul.f32 %v1338, %v1365
        %v1368 = vmul.f32 %v1339, %v1365
        %v1369 = vmul.f32 %v1340, %v1365
        %v1370 = vmul.f32 %v1341, %v1365
        %v1371 = vmul.f32 %v1342, %v1365
        %v1372 = vmul.f32 %v1343, %v1365
        %v1373 = vmul.f32 %v1344, %v1365
        %v1374 = vmul.f32 %v1345, %v1365
        %v1375 = vmul.f32 %v1346, %v1365
        %v1376 = vmul.f32 %v1347, %v1365
        %v1377 = vmul.f32 %v1348, %v1365
        %v1378 = vmul.f32 %v1349, %v1365
        %v1379 = vmul.f32 %v1350, %v1365
        %v1380 = vmul.f32 %v1351, %v1365
        %v1381 = vmul.f32 %v1352, %v1365
        %v1382 = vadd.f32 %v1321, %v1366
        %v1383 = vadd.f32 %v1322, %v1367
        %v1384 = vadd.f32 %v1323, %v1368
        %v1385 = vadd.f32 %v1324, %v1369
        %v1386 = vadd.f32 %v1325, %v1370
        %v1387 = vadd.f32 %v1326, %v1371
        %v1388 = vadd.f32 %v1327, %v1372
        %v1389 = vadd.f32 %v1328, %v1373
        %v1390 = vadd.f32 %v1329, %v1374
        %v1391 = vadd.f32 %v1330, %v1375
        %v1392 = vadd.f32 %v1331, %v1376
        %v1393 = vadd.f32 %v1332, %v1377
        %v1394 = vadd.f32 %v1333, %v1378
        %v1395 = vadd.f32 %v1334, %v1379
        %v1396 = vadd.f32 %v1335, %v1380
        %v1397 = vadd.f32 %v1336, %v1381
        %v1398 = vperm.slane %v553, 3
        %v1399 = vmul.f32 %v1339, %v1398
        %v1400 = vmul.f32 %v1340, %v1398
        %v1401 = vmul.f32 %v1341, %v1398
        %v1402 = vmul.f32 %v1342, %v1398
        %v1403 = vmul.f32 %v1343, %v1398
        %v1404 = vmul.f32 %v1344, %v1398
        %v1405 = vmul.f32 %v1345, %v1398
        %v1406 = vmul.f32 %v1346, %v1398
        %v1407 = vmul.f32 %v1347, %v1398
        %v1408 = vmul.f32 %v1348, %v1398
        %v1409 = vmul.f32 %v1349, %v1398
        %v1410 = vmul.f32 %v1350, %v1398
        %v1411 = vmul.f32 %v1351, %v1398
        %v1412 = vmul.f32 %v1352, %v1398
        %v1413 = vmul.f32 %v1353, %v1398
        %v1414 = vmul.f32 %v1354, %v1398
        %v1415 = vadd.f32 %v1382, %v1399
        %v1416 = vadd.f32 %v1383, %v1400
        %v1417 = vadd.f32 %v1384, %v1401
        %v1418 = vadd.f32 %v1385, %v1402
        %v1419 = vadd.f32 %v1386, %v1403
        %v1420 = vadd.f32 %v1387, %v1404
        %v1421 = vadd.f32 %v1388, %v1405
        %v1422 = vadd.f32 %v1389, %v1406
        %v1423 = vadd.f32 %v1390, %v1407
        %v1424 = vadd.f32 %v1391, %v1408
        %v1425 = vadd.f32 %v1392, %v1409
        %v1426 = vadd.f32 %v1393, %v1410
        %v1427 = vadd.f32 %v1394, %v1411
        %v1428 = vadd.f32 %v1395, %v1412
        %v1429 = vadd.f32 %v1396, %v1413
        %v1430 = vadd.f32 %v1397, %v1414
        %v1431 = vperm.slane %v554, 3
        %v1432 = vmul.f32 %v1341, %v1431
        %v1433 = vmul.f32 %v1342, %v1431
        %v1434 = vmul.f32 %v1343, %v1431
        %v1435 = vmul.f32 %v1344, %v1431
        %v1436 = vmul.f32 %v1345, %v1431
        %v1437 = vmul.f32 %v1346, %v1431
        %v1438 = vmul.f32 %v1347, %v1431
        %v1439 = vmul.f32 %v1348, %v1431
        %v1440 = vmul.f32 %v1349, %v1431
        %v1441 = vmul.f32 %v1350, %v1431
        %v1442 = vmul.f32 %v1351, %v1431
        %v1443 = vmul.f32 %v1352, %v1431
        %v1444 = vmul.f32 %v1353, %v1431
        %v1445 = vmul.f32 %v1354, %v1431
        %v1446 = vmul.f32 %v1355, %v1431
        %v1447 = vmul.f32 %v1356, %v1431
        %v1448 = vadd.f32 %v1415, %v1432
        %v1449 = vadd.f32 %v1416, %v1433
        %v1450 = vadd.f32 %v1417, %v1434
        %v1451 = vadd.f32 %v1418, %v1435
        %v1452 = vadd.f32 %v1419, %v1436
        %v1453 = vadd.f32 %v1420, %v1437
        %v1454 = vadd.f32 %v1421, %v1438
        %v1455 = vadd.f32 %v1422, %v1439
        %v1456 = vadd.f32 %v1423, %v1440
        %v1457 = vadd.f32 %v1424, %v1441
        %v1458 = vadd.f32 %v1425, %v1442
        %v1459 = vadd.f32 %v1426, %v1443
        %v1460 = vadd.f32 %v1427, %v1444
        %v1461 = vadd.f32 %v1428, %v1445
        %v1462 = vadd.f32 %v1429, %v1446
        %v1463 = vadd.f32 %v1430, %v1447
        %v1464 = vperm.slane %v555, 3
        %v1465 = vmul.f32 %v1343, %v1464
        %v1466 = vmul.f32 %v1344, %v1464
        %v1467 = vmul.f32 %v1345, %v1464
        %v1468 = vmul.f32 %v1346, %v1464
        %v1469 = vmul.f32 %v1347, %v1464
        %v1470 = vmul.f32 %v1348, %v1464
        %v1471 = vmul.f32 %v1349, %v1464
        %v1472 = vmul.f32 %v1350, %v1464
        %v1473 = vmul.f32 %v1351, %v1464
        %v1474 = vmul.f32 %v1352, %v1464
        %v1475 = vmul.f32 %v1353, %v1464
        %v1476 = vmul.f32 %v1354, %v1464
        %v1477 = vmul.f32 %v1355, %v1464
        %v1478 = vmul.f32 %v1356, %v1464
        %v1479 = vmul.f32 %v1357, %v1464
        %v1480 = vmul.f32 %v1358, %v1464
        %v1481 = vadd.f32 %v1448, %v1465
        %v1482 = vadd.f32 %v1449, %v1466
        %v1483 = vadd.f32 %v1450, %v1467
        %v1484 = vadd.f32 %v1451, %v1468
        %v1485 = vadd.f32 %v1452, %v1469
        %v1486 = vadd.f32 %v1453, %v1470
        %v1487 = vadd.f32 %v1454, %v1471
        %v1488 = vadd.f32 %v1455, %v1472
        %v1489 = vadd.f32 %v1456, %v1473
        %v1490 = vadd.f32 %v1457, %v1474
        %v1491 = vadd.f32 %v1458, %v1475
        %v1492 = vadd.f32 %v1459, %v1476
        %v1493 = vadd.f32 %v1460, %v1477
        %v1494 = vadd.f32 %v1461, %v1478
        %v1495 = vadd.f32 %v1462, %v1479
        %v1496 = vadd.f32 %v1463, %v1480
        %v1497 = vperm.slane %v556, 3
        %v1498 = vmul.f32 %v1345, %v1497
        %v1499 = vmul.f32 %v1346, %v1497
        %v1500 = vmul.f32 %v1347, %v1497
        %v1501 = vmul.f32 %v1348, %v1497
        %v1502 = vmul.f32 %v1349, %v1497
        %v1503 = vmul.f32 %v1350, %v1497
        %v1504 = vmul.f32 %v1351, %v1497
        %v1505 = vmul.f32 %v1352, %v1497
        %v1506 = vmul.f32 %v1353, %v1497
        %v1507 = vmul.f32 %v1354, %v1497
        %v1508 = vmul.f32 %v1355, %v1497
        %v1509 = vmul.f32 %v1356, %v1497
        %v1510 = vmul.f32 %v1357, %v1497
        %v1511 = vmul.f32 %v1358, %v1497
        %v1512 = vmul.f32 %v1359, %v1497
        %v1513 = vmul.f32 %v1360, %v1497
        %v1514 = vadd.f32 %v1481, %v1498
        %v1515 = vadd.f32 %v1482, %v1499
        %v1516 = vadd.f32 %v1483, %v1500
        %v1517 = vadd.f32 %v1484, %v1501
        %v1518 = vadd.f32 %v1485, %v1502
        %v1519 = vadd.f32 %v1486, %v1503
        %v1520 = vadd.f32 %v1487, %v1504
        %v1521 = vadd.f32 %v1488, %v1505
        %v1522 = vadd.f32 %v1489, %v1506
        %v1523 = vadd.f32 %v1490, %v1507
        %v1524 = vadd.f32 %v1491, %v1508
        %v1525 = vadd.f32 %v1492, %v1509
        %v1526 = vadd.f32 %v1493, %v1510
        %v1527 = vadd.f32 %v1494, %v1511
        %v1528 = vadd.f32 %v1495, %v1512
        %v1529 = vadd.f32 %v1496, %v1513
        %v1530 = vperm.slane %v557, 3
        %v1531 = vmul.f32 %v1347, %v1530
        %v1532 = vmul.f32 %v1348, %v1530
        %v1533 = vmul.f32 %v1349, %v1530
        %v1534 = vmul.f32 %v1350, %v1530
        %v1535 = vmul.f32 %v1351, %v1530
        %v1536 = vmul.f32 %v1352, %v1530
        %v1537 = vmul.f32 %v1353, %v1530
        %v1538 = vmul.f32 %v1354, %v1530
        %v1539 = vmul.f32 %v1355, %v1530
        %v1540 = vmul.f32 %v1356, %v1530
        %v1541 = vmul.f32 %v1357, %v1530
        %v1542 = vmul.f32 %v1358, %v1530
        %v1543 = vmul.f32 %v1359, %v1530
        %v1544 = vmul.f32 %v1360, %v1530
        %v1545 = vmul.f32 %v1361, %v1530
        %v1546 = vmul.f32 %v1362, %v1530
        %v1547 = vadd.f32 %v1514, %v1531
        %v1548 = vadd.f32 %v1515, %v1532
        %v1549 = vadd.f32 %v1516, %v1533
        %v1550 = vadd.f32 %v1517, %v1534
        %v1551 = vadd.f32 %v1518, %v1535
        %v1552 = vadd.f32 %v1519, %v1536
        %v1553 = vadd.f32 %v1520, %v1537
        %v1554 = vadd.f32 %v1521, %v1538
        %v1555 = vadd.f32 %v1522, %v1539
        %v1556 = vadd.f32 %v1523, %v1540
        %v1557 = vadd.f32 %v1524, %v1541
        %v1558 = vadd.f32 %v1525, %v1542
        %v1559 = vadd.f32 %v1526, %v1543
        %v1560 = vadd.f32 %v1527, %v1544
        %v1561 = vadd.f32 %v1528, %v1545
        %v1562 = vadd.f32 %v1529, %v1546
        %v1563 = vperm.slane %v558, 3
        %v1564 = vmul.f32 %v1349, %v1563
        %v1565 = vmul.f32 %v1350, %v1563
        %v1566 = vmul.f32 %v1351, %v1563
        %v1567 = vmul.f32 %v1352, %v1563
        %v1568 = vmul.f32 %v1353, %v1563
        %v1569 = vmul.f32 %v1354, %v1563
        %v1570 = vmul.f32 %v1355, %v1563
        %v1571 = vmul.f32 %v1356, %v1563
        %v1572 = vmul.f32 %v1357, %v1563
        %v1573 = vmul.f32 %v1358, %v1563
        %v1574 = vmul.f32 %v1359, %v1563
        %v1575 = vmul.f32 %v1360, %v1563
        %v1576 = vmul.f32 %v1361, %v1563
        %v1577 = vmul.f32 %v1362, %v1563
        %v1578 = vmul.f32 %v1363, %v1563
        %v1579 = vmul.f32 %v1364, %v1563
        %v1580 = vadd.f32 %v1547, %v1564
        %v1581 = vadd.f32 %v1548, %v1565
        %v1582 = vadd.f32 %v1549, %v1566
        %v1583 = vadd.f32 %v1550, %v1567
        %v1584 = vadd.f32 %v1551, %v1568
        %v1585 = vadd.f32 %v1552, %v1569
        %v1586 = vadd.f32 %v1553, %v1570
        %v1587 = vadd.f32 %v1554, %v1571
        %v1588 = vadd.f32 %v1555, %v1572
        %v1589 = vadd.f32 %v1556, %v1573
        %v1590 = vadd.f32 %v1557, %v1574
        %v1591 = vadd.f32 %v1558, %v1575
        %v1592 = vadd.f32 %v1559, %v1576
        %v1593 = vadd.f32 %v1560, %v1577
        %v1594 = vadd.f32 %v1561, %v1578
        %v1595 = vadd.f32 %v1562, %v1579
        %v1596 = vld [vmem:[#allocation2 + $0x9] sm:$0xff]
        %v1597 = vld [vmem:[#allocation2 + $0x11] sm:$0xff]
        %v1598 = vld [vmem:[#allocation2 + $0x29] sm:$0xff]
        %v1599 = vld [vmem:[#allocation2 + $0x31] sm:$0xff]
        %v1600 = vld [vmem:[#allocation2 + $0x49] sm:$0xff]
        %v1601 = vld [vmem:[#allocation2 + $0x51] sm:$0xff]
        %v1602 = vld [vmem:[#allocation2 + $0x69] sm:$0xff]
        %v1603 = vld [vmem:[#allocation2 + $0x71] sm:$0xff]
        %v1604 = vld [vmem:[#allocation2 + $0x89] sm:$0xff]
        %v1605 = vld [vmem:[#allocation2 + $0x91] sm:$0xff]
        %v1606 = vld [vmem:[#allocation2 + $0xa9] sm:$0xff]
        %v1607 = vld [vmem:[#allocation2 + $0xb1] sm:$0xff]
        %v1608 = vld [vmem:[#allocation2 + $0xc9] sm:$0xff]
        %v1609 = vld [vmem:[#allocation2 + $0xd1] sm:$0xff]
        %v1610 = vld [vmem:[#allocation2 + $0xe9] sm:$0xff]
        %v1611 = vld [vmem:[#allocation2 + $0xf1] sm:$0xff]
        %v1612 = vld [vmem:[#allocation2 + $0x109] sm:$0xff]
        %v1613 = vld [vmem:[#allocation2 + $0x111] sm:$0xff]
        %v1614 = vld [vmem:[#allocation2 + $0x129] sm:$0xff]
        %v1615 = vld [vmem:[#allocation2 + $0x131] sm:$0xff]
        %v1616 = vld [vmem:[#allocation2 + $0x149] sm:$0xff]
        %v1617 = vld [vmem:[#allocation2 + $0x151] sm:$0xff]
        %v1618 = vld [vmem:[#allocation2 + $0x169] sm:$0xff]
        %v1619 = vld [vmem:[#allocation2 + $0x171] sm:$0xff]
        %v1620 = vld [vmem:[#allocation2 + $0x189] sm:$0xff]
        %v1621 = vld [vmem:[#allocation2 + $0x191] sm:$0xff]
        %v1622 = vld [vmem:[#allocation2 + $0x1a9] sm:$0xff]
        %v1623 = vld [vmem:[#allocation2 + $0x1b1] sm:$0xff]
        %v1624 = vperm.slane %v552, 4
        %v1625 = vmul.f32 %v1596, %v1624
        %v1626 = vmul.f32 %v1597, %v1624
        %v1627 = vmul.f32 %v1598, %v1624
        %v1628 = vmul.f32 %v1599, %v1624
        %v1629 = vmul.f32 %v1600, %v1624
        %v1630 = vmul.f32 %v1601, %v1624
        %v1631 = vmul.f32 %v1602, %v1624
        %v1632 = vmul.f32 %v1603, %v1624
        %v1633 = vmul.f32 %v1604, %v1624
        %v1634 = vmul.f32 %v1605, %v1624
        %v1635 = vmul.f32 %v1606, %v1624
        %v1636 = vmul.f32 %v1607, %v1624
        %v1637 = vmul.f32 %v1608, %v1624
        %v1638 = vmul.f32 %v1609, %v1624
        %v1639 = vmul.f32 %v1610, %v1624
        %v1640 = vmul.f32 %v1611, %v1624
        %v1641 = vadd.f32 %v1580, %v1625
        %v1642 = vadd.f32 %v1581, %v1626
        %v1643 = vadd.f32 %v1582, %v1627
        %v1644 = vadd.f32 %v1583, %v1628
        %v1645 = vadd.f32 %v1584, %v1629
        %v1646 = vadd.f32 %v1585, %v1630
        %v1647 = vadd.f32 %v1586, %v1631
        %v1648 = vadd.f32 %v1587, %v1632
        %v1649 = vadd.f32 %v1588, %v1633
        %v1650 = vadd.f32 %v1589, %v1634
        %v1651 = vadd.f32 %v1590, %v1635
        %v1652 = vadd.f32 %v1591, %v1636
        %v1653 = vadd.f32 %v1592, %v1637
        %v1654 = vadd.f32 %v1593, %v1638
        %v1655 = vadd.f32 %v1594, %v1639
        %v1656 = vadd.f32 %v1595, %v1640
        %v1657 = vperm.slane %v553, 4
        %v1658 = vmul.f32 %v1598, %v1657
        %v1659 = vmul.f32 %v1599, %v1657
        %v1660 = vmul.f32 %v1600, %v1657
        %v1661 = vmul.f32 %v1601, %v1657
        %v1662 = vmul.f32 %v1602, %v1657
        %v1663 = vmul.f32 %v1603, %v1657
        %v1664 = vmul.f32 %v1604, %v1657
        %v1665 = vmul.f32 %v1605, %v1657
        %v1666 = vmul.f32 %v1606, %v1657
        %v1667 = vmul.f32 %v1607, %v1657
        %v1668 = vmul.f32 %v1608, %v1657
        %v1669 = vmul.f32 %v1609, %v1657
        %v1670 = vmul.f32 %v1610, %v1657
        %v1671 = vmul.f32 %v1611, %v1657
        %v1672 = vmul.f32 %v1612, %v1657
        %v1673 = vmul.f32 %v1613, %v1657
        %v1674 = vadd.f32 %v1641, %v1658
        %v1675 = vadd.f32 %v1642, %v1659
        %v1676 = vadd.f32 %v1643, %v1660
        %v1677 = vadd.f32 %v1644, %v1661
        %v1678 = vadd.f32 %v1645, %v1662
        %v1679 = vadd.f32 %v1646, %v1663
        %v1680 = vadd.f32 %v1647, %v1664
        %v1681 = vadd.f32 %v1648, %v1665
        %v1682 = vadd.f32 %v1649, %v1666
        %v1683 = vadd.f32 %v1650, %v1667
        %v1684 = vadd.f32 %v1651, %v1668
        %v1685 = vadd.f32 %v1652, %v1669
        %v1686 = vadd.f32 %v1653, %v1670
        %v1687 = vadd.f32 %v1654, %v1671
        %v1688 = vadd.f32 %v1655, %v1672
        %v1689 = vadd.f32 %v1656, %v1673
        %v1690 = vperm.slane %v554, 4
        %v1691 = vmul.f32 %v1600, %v1690
        %v1692 = vmul.f32 %v1601, %v1690
        %v1693 = vmul.f32 %v1602, %v1690
        %v1694 = vmul.f32 %v1603, %v1690
        %v1695 = vmul.f32 %v1604, %v1690
        %v1696 = vmul.f32 %v1605, %v1690
        %v1697 = vmul.f32 %v1606, %v1690
        %v1698 = vmul.f32 %v1607, %v1690
        %v1699 = vmul.f32 %v1608, %v1690
        %v1700 = vmul.f32 %v1609, %v1690
        %v1701 = vmul.f32 %v1610, %v1690
        %v1702 = vmul.f32 %v1611, %v1690
        %v1703 = vmul.f32 %v1612, %v1690
        %v1704 = vmul.f32 %v1613, %v1690
        %v1705 = vmul.f32 %v1614, %v1690
        %v1706 = vmul.f32 %v1615, %v1690
        %v1707 = vadd.f32 %v1674, %v1691
        %v1708 = vadd.f32 %v1675, %v1692
        %v1709 = vadd.f32 %v1676, %v1693
        %v1710 = vadd.f32 %v1677, %v1694
        %v1711 = vadd.f32 %v1678, %v1695
        %v1712 = vadd.f32 %v1679, %v1696
        %v1713 = vadd.f32 %v1680, %v1697
        %v1714 = vadd.f32 %v1681, %v1698
        %v1715 = vadd.f32 %v1682, %v1699
        %v1716 = vadd.f32 %v1683, %v1700
        %v1717 = vadd.f32 %v1684, %v1701
        %v1718 = vadd.f32 %v1685, %v1702
        %v1719 = vadd.f32 %v1686, %v1703
        %v1720 = vadd.f32 %v1687, %v1704
        %v1721 = vadd.f32 %v1688, %v1705
        %v1722 = vadd.f32 %v1689, %v1706
        %v1723 = vperm.slane %v555, 4
        %v1724 = vmul.f32 %v1602, %v1723
        %v1725 = vmul.f32 %v1603, %v1723
        %v1726 = vmul.f32 %v1604, %v1723
        %v1727 = vmul.f32 %v1605, %v1723
        %v1728 = vmul.f32 %v1606, %v1723
        %v1729 = vmul.f32 %v1607, %v1723
        %v1730 = vmul.f32 %v1608, %v1723
        %v1731 = vmul.f32 %v1609, %v1723
        %v1732 = vmul.f32 %v1610, %v1723
        %v1733 = vmul.f32 %v1611, %v1723
        %v1734 = vmul.f32 %v1612, %v1723
        %v1735 = vmul.f32 %v1613, %v1723
        %v1736 = vmul.f32 %v1614, %v1723
        %v1737 = vmul.f32 %v1615, %v1723
        %v1738 = vmul.f32 %v1616, %v1723
        %v1739 = vmul.f32 %v1617, %v1723
        %v1740 = vadd.f32 %v1707, %v1724
        %v1741 = vadd.f32 %v1708, %v1725
        %v1742 = vadd.f32 %v1709, %v1726
        %v1743 = vadd.f32 %v1710, %v1727
        %v1744 = vadd.f32 %v1711, %v1728
        %v1745 = vadd.f32 %v1712, %v1729
        %v1746 = vadd.f32 %v1713, %v1730
        %v1747 = vadd.f32 %v1714, %v1731
        %v1748 = vadd.f32 %v1715, %v1732
        %v1749 = vadd.f32 %v1716, %v1733
        %v1750 = vadd.f32 %v1717, %v1734
        %v1751 = vadd.f32 %v1718, %v1735
        %v1752 = vadd.f32 %v1719, %v1736
        %v1753 = vadd.f32 %v1720, %v1737
        %v1754 = vadd.f32 %v1721, %v1738
        %v1755 = vadd.f32 %v1722, %v1739
        %v1756 = vperm.slane %v556, 4
        %v1757 = vmul.f32 %v1604, %v1756
        %v1758 = vmul.f32 %v1605, %v1756
        %v1759 = vmul.f32 %v1606, %v1756
        %v1760 = vmul.f32 %v1607, %v1756
        %v1761 = vmul.f32 %v1608, %v1756
        %v1762 = vmul.f32 %v1609, %v1756
        %v1763 = vmul.f32 %v1610, %v1756
        %v1764 = vmul.f32 %v1611, %v1756
        %v1765 = vmul.f32 %v1612, %v1756
        %v1766 = vmul.f32 %v1613, %v1756
        %v1767 = vmul.f32 %v1614, %v1756
        %v1768 = vmul.f32 %v1615, %v1756
        %v1769 = vmul.f32 %v1616, %v1756
        %v1770 = vmul.f32 %v1617, %v1756
        %v1771 = vmul.f32 %v1618, %v1756
        %v1772 = vmul.f32 %v1619, %v1756
        %v1773 = vadd.f32 %v1740, %v1757
        %v1774 = vadd.f32 %v1741, %v1758
        %v1775 = vadd.f32 %v1742, %v1759
        %v1776 = vadd.f32 %v1743, %v1760
        %v1777 = vadd.f32 %v1744, %v1761
        %v1778 = vadd.f32 %v1745, %v1762
        %v1779 = vadd.f32 %v1746, %v1763
        %v1780 = vadd.f32 %v1747, %v1764
        %v1781 = vadd.f32 %v1748, %v1765
        %v1782 = vadd.f32 %v1749, %v1766
        %v1783 = vadd.f32 %v1750, %v1767
        %v1784 = vadd.f32 %v1751, %v1768
        %v1785 = vadd.f32 %v1752, %v1769
        %v1786 = vadd.f32 %v1753, %v1770
        %v1787 = vadd.f32 %v1754, %v1771
        %v1788 = vadd.f32 %v1755, %v1772
        %v1789 = vperm.slane %v557, 4
        %v1790 = vmul.f32 %v1606, %v1789
        %v1791 = vmul.f32 %v1607, %v1789
        %v1792 = vmul.f32 %v1608, %v1789
        %v1793 = vmul.f32 %v1609, %v1789
        %v1794 = vmul.f32 %v1610, %v1789
        %v1795 = vmul.f32 %v1611, %v1789
        %v1796 = vmul.f32 %v1612, %v1789
        %v1797 = vmul.f32 %v1613, %v1789
        %v1798 = vmul.f32 %v1614, %v1789
        %v1799 = vmul.f32 %v1615, %v1789
        %v1800 = vmul.f32 %v1616, %v1789
        %v1801 = vmul.f32 %v1617, %v1789
        %v1802 = vmul.f32 %v1618, %v1789
        %v1803 = vmul.f32 %v1619, %v1789
        %v1804 = vmul.f32 %v1620, %v1789
        %v1805 = vmul.f32 %v1621, %v1789
        %v1806 = vadd.f32 %v1773, %v1790
        %v1807 = vadd.f32 %v1774, %v1791
        %v1808 = vadd.f32 %v1775, %v1792
        %v1809 = vadd.f32 %v1776, %v1793
        %v1810 = vadd.f32 %v1777, %v1794
        %v1811 = vadd.f32 %v1778, %v1795
        %v1812 = vadd.f32 %v1779, %v1796
        %v1813 = vadd.f32 %v1780, %v1797
        %v1814 = vadd.f32 %v1781, %v1798
        %v1815 = vadd.f32 %v1782, %v1799
        %v1816 = vadd.f32 %v1783, %v1800
        %v1817 = vadd.f32 %v1784, %v1801
        %v1818 = vadd.f32 %v1785, %v1802
        %v1819 = vadd.f32 %v1786, %v1803
        %v1820 = vadd.f32 %v1787, %v1804
        %v1821 = vadd.f32 %v1788, %v1805
        %v1822 = vperm.slane %v558, 4
        %v1823 = vmul.f32 %v1608, %v1822
        %v1824 = vmul.f32 %v1609, %v1822
        %v1825 = vmul.f32 %v1610, %v1822
        %v1826 = vmul.f32 %v1611, %v1822
        %v1827 = vmul.f32 %v1612, %v1822
        %v1828 = vmul.f32 %v1613, %v1822
        %v1829 = vmul.f32 %v1614, %v1822
        %v1830 = vmul.f32 %v1615, %v1822
        %v1831 = vmul.f32 %v1616, %v1822
        %v1832 = vmul.f32 %v1617, %v1822
        %v1833 = vmul.f32 %v1618, %v1822
        %v1834 = vmul.f32 %v1619, %v1822
        %v1835 = vmul.f32 %v1620, %v1822
        %v1836 = vmul.f32 %v1621, %v1822
        %v1837 = vmul.f32 %v1622, %v1822
        %v1838 = vmul.f32 %v1623, %v1822
        %v1839 = vadd.f32 %v1806, %v1823
        %v1840 = vadd.f32 %v1807, %v1824
        %v1841 = vadd.f32 %v1808, %v1825
        %v1842 = vadd.f32 %v1809, %v1826
        %v1843 = vadd.f32 %v1810, %v1827
        %v1844 = vadd.f32 %v1811, %v1828
        %v1845 = vadd.f32 %v1812, %v1829
        %v1846 = vadd.f32 %v1813, %v1830
        %v1847 = vadd.f32 %v1814, %v1831
        %v1848 = vadd.f32 %v1815, %v1832
        %v1849 = vadd.f32 %v1816, %v1833
        %v1850 = vadd.f32 %v1817, %v1834
        %v1851 = vadd.f32 %v1818, %v1835
        %v1852 = vadd.f32 %v1819, %v1836
        %v1853 = vadd.f32 %v1820, %v1837
        %v1854 = vadd.f32 %v1821, %v1838
        %v1855 = vld [vmem:[#allocation2 + $0xa] sm:$0xff]
        %v1856 = vld [vmem:[#allocation2 + $0x12] sm:$0xff]
        %v1857 = vld [vmem:[#allocation2 + $0x2a] sm:$0xff]
        %v1858 = vld [vmem:[#allocation2 + $0x32] sm:$0xff]
        %v1859 = vld [vmem:[#allocation2 + $0x4a] sm:$0xff]
        %v1860 = vld [vmem:[#allocation2 + $0x52] sm:$0xff]
        %v1861 = vld [vmem:[#allocation2 + $0x6a] sm:$0xff]
        %v1862 = vld [vmem:[#allocation2 + $0x72] sm:$0xff]
        %v1863 = vld [vmem:[#allocation2 + $0x8a] sm:$0xff]
        %v1864 = vld [vmem:[#allocation2 + $0x92] sm:$0xff]
        %v1865 = vld [vmem:[#allocation2 + $0xaa] sm:$0xff]
        %v1866 = vld [vmem:[#allocation2 + $0xb2] sm:$0xff]
        %v1867 = vld [vmem:[#allocation2 + $0xca] sm:$0xff]
        %v1868 = vld [vmem:[#allocation2 + $0xd2] sm:$0xff]
        %v1869 = vld [vmem:[#allocation2 + $0xea] sm:$0xff]
        %v1870 = vld [vmem:[#allocation2 + $0xf2] sm:$0xff]
        %v1871 = vld [vmem:[#allocation2 + $0x10a] sm:$0xff]
        %v1872 = vld [vmem:[#allocation2 + $0x112] sm:$0xff]
        %v1873 = vld [vmem:[#allocation2 + $0x12a] sm:$0xff]
        %v1874 = vld [vmem:[#allocation2 + $0x132] sm:$0xff]
        %v1875 = vld [vmem:[#allocation2 + $0x14a] sm:$0xff]
        %v1876 = vld [vmem:[#allocation2 + $0x152] sm:$0xff]
        %v1877 = vld [vmem:[#allocation2 + $0x16a] sm:$0xff]
        %v1878 = vld [vmem:[#allocation2 + $0x172] sm:$0xff]
        %v1879 = vld [vmem:[#allocation2 + $0x18a] sm:$0xff]
        %v1880 = vld [vmem:[#allocation2 + $0x192] sm:$0xff]
        %v1881 = vld [vmem:[#allocation2 + $0x1aa] sm:$0xff]
        %v1882 = vld [vmem:[#allocation2 + $0x1b2] sm:$0xff]
        %v1883 = vperm.slane %v552, 5
        %v1884 = vmul.f32 %v1855, %v1883
        %v1885 = vmul.f32 %v1856, %v1883
        %v1886 = vmul.f32 %v1857, %v1883
        %v1887 = vmul.f32 %v1858, %v1883
        %v1888 = vmul.f32 %v1859, %v1883
        %v1889 = vmul.f32 %v1860, %v1883
        %v1890 = vmul.f32 %v1861, %v1883
        %v1891 = vmul.f32 %v1862, %v1883
        %v1892 = vmul.f32 %v1863, %v1883
        %v1893 = vmul.f32 %v1864, %v1883
        %v1894 = vmul.f32 %v1865, %v1883
        %v1895 = vmul.f32 %v1866, %v1883
        %v1896 = vmul.f32 %v1867, %v1883
        %v1897 = vmul.f32 %v1868, %v1883
        %v1898 = vmul.f32 %v1869, %v1883
        %v1899 = vmul.f32 %v1870, %v1883
        %v1900 = vadd.f32 %v1839, %v1884
        %v1901 = vadd.f32 %v1840, %v1885
        %v1902 = vadd.f32 %v1841, %v1886
        %v1903 = vadd.f32 %v1842, %v1887
        %v1904 = vadd.f32 %v1843, %v1888
        %v1905 = vadd.f32 %v1844, %v1889
        %v1906 = vadd.f32 %v1845, %v1890
        %v1907 = vadd.f32 %v1846, %v1891
        %v1908 = vadd.f32 %v1847, %v1892
        %v1909 = vadd.f32 %v1848, %v1893
        %v1910 = vadd.f32 %v1849, %v1894
        %v1911 = vadd.f32 %v1850, %v1895
        %v1912 = vadd.f32 %v1851, %v1896
        %v1913 = vadd.f32 %v1852, %v1897
        %v1914 = vadd.f32 %v1853, %v1898
        %v1915 = vadd.f32 %v1854, %v1899
        %v1916 = vperm.slane %v553, 5
        %v1917 = vmul.f32 %v1857, %v1916
        %v1918 = vmul.f32 %v1858, %v1916
        %v1919 = vmul.f32 %v1859, %v1916
        %v1920 = vmul.f32 %v1860, %v1916
        %v1921 = vmul.f32 %v1861, %v1916
        %v1922 = vmul.f32 %v1862, %v1916
        %v1923 = vmul.f32 %v1863, %v1916
        %v1924 = vmul.f32 %v1864, %v1916
        %v1925 = vmul.f32 %v1865, %v1916
        %v1926 = vmul.f32 %v1866, %v1916
        %v1927 = vmul.f32 %v1867, %v1916
        %v1928 = vmul.f32 %v1868, %v1916
        %v1929 = vmul.f32 %v1869, %v1916
        %v1930 = vmul.f32 %v1870, %v1916
        %v1931 = vmul.f32 %v1871, %v1916
        %v1932 = vmul.f32 %v1872, %v1916
        %v1933 = vadd.f32 %v1900, %v1917
        %v1934 = vadd.f32 %v1901, %v1918
        %v1935 = vadd.f32 %v1902, %v1919
        %v1936 = vadd.f32 %v1903, %v1920
        %v1937 = vadd.f32 %v1904, %v1921
        %v1938 = vadd.f32 %v1905, %v1922
        %v1939 = vadd.f32 %v1906, %v1923
        %v1940 = vadd.f32 %v1907, %v1924
        %v1941 = vadd.f32 %v1908, %v1925
        %v1942 = vadd.f32 %v1909, %v1926
        %v1943 = vadd.f32 %v1910, %v1927
        %v1944 = vadd.f32 %v1911, %v1928
        %v1945 = vadd.f32 %v1912, %v1929
        %v1946 = vadd.f32 %v1913, %v1930
        %v1947 = vadd.f32 %v1914, %v1931
        %v1948 = vadd.f32 %v1915, %v1932
        %v1949 = vperm.slane %v554, 5
        %v1950 = vmul.f32 %v1859, %v1949
        %v1951 = vmul.f32 %v1860, %v1949
        %v1952 = vmul.f32 %v1861, %v1949
        %v1953 = vmul.f32 %v1862, %v1949
        %v1954 = vmul.f32 %v1863, %v1949
        %v1955 = vmul.f32 %v1864, %v1949
        %v1956 = vmul.f32 %v1865, %v1949
        %v1957 = vmul.f32 %v1866, %v1949
        %v1958 = vmul.f32 %v1867, %v1949
        %v1959 = vmul.f32 %v1868, %v1949
        %v1960 = vmul.f32 %v1869, %v1949
        %v1961 = vmul.f32 %v1870, %v1949
        %v1962 = vmul.f32 %v1871, %v1949
        %v1963 = vmul.f32 %v1872, %v1949
        %v1964 = vmul.f32 %v1873, %v1949
        %v1965 = vmul.f32 %v1874, %v1949
        %v1966 = vadd.f32 %v1933, %v1950
        %v1967 = vadd.f32 %v1934, %v1951
        %v1968 = vadd.f32 %v1935, %v1952
        %v1969 = vadd.f32 %v1936, %v1953
        %v1970 = vadd.f32 %v1937, %v1954
        %v1971 = vadd.f32 %v1938, %v1955
        %v1972 = vadd.f32 %v1939, %v1956
        %v1973 = vadd.f32 %v1940, %v1957
        %v1974 = vadd.f32 %v1941, %v1958
        %v1975 = vadd.f32 %v1942, %v1959
        %v1976 = vadd.f32 %v1943, %v1960
        %v1977 = vadd.f32 %v1944, %v1961
        %v1978 = vadd.f32 %v1945, %v1962
        %v1979 = vadd.f32 %v1946, %v1963
        %v1980 = vadd.f32 %v1947, %v1964
        %v1981 = vadd.f32 %v1948, %v1965
        %v1982 = vperm.slane %v555, 5
        %v1983 = vmul.f32 %v1861, %v1982
        %v1984 = vmul.f32 %v1862, %v1982
        %v1985 = vmul.f32 %v1863, %v1982
        %v1986 = vmul.f32 %v1864, %v1982
        %v1987 = vmul.f32 %v1865, %v1982
        %v1988 = vmul.f32 %v1866, %v1982
        %v1989 = vmul.f32 %v1867, %v1982
        %v1990 = vmul.f32 %v1868, %v1982
        %v1991 = vmul.f32 %v1869, %v1982
        %v1992 = vmul.f32 %v1870, %v1982
        %v1993 = vmul.f32 %v1871, %v1982
        %v1994 = vmul.f32 %v1872, %v1982
        %v1995 = vmul.f32 %v1873, %v1982
        %v1996 = vmul.f32 %v1874, %v1982
        %v1997 = vmul.f32 %v1875, %v1982
        %v1998 = vmul.f32 %v1876, %v1982
        %v1999 = vadd.f32 %v1966, %v1983
        %v2000 = vadd.f32 %v1967, %v1984
        %v2001 = vadd.f32 %v1968, %v1985
        %v2002 = vadd.f32 %v1969, %v1986
        %v2003 = vadd.f32 %v1970, %v1987
        %v2004 = vadd.f32 %v1971, %v1988
        %v2005 = vadd.f32 %v1972, %v1989
        %v2006 = vadd.f32 %v1973, %v1990
        %v2007 = vadd.f32 %v1974, %v1991
        %v2008 = vadd.f32 %v1975, %v1992
        %v2009 = vadd.f32 %v1976, %v1993
        %v2010 = vadd.f32 %v1977, %v1994
        %v2011 = vadd.f32 %v1978, %v1995
        %v2012 = vadd.f32 %v1979, %v1996
        %v2013 = vadd.f32 %v1980, %v1997
        %v2014 = vadd.f32 %v1981, %v1998
        %v2015 = vperm.slane %v556, 5
        %v2016 = vmul.f32 %v1863, %v2015
        %v2017 = vmul.f32 %v1864, %v2015
        %v2018 = vmul.f32 %v1865, %v2015
        %v2019 = vmul.f32 %v1866, %v2015
        %v2020 = vmul.f32 %v1867, %v2015
        %v2021 = vmul.f32 %v1868, %v2015
        %v2022 = vmul.f32 %v1869, %v2015
        %v2023 = vmul.f32 %v1870, %v2015
        %v2024 = vmul.f32 %v1871, %v2015
        %v2025 = vmul.f32 %v1872, %v2015
        %v2026 = vmul.f32 %v1873, %v2015
        %v2027 = vmul.f32 %v1874, %v2015
        %v2028 = vmul.f32 %v1875, %v2015
        %v2029 = vmul.f32 %v1876, %v2015
        %v2030 = vmul.f32 %v1877, %v2015
        %v2031 = vmul.f32 %v1878, %v2015
        %v2032 = vadd.f32 %v1999, %v2016
        %v2033 = vadd.f32 %v2000, %v2017
        %v2034 = vadd.f32 %v2001, %v2018
        %v2035 = vadd.f32 %v2002, %v2019
        %v2036 = vadd.f32 %v2003, %v2020
        %v2037 = vadd.f32 %v2004, %v2021
        %v2038 = vadd.f32 %v2005, %v2022
        %v2039 = vadd.f32 %v2006, %v2023
        %v2040 = vadd.f32 %v2007, %v2024
        %v2041 = vadd.f32 %v2008, %v2025
        %v2042 = vadd.f32 %v2009, %v2026
        %v2043 = vadd.f32 %v2010, %v2027
        %v2044 = vadd.f32 %v2011, %v2028
        %v2045 = vadd.f32 %v2012, %v2029
        %v2046 = vadd.f32 %v2013, %v2030
        %v2047 = vadd.f32 %v2014, %v2031
        %v2048 = vperm.slane %v557, 5
        %v2049 = vmul.f32 %v1865, %v2048
        %v2050 = vmul.f32 %v1866, %v2048
        %v2051 = vmul.f32 %v1867, %v2048
        %v2052 = vmul.f32 %v1868, %v2048
        %v2053 = vmul.f32 %v1869, %v2048
        %v2054 = vmul.f32 %v1870, %v2048
        %v2055 = vmul.f32 %v1871, %v2048
        %v2056 = vmul.f32 %v1872, %v2048
        %v2057 = vmul.f32 %v1873, %v2048
        %v2058 = vmul.f32 %v1874, %v2048
        %v2059 = vmul.f32 %v1875, %v2048
        %v2060 = vmul.f32 %v1876, %v2048
        %v2061 = vmul.f32 %v1877, %v2048
        %v2062 = vmul.f32 %v1878, %v2048
        %v2063 = vmul.f32 %v1879, %v2048
        %v2064 = vmul.f32 %v1880, %v2048
        %v2065 = vadd.f32 %v2032, %v2049
        %v2066 = vadd.f32 %v2033, %v2050
        %v2067 = vadd.f32 %v2034, %v2051
        %v2068 = vadd.f32 %v2035, %v2052
        %v2069 = vadd.f32 %v2036, %v2053
        %v2070 = vadd.f32 %v2037, %v2054
        %v2071 = vadd.f32 %v2038, %v2055
        %v2072 = vadd.f32 %v2039, %v2056
        %v2073 = vadd.f32 %v2040, %v2057
        %v2074 = vadd.f32 %v2041, %v2058
        %v2075 = vadd.f32 %v2042, %v2059
        %v2076 = vadd.f32 %v2043, %v2060
        %v2077 = vadd.f32 %v2044, %v2061
        %v2078 = vadd.f32 %v2045, %v2062
        %v2079 = vadd.f32 %v2046, %v2063
        %v2080 = vadd.f32 %v2047, %v2064
        %v2081 = vperm.slane %v558, 5
        %v2082 = vmul.f32 %v1867, %v2081
        %v2083 = vmul.f32 %v1868, %v2081
        %v2084 = vmul.f32 %v1869, %v2081
        %v2085 = vmul.f32 %v1870, %v2081
        %v2086 = vmul.f32 %v1871, %v2081
        %v2087 = vmul.f32 %v1872, %v2081
        %v2088 = vmul.f32 %v1873, %v2081
        %v2089 = vmul.f32 %v1874, %v2081
        %v2090 = vmul.f32 %v1875, %v2081
        %v2091 = vmul.f32 %v1876, %v2081
        %v2092 = vmul.f32 %v1877, %v2081
        %v2093 = vmul.f32 %v1878, %v2081
        %v2094 = vmul.f32 %v1879, %v2081
        %v2095 = vmul.f32 %v1880, %v2081
        %v2096 = vmul.f32 %v1881, %v2081
        %v2097 = vmul.f32 %v1882, %v2081
        %v2098 = vadd.f32 %v2065, %v2082
        %v2099 = vadd.f32 %v2066, %v2083
        %v2100 = vadd.f32 %v2067, %v2084
        %v2101 = vadd.f32 %v2068, %v2085
        %v2102 = vadd.f32 %v2069, %v2086
        %v2103 = vadd.f32 %v2070, %v2087
        %v2104 = vadd.f32 %v2071, %v2088
        %v2105 = vadd.f32 %v2072, %v2089
        %v2106 = vadd.f32 %v2073, %v2090
        %v2107 = vadd.f32 %v2074, %v2091
        %v2108 = vadd.f32 %v2075, %v2092
        %v2109 = vadd.f32 %v2076, %v2093
        %v2110 = vadd.f32 %v2077, %v2094
        %v2111 = vadd.f32 %v2078, %v2095
        %v2112 = vadd.f32 %v2079, %v2096
        %v2113 = vadd.f32 %v2080, %v2097
        %v2114 = vld [vmem:[#allocation2 + $0xb] sm:$0xff]
        %v2115 = vld [vmem:[#allocation2 + $0x13] sm:$0xff]
        %v2116 = vld [vmem:[#allocation2 + $0x2b] sm:$0xff]
        %v2117 = vld [vmem:[#allocation2 + $0x33] sm:$0xff]
        %v2118 = vld [vmem:[#allocation2 + $0x4b] sm:$0xff]
        %v2119 = vld [vmem:[#allocation2 + $0x53] sm:$0xff]
        %v2120 = vld [vmem:[#allocation2 + $0x6b] sm:$0xff]
        %v2121 = vld [vmem:[#allocation2 + $0x73] sm:$0xff]
        %v2122 = vld [vmem:[#allocation2 + $0x8b] sm:$0xff]
        %v2123 = vld [vmem:[#allocation2 + $0x93] sm:$0xff]
        %v2124 = vld [vmem:[#allocation2 + $0xab] sm:$0xff]
        %v2125 = vld [vmem:[#allocation2 + $0xb3] sm:$0xff]
        %v2126 = vld [vmem:[#allocation2 + $0xcb] sm:$0xff]
        %v2127 = vld [vmem:[#allocation2 + $0xd3] sm:$0xff]
        %v2128 = vld [vmem:[#allocation2 + $0xeb] sm:$0xff]
        %v2129 = vld [vmem:[#allocation2 + $0xf3] sm:$0xff]
        %v2130 = vld [vmem:[#allocation2 + $0x10b] sm:$0xff]
        %v2131 = vld [vmem:[#allocation2 + $0x113] sm:$0xff]
        %v2132 = vld [vmem:[#allocation2 + $0x12b] sm:$0xff]
        %v2133 = vld [vmem:[#allocation2 + $0x133] sm:$0xff]
        %v2134 = vld [vmem:[#allocation2 + $0x14b] sm:$0xff]
        %v2135 = vld [vmem:[#allocation2 + $0x153] sm:$0xff]
        %v2136 = vld [vmem:[#allocation2 + $0x16b] sm:$0xff]
        %v2137 = vld [vmem:[#allocation2 + $0x173] sm:$0xff]
        %v2138 = vld [vmem:[#allocation2 + $0x18b] sm:$0xff]
        %v2139 = vld [vmem:[#allocation2 + $0x193] sm:$0xff]
        %v2140 = vld [vmem:[#allocation2 + $0x1ab] sm:$0xff]
        %v2141 = vld [vmem:[#allocation2 + $0x1b3] sm:$0xff]
        %v2142 = vperm.slane %v552, 6
        %v2143 = vmul.f32 %v2114, %v2142
        %v2144 = vmul.f32 %v2115, %v2142
        %v2145 = vmul.f32 %v2116, %v2142
        %v2146 = vmul.f32 %v2117, %v2142
        %v2147 = vmul.f32 %v2118, %v2142
        %v2148 = vmul.f32 %v2119, %v2142
        %v2149 = vmul.f32 %v2120, %v2142
        %v2150 = vmul.f32 %v2121, %v2142
        %v2151 = vmul.f32 %v2122, %v2142
        %v2152 = vmul.f32 %v2123, %v2142
        %v2153 = vmul.f32 %v2124, %v2142
        %v2154 = vmul.f32 %v2125, %v2142
        %v2155 = vmul.f32 %v2126, %v2142
        %v2156 = vmul.f32 %v2127, %v2142
        %v2157 = vmul.f32 %v2128, %v2142
        %v2158 = vmul.f32 %v2129, %v2142
        %v2159 = vadd.f32 %v2098, %v2143
        %v2160 = vadd.f32 %v2099, %v2144
        %v2161 = vadd.f32 %v2100, %v2145
        %v2162 = vadd.f32 %v2101, %v2146
        %v2163 = vadd.f32 %v2102, %v2147
        %v2164 = vadd.f32 %v2103, %v2148
        %v2165 = vadd.f32 %v2104, %v2149
        %v2166 = vadd.f32 %v2105, %v2150
        %v2167 = vadd.f32 %v2106, %v2151
        %v2168 = vadd.f32 %v2107, %v2152
        %v2169 = vadd.f32 %v2108, %v2153
        %v2170 = vadd.f32 %v2109, %v2154
        %v2171 = vadd.f32 %v2110, %v2155
        %v2172 = vadd.f32 %v2111, %v2156
        %v2173 = vadd.f32 %v2112, %v2157
        %v2174 = vadd.f32 %v2113, %v2158
        %v2175 = vperm.slane %v553, 6
        %v2176 = vmul.f32 %v2116, %v2175
        %v2177 = vmul.f32 %v2117, %v2175
        %v2178 = vmul.f32 %v2118, %v2175
        %v2179 = vmul.f32 %v2119, %v2175
        %v2180 = vmul.f32 %v2120, %v2175
        %v2181 = vmul.f32 %v2121, %v2175
        %v2182 = vmul.f32 %v2122, %v2175
        %v2183 = vmul.f32 %v2123, %v2175
        %v2184 = vmul.f32 %v2124, %v2175
        %v2185 = vmul.f32 %v2125, %v2175
        %v2186 = vmul.f32 %v2126, %v2175
        %v2187 = vmul.f32 %v2127, %v2175
        %v2188 = vmul.f32 %v2128, %v2175
        %v2189 = vmul.f32 %v2129, %v2175
        %v2190 = vmul.f32 %v2130, %v2175
        %v2191 = vmul.f32 %v2131, %v2175
        %v2192 = vadd.f32 %v2159, %v2176
        %v2193 = vadd.f32 %v2160, %v2177
        %v2194 = vadd.f32 %v2161, %v2178
        %v2195 = vadd.f32 %v2162, %v2179
        %v2196 = vadd.f32 %v2163, %v2180
        %v2197 = vadd.f32 %v2164, %v2181
        %v2198 = vadd.f32 %v2165, %v2182
        %v2199 = vadd.f32 %v2166, %v2183
        %v2200 = vadd.f32 %v2167, %v2184
        %v2201 = vadd.f32 %v2168, %v2185
        %v2202 = vadd.f32 %v2169, %v2186
        %v2203 = vadd.f32 %v2170, %v2187
        %v2204 = vadd.f32 %v2171, %v2188
        %v2205 = vadd.f32 %v2172, %v2189
        %v2206 = vadd.f32 %v2173, %v2190
        %v2207 = vadd.f32 %v2174, %v2191
        %v2208 = vperm.slane %v554, 6
        %v2209 = vmul.f32 %v2118, %v2208
        %v2210 = vmul.f32 %v2119, %v2208
        %v2211 = vmul.f32 %v2120, %v2208
        %v2212 = vmul.f32 %v2121, %v2208
        %v2213 = vmul.f32 %v2122, %v2208
        %v2214 = vmul.f32 %v2123, %v2208
        %v2215 = vmul.f32 %v2124, %v2208
        %v2216 = vmul.f32 %v2125, %v2208
        %v2217 = vmul.f32 %v2126, %v2208
        %v2218 = vmul.f32 %v2127, %v2208
        %v2219 = vmul.f32 %v2128, %v2208
        %v2220 = vmul.f32 %v2129, %v2208
        %v2221 = vmul.f32 %v2130, %v2208
        %v2222 = vmul.f32 %v2131, %v2208
        %v2223 = vmul.f32 %v2132, %v2208
        %v2224 = vmul.f32 %v2133, %v2208
        %v2225 = vadd.f32 %v2192, %v2209
        %v2226 = vadd.f32 %v2193, %v2210
        %v2227 = vadd.f32 %v2194, %v2211
        %v2228 = vadd.f32 %v2195, %v2212
        %v2229 = vadd.f32 %v2196, %v2213
        %v2230 = vadd.f32 %v2197, %v2214
        %v2231 = vadd.f32 %v2198, %v2215
        %v2232 = vadd.f32 %v2199, %v2216
        %v2233 = vadd.f32 %v2200, %v2217
        %v2234 = vadd.f32 %v2201, %v2218
        %v2235 = vadd.f32 %v2202, %v2219
        %v2236 = vadd.f32 %v2203, %v2220
        %v2237 = vadd.f32 %v2204, %v2221
        %v2238 = vadd.f32 %v2205, %v2222
        %v2239 = vadd.f32 %v2206, %v2223
        %v2240 = vadd.f32 %v2207, %v2224
        %v2241 = vperm.slane %v555, 6
        %v2242 = vmul.f32 %v2120, %v2241
        %v2243 = vmul.f32 %v2121, %v2241
        %v2244 = vmul.f32 %v2122, %v2241
        %v2245 = vmul.f32 %v2123, %v2241
        %v2246 = vmul.f32 %v2124, %v2241
        %v2247 = vmul.f32 %v2125, %v2241
        %v2248 = vmul.f32 %v2126, %v2241
        %v2249 = vmul.f32 %v2127, %v2241
        %v2250 = vmul.f32 %v2128, %v2241
        %v2251 = vmul.f32 %v2129, %v2241
        %v2252 = vmul.f32 %v2130, %v2241
        %v2253 = vmul.f32 %v2131, %v2241
        %v2254 = vmul.f32 %v2132, %v2241
        %v2255 = vmul.f32 %v2133, %v2241
        %v2256 = vmul.f32 %v2134, %v2241
        %v2257 = vmul.f32 %v2135, %v2241
        %v2258 = vadd.f32 %v2225, %v2242
        %v2259 = vadd.f32 %v2226, %v2243
        %v2260 = vadd.f32 %v2227, %v2244
        %v2261 = vadd.f32 %v2228, %v2245
        %v2262 = vadd.f32 %v2229, %v2246
        %v2263 = vadd.f32 %v2230, %v2247
        %v2264 = vadd.f32 %v2231, %v2248
        %v2265 = vadd.f32 %v2232, %v2249
        %v2266 = vadd.f32 %v2233, %v2250
        %v2267 = vadd.f32 %v2234, %v2251
        %v2268 = vadd.f32 %v2235, %v2252
        %v2269 = vadd.f32 %v2236, %v2253
        %v2270 = vadd.f32 %v2237, %v2254
        %v2271 = vadd.f32 %v2238, %v2255
        %v2272 = vadd.f32 %v2239, %v2256
        %v2273 = vadd.f32 %v2240, %v2257
        %v2274 = vperm.slane %v556, 6
        %v2275 = vmul.f32 %v2122, %v2274
        %v2276 = vmul.f32 %v2123, %v2274
        %v2277 = vmul.f32 %v2124, %v2274
        %v2278 = vmul.f32 %v2125, %v2274
        %v2279 = vmul.f32 %v2126, %v2274
        %v2280 = vmul.f32 %v2127, %v2274
        %v2281 = vmul.f32 %v2128, %v2274
        %v2282 = vmul.f32 %v2129, %v2274
        %v2283 = vmul.f32 %v2130, %v2274
        %v2284 = vmul.f32 %v2131, %v2274
        %v2285 = vmul.f32 %v2132, %v2274
        %v2286 = vmul.f32 %v2133, %v2274
        %v2287 = vmul.f32 %v2134, %v2274
        %v2288 = vmul.f32 %v2135, %v2274
        %v2289 = vmul.f32 %v2136, %v2274
        %v2290 = vmul.f32 %v2137, %v2274
        %v2291 = vadd.f32 %v2258, %v2275
        %v2292 = vadd.f32 %v2259, %v2276
        %v2293 = vadd.f32 %v2260, %v2277
        %v2294 = vadd.f32 %v2261, %v2278
        %v2295 = vadd.f32 %v2262, %v2279
        %v2296 = vadd.f32 %v2263, %v2280
        %v2297 = vadd.f32 %v2264, %v2281
        %v2298 = vadd.f32 %v2265, %v2282
        %v2299 = vadd.f32 %v2266, %v2283
        %v2300 = vadd.f32 %v2267, %v2284
        %v2301 = vadd.f32 %v2268, %v2285
        %v2302 = vadd.f32 %v2269, %v2286
        %v2303 = vadd.f32 %v2270, %v2287
        %v2304 = vadd.f32 %v2271, %v2288
        %v2305 = vadd.f32 %v2272, %v2289
        %v2306 = vadd.f32 %v2273, %v2290
        %v2307 = vperm.slane %v557, 6
        %v2308 = vmul.f32 %v2124, %v2307
        %v2309 = vmul.f32 %v2125, %v2307
        %v2310 = vmul.f32 %v2126, %v2307
        %v2311 = vmul.f32 %v2127, %v2307
        %v2312 = vmul.f32 %v2128, %v2307
        %v2313 = vmul.f32 %v2129, %v2307
        %v2314 = vmul.f32 %v2130, %v2307
        %v2315 = vmul.f32 %v2131, %v2307
        %v2316 = vmul.f32 %v2132, %v2307
        %v2317 = vmul.f32 %v2133, %v2307
        %v2318 = vmul.f32 %v2134, %v2307
        %v2319 = vmul.f32 %v2135, %v2307
        %v2320 = vmul.f32 %v2136, %v2307
        %v2321 = vmul.f32 %v2137, %v2307
        %v2322 = vmul.f32 %v2138, %v2307
        %v2323 = vmul.f32 %v2139, %v2307
        %v2324 = vadd.f32 %v2291, %v2308
        %v2325 = vadd.f32 %v2292, %v2309
        %v2326 = vadd.f32 %v2293, %v2310
        %v2327 = vadd.f32 %v2294, %v2311
        %v2328 = vadd.f32 %v2295, %v2312
        %v2329 = vadd.f32 %v2296, %v2313
        %v2330 = vadd.f32 %v2297, %v2314
        %v2331 = vadd.f32 %v2298, %v2315
        %v2332 = vadd.f32 %v2299, %v2316
        %v2333 = vadd.f32 %v2300, %v2317
        %v2334 = vadd.f32 %v2301, %v2318
        %v2335 = vadd.f32 %v2302, %v2319
        %v2336 = vadd.f32 %v2303, %v2320
        %v2337 = vadd.f32 %v2304, %v2321
        %v2338 = vadd.f32 %v2305, %v2322
        %v2339 = vadd.f32 %v2306, %v2323
        %v2340 = vperm.slane %v558, 6
        %v2341 = vmul.f32 %v2126, %v2340
        %v2342 = vmul.f32 %v2127, %v2340
        %v2343 = vmul.f32 %v2128, %v2340
        %v2344 = vmul.f32 %v2129, %v2340
        %v2345 = vmul.f32 %v2130, %v2340
        %v2346 = vmul.f32 %v2131, %v2340
        %v2347 = vmul.f32 %v2132, %v2340
        %v2348 = vmul.f32 %v2133, %v2340
        %v2349 = vmul.f32 %v2134, %v2340
        %v2350 = vmul.f32 %v2135, %v2340
        %v2351 = vmul.f32 %v2136, %v2340
        %v2352 = vmul.f32 %v2137, %v2340
        %v2353 = vmul.f32 %v2138, %v2340
        %v2354 = vmul.f32 %v2139, %v2340
        %v2355 = vmul.f32 %v2140, %v2340
        %v2356 = vmul.f32 %v2141, %v2340
        %v2357 = vadd.f32 %v2324, %v2341
        %v2358 = vadd.f32 %v2325, %v2342
        %v2359 = vadd.f32 %v2326, %v2343
        %v2360 = vadd.f32 %v2327, %v2344
        %v2361 = vadd.f32 %v2328, %v2345
        %v2362 = vadd.f32 %v2329, %v2346
        %v2363 = vadd.f32 %v2330, %v2347
        %v2364 = vadd.f32 %v2331, %v2348
        %v2365 = vadd.f32 %v2332, %v2349
        %v2366 = vadd.f32 %v2333, %v2350
        %v2367 = vadd.f32 %v2334, %v2351
        %v2368 = vadd.f32 %v2335, %v2352
        %v2369 = vadd.f32 %v2336, %v2353
        %v2370 = vadd.f32 %v2337, %v2354
        %v2371 = vadd.f32 %v2338, %v2355
        %v2372 = vadd.f32 %v2339, %v2356
        %v2374 = vperm.slane %v559, 0
        %v2376 = vadd.f32 %v2357, %v2374
        %v2377 = vadd.f32 %v2358, %v2374
        %v2378 = vadd.f32 %v2359, %v2374
        %v2379 = vadd.f32 %v2360, %v2374
        %v2380 = vadd.f32 %v2361, %v2374
        %v2381 = vadd.f32 %v2362, %v2374
        %v2382 = vadd.f32 %v2363, %v2374
        %v2383 = vadd.f32 %v2364, %v2374
        %v2384 = vadd.f32 %v2365, %v2374
        %v2385 = vadd.f32 %v2366, %v2374
        %v2386 = vadd.f32 %v2367, %v2374
        %v2387 = vadd.f32 %v2368, %v2374
        %v2388 = vadd.f32 %v2369, %v2374
        %v2389 = vadd.f32 %v2370, %v2374
        %v2390 = vadd.f32 %v2371, %v2374
        %v2391 = vadd.f32 %v2372, %v2374
        %2392 = vst [vmem:[#allocation3] sm:$0xff] %v2376
        %2393 = vst [vmem:[#allocation3 + $0x8] sm:$0xff] %v2377
        %2394 = vst [vmem:[#allocation3 + $0x10] sm:$0xff] %v2378
        %2395 = vst [vmem:[#allocation3 + $0x18] sm:$0xff] %v2379
        %2396 = vst [vmem:[#allocation3 + $0x20] sm:$0xff] %v2380
        %2397 = vst [vmem:[#allocation3 + $0x28] sm:$0xff] %v2381
        %2398 = vst [vmem:[#allocation3 + $0x30] sm:$0xff] %v2382
        %2399 = vst [vmem:[#allocation3 + $0x38] sm:$0xff] %v2383
        %2400 = vst [vmem:[#allocation3 + $0x40] sm:$0xff] %v2384
        %2401 = vst [vmem:[#allocation3 + $0x48] sm:$0xff] %v2385
        %2402 = vst [vmem:[#allocation3 + $0x50] sm:$0xff] %v2386
        %2403 = vst [vmem:[#allocation3 + $0x58] sm:$0xff] %v2387
        %2404 = vst [vmem:[#allocation3 + $0x60] sm:$0xff] %v2388
        %2405 = vst [vmem:[#allocation3 + $0x68] sm:$0xff] %v2389
        %2406 = vst [vmem:[#allocation3 + $0x70] sm:$0xff] %v2390
        %2407 = vst [vmem:[#allocation3 + $0x78] sm:$0xff] %v2391
        %v2408 = vadd.f32 %v2376, %v2378
        %v2409 = vadd.f32 %v2408, %v2380
        %v2410 = vadd.f32 %v2409, %v2382
        %v2411 = vadd.f32 %v2410, %v2384
        %v2412 = vadd.f32 %v2411, %v2386
        %v2413 = vadd.f32 %v2412, %v2388
        %v2414 = vadd.f32 %v2413, %v2390
        %v2415 = vadd.f32 %v2377, %v2379
        %v2416 = vadd.f32 %v2415, %v2381
        %v2417 = vadd.f32 %v2416, %v2383
        %v2418 = vadd.f32 %v2417, %v2385
        %v2419 = vadd.f32 %v2418, %v2387
        %v2420 = vadd.f32 %v2419, %v2389
        %v2421 = vadd.f32 %v2420, %v2391
        %v2422 = vadd.f32 %v2414, %v2421
        %2423 = vadd.xlane.f32.xlu0 %v2422
        %v2424 = vpop.xlane.xlu0 %2423
        %v2425 = vrot.slane %v2424, 4
        %v2426 = vadd.f32 %v2424, %v2425
        %v2427 = vrot.slane %v2426, 2
        %v2428 = vadd.f32 %v2426, %v2427
        %v2429 = vrot.slane %v2428, 1
        %v2430 = vadd.f32 %v2428, %v2429
        %s2431 = vtos %v2430
        %v2432 = vstv %s2431
        %v2433 = vadd.f32 %v2432, 0.0
        %v2434 = vmul.f32 %v2376, %v2376
        %v2435 = vmul.f32 %v2377, %v2377
        %v2436 = vmul.f32 %v2378, %v2378
        %v2437 = vmul.f32 %v2379, %v2379
        %v2438 = vmul.f32 %v2380, %v2380
        %v2439 = vmul.f32 %v2381, %v2381
        %v2440 = vmul.f32 %v2382, %v2382
        %v2441 = vmul.f32 %v2383, %v2383
        %v2442 = vmul.f32 %v2384, %v2384
        %v2443 = vmul.f32 %v2385, %v2385
        %v2444 = vmul.f32 %v2386, %v2386
        %v2445 = vmul.f32 %v2387, %v2387
        %v2446 = vmul.f32 %v2388, %v2388
        %v2447 = vmul.f32 %v2389, %v2389
        %v2448 = vmul.f32 %v2390, %v2390
        %v2449 = vmul.f32 %v2391, %v2391
        %v2450 = vadd.f32 %v2434, %v2436
        %v2451 = vadd.f32 %v2450, %v2438
        %v2452 = vadd.f32 %v2451, %v2440
        %v2453 = vadd.f32 %v2452, %v2442
        %v2454 = vadd.f32 %v2453, %v2444
        %v2455 = vadd.f32 %v2454, %v2446
        %v2456 = vadd.f32 %v2455, %v2448
        %v2457 = vadd.f32 %v2435, %v2437
        %v2458 = vadd.f32 %v2457, %v2439
        %v2459 = vadd.f32 %v2458, %v2441
        %v2460 = vadd.f32 %v2459, %v2443
        %v2461 = vadd.f32 %v2460, %v2445
        %v2462 = vadd.f32 %v2461, %v2447
        %v2463 = vadd.f32 %v2462, %v2449
        %v2464 = vadd.f32 %v2456, %v2463
        %2465 = vadd.xlane.f32.xlu0 %v2464
        %v2466 = vpop.xlane.xlu0 %2465
        %v2467 = vrot.slane %v2466, 4
        %v2468 = vadd.f32 %v2466, %v2467
        %v2469 = vrot.slane %v2468, 2
        %v2470 = vadd.f32 %v2468, %v2469
        %v2471 = vrot.slane %v2470, 1
        %v2472 = vadd.f32 %v2470, %v2471
        %s2473 = vtos %v2472
        %v2474 = vstv %s2473
        %v2475 = vadd.f32 %v2474, 0.0
        %s2476 = scalar_lea.vmem [#allocation2], 256
        %v2477 = vld [vmem:[%s2476 + $0x5] sm:$0xff]
        %v2478 = vld [vmem:[%s2476 + $0xd] sm:$0xff]
        %v2479 = vld [vmem:[%s2476 + $0x25] sm:$0xff]
        %v2480 = vld [vmem:[%s2476 + $0x2d] sm:$0xff]
        %v2481 = vld [vmem:[%s2476 + $0x45] sm:$0xff]
        %v2482 = vld [vmem:[%s2476 + $0x4d] sm:$0xff]
        %v2483 = vld [vmem:[%s2476 + $0x65] sm:$0xff]
        %v2484 = vld [vmem:[%s2476 + $0x6d] sm:$0xff]
        %v2485 = vld [vmem:[%s2476 + $0x85] sm:$0xff]
        %v2486 = vld [vmem:[%s2476 + $0x8d] sm:$0xff]
        %v2487 = vld [vmem:[%s2476 + $0xa5] sm:$0xff]
        %v2488 = vld [vmem:[%s2476 + $0xad] sm:$0xff]
        %v2489 = vld [vmem:[%s2476 + $0xc5] sm:$0xff]
        %v2490 = vld [vmem:[%s2476 + $0xcd] sm:$0xff]
        %v2491 = vld [vmem:[%s2476 + $0xe5] sm:$0xff]
        %v2492 = vld [vmem:[%s2476 + $0xed] sm:$0xff]
        %v2493 = vld [vmem:[%s2476 + $0x105] sm:$0xff]
        %v2494 = vld [vmem:[%s2476 + $0x10d] sm:$0xff]
        %v2495 = vld [vmem:[%s2476 + $0x125] sm:$0xff]
        %v2496 = vld [vmem:[%s2476 + $0x12d] sm:$0xff]
        %v2497 = vld [vmem:[%s2476 + $0x145] sm:$0xff]
        %v2498 = vld [vmem:[%s2476 + $0x14d] sm:$0xff]
        %v2499 = vld [vmem:[%s2476 + $0x165] sm:$0xff]
        %v2500 = vld [vmem:[%s2476 + $0x16d] sm:$0xff]
        %v2501 = vld [vmem:[%s2476 + $0x185] sm:$0xff]
        %v2502 = vld [vmem:[%s2476 + $0x18d] sm:$0xff]
        %v2503 = vld [vmem:[%s2476 + $0x1a5] sm:$0xff]
        %v2504 = vld [vmem:[%s2476 + $0x1ad] sm:$0xff]
        %v2505 = vmul.f32 %v2477, %v588
        %v2506 = vmul.f32 %v2478, %v588
        %v2507 = vmul.f32 %v2479, %v588
        %v2508 = vmul.f32 %v2480, %v588
        %v2509 = vmul.f32 %v2481, %v588
        %v2510 = vmul.f32 %v2482, %v588
        %v2511 = vmul.f32 %v2483, %v588
        %v2512 = vmul.f32 %v2484, %v588
        %v2513 = vmul.f32 %v2485, %v588
        %v2514 = vmul.f32 %v2486, %v588
        %v2515 = vmul.f32 %v2487, %v588
        %v2516 = vmul.f32 %v2488, %v588
        %v2517 = vmul.f32 %v2489, %v588
        %v2518 = vmul.f32 %v2490, %v588
        %v2519 = vmul.f32 %v2491, %v588
        %v2520 = vmul.f32 %v2492, %v588
        %v2521 = vadd.f32 %v2505, 0.0
        %v2522 = vadd.f32 %v2506, 0.0
        %v2523 = vadd.f32 %v2507, 0.0
        %v2524 = vadd.f32 %v2508, 0.0
        %v2525 = vadd.f32 %v2509, 0.0
        %v2526 = vadd.f32 %v2510, 0.0
        %v2527 = vadd.f32 %v2511, 0.0
        %v2528 = vadd.f32 %v2512, 0.0
        %v2529 = vadd.f32 %v2513, 0.0
        %v2530 = vadd.f32 %v2514, 0.0
        %v2531 = vadd.f32 %v2515, 0.0
        %v2532 = vadd.f32 %v2516, 0.0
        %v2533 = vadd.f32 %v2517, 0.0
        %v2534 = vadd.f32 %v2518, 0.0
        %v2535 = vadd.f32 %v2519, 0.0
        %v2536 = vadd.f32 %v2520, 0.0
        %v2537 = vmul.f32 %v2479, %v621
        %v2538 = vmul.f32 %v2480, %v621
        %v2539 = vmul.f32 %v2481, %v621
        %v2540 = vmul.f32 %v2482, %v621
        %v2541 = vmul.f32 %v2483, %v621
        %v2542 = vmul.f32 %v2484, %v621
        %v2543 = vmul.f32 %v2485, %v621
        %v2544 = vmul.f32 %v2486, %v621
        %v2545 = vmul.f32 %v2487, %v621
        %v2546 = vmul.f32 %v2488, %v621
        %v2547 = vmul.f32 %v2489, %v621
        %v2548 = vmul.f32 %v2490, %v621
        %v2549 = vmul.f32 %v2491, %v621
        %v2550 = vmul.f32 %v2492, %v621
        %v2551 = vmul.f32 %v2493, %v621
        %v2552 = vmul.f32 %v2494, %v621
        %v2553 = vadd.f32 %v2521, %v2537
        %v2554 = vadd.f32 %v2522, %v2538
        %v2555 = vadd.f32 %v2523, %v2539
        %v2556 = vadd.f32 %v2524, %v2540
        %v2557 = vadd.f32 %v2525, %v2541
        %v2558 = vadd.f32 %v2526, %v2542
        %v2559 = vadd.f32 %v2527, %v2543
        %v2560 = vadd.f32 %v2528, %v2544
        %v2561 = vadd.f32 %v2529, %v2545
        %v2562 = vadd.f32 %v2530, %v2546
        %v2563 = vadd.f32 %v2531, %v2547
        %v2564 = vadd.f32 %v2532, %v2548
        %v2565 = vadd.f32 %v2533, %v2549
        %v2566 = vadd.f32 %v2534, %v2550
        %v2567 = vadd.f32 %v2535, %v2551
        %v2568 = vadd.f32 %v2536, %v2552
        %v2569 = vmul.f32 %v2481, %v654
        %v2570 = vmul.f32 %v2482, %v654
        %v2571 = vmul.f32 %v2483, %v654
        %v2572 = vmul.f32 %v2484, %v654
        %v2573 = vmul.f32 %v2485, %v654
        %v2574 = vmul.f32 %v2486, %v654
        %v2575 = vmul.f32 %v2487, %v654
        %v2576 = vmul.f32 %v2488, %v654
        %v2577 = vmul.f32 %v2489, %v654
        %v2578 = vmul.f32 %v2490, %v654
        %v2579 = vmul.f32 %v2491, %v654
        %v2580 = vmul.f32 %v2492, %v654
        %v2581 = vmul.f32 %v2493, %v654
        %v2582 = vmul.f32 %v2494, %v654
        %v2583 = vmul.f32 %v2495, %v654
        %v2584 = vmul.f32 %v2496, %v654
        %v2585 = vadd.f32 %v2553, %v2569
        %v2586 = vadd.f32 %v2554, %v2570
        %v2587 = vadd.f32 %v2555, %v2571
        %v2588 = vadd.f32 %v2556, %v2572
        %v2589 = vadd.f32 %v2557, %v2573
        %v2590 = vadd.f32 %v2558, %v2574
        %v2591 = vadd.f32 %v2559, %v2575
        %v2592 = vadd.f32 %v2560, %v2576
        %v2593 = vadd.f32 %v2561, %v2577
        %v2594 = vadd.f32 %v2562, %v2578
        %v2595 = vadd.f32 %v2563, %v2579
        %v2596 = vadd.f32 %v2564, %v2580
        %v2597 = vadd.f32 %v2565, %v2581
        %v2598 = vadd.f32 %v2566, %v2582
        %v2599 = vadd.f32 %v2567, %v2583
        %v2600 = vadd.f32 %v2568, %v2584
        %v2601 = vmul.f32 %v2483, %v687
        %v2602 = vmul.f32 %v2484, %v687
        %v2603 = vmul.f32 %v2485, %v687
        %v2604 = vmul.f32 %v2486, %v687
        %v2605 = vmul.f32 %v2487, %v687
        %v2606 = vmul.f32 %v2488, %v687
        %v2607 = vmul.f32 %v2489, %v687
        %v2608 = vmul.f32 %v2490, %v687
        %v2609 = vmul.f32 %v2491, %v687
        %v2610 = vmul.f32 %v2492, %v687
        %v2611 = vmul.f32 %v2493, %v687
        %v2612 = vmul.f32 %v2494, %v687
        %v2613 = vmul.f32 %v2495, %v687
        %v2614 = vmul.f32 %v2496, %v687
        %v2615 = vmul.f32 %v2497, %v687
        %v2616 = vmul.f32 %v2498, %v687
        %v2617 = vadd.f32 %v2585, %v2601
        %v2618 = vadd.f32 %v2586, %v2602
        %v2619 = vadd.f32 %v2587, %v2603
        %v2620 = vadd.f32 %v2588, %v2604
        %v2621 = vadd.f32 %v2589, %v2605
        %v2622 = vadd.f32 %v2590, %v2606
        %v2623 = vadd.f32 %v2591, %v2607
        %v2624 = vadd.f32 %v2592, %v2608
        %v2625 = vadd.f32 %v2593, %v2609
        %v2626 = vadd.f32 %v2594, %v2610
        %v2627 = vadd.f32 %v2595, %v2611
        %v2628 = vadd.f32 %v2596, %v2612
        %v2629 = vadd.f32 %v2597, %v2613
        %v2630 = vadd.f32 %v2598, %v2614
        %v2631 = vadd.f32 %v2599, %v2615
        %v2632 = vadd.f32 %v2600, %v2616
        %v2633 = vmul.f32 %v2485, %v720
        %v2634 = vmul.f32 %v2486, %v720
        %v2635 = vmul.f32 %v2487, %v720
        %v2636 = vmul.f32 %v2488, %v720
        %v2637 = vmul.f32 %v2489, %v720
        %v2638 = vmul.f32 %v2490, %v720
        %v2639 = vmul.f32 %v2491, %v720
        %v2640 = vmul.f32 %v2492, %v720
        %v2641 = vmul.f32 %v2493, %v720
        %v2642 = vmul.f32 %v2494, %v720
        %v2643 = vmul.f32 %v2495, %v720
        %v2644 = vmul.f32 %v2496, %v720
        %v2645 = vmul.f32 %v2497, %v720
        %v2646 = vmul.f32 %v2498, %v720
        %v2647 = vmul.f32 %v2499, %v720
        %v2648 = vmul.f32 %v2500, %v720
        %v2649 = vadd.f32 %v2617, %v2633
        %v2650 = vadd.f32 %v2618, %v2634
        %v2651 = vadd.f32 %v2619, %v2635
        %v2652 = vadd.f32 %v2620, %v2636
        %v2653 = vadd.f32 %v2621, %v2637
        %v2654 = vadd.f32 %v2622, %v2638
        %v2655 = vadd.f32 %v2623, %v2639
        %v2656 = vadd.f32 %v2624, %v2640
        %v2657 = vadd.f32 %v2625, %v2641
        %v2658 = vadd.f32 %v2626, %v2642
        %v2659 = vadd.f32 %v2627, %v2643
        %v2660 = vadd.f32 %v2628, %v2644
        %v2661 = vadd.f32 %v2629, %v2645
        %v2662 = vadd.f32 %v2630, %v2646
        %v2663 = vadd.f32 %v2631, %v2647
        %v2664 = vadd.f32 %v2632, %v2648
        %v2665 = vmul.f32 %v2487, %v753
        %v2666 = vmul.f32 %v2488, %v753
        %v2667 = vmul.f32 %v2489, %v753
        %v2668 = vmul.f32 %v2490, %v753
        %v2669 = vmul.f32 %v2491, %v753
        %v2670 = vmul.f32 %v2492, %v753
        %v2671 = vmul.f32 %v2493, %v753
        %v2672 = vmul.f32 %v2494, %v753
        %v2673 = vmul.f32 %v2495, %v753
        %v2674 = vmul.f32 %v2496, %v753
        %v2675 = vmul.f32 %v2497, %v753
        %v2676 = vmul.f32 %v2498, %v753
        %v2677 = vmul.f32 %v2499, %v753
        %v2678 = vmul.f32 %v2500, %v753
        %v2679 = vmul.f32 %v2501, %v753
        %v2680 = vmul.f32 %v2502, %v753
        %v2681 = vadd.f32 %v2649, %v2665
        %v2682 = vadd.f32 %v2650, %v2666
        %v2683 = vadd.f32 %v2651, %v2667
        %v2684 = vadd.f32 %v2652, %v2668
        %v2685 = vadd.f32 %v2653, %v2669
        %v2686 = vadd.f32 %v2654, %v2670
        %v2687 = vadd.f32 %v2655, %v2671
        %v2688 = vadd.f32 %v2656, %v2672
        %v2689 = vadd.f32 %v2657, %v2673
        %v2690 = vadd.f32 %v2658, %v2674
        %v2691 = vadd.f32 %v2659, %v2675
        %v2692 = vadd.f32 %v2660, %v2676
        %v2693 = vadd.f32 %v2661, %v2677
        %v2694 = vadd.f32 %v2662, %v2678
        %v2695 = vadd.f32 %v2663, %v2679
        %v2696 = vadd.f32 %v2664, %v2680
        %v2697 = vmul.f32 %v2489, %v786
        %v2698 = vmul.f32 %v2490, %v786
        %v2699 = vmul.f32 %v2491, %v786
        %v2700 = vmul.f32 %v2492, %v786
        %v2701 = vmul.f32 %v2493, %v786
        %v2702 = vmul.f32 %v2494, %v786
        %v2703 = vmul.f32 %v2495, %v786
        %v2704 = vmul.f32 %v2496, %v786
        %v2705 = vmul.f32 %v2497, %v786
        %v2706 = vmul.f32 %v2498, %v786
        %v2707 = vmul.f32 %v2499, %v786
        %v2708 = vmul.f32 %v2500, %v786
        %v2709 = vmul.f32 %v2501, %v786
        %v2710 = vmul.f32 %v2502, %v786
        %v2711 = vmul.f32 %v2503, %v786
        %v2712 = vmul.f32 %v2504, %v786
        %v2713 = vadd.f32 %v2681, %v2697
        %v2714 = vadd.f32 %v2682, %v2698
        %v2715 = vadd.f32 %v2683, %v2699
        %v2716 = vadd.f32 %v2684, %v2700
        %v2717 = vadd.f32 %v2685, %v2701
        %v2718 = vadd.f32 %v2686, %v2702
        %v2719 = vadd.f32 %v2687, %v2703
        %v2720 = vadd.f32 %v2688, %v2704
        %v2721 = vadd.f32 %v2689, %v2705
        %v2722 = vadd.f32 %v2690, %v2706
        %v2723 = vadd.f32 %v2691, %v2707
        %v2724 = vadd.f32 %v2692, %v2708
        %v2725 = vadd.f32 %v2693, %v2709
        %v2726 = vadd.f32 %v2694, %v2710
        %v2727 = vadd.f32 %v2695, %v2711
        %v2728 = vadd.f32 %v2696, %v2712
        %v2729 = vld [vmem:[%s2476 + $0x6] sm:$0xff]
        %v2730 = vld [vmem:[%s2476 + $0xe] sm:$0xff]
        %v2731 = vld [vmem:[%s2476 + $0x26] sm:$0xff]
        %v2732 = vld [vmem:[%s2476 + $0x2e] sm:$0xff]
        %v2733 = vld [vmem:[%s2476 + $0x46] sm:$0xff]
        %v2734 = vld [vmem:[%s2476 + $0x4e] sm:$0xff]
        %v2735 = vld [vmem:[%s2476 + $0x66] sm:$0xff]
        %v2736 = vld [vmem:[%s2476 + $0x6e] sm:$0xff]
        %v2737 = vld [vmem:[%s2476 + $0x86] sm:$0xff]
        %v2738 = vld [vmem:[%s2476 + $0x8e] sm:$0xff]
        %v2739 = vld [vmem:[%s2476 + $0xa6] sm:$0xff]
        %v2740 = vld [vmem:[%s2476 + $0xae] sm:$0xff]
        %v2741 = vld [vmem:[%s2476 + $0xc6] sm:$0xff]
        %v2742 = vld [vmem:[%s2476 + $0xce] sm:$0xff]
        %v2743 = vld [vmem:[%s2476 + $0xe6] sm:$0xff]
        %v2744 = vld [vmem:[%s2476 + $0xee] sm:$0xff]
        %v2745 = vld [vmem:[%s2476 + $0x106] sm:$0xff]
        %v2746 = vld [vmem:[%s2476 + $0x10e] sm:$0xff]
        %v2747 = vld [vmem:[%s2476 + $0x126] sm:$0xff]
        %v2748 = vld [vmem:[%s2476 + $0x12e] sm:$0xff]
        %v2749 = vld [vmem:[%s2476 + $0x146] sm:$0xff]
        %v2750 = vld [vmem:[%s2476 + $0x14e] sm:$0xff]
        %v2751 = vld [vmem:[%s2476 + $0x166] sm:$0xff]
        %v2752 = vld [vmem:[%s2476 + $0x16e] sm:$0xff]
        %v2753 = vld [vmem:[%s2476 + $0x186] sm:$0xff]
        %v2754 = vld [vmem:[%s2476 + $0x18e] sm:$0xff]
        %v2755 = vld [vmem:[%s2476 + $0x1a6] sm:$0xff]
        %v2756 = vld [vmem:[%s2476 + $0x1ae] sm:$0xff]
        %v2757 = vmul.f32 %v2729, %v847
        %v2758 = vmul.f32 %v2730, %v847
        %v2759 = vmul.f32 %v2731, %v847
        %v2760 = vmul.f32 %v2732, %v847
        %v2761 = vmul.f32 %v2733, %v847
        %v2762 = vmul.f32 %v2734, %v847
        %v2763 = vmul.f32 %v2735, %v847
        %v2764 = vmul.f32 %v2736, %v847
        %v2765 = vmul.f32 %v2737, %v847
        %v2766 = vmul.f32 %v2738, %v847
        %v2767 = vmul.f32 %v2739, %v847
        %v2768 = vmul.f32 %v2740, %v847
        %v2769 = vmul.f32 %v2741, %v847
        %v2770 = vmul.f32 %v2742, %v847
        %v2771 = vmul.f32 %v2743, %v847
        %v2772 = vmul.f32 %v2744, %v847
        %v2773 = vadd.f32 %v2713, %v2757
        %v2774 = vadd.f32 %v2714, %v2758
        %v2775 = vadd.f32 %v2715, %v2759
        %v2776 = vadd.f32 %v2716, %v2760
        %v2777 = vadd.f32 %v2717, %v2761
        %v2778 = vadd.f32 %v2718, %v2762
        %v2779 = vadd.f32 %v2719, %v2763
        %v2780 = vadd.f32 %v2720, %v2764
        %v2781 = vadd.f32 %v2721, %v2765
        %v2782 = vadd.f32 %v2722, %v2766
        %v2783 = vadd.f32 %v2723, %v2767
        %v2784 = vadd.f32 %v2724, %v2768
        %v2785 = vadd.f32 %v2725, %v2769
        %v2786 = vadd.f32 %v2726, %v2770
        %v2787 = vadd.f32 %v2727, %v2771
        %v2788 = vadd.f32 %v2728, %v2772
        %v2789 = vmul.f32 %v2731, %v880
        %v2790 = vmul.f32 %v2732, %v880
        %v2791 = vmul.f32 %v2733, %v880
        %v2792 = vmul.f32 %v2734, %v880
        %v2793 = vmul.f32 %v2735, %v880
        %v2794 = vmul.f32 %v2736, %v880
        %v2795 = vmul.f32 %v2737, %v880
        %v2796 = vmul.f32 %v2738, %v880
        %v2797 = vmul.f32 %v2739, %v880
        %v2798 = vmul.f32 %v2740, %v880
        %v2799 = vmul.f32 %v2741, %v880
        %v2800 = vmul.f32 %v2742, %v880
        %v2801 = vmul.f32 %v2743, %v880
        %v2802 = vmul.f32 %v2744, %v880
        %v2803 = vmul.f32 %v2745, %v880
        %v2804 = vmul.f32 %v2746, %v880
        %v2805 = vadd.f32 %v2773, %v2789
        %v2806 = vadd.f32 %v2774, %v2790
        %v2807 = vadd.f32 %v2775, %v2791
        %v2808 = vadd.f32 %v2776, %v2792
        %v2809 = vadd.f32 %v2777, %v2793
        %v2810 = vadd.f32 %v2778, %v2794
        %v2811 = vadd.f32 %v2779, %v2795
        %v2812 = vadd.f32 %v2780, %v2796
        %v2813 = vadd.f32 %v2781, %v2797
        %v2814 = vadd.f32 %v2782, %v2798
        %v2815 = vadd.f32 %v2783, %v2799
        %v2816 = vadd.f32 %v2784, %v2800
        %v2817 = vadd.f32 %v2785, %v2801
        %v2818 = vadd.f32 %v2786, %v2802
        %v2819 = vadd.f32 %v2787, %v2803
        %v2820 = vadd.f32 %v2788, %v2804
        %v2821 = vmul.f32 %v2733, %v913
        %v2822 = vmul.f32 %v2734, %v913
        %v2823 = vmul.f32 %v2735, %v913
        %v2824 = vmul.f32 %v2736, %v913
        %v2825 = vmul.f32 %v2737, %v913
        %v2826 = vmul.f32 %v2738, %v913
        %v2827 = vmul.f32 %v2739, %v913
        %v2828 = vmul.f32 %v2740, %v913
        %v2829 = vmul.f32 %v2741, %v913
        %v2830 = vmul.f32 %v2742, %v913
        %v2831 = vmul.f32 %v2743, %v913
        %v2832 = vmul.f32 %v2744, %v913
        %v2833 = vmul.f32 %v2745, %v913
        %v2834 = vmul.f32 %v2746, %v913
        %v2835 = vmul.f32 %v2747, %v913
        %v2836 = vmul.f32 %v2748, %v913
        %v2837 = vadd.f32 %v2805, %v2821
        %v2838 = vadd.f32 %v2806, %v2822
        %v2839 = vadd.f32 %v2807, %v2823
        %v2840 = vadd.f32 %v2808, %v2824
        %v2841 = vadd.f32 %v2809, %v2825
        %v2842 = vadd.f32 %v2810, %v2826
        %v2843 = vadd.f32 %v2811, %v2827
        %v2844 = vadd.f32 %v2812, %v2828
        %v2845 = vadd.f32 %v2813, %v2829
        %v2846 = vadd.f32 %v2814, %v2830
        %v2847 = vadd.f32 %v2815, %v2831
        %v2848 = vadd.f32 %v2816, %v2832
        %v2849 = vadd.f32 %v2817, %v2833
        %v2850 = vadd.f32 %v2818, %v2834
        %v2851 = vadd.f32 %v2819, %v2835
        %v2852 = vadd.f32 %v2820, %v2836
        %v2853 = vmul.f32 %v2735, %v946
        %v2854 = vmul.f32 %v2736, %v946
        %v2855 = vmul.f32 %v2737, %v946
        %v2856 = vmul.f32 %v2738, %v946
        %v2857 = vmul.f32 %v2739, %v946
        %v2858 = vmul.f32 %v2740, %v946
        %v2859 = vmul.f32 %v2741, %v946
        %v2860 = vmul.f32 %v2742, %v946
        %v2861 = vmul.f32 %v2743, %v946
        %v2862 = vmul.f32 %v2744, %v946
        %v2863 = vmul.f32 %v2745, %v946
        %v2864 = vmul.f32 %v2746, %v946
        %v2865 = vmul.f32 %v2747, %v946
        %v2866 = vmul.f32 %v2748, %v946
        %v2867 = vmul.f32 %v2749, %v946
        %v2868 = vmul.f32 %v2750, %v946
        %v2869 = vadd.f32 %v2837, %v2853
        %v2870 = vadd.f32 %v2838, %v2854
        %v2871 = vadd.f32 %v2839, %v2855
        %v2872 = vadd.f32 %v2840, %v2856
        %v2873 = vadd.f32 %v2841, %v2857
        %v2874 = vadd.f32 %v2842, %v2858
        %v2875 = vadd.f32 %v2843, %v2859
        %v2876 = vadd.f32 %v2844, %v2860
        %v2877 = vadd.f32 %v2845, %v2861
        %v2878 = vadd.f32 %v2846, %v2862
        %v2879 = vadd.f32 %v2847, %v2863
        %v2880 = vadd.f32 %v2848, %v2864
        %v2881 = vadd.f32 %v2849, %v2865
        %v2882 = vadd.f32 %v2850, %v2866
        %v2883 = vadd.f32 %v2851, %v2867
        %v2884 = vadd.f32 %v2852, %v2868
        %v2885 = vmul.f32 %v2737, %v979
        %v2886 = vmul.f32 %v2738, %v979
        %v2887 = vmul.f32 %v2739, %v979
        %v2888 = vmul.f32 %v2740, %v979
        %v2889 = vmul.f32 %v2741, %v979
        %v2890 = vmul.f32 %v2742, %v979
        %v2891 = vmul.f32 %v2743, %v979
        %v2892 = vmul.f32 %v2744, %v979
        %v2893 = vmul.f32 %v2745, %v979
        %v2894 = vmul.f32 %v2746, %v979
        %v2895 = vmul.f32 %v2747, %v979
        %v2896 = vmul.f32 %v2748, %v979
        %v2897 = vmul.f32 %v2749, %v979
        %v2898 = vmul.f32 %v2750, %v979
        %v2899 = vmul.f32 %v2751, %v979
        %v2900 = vmul.f32 %v2752, %v979
        %v2901 = vadd.f32 %v2869, %v2885
        %v2902 = vadd.f32 %v2870, %v2886
        %v2903 = vadd.f32 %v2871, %v2887
        %v2904 = vadd.f32 %v2872, %v2888
        %v2905 = vadd.f32 %v2873, %v2889
        %v2906 = vadd.f32 %v2874, %v2890
        %v2907 = vadd.f32 %v2875, %v2891
        %v2908 = vadd.f32 %v2876, %v2892
        %v2909 = vadd.f32 %v2877, %v2893
        %v2910 = vadd.f32 %v2878, %v2894
        %v2911 = vadd.f32 %v2879, %v2895
        %v2912 = vadd.f32 %v2880, %v2896
        %v2913 = vadd.f32 %v2881, %v2897
        %v2914 = vadd.f32 %v2882, %v2898
        %v2915 = vadd.f32 %v2883, %v2899
        %v2916 = vadd.f32 %v2884, %v2900
        %v2917 = vmul.f32 %v2739, %v1012
        %v2918 = vmul.f32 %v2740, %v1012
        %v2919 = vmul.f32 %v2741, %v1012
        %v2920 = vmul.f32 %v2742, %v1012
        %v2921 = vmul.f32 %v2743, %v1012
        %v2922 = vmul.f32 %v2744, %v1012
        %v2923 = vmul.f32 %v2745, %v1012
        %v2924 = vmul.f32 %v2746, %v1012
        %v2925 = vmul.f32 %v2747, %v1012
        %v2926 = vmul.f32 %v2748, %v1012
        %v2927 = vmul.f32 %v2749, %v1012
        %v2928 = vmul.f32 %v2750, %v1012
        %v2929 = vmul.f32 %v2751, %v1012
        %v2930 = vmul.f32 %v2752, %v1012
        %v2931 = vmul.f32 %v2753, %v1012
        %v2932 = vmul.f32 %v2754, %v1012
        %v2933 = vadd.f32 %v2901, %v2917
        %v2934 = vadd.f32 %v2902, %v2918
        %v2935 = vadd.f32 %v2903, %v2919
        %v2936 = vadd.f32 %v2904, %v2920
        %v2937 = vadd.f32 %v2905, %v2921
        %v2938 = vadd.f32 %v2906, %v2922
        %v2939 = vadd.f32 %v2907, %v2923
        %v2940 = vadd.f32 %v2908, %v2924
        %v2941 = vadd.f32 %v2909, %v2925
        %v2942 = vadd.f32 %v2910, %v2926
        %v2943 = vadd.f32 %v2911, %v2927
        %v2944 = vadd.f32 %v2912, %v2928
        %v2945 = vadd.f32 %v2913, %v2929
        %v2946 = vadd.f32 %v2914, %v2930
        %v2947 = vadd.f32 %v2915, %v2931
        %v2948 = vadd.f32 %v2916, %v2932
        %v2949 = vmul.f32 %v2741, %v1045
        %v2950 = vmul.f32 %v2742, %v1045
        %v2951 = vmul.f32 %v2743, %v1045
        %v2952 = vmul.f32 %v2744, %v1045
        %v2953 = vmul.f32 %v2745, %v1045
        %v2954 = vmul.f32 %v2746, %v1045
        %v2955 = vmul.f32 %v2747, %v1045
        %v2956 = vmul.f32 %v2748, %v1045
        %v2957 = vmul.f32 %v2749, %v1045
        %v2958 = vmul.f32 %v2750, %v1045
        %v2959 = vmul.f32 %v2751, %v1045
        %v2960 = vmul.f32 %v2752, %v1045
        %v2961 = vmul.f32 %v2753, %v1045
        %v2962 = vmul.f32 %v2754, %v1045
        %v2963 = vmul.f32 %v2755, %v1045
        %v2964 = vmul.f32 %v2756, %v1045
        %v2965 = vadd.f32 %v2933, %v2949
        %v2966 = vadd.f32 %v2934, %v2950
        %v2967 = vadd.f32 %v2935, %v2951
        %v2968 = vadd.f32 %v2936, %v2952
        %v2969 = vadd.f32 %v2937, %v2953
        %v2970 = vadd.f32 %v2938, %v2954
        %v2971 = vadd.f32 %v2939, %v2955
        %v2972 = vadd.f32 %v2940, %v2956
        %v2973 = vadd.f32 %v2941, %v2957
        %v2974 = vadd.f32 %v2942, %v2958
        %v2975 = vadd.f32 %v2943, %v2959
        %v2976 = vadd.f32 %v2944, %v2960
        %v2977 = vadd.f32 %v2945, %v2961
        %v2978 = vadd.f32 %v2946, %v2962
        %v2979 = vadd.f32 %v2947, %v2963
        %v2980 = vadd.f32 %v2948, %v2964
        %v2981 = vld [vmem:[%s2476 + $0x7] sm:$0xff]
        %v2982 = vld [vmem:[%s2476 + $0xf] sm:$0xff]
        %v2983 = vld [vmem:[%s2476 + $0x27] sm:$0xff]
        %v2984 = vld [vmem:[%s2476 + $0x2f] sm:$0xff]
        %v2985 = vld [vmem:[%s2476 + $0x47] sm:$0xff]
        %v2986 = vld [vmem:[%s2476 + $0x4f] sm:$0xff]
        %v2987 = vld [vmem:[%s2476 + $0x67] sm:$0xff]
        %v2988 = vld [vmem:[%s2476 + $0x6f] sm:$0xff]
        %v2989 = vld [vmem:[%s2476 + $0x87] sm:$0xff]
        %v2990 = vld [vmem:[%s2476 + $0x8f] sm:$0xff]
        %v2991 = vld [vmem:[%s2476 + $0xa7] sm:$0xff]
        %v2992 = vld [vmem:[%s2476 + $0xaf] sm:$0xff]
        %v2993 = vld [vmem:[%s2476 + $0xc7] sm:$0xff]
        %v2994 = vld [vmem:[%s2476 + $0xcf] sm:$0xff]
        %v2995 = vld [vmem:[%s2476 + $0xe7] sm:$0xff]
        %v2996 = vld [vmem:[%s2476 + $0xef] sm:$0xff]
        %v2997 = vld [vmem:[%s2476 + $0x107] sm:$0xff]
        %v2998 = vld [vmem:[%s2476 + $0x10f] sm:$0xff]
        %v2999 = vld [vmem:[%s2476 + $0x127] sm:$0xff]
        %v3000 = vld [vmem:[%s2476 + $0x12f] sm:$0xff]
        %v3001 = vld [vmem:[%s2476 + $0x147] sm:$0xff]
        %v3002 = vld [vmem:[%s2476 + $0x14f] sm:$0xff]
        %v3003 = vld [vmem:[%s2476 + $0x167] sm:$0xff]
        %v3004 = vld [vmem:[%s2476 + $0x16f] sm:$0xff]
        %v3005 = vld [vmem:[%s2476 + $0x187] sm:$0xff]
        %v3006 = vld [vmem:[%s2476 + $0x18f] sm:$0xff]
        %v3007 = vld [vmem:[%s2476 + $0x1a7] sm:$0xff]
        %v3008 = vld [vmem:[%s2476 + $0x1af] sm:$0xff]
        %v3009 = vmul.f32 %v2981, %v1106
        %v3010 = vmul.f32 %v2982, %v1106
        %v3011 = vmul.f32 %v2983, %v1106
        %v3012 = vmul.f32 %v2984, %v1106
        %v3013 = vmul.f32 %v2985, %v1106
        %v3014 = vmul.f32 %v2986, %v1106
        %v3015 = vmul.f32 %v2987, %v1106
        %v3016 = vmul.f32 %v2988, %v1106
        %v3017 = vmul.f32 %v2989, %v1106
        %v3018 = vmul.f32 %v2990, %v1106
        %v3019 = vmul.f32 %v2991, %v1106
        %v3020 = vmul.f32 %v2992, %v1106
        %v3021 = vmul.f32 %v2993, %v1106
        %v3022 = vmul.f32 %v2994, %v1106
        %v3023 = vmul.f32 %v2995, %v1106
        %v3024 = vmul.f32 %v2996, %v1106
        %v3025 = vadd.f32 %v2965, %v3009
        %v3026 = vadd.f32 %v2966, %v3010
        %v3027 = vadd.f32 %v2967, %v3011
        %v3028 = vadd.f32 %v2968, %v3012
        %v3029 = vadd.f32 %v2969, %v3013
        %v3030 = vadd.f32 %v2970, %v3014
        %v3031 = vadd.f32 %v2971, %v3015
        %v3032 = vadd.f32 %v2972, %v3016
        %v3033 = vadd.f32 %v2973, %v3017
        %v3034 = vadd.f32 %v2974, %v3018
        %v3035 = vadd.f32 %v2975, %v3019
        %v3036 = vadd.f32 %v2976, %v3020
        %v3037 = vadd.f32 %v2977, %v3021
        %v3038 = vadd.f32 %v2978, %v3022
        %v3039 = vadd.f32 %v2979, %v3023
        %v3040 = vadd.f32 %v2980, %v3024
        %v3041 = vmul.f32 %v2983, %v1139
        %v3042 = vmul.f32 %v2984, %v1139
        %v3043 = vmul.f32 %v2985, %v1139
        %v3044 = vmul.f32 %v2986, %v1139
        %v3045 = vmul.f32 %v2987, %v1139
        %v3046 = vmul.f32 %v2988, %v1139
        %v3047 = vmul.f32 %v2989, %v1139
        %v3048 = vmul.f32 %v2990, %v1139
        %v3049 = vmul.f32 %v2991, %v1139
        %v3050 = vmul.f32 %v2992, %v1139
        %v3051 = vmul.f32 %v2993, %v1139
        %v3052 = vmul.f32 %v2994, %v1139
        %v3053 = vmul.f32 %v2995, %v1139
        %v3054 = vmul.f32 %v2996, %v1139
        %v3055 = vmul.f32 %v2997, %v1139
        %v3056 = vmul.f32 %v2998, %v1139
        %v3057 = vadd.f32 %v3025, %v3041
        %v3058 = vadd.f32 %v3026, %v3042
        %v3059 = vadd.f32 %v3027, %v3043
        %v3060 = vadd.f32 %v3028, %v3044
        %v3061 = vadd.f32 %v3029, %v3045
        %v3062 = vadd.f32 %v3030, %v3046
        %v3063 = vadd.f32 %v3031, %v3047
        %v3064 = vadd.f32 %v3032, %v3048
        %v3065 = vadd.f32 %v3033, %v3049
        %v3066 = vadd.f32 %v3034, %v3050
        %v3067 = vadd.f32 %v3035, %v3051
        %v3068 = vadd.f32 %v3036, %v3052
        %v3069 = vadd.f32 %v3037, %v3053
        %v3070 = vadd.f32 %v3038, %v3054
        %v3071 = vadd.f32 %v3039, %v3055
        %v3072 = vadd.f32 %v3040, %v3056
        %v3073 = vmul.f32 %v2985, %v1172
        %v3074 = vmul.f32 %v2986, %v1172
        %v3075 = vmul.f32 %v2987, %v1172
        %v3076 = vmul.f32 %v2988, %v1172
        %v3077 = vmul.f32 %v2989, %v1172
        %v3078 = vmul.f32 %v2990, %v1172
        %v3079 = vmul.f32 %v2991, %v1172
        %v3080 = vmul.f32 %v2992, %v1172
        %v3081 = vmul.f32 %v2993, %v1172
        %v3082 = vmul.f32 %v2994, %v1172
        %v3083 = vmul.f32 %v2995, %v1172
        %v3084 = vmul.f32 %v2996, %v1172
        %v3085 = vmul.f32 %v2997, %v1172
        %v3086 = vmul.f32 %v2998, %v1172
        %v3087 = vmul.f32 %v2999, %v1172
        %v3088 = vmul.f32 %v3000, %v1172
        %v3089 = vadd.f32 %v3057, %v3073
        %v3090 = vadd.f32 %v3058, %v3074
        %v3091 = vadd.f32 %v3059, %v3075
        %v3092 = vadd.f32 %v3060, %v3076
        %v3093 = vadd.f32 %v3061, %v3077
        %v3094 = vadd.f32 %v3062, %v3078
        %v3095 = vadd.f32 %v3063, %v3079
        %v3096 = vadd.f32 %v3064, %v3080
        %v3097 = vadd.f32 %v3065, %v3081
        %v3098 = vadd.f32 %v3066, %v3082
        %v3099 = vadd.f32 %v3067, %v3083
        %v3100 = vadd.f32 %v3068, %v3084
        %v3101 = vadd.f32 %v3069, %v3085
        %v3102 = vadd.f32 %v3070, %v3086
        %v3103 = vadd.f32 %v3071, %v3087
        %v3104 = vadd.f32 %v3072, %v3088
        %v3105 = vmul.f32 %v2987, %v1205
        %v3106 = vmul.f32 %v2988, %v1205
        %v3107 = vmul.f32 %v2989, %v1205
        %v3108 = vmul.f32 %v2990, %v1205
        %v3109 = vmul.f32 %v2991, %v1205
        %v3110 = vmul.f32 %v2992, %v1205
        %v3111 = vmul.f32 %v2993, %v1205
        %v3112 = vmul.f32 %v2994, %v1205
        %v3113 = vmul.f32 %v2995, %v1205
        %v3114 = vmul.f32 %v2996, %v1205
        %v3115 = vmul.f32 %v2997, %v1205
        %v3116 = vmul.f32 %v2998, %v1205
        %v3117 = vmul.f32 %v2999, %v1205
        %v3118 = vmul.f32 %v3000, %v1205
        %v3119 = vmul.f32 %v3001, %v1205
        %v3120 = vmul.f32 %v3002, %v1205
        %v3121 = vadd.f32 %v3089, %v3105
        %v3122 = vadd.f32 %v3090, %v3106
        %v3123 = vadd.f32 %v3091, %v3107
        %v3124 = vadd.f32 %v3092, %v3108
        %v3125 = vadd.f32 %v3093, %v3109
        %v3126 = vadd.f32 %v3094, %v3110
        %v3127 = vadd.f32 %v3095, %v3111
        %v3128 = vadd.f32 %v3096, %v3112
        %v3129 = vadd.f32 %v3097, %v3113
        %v3130 = vadd.f32 %v3098, %v3114
        %v3131 = vadd.f32 %v3099, %v3115
        %v3132 = vadd.f32 %v3100, %v3116
        %v3133 = vadd.f32 %v3101, %v3117
        %v3134 = vadd.f32 %v3102, %v3118
        %v3135 = vadd.f32 %v3103, %v3119
        %v3136 = vadd.f32 %v3104, %v3120
        %v3137 = vmul.f32 %v2989, %v1238
        %v3138 = vmul.f32 %v2990, %v1238
        %v3139 = vmul.f32 %v2991, %v1238
        %v3140 = vmul.f32 %v2992, %v1238
        %v3141 = vmul.f32 %v2993, %v1238
        %v3142 = vmul.f32 %v2994, %v1238
        %v3143 = vmul.f32 %v2995, %v1238
        %v3144 = vmul.f32 %v2996, %v1238
        %v3145 = vmul.f32 %v2997, %v1238
        %v3146 = vmul.f32 %v2998, %v1238
        %v3147 = vmul.f32 %v2999, %v1238
        %v3148 = vmul.f32 %v3000, %v1238
        %v3149 = vmul.f32 %v3001, %v1238
        %v3150 = vmul.f32 %v3002, %v1238
        %v3151 = vmul.f32 %v3003, %v1238
        %v3152 = vmul.f32 %v3004, %v1238
        %v3153 = vadd.f32 %v3121, %v3137
        %v3154 = vadd.f32 %v3122, %v3138
        %v3155 = vadd.f32 %v3123, %v3139
        %v3156 = vadd.f32 %v3124, %v3140
        %v3157 = vadd.f32 %v3125, %v3141
        %v3158 = vadd.f32 %v3126, %v3142
        %v3159 = vadd.f32 %v3127, %v3143
        %v3160 = vadd.f32 %v3128, %v3144
        %v3161 = vadd.f32 %v3129, %v3145
        %v3162 = vadd.f32 %v3130, %v3146
        %v3163 = vadd.f32 %v3131, %v3147
        %v3164 = vadd.f32 %v3132, %v3148
        %v3165 = vadd.f32 %v3133, %v3149
        %v3166 = vadd.f32 %v3134, %v3150
        %v3167 = vadd.f32 %v3135, %v3151
        %v3168 = vadd.f32 %v3136, %v3152
        %v3169 = vmul.f32 %v2991, %v1271
        %v3170 = vmul.f32 %v2992, %v1271
        %v3171 = vmul.f32 %v2993, %v1271
        %v3172 = vmul.f32 %v2994, %v1271
        %v3173 = vmul.f32 %v2995, %v1271
        %v3174 = vmul.f32 %v2996, %v1271
        %v3175 = vmul.f32 %v2997, %v1271
        %v3176 = vmul.f32 %v2998, %v1271
        %v3177 = vmul.f32 %v2999, %v1271
        %v3178 = vmul.f32 %v3000, %v1271
        %v3179 = vmul.f32 %v3001, %v1271
        %v3180 = vmul.f32 %v3002, %v1271
        %v3181 = vmul.f32 %v3003, %v1271
        %v3182 = vmul.f32 %v3004, %v1271
        %v3183 = vmul.f32 %v3005, %v1271
        %v3184 = vmul.f32 %v3006, %v1271
        %v3185 = vadd.f32 %v3153, %v3169
        %v3186 = vadd.f32 %v3154, %v3170
        %v3187 = vadd.f32 %v3155, %v3171
        %v3188 = vadd.f32 %v3156, %v3172
        %v3189 = vadd.f32 %v3157, %v3173
        %v3190 = vadd.f32 %v3158, %v3174
        %v3191 = vadd.f32 %v3159, %v3175
        %v3192 = vadd.f32 %v3160, %v3176
        %v3193 = vadd.f32 %v3161, %v3177
        %v3194 = vadd.f32 %v3162, %v3178
        %v3195 = vadd.f32 %v3163, %v3179
        %v3196 = vadd.f32 %v3164, %v3180
        %v3197 = vadd.f32 %v3165, %v3181
        %v3198 = vadd.f32 %v3166, %v3182
        %v3199 = vadd.f32 %v3167, %v3183
        %v3200 = vadd.f32 %v3168, %v3184
        %v3201 = vmul.f32 %v2993, %v1304
        %v3202 = vmul.f32 %v2994, %v1304
        %v3203 = vmul.f32 %v2995, %v1304
        %v3204 = vmul.f32 %v2996, %v1304
        %v3205 = vmul.f32 %v2997, %v1304
        %v3206 = vmul.f32 %v2998, %v1304
        %v3207 = vmul.f32 %v2999, %v1304
        %v3208 = vmul.f32 %v3000, %v1304
        %v3209 = vmul.f32 %v3001, %v1304
        %v3210 = vmul.f32 %v3002, %v1304
        %v3211 = vmul.f32 %v3003, %v1304
        %v3212 = vmul.f32 %v3004, %v1304
        %v3213 = vmul.f32 %v3005, %v1304
        %v3214 = vmul.f32 %v3006, %v1304
        %v3215 = vmul.f32 %v3007, %v1304
        %v3216 = vmul.f32 %v3008, %v1304
        %v3217 = vadd.f32 %v3185, %v3201
        %v3218 = vadd.f32 %v3186, %v3202
        %v3219 = vadd.f32 %v3187, %v3203
        %v3220 = vadd.f32 %v3188, %v3204
        %v3221 = vadd.f32 %v3189, %v3205
        %v3222 = vadd.f32 %v3190, %v3206
        %v3223 = vadd.f32 %v3191, %v3207
        %v3224 = vadd.f32 %v3192, %v3208
        %v3225 = vadd.f32 %v3193, %v3209
        %v3226 = vadd.f32 %v3194, %v3210
        %v3227 = vadd.f32 %v3195, %v3211
        %v3228 = vadd.f32 %v3196, %v3212
        %v3229 = vadd.f32 %v3197, %v3213
        %v3230 = vadd.f32 %v3198, %v3214
        %v3231 = vadd.f32 %v3199, %v3215
        %v3232 = vadd.f32 %v3200, %v3216
        %v3233 = vld [vmem:[%s2476 + $0x8] sm:$0xff]
        %v3234 = vld [vmem:[%s2476 + $0x10] sm:$0xff]
        %v3235 = vld [vmem:[%s2476 + $0x28] sm:$0xff]
        %v3236 = vld [vmem:[%s2476 + $0x30] sm:$0xff]
        %v3237 = vld [vmem:[%s2476 + $0x48] sm:$0xff]
        %v3238 = vld [vmem:[%s2476 + $0x50] sm:$0xff]
        %v3239 = vld [vmem:[%s2476 + $0x68] sm:$0xff]
        %v3240 = vld [vmem:[%s2476 + $0x70] sm:$0xff]
        %v3241 = vld [vmem:[%s2476 + $0x88] sm:$0xff]
        %v3242 = vld [vmem:[%s2476 + $0x90] sm:$0xff]
        %v3243 = vld [vmem:[%s2476 + $0xa8] sm:$0xff]
        %v3244 = vld [vmem:[%s2476 + $0xb0] sm:$0xff]
        %v3245 = vld [vmem:[%s2476 + $0xc8] sm:$0xff]
        %v3246 = vld [vmem:[%s2476 + $0xd0] sm:$0xff]
        %v3247 = vld [vmem:[%s2476 + $0xe8] sm:$0xff]
        %v3248 = vld [vmem:[%s2476 + $0xf0] sm:$0xff]
        %v3249 = vld [vmem:[%s2476 + $0x108] sm:$0xff]
        %v3250 = vld [vmem:[%s2476 + $0x110] sm:$0xff]
        %v3251 = vld [vmem:[%s2476 + $0x128] sm:$0xff]
        %v3252 = vld [vmem:[%s2476 + $0x130] sm:$0xff]
        %v3253 = vld [vmem:[%s2476 + $0x148] sm:$0xff]
        %v3254 = vld [vmem:[%s2476 + $0x150] sm:$0xff]
        %v3255 = vld [vmem:[%s2476 + $0x168] sm:$0xff]
        %v3256 = vld [vmem:[%s2476 + $0x170] sm:$0xff]
        %v3257 = vld [vmem:[%s2476 + $0x188] sm:$0xff]
        %v3258 = vld [vmem:[%s2476 + $0x190] sm:$0xff]
        %v3259 = vld [vmem:[%s2476 + $0x1a8] sm:$0xff]
        %v3260 = vld [vmem:[%s2476 + $0x1b0] sm:$0xff]
        %v3261 = vmul.f32 %v3233, %v1365
        %v3262 = vmul.f32 %v3234, %v1365
        %v3263 = vmul.f32 %v3235, %v1365
        %v3264 = vmul.f32 %v3236, %v1365
        %v3265 = vmul.f32 %v3237, %v1365
        %v3266 = vmul.f32 %v3238, %v1365
        %v3267 = vmul.f32 %v3239, %v1365
        %v3268 = vmul.f32 %v3240, %v1365
        %v3269 = vmul.f32 %v3241, %v1365
        %v3270 = vmul.f32 %v3242, %v1365
        %v3271 = vmul.f32 %v3243, %v1365
        %v3272 = vmul.f32 %v3244, %v1365
        %v3273 = vmul.f32 %v3245, %v1365
        %v3274 = vmul.f32 %v3246, %v1365
        %v3275 = vmul.f32 %v3247, %v1365
        %v3276 = vmul.f32 %v3248, %v1365
        %v3277 = vadd.f32 %v3217, %v3261
        %v3278 = vadd.f32 %v3218, %v3262
        %v3279 = vadd.f32 %v3219, %v3263
        %v3280 = vadd.f32 %v3220, %v3264
        %v3281 = vadd.f32 %v3221, %v3265
        %v3282 = vadd.f32 %v3222, %v3266
        %v3283 = vadd.f32 %v3223, %v3267
        %v3284 = vadd.f32 %v3224, %v3268
        %v3285 = vadd.f32 %v3225, %v3269
        %v3286 = vadd.f32 %v3226, %v3270
        %v3287 = vadd.f32 %v3227, %v3271
        %v3288 = vadd.f32 %v3228, %v3272
        %v3289 = vadd.f32 %v3229, %v3273
        %v3290 = vadd.f32 %v3230, %v3274
        %v3291 = vadd.f32 %v3231, %v3275
        %v3292 = vadd.f32 %v3232, %v3276
        %v3293 = vmul.f32 %v3235, %v1398
        %v3294 = vmul.f32 %v3236, %v1398
        %v3295 = vmul.f32 %v3237, %v1398
        %v3296 = vmul.f32 %v3238, %v1398
        %v3297 = vmul.f32 %v3239, %v1398
        %v3298 = vmul.f32 %v3240, %v1398
        %v3299 = vmul.f32 %v3241, %v1398
        %v3300 = vmul.f32 %v3242, %v1398
        %v3301 = vmul.f32 %v3243, %v1398
        %v3302 = vmul.f32 %v3244, %v1398
        %v3303 = vmul.f32 %v3245, %v1398
        %v3304 = vmul.f32 %v3246, %v1398
        %v3305 = vmul.f32 %v3247, %v1398
        %v3306 = vmul.f32 %v3248, %v1398
        %v3307 = vmul.f32 %v3249, %v1398
        %v3308 = vmul.f32 %v3250, %v1398
        %v3309 = vadd.f32 %v3277, %v3293
        %v3310 = vadd.f32 %v3278, %v3294
        %v3311 = vadd.f32 %v3279, %v3295
        %v3312 = vadd.f32 %v3280, %v3296
        %v3313 = vadd.f32 %v3281, %v3297
        %v3314 = vadd.f32 %v3282, %v3298
        %v3315 = vadd.f32 %v3283, %v3299
        %v3316 = vadd.f32 %v3284, %v3300
        %v3317 = vadd.f32 %v3285, %v3301
        %v3318 = vadd.f32 %v3286, %v3302
        %v3319 = vadd.f32 %v3287, %v3303
        %v3320 = vadd.f32 %v3288, %v3304
        %v3321 = vadd.f32 %v3289, %v3305
        %v3322 = vadd.f32 %v3290, %v3306
        %v3323 = vadd.f32 %v3291, %v3307
        %v3324 = vadd.f32 %v3292, %v3308
        %v3325 = vmul.f32 %v3237, %v1431
        %v3326 = vmul.f32 %v3238, %v1431
        %v3327 = vmul.f32 %v3239, %v1431
        %v3328 = vmul.f32 %v3240, %v1431
        %v3329 = vmul.f32 %v3241, %v1431
        %v3330 = vmul.f32 %v3242, %v1431
        %v3331 = vmul.f32 %v3243, %v1431
        %v3332 = vmul.f32 %v3244, %v1431
        %v3333 = vmul.f32 %v3245, %v1431
        %v3334 = vmul.f32 %v3246, %v1431
        %v3335 = vmul.f32 %v3247, %v1431
        %v3336 = vmul.f32 %v3248, %v1431
        %v3337 = vmul.f32 %v3249, %v1431
        %v3338 = vmul.f32 %v3250, %v1431
        %v3339 = vmul.f32 %v3251, %v1431
        %v3340 = vmul.f32 %v3252, %v1431
        %v3341 = vadd.f32 %v3309, %v3325
        %v3342 = vadd.f32 %v3310, %v3326
        %v3343 = vadd.f32 %v3311, %v3327
        %v3344 = vadd.f32 %v3312, %v3328
        %v3345 = vadd.f32 %v3313, %v3329
        %v3346 = vadd.f32 %v3314, %v3330
        %v3347 = vadd.f32 %v3315, %v3331
        %v3348 = vadd.f32 %v3316, %v3332
        %v3349 = vadd.f32 %v3317, %v3333
        %v3350 = vadd.f32 %v3318, %v3334
        %v3351 = vadd.f32 %v3319, %v3335
        %v3352 = vadd.f32 %v3320, %v3336
        %v3353 = vadd.f32 %v3321, %v3337
        %v3354 = vadd.f32 %v3322, %v3338
        %v3355 = vadd.f32 %v3323, %v3339
        %v3356 = vadd.f32 %v3324, %v3340
        %v3357 = vmul.f32 %v3239, %v1464
        %v3358 = vmul.f32 %v3240, %v1464
        %v3359 = vmul.f32 %v3241, %v1464
        %v3360 = vmul.f32 %v3242, %v1464
        %v3361 = vmul.f32 %v3243, %v1464
        %v3362 = vmul.f32 %v3244, %v1464
        %v3363 = vmul.f32 %v3245, %v1464
        %v3364 = vmul.f32 %v3246, %v1464
        %v3365 = vmul.f32 %v3247, %v1464
        %v3366 = vmul.f32 %v3248, %v1464
        %v3367 = vmul.f32 %v3249, %v1464
        %v3368 = vmul.f32 %v3250, %v1464
        %v3369 = vmul.f32 %v3251, %v1464
        %v3370 = vmul.f32 %v3252, %v1464
        %v3371 = vmul.f32 %v3253, %v1464
        %v3372 = vmul.f32 %v3254, %v1464
        %v3373 = vadd.f32 %v3341, %v3357
        %v3374 = vadd.f32 %v3342, %v3358
        %v3375 = vadd.f32 %v3343, %v3359
        %v3376 = vadd.f32 %v3344, %v3360
        %v3377 = vadd.f32 %v3345, %v3361
        %v3378 = vadd.f32 %v3346, %v3362
        %v3379 = vadd.f32 %v3347, %v3363
        %v3380 = vadd.f32 %v3348, %v3364
        %v3381 = vadd.f32 %v3349, %v3365
        %v3382 = vadd.f32 %v3350, %v3366
        %v3383 = vadd.f32 %v3351, %v3367
        %v3384 = vadd.f32 %v3352, %v3368
        %v3385 = vadd.f32 %v3353, %v3369
        %v3386 = vadd.f32 %v3354, %v3370
        %v3387 = vadd.f32 %v3355, %v3371
        %v3388 = vadd.f32 %v3356, %v3372
        %v3389 = vmul.f32 %v3241, %v1497
        %v3390 = vmul.f32 %v3242, %v1497
        %v3391 = vmul.f32 %v3243, %v1497
        %v3392 = vmul.f32 %v3244, %v1497
        %v3393 = vmul.f32 %v3245, %v1497
        %v3394 = vmul.f32 %v3246, %v1497
        %v3395 = vmul.f32 %v3247, %v1497
        %v3396 = vmul.f32 %v3248, %v1497
        %v3397 = vmul.f32 %v3249, %v1497
        %v3398 = vmul.f32 %v3250, %v1497
        %v3399 = vmul.f32 %v3251, %v1497
        %v3400 = vmul.f32 %v3252, %v1497
        %v3401 = vmul.f32 %v3253, %v1497
        %v3402 = vmul.f32 %v3254, %v1497
        %v3403 = vmul.f32 %v3255, %v1497
        %v3404 = vmul.f32 %v3256, %v1497
        %v3405 = vadd.f32 %v3373, %v3389
        %v3406 = vadd.f32 %v3374, %v3390
        %v3407 = vadd.f32 %v3375, %v3391
        %v3408 = vadd.f32 %v3376, %v3392
        %v3409 = vadd.f32 %v3377, %v3393
        %v3410 = vadd.f32 %v3378, %v3394
        %v3411 = vadd.f32 %v3379, %v3395
        %v3412 = vadd.f32 %v3380, %v3396
        %v3413 = vadd.f32 %v3381, %v3397
        %v3414 = vadd.f32 %v3382, %v3398
        %v3415 = vadd.f32 %v3383, %v3399
        %v3416 = vadd.f32 %v3384, %v3400
        %v3417 = vadd.f32 %v3385, %v3401
        %v3418 = vadd.f32 %v3386, %v3402
        %v3419 = vadd.f32 %v3387, %v3403
        %v3420 = vadd.f32 %v3388, %v3404
        %v3421 = vmul.f32 %v3243, %v1530
        %v3422 = vmul.f32 %v3244, %v1530
        %v3423 = vmul.f32 %v3245, %v1530
        %v3424 = vmul.f32 %v3246, %v1530
        %v3425 = vmul.f32 %v3247, %v1530
        %v3426 = vmul.f32 %v3248, %v1530
        %v3427 = vmul.f32 %v3249, %v1530
        %v3428 = vmul.f32 %v3250, %v1530
        %v3429 = vmul.f32 %v3251, %v1530
        %v3430 = vmul.f32 %v3252, %v1530
        %v3431 = vmul.f32 %v3253, %v1530
        %v3432 = vmul.f32 %v3254, %v1530
        %v3433 = vmul.f32 %v3255, %v1530
        %v3434 = vmul.f32 %v3256, %v1530
        %v3435 = vmul.f32 %v3257, %v1530
        %v3436 = vmul.f32 %v3258, %v1530
        %v3437 = vadd.f32 %v3405, %v3421
        %v3438 = vadd.f32 %v3406, %v3422
        %v3439 = vadd.f32 %v3407, %v3423
        %v3440 = vadd.f32 %v3408, %v3424
        %v3441 = vadd.f32 %v3409, %v3425
        %v3442 = vadd.f32 %v3410, %v3426
        %v3443 = vadd.f32 %v3411, %v3427
        %v3444 = vadd.f32 %v3412, %v3428
        %v3445 = vadd.f32 %v3413, %v3429
        %v3446 = vadd.f32 %v3414, %v3430
        %v3447 = vadd.f32 %v3415, %v3431
        %v3448 = vadd.f32 %v3416, %v3432
        %v3449 = vadd.f32 %v3417, %v3433
        %v3450 = vadd.f32 %v3418, %v3434
        %v3451 = vadd.f32 %v3419, %v3435
        %v3452 = vadd.f32 %v3420, %v3436
        %v3453 = vmul.f32 %v3245, %v1563
        %v3454 = vmul.f32 %v3246, %v1563
        %v3455 = vmul.f32 %v3247, %v1563
        %v3456 = vmul.f32 %v3248, %v1563
        %v3457 = vmul.f32 %v3249, %v1563
        %v3458 = vmul.f32 %v3250, %v1563
        %v3459 = vmul.f32 %v3251, %v1563
        %v3460 = vmul.f32 %v3252, %v1563
        %v3461 = vmul.f32 %v3253, %v1563
        %v3462 = vmul.f32 %v3254, %v1563
        %v3463 = vmul.f32 %v3255, %v1563
        %v3464 = vmul.f32 %v3256, %v1563
        %v3465 = vmul.f32 %v3257, %v1563
        %v3466 = vmul.f32 %v3258, %v1563
        %v3467 = vmul.f32 %v3259, %v1563
        %v3468 = vmul.f32 %v3260, %v1563
        %v3469 = vadd.f32 %v3437, %v3453
        %v3470 = vadd.f32 %v3438, %v3454
        %v3471 = vadd.f32 %v3439, %v3455
        %v3472 = vadd.f32 %v3440, %v3456
        %v3473 = vadd.f32 %v3441, %v3457
        %v3474 = vadd.f32 %v3442, %v3458
        %v3475 = vadd.f32 %v3443, %v3459
        %v3476 = vadd.f32 %v3444, %v3460
        %v3477 = vadd.f32 %v3445, %v3461
        %v3478 = vadd.f32 %v3446, %v3462
        %v3479 = vadd.f32 %v3447, %v3463
        %v3480 = vadd.f32 %v3448, %v3464
        %v3481 = vadd.f32 %v3449, %v3465
        %v3482 = vadd.f32 %v3450, %v3466
        %v3483 = vadd.f32 %v3451, %v3467
        %v3484 = vadd.f32 %v3452, %v3468
        %v3485 = vld [vmem:[%s2476 + $0x9] sm:$0xff]
        %v3486 = vld [vmem:[%s2476 + $0x11] sm:$0xff]
        %v3487 = vld [vmem:[%s2476 + $0x29] sm:$0xff]
        %v3488 = vld [vmem:[%s2476 + $0x31] sm:$0xff]
        %v3489 = vld [vmem:[%s2476 + $0x49] sm:$0xff]
        %v3490 = vld [vmem:[%s2476 + $0x51] sm:$0xff]
        %v3491 = vld [vmem:[%s2476 + $0x69] sm:$0xff]
        %v3492 = vld [vmem:[%s2476 + $0x71] sm:$0xff]
        %v3493 = vld [vmem:[%s2476 + $0x89] sm:$0xff]
        %v3494 = vld [vmem:[%s2476 + $0x91] sm:$0xff]
        %v3495 = vld [vmem:[%s2476 + $0xa9] sm:$0xff]
        %v3496 = vld [vmem:[%s2476 + $0xb1] sm:$0xff]
        %v3497 = vld [vmem:[%s2476 + $0xc9] sm:$0xff]
        %v3498 = vld [vmem:[%s2476 + $0xd1] sm:$0xff]
        %v3499 = vld [vmem:[%s2476 + $0xe9] sm:$0xff]
        %v3500 = vld [vmem:[%s2476 + $0xf1] sm:$0xff]
        %v3501 = vld [vmem:[%s2476 + $0x109] sm:$0xff]
        %v3502 = vld [vmem:[%s2476 + $0x111] sm:$0xff]
        %v3503 = vld [vmem:[%s2476 + $0x129] sm:$0xff]
        %v3504 = vld [vmem:[%s2476 + $0x131] sm:$0xff]
        %v3505 = vld [vmem:[%s2476 + $0x149] sm:$0xff]
        %v3506 = vld [vmem:[%s2476 + $0x151] sm:$0xff]
        %v3507 = vld [vmem:[%s2476 + $0x169] sm:$0xff]
        %v3508 = vld [vmem:[%s2476 + $0x171] sm:$0xff]
        %v3509 = vld [vmem:[%s2476 + $0x189] sm:$0xff]
        %v3510 = vld [vmem:[%s2476 + $0x191] sm:$0xff]
        %v3511 = vld [vmem:[%s2476 + $0x1a9] sm:$0xff]
        %v3512 = vld [vmem:[%s2476 + $0x1b1] sm:$0xff]
        %v3513 = vmul.f32 %v3485, %v1624
        %v3514 = vmul.f32 %v3486, %v1624
        %v3515 = vmul.f32 %v3487, %v1624
        %v3516 = vmul.f32 %v3488, %v1624
        %v3517 = vmul.f32 %v3489, %v1624
        %v3518 = vmul.f32 %v3490, %v1624
        %v3519 = vmul.f32 %v3491, %v1624
        %v3520 = vmul.f32 %v3492, %v1624
        %v3521 = vmul.f32 %v3493, %v1624
        %v3522 = vmul.f32 %v3494, %v1624
        %v3523 = vmul.f32 %v3495, %v1624
        %v3524 = vmul.f32 %v3496, %v1624
        %v3525 = vmul.f32 %v3497, %v1624
        %v3526 = vmul.f32 %v3498, %v1624
        %v3527 = vmul.f32 %v3499, %v1624
        %v3528 = vmul.f32 %v3500, %v1624
        %v3529 = vadd.f32 %v3469, %v3513
        %v3530 = vadd.f32 %v3470, %v3514
        %v3531 = vadd.f32 %v3471, %v3515
        %v3532 = vadd.f32 %v3472, %v3516
        %v3533 = vadd.f32 %v3473, %v3517
        %v3534 = vadd.f32 %v3474, %v3518
        %v3535 = vadd.f32 %v3475, %v3519
        %v3536 = vadd.f32 %v3476, %v3520
        %v3537 = vadd.f32 %v3477, %v3521
        %v3538 = vadd.f32 %v3478, %v3522
        %v3539 = vadd.f32 %v3479, %v3523
        %v3540 = vadd.f32 %v3480, %v3524
        %v3541 = vadd.f32 %v3481, %v3525
        %v3542 = vadd.f32 %v3482, %v3526
        %v3543 = vadd.f32 %v3483, %v3527
        %v3544 = vadd.f32 %v3484, %v3528
        %v3545 = vmul.f32 %v3487, %v1657
        %v3546 = vmul.f32 %v3488, %v1657
        %v3547 = vmul.f32 %v3489, %v1657
        %v3548 = vmul.f32 %v3490, %v1657
        %v3549 = vmul.f32 %v3491, %v1657
        %v3550 = vmul.f32 %v3492, %v1657
        %v3551 = vmul.f32 %v3493, %v1657
        %v3552 = vmul.f32 %v3494, %v1657
        %v3553 = vmul.f32 %v3495, %v1657
        %v3554 = vmul.f32 %v3496, %v1657
        %v3555 = vmul.f32 %v3497, %v1657
        %v3556 = vmul.f32 %v3498, %v1657
        %v3557 = vmul.f32 %v3499, %v1657
        %v3558 = vmul.f32 %v3500, %v1657
        %v3559 = vmul.f32 %v3501, %v1657
        %v3560 = vmul.f32 %v3502, %v1657
        %v3561 = vadd.f32 %v3529, %v3545
        %v3562 = vadd.f32 %v3530, %v3546
        %v3563 = vadd.f32 %v3531, %v3547
        %v3564 = vadd.f32 %v3532, %v3548
        %v3565 = vadd.f32 %v3533, %v3549
        %v3566 = vadd.f32 %v3534, %v3550
        %v3567 = vadd.f32 %v3535, %v3551
        %v3568 = vadd.f32 %v3536, %v3552
        %v3569 = vadd.f32 %v3537, %v3553
        %v3570 = vadd.f32 %v3538, %v3554
        %v3571 = vadd.f32 %v3539, %v3555
        %v3572 = vadd.f32 %v3540, %v3556
        %v3573 = vadd.f32 %v3541, %v3557
        %v3574 = vadd.f32 %v3542, %v3558
        %v3575 = vadd.f32 %v3543, %v3559
        %v3576 = vadd.f32 %v3544, %v3560
        %v3577 = vmul.f32 %v3489, %v1690
        %v3578 = vmul.f32 %v3490, %v1690
        %v3579 = vmul.f32 %v3491, %v1690
        %v3580 = vmul.f32 %v3492, %v1690
        %v3581 = vmul.f32 %v3493, %v1690
        %v3582 = vmul.f32 %v3494, %v1690
        %v3583 = vmul.f32 %v3495, %v1690
        %v3584 = vmul.f32 %v3496, %v1690
        %v3585 = vmul.f32 %v3497, %v1690
        %v3586 = vmul.f32 %v3498, %v1690
        %v3587 = vmul.f32 %v3499, %v1690
        %v3588 = vmul.f32 %v3500, %v1690
        %v3589 = vmul.f32 %v3501, %v1690
        %v3590 = vmul.f32 %v3502, %v1690
        %v3591 = vmul.f32 %v3503, %v1690
        %v3592 = vmul.f32 %v3504, %v1690
        %v3593 = vadd.f32 %v3561, %v3577
        %v3594 = vadd.f32 %v3562, %v3578
        %v3595 = vadd.f32 %v3563, %v3579
        %v3596 = vadd.f32 %v3564, %v3580
        %v3597 = vadd.f32 %v3565, %v3581
        %v3598 = vadd.f32 %v3566, %v3582
        %v3599 = vadd.f32 %v3567, %v3583
        %v3600 = vadd.f32 %v3568, %v3584
        %v3601 = vadd.f32 %v3569, %v3585
        %v3602 = vadd.f32 %v3570, %v3586
        %v3603 = vadd.f32 %v3571, %v3587
        %v3604 = vadd.f32 %v3572, %v3588
        %v3605 = vadd.f32 %v3573, %v3589
        %v3606 = vadd.f32 %v3574, %v3590
        %v3607 = vadd.f32 %v3575, %v3591
        %v3608 = vadd.f32 %v3576, %v3592
        %v3609 = vmul.f32 %v3491, %v1723
        %v3610 = vmul.f32 %v3492, %v1723
        %v3611 = vmul.f32 %v3493, %v1723
        %v3612 = vmul.f32 %v3494, %v1723
        %v3613 = vmul.f32 %v3495, %v1723
        %v3614 = vmul.f32 %v3496, %v1723
        %v3615 = vmul.f32 %v3497, %v1723
        %v3616 = vmul.f32 %v3498, %v1723
        %v3617 = vmul.f32 %v3499, %v1723
        %v3618 = vmul.f32 %v3500, %v1723
        %v3619 = vmul.f32 %v3501, %v1723
        %v3620 = vmul.f32 %v3502, %v1723
        %v3621 = vmul.f32 %v3503, %v1723
        %v3622 = vmul.f32 %v3504, %v1723
        %v3623 = vmul.f32 %v3505, %v1723
        %v3624 = vmul.f32 %v3506, %v1723
        %v3625 = vadd.f32 %v3593, %v3609
        %v3626 = vadd.f32 %v3594, %v3610
        %v3627 = vadd.f32 %v3595, %v3611
        %v3628 = vadd.f32 %v3596, %v3612
        %v3629 = vadd.f32 %v3597, %v3613
        %v3630 = vadd.f32 %v3598, %v3614
        %v3631 = vadd.f32 %v3599, %v3615
        %v3632 = vadd.f32 %v3600, %v3616
        %v3633 = vadd.f32 %v3601, %v3617
        %v3634 = vadd.f32 %v3602, %v3618
        %v3635 = vadd.f32 %v3603, %v3619
        %v3636 = vadd.f32 %v3604, %v3620
        %v3637 = vadd.f32 %v3605, %v3621
        %v3638 = vadd.f32 %v3606, %v3622
        %v3639 = vadd.f32 %v3607, %v3623
        %v3640 = vadd.f32 %v3608, %v3624
        %v3641 = vmul.f32 %v3493, %v1756
        %v3642 = vmul.f32 %v3494, %v1756
        %v3643 = vmul.f32 %v3495, %v1756
        %v3644 = vmul.f32 %v3496, %v1756
        %v3645 = vmul.f32 %v3497, %v1756
        %v3646 = vmul.f32 %v3498, %v1756
        %v3647 = vmul.f32 %v3499, %v1756
        %v3648 = vmul.f32 %v3500, %v1756
        %v3649 = vmul.f32 %v3501, %v1756
        %v3650 = vmul.f32 %v3502, %v1756
        %v3651 = vmul.f32 %v3503, %v1756
        %v3652 = vmul.f32 %v3504, %v1756
        %v3653 = vmul.f32 %v3505, %v1756
        %v3654 = vmul.f32 %v3506, %v1756
        %v3655 = vmul.f32 %v3507, %v1756
        %v3656 = vmul.f32 %v3508, %v1756
        %v3657 = vadd.f32 %v3625, %v3641
        %v3658 = vadd.f32 %v3626, %v3642
        %v3659 = vadd.f32 %v3627, %v3643
        %v3660 = vadd.f32 %v3628, %v3644
        %v3661 = vadd.f32 %v3629, %v3645
        %v3662 = vadd.f32 %v3630, %v3646
        %v3663 = vadd.f32 %v3631, %v3647
        %v3664 = vadd.f32 %v3632, %v3648
        %v3665 = vadd.f32 %v3633, %v3649
        %v3666 = vadd.f32 %v3634, %v3650
        %v3667 = vadd.f32 %v3635, %v3651
        %v3668 = vadd.f32 %v3636, %v3652
        %v3669 = vadd.f32 %v3637, %v3653
        %v3670 = vadd.f32 %v3638, %v3654
        %v3671 = vadd.f32 %v3639, %v3655
        %v3672 = vadd.f32 %v3640, %v3656
        %v3673 = vmul.f32 %v3495, %v1789
        %v3674 = vmul.f32 %v3496, %v1789
        %v3675 = vmul.f32 %v3497, %v1789
        %v3676 = vmul.f32 %v3498, %v1789
        %v3677 = vmul.f32 %v3499, %v1789
        %v3678 = vmul.f32 %v3500, %v1789
        %v3679 = vmul.f32 %v3501, %v1789
        %v3680 = vmul.f32 %v3502, %v1789
        %v3681 = vmul.f32 %v3503, %v1789
        %v3682 = vmul.f32 %v3504, %v1789
        %v3683 = vmul.f32 %v3505, %v1789
        %v3684 = vmul.f32 %v3506, %v1789
        %v3685 = vmul.f32 %v3507, %v1789
        %v3686 = vmul.f32 %v3508, %v1789
        %v3687 = vmul.f32 %v3509, %v1789
        %v3688 = vmul.f32 %v3510, %v1789
        %v3689 = vadd.f32 %v3657, %v3673
        %v3690 = vadd.f32 %v3658, %v3674
        %v3691 = vadd.f32 %v3659, %v3675
        %v3692 = vadd.f32 %v3660, %v3676
        %v3693 = vadd.f32 %v3661, %v3677
        %v3694 = vadd.f32 %v3662, %v3678
        %v3695 = vadd.f32 %v3663, %v3679
        %v3696 = vadd.f32 %v3664, %v3680
        %v3697 = vadd.f32 %v3665, %v3681
        %v3698 = vadd.f32 %v3666, %v3682
        %v3699 = vadd.f32 %v3667, %v3683
        %v3700 = vadd.f32 %v3668, %v3684
        %v3701 = vadd.f32 %v3669, %v3685
        %v3702 = vadd.f32 %v3670, %v3686
        %v3703 = vadd.f32 %v3671, %v3687
        %v3704 = vadd.f32 %v3672, %v3688
        %v3705 = vmul.f32 %v3497, %v1822
        %v3706 = vmul.f32 %v3498, %v1822
        %v3707 = vmul.f32 %v3499, %v1822
        %v3708 = vmul.f32 %v3500, %v1822
        %v3709 = vmul.f32 %v3501, %v1822
        %v3710 = vmul.f32 %v3502, %v1822
        %v3711 = vmul.f32 %v3503, %v1822
        %v3712 = vmul.f32 %v3504, %v1822
        %v3713 = vmul.f32 %v3505, %v1822
        %v3714 = vmul.f32 %v3506, %v1822
        %v3715 = vmul.f32 %v3507, %v1822
        %v3716 = vmul.f32 %v3508, %v1822
        %v3717 = vmul.f32 %v3509, %v1822
        %v3718 = vmul.f32 %v3510, %v1822
        %v3719 = vmul.f32 %v3511, %v1822
        %v3720 = vmul.f32 %v3512, %v1822
        %v3721 = vadd.f32 %v3689, %v3705
        %v3722 = vadd.f32 %v3690, %v3706
        %v3723 = vadd.f32 %v3691, %v3707
        %v3724 = vadd.f32 %v3692, %v3708
        %v3725 = vadd.f32 %v3693, %v3709
        %v3726 = vadd.f32 %v3694, %v3710
        %v3727 = vadd.f32 %v3695, %v3711
        %v3728 = vadd.f32 %v3696, %v3712
        %v3729 = vadd.f32 %v3697, %v3713
        %v3730 = vadd.f32 %v3698, %v3714
        %v3731 = vadd.f32 %v3699, %v3715
        %v3732 = vadd.f32 %v3700, %v3716
        %v3733 = vadd.f32 %v3701, %v3717
        %v3734 = vadd.f32 %v3702, %v3718
        %v3735 = vadd.f32 %v3703, %v3719
        %v3736 = vadd.f32 %v3704, %v3720
        %v3737 = vld [vmem:[%s2476 + $0xa] sm:$0xff]
        %v3738 = vld [vmem:[%s2476 + $0x12] sm:$0xff]
        %v3739 = vld [vmem:[%s2476 + $0x2a] sm:$0xff]
        %v3740 = vld [vmem:[%s2476 + $0x32] sm:$0xff]
        %v3741 = vld [vmem:[%s2476 + $0x4a] sm:$0xff]
        %v3742 = vld [vmem:[%s2476 + $0x52] sm:$0xff]
        %v3743 = vld [vmem:[%s2476 + $0x6a] sm:$0xff]
        %v3744 = vld [vmem:[%s2476 + $0x72] sm:$0xff]
        %v3745 = vld [vmem:[%s2476 + $0x8a] sm:$0xff]
        %v3746 = vld [vmem:[%s2476 + $0x92] sm:$0xff]
        %v3747 = vld [vmem:[%s2476 + $0xaa] sm:$0xff]
        %v3748 = vld [vmem:[%s2476 + $0xb2] sm:$0xff]
        %v3749 = vld [vmem:[%s2476 + $0xca] sm:$0xff]
        %v3750 = vld [vmem:[%s2476 + $0xd2] sm:$0xff]
        %v3751 = vld [vmem:[%s2476 + $0xea] sm:$0xff]
        %v3752 = vld [vmem:[%s2476 + $0xf2] sm:$0xff]
        %v3753 = vld [vmem:[%s2476 + $0x10a] sm:$0xff]
        %v3754 = vld [vmem:[%s2476 + $0x112] sm:$0xff]
        %v3755 = vld [vmem:[%s2476 + $0x12a] sm:$0xff]
        %v3756 = vld [vmem:[%s2476 + $0x132] sm:$0xff]
        %v3757 = vld [vmem:[%s2476 + $0x14a] sm:$0xff]
        %v3758 = vld [vmem:[%s2476 + $0x152] sm:$0xff]
        %v3759 = vld [vmem:[%s2476 + $0x16a] sm:$0xff]
        %v3760 = vld [vmem:[%s2476 + $0x172] sm:$0xff]
        %v3761 = vld [vmem:[%s2476 + $0x18a] sm:$0xff]
        %v3762 = vld [vmem:[%s2476 + $0x192] sm:$0xff]
        %v3763 = vld [vmem:[%s2476 + $0x1aa] sm:$0xff]
        %v3764 = vld [vmem:[%s2476 + $0x1b2] sm:$0xff]
        %v3765 = vmul.f32 %v3737, %v1883
        %v3766 = vmul.f32 %v3738, %v1883
        %v3767 = vmul.f32 %v3739, %v1883
        %v3768 = vmul.f32 %v3740, %v1883
        %v3769 = vmul.f32 %v3741, %v1883
        %v3770 = vmul.f32 %v3742, %v1883
        %v3771 = vmul.f32 %v3743, %v1883
        %v3772 = vmul.f32 %v3744, %v1883
        %v3773 = vmul.f32 %v3745, %v1883
        %v3774 = vmul.f32 %v3746, %v1883
        %v3775 = vmul.f32 %v3747, %v1883
        %v3776 = vmul.f32 %v3748, %v1883
        %v3777 = vmul.f32 %v3749, %v1883
        %v3778 = vmul.f32 %v3750, %v1883
        %v3779 = vmul.f32 %v3751, %v1883
        %v3780 = vmul.f32 %v3752, %v1883
        %v3781 = vadd.f32 %v3721, %v3765
        %v3782 = vadd.f32 %v3722, %v3766
        %v3783 = vadd.f32 %v3723, %v3767
        %v3784 = vadd.f32 %v3724, %v3768
        %v3785 = vadd.f32 %v3725, %v3769
        %v3786 = vadd.f32 %v3726, %v3770
        %v3787 = vadd.f32 %v3727, %v3771
        %v3788 = vadd.f32 %v3728, %v3772
        %v3789 = vadd.f32 %v3729, %v3773
        %v3790 = vadd.f32 %v3730, %v3774
        %v3791 = vadd.f32 %v3731, %v3775
        %v3792 = vadd.f32 %v3732, %v3776
        %v3793 = vadd.f32 %v3733, %v3777
        %v3794 = vadd.f32 %v3734, %v3778
        %v3795 = vadd.f32 %v3735, %v3779
        %v3796 = vadd.f32 %v3736, %v3780
        %v3797 = vmul.f32 %v3739, %v1916
        %v3798 = vmul.f32 %v3740, %v1916
        %v3799 = vmul.f32 %v3741, %v1916
        %v3800 = vmul.f32 %v3742, %v1916
        %v3801 = vmul.f32 %v3743, %v1916
        %v3802 = vmul.f32 %v3744, %v1916
        %v3803 = vmul.f32 %v3745, %v1916
        %v3804 = vmul.f32 %v3746, %v1916
        %v3805 = vmul.f32 %v3747, %v1916
        %v3806 = vmul.f32 %v3748, %v1916
        %v3807 = vmul.f32 %v3749, %v1916
        %v3808 = vmul.f32 %v3750, %v1916
        %v3809 = vmul.f32 %v3751, %v1916
        %v3810 = vmul.f32 %v3752, %v1916
        %v3811 = vmul.f32 %v3753, %v1916
        %v3812 = vmul.f32 %v3754, %v1916
        %v3813 = vadd.f32 %v3781, %v3797
        %v3814 = vadd.f32 %v3782, %v3798
        %v3815 = vadd.f32 %v3783, %v3799
        %v3816 = vadd.f32 %v3784, %v3800
        %v3817 = vadd.f32 %v3785, %v3801
        %v3818 = vadd.f32 %v3786, %v3802
        %v3819 = vadd.f32 %v3787, %v3803
        %v3820 = vadd.f32 %v3788, %v3804
        %v3821 = vadd.f32 %v3789, %v3805
        %v3822 = vadd.f32 %v3790, %v3806
        %v3823 = vadd.f32 %v3791, %v3807
        %v3824 = vadd.f32 %v3792, %v3808
        %v3825 = vadd.f32 %v3793, %v3809
        %v3826 = vadd.f32 %v3794, %v3810
        %v3827 = vadd.f32 %v3795, %v3811
        %v3828 = vadd.f32 %v3796, %v3812
        %v3829 = vmul.f32 %v3741, %v1949
        %v3830 = vmul.f32 %v3742, %v1949
        %v3831 = vmul.f32 %v3743, %v1949
        %v3832 = vmul.f32 %v3744, %v1949
        %v3833 = vmul.f32 %v3745, %v1949
        %v3834 = vmul.f32 %v3746, %v1949
        %v3835 = vmul.f32 %v3747, %v1949
        %v3836 = vmul.f32 %v3748, %v1949
        %v3837 = vmul.f32 %v3749, %v1949
        %v3838 = vmul.f32 %v3750, %v1949
        %v3839 = vmul.f32 %v3751, %v1949
        %v3840 = vmul.f32 %v3752, %v1949
        %v3841 = vmul.f32 %v3753, %v1949
        %v3842 = vmul.f32 %v3754, %v1949
        %v3843 = vmul.f32 %v3755, %v1949
        %v3844 = vmul.f32 %v3756, %v1949
        %v3845 = vadd.f32 %v3813, %v3829
        %v3846 = vadd.f32 %v3814, %v3830
        %v3847 = vadd.f32 %v3815, %v3831
        %v3848 = vadd.f32 %v3816, %v3832
        %v3849 = vadd.f32 %v3817, %v3833
        %v3850 = vadd.f32 %v3818, %v3834
        %v3851 = vadd.f32 %v3819, %v3835
        %v3852 = vadd.f32 %v3820, %v3836
        %v3853 = vadd.f32 %v3821, %v3837
        %v3854 = vadd.f32 %v3822, %v3838
        %v3855 = vadd.f32 %v3823, %v3839
        %v3856 = vadd.f32 %v3824, %v3840
        %v3857 = vadd.f32 %v3825, %v3841
        %v3858 = vadd.f32 %v3826, %v3842
        %v3859 = vadd.f32 %v3827, %v3843
        %v3860 = vadd.f32 %v3828, %v3844
        %v3861 = vmul.f32 %v3743, %v1982
        %v3862 = vmul.f32 %v3744, %v1982
        %v3863 = vmul.f32 %v3745, %v1982
        %v3864 = vmul.f32 %v3746, %v1982
        %v3865 = vmul.f32 %v3747, %v1982
        %v3866 = vmul.f32 %v3748, %v1982
        %v3867 = vmul.f32 %v3749, %v1982
        %v3868 = vmul.f32 %v3750, %v1982
        %v3869 = vmul.f32 %v3751, %v1982
        %v3870 = vmul.f32 %v3752, %v1982
        %v3871 = vmul.f32 %v3753, %v1982
        %v3872 = vmul.f32 %v3754, %v1982
        %v3873 = vmul.f32 %v3755, %v1982
        %v3874 = vmul.f32 %v3756, %v1982
        %v3875 = vmul.f32 %v3757, %v1982
        %v3876 = vmul.f32 %v3758, %v1982
        %v3877 = vadd.f32 %v3845, %v3861
        %v3878 = vadd.f32 %v3846, %v3862
        %v3879 = vadd.f32 %v3847, %v3863
        %v3880 = vadd.f32 %v3848, %v3864
        %v3881 = vadd.f32 %v3849, %v3865
        %v3882 = vadd.f32 %v3850, %v3866
        %v3883 = vadd.f32 %v3851, %v3867
        %v3884 = vadd.f32 %v3852, %v3868
        %v3885 = vadd.f32 %v3853, %v3869
        %v3886 = vadd.f32 %v3854, %v3870
        %v3887 = vadd.f32 %v3855, %v3871
        %v3888 = vadd.f32 %v3856, %v3872
        %v3889 = vadd.f32 %v3857, %v3873
        %v3890 = vadd.f32 %v3858, %v3874
        %v3891 = vadd.f32 %v3859, %v3875
        %v3892 = vadd.f32 %v3860, %v3876
        %v3893 = vmul.f32 %v3745, %v2015
        %v3894 = vmul.f32 %v3746, %v2015
        %v3895 = vmul.f32 %v3747, %v2015
        %v3896 = vmul.f32 %v3748, %v2015
        %v3897 = vmul.f32 %v3749, %v2015
        %v3898 = vmul.f32 %v3750, %v2015
        %v3899 = vmul.f32 %v3751, %v2015
        %v3900 = vmul.f32 %v3752, %v2015
        %v3901 = vmul.f32 %v3753, %v2015
        %v3902 = vmul.f32 %v3754, %v2015
        %v3903 = vmul.f32 %v3755, %v2015
        %v3904 = vmul.f32 %v3756, %v2015
        %v3905 = vmul.f32 %v3757, %v2015
        %v3906 = vmul.f32 %v3758, %v2015
        %v3907 = vmul.f32 %v3759, %v2015
        %v3908 = vmul.f32 %v3760, %v2015
        %v3909 = vadd.f32 %v3877, %v3893
        %v3910 = vadd.f32 %v3878, %v3894
        %v3911 = vadd.f32 %v3879, %v3895
        %v3912 = vadd.f32 %v3880, %v3896
        %v3913 = vadd.f32 %v3881, %v3897
        %v3914 = vadd.f32 %v3882, %v3898
        %v3915 = vadd.f32 %v3883, %v3899
        %v3916 = vadd.f32 %v3884, %v3900
        %v3917 = vadd.f32 %v3885, %v3901
        %v3918 = vadd.f32 %v3886, %v3902
        %v3919 = vadd.f32 %v3887, %v3903
        %v3920 = vadd.f32 %v3888, %v3904
        %v3921 = vadd.f32 %v3889, %v3905
        %v3922 = vadd.f32 %v3890, %v3906
        %v3923 = vadd.f32 %v3891, %v3907
        %v3924 = vadd.f32 %v3892, %v3908
        %v3925 = vmul.f32 %v3747, %v2048
        %v3926 = vmul.f32 %v3748, %v2048
        %v3927 = vmul.f32 %v3749, %v2048
        %v3928 = vmul.f32 %v3750, %v2048
        %v3929 = vmul.f32 %v3751, %v2048
        %v3930 = vmul.f32 %v3752, %v2048
        %v3931 = vmul.f32 %v3753, %v2048
        %v3932 = vmul.f32 %v3754, %v2048
        %v3933 = vmul.f32 %v3755, %v2048
        %v3934 = vmul.f32 %v3756, %v2048
        %v3935 = vmul.f32 %v3757, %v2048
        %v3936 = vmul.f32 %v3758, %v2048
        %v3937 = vmul.f32 %v3759, %v2048
        %v3938 = vmul.f32 %v3760, %v2048
        %v3939 = vmul.f32 %v3761, %v2048
        %v3940 = vmul.f32 %v3762, %v2048
        %v3941 = vadd.f32 %v3909, %v3925
        %v3942 = vadd.f32 %v3910, %v3926
        %v3943 = vadd.f32 %v3911, %v3927
        %v3944 = vadd.f32 %v3912, %v3928
        %v3945 = vadd.f32 %v3913, %v3929
        %v3946 = vadd.f32 %v3914, %v3930
        %v3947 = vadd.f32 %v3915, %v3931
        %v3948 = vadd.f32 %v3916, %v3932
        %v3949 = vadd.f32 %v3917, %v3933
        %v3950 = vadd.f32 %v3918, %v3934
        %v3951 = vadd.f32 %v3919, %v3935
        %v3952 = vadd.f32 %v3920, %v3936
        %v3953 = vadd.f32 %v3921, %v3937
        %v3954 = vadd.f32 %v3922, %v3938
        %v3955 = vadd.f32 %v3923, %v3939
        %v3956 = vadd.f32 %v3924, %v3940
        %v3957 = vmul.f32 %v3749, %v2081
        %v3958 = vmul.f32 %v3750, %v2081
        %v3959 = vmul.f32 %v3751, %v2081
        %v3960 = vmul.f32 %v3752, %v2081
        %v3961 = vmul.f32 %v3753, %v2081
        %v3962 = vmul.f32 %v3754, %v2081
        %v3963 = vmul.f32 %v3755, %v2081
        %v3964 = vmul.f32 %v3756, %v2081
        %v3965 = vmul.f32 %v3757, %v2081
        %v3966 = vmul.f32 %v3758, %v2081
        %v3967 = vmul.f32 %v3759, %v2081
        %v3968 = vmul.f32 %v3760, %v2081
        %v3969 = vmul.f32 %v3761, %v2081
        %v3970 = vmul.f32 %v3762, %v2081
        %v3971 = vmul.f32 %v3763, %v2081
        %v3972 = vmul.f32 %v3764, %v2081
        %v3973 = vadd.f32 %v3941, %v3957
        %v3974 = vadd.f32 %v3942, %v3958
        %v3975 = vadd.f32 %v3943, %v3959
        %v3976 = vadd.f32 %v3944, %v3960
        %v3977 = vadd.f32 %v3945, %v3961
        %v3978 = vadd.f32 %v3946, %v3962
        %v3979 = vadd.f32 %v3947, %v3963
        %v3980 = vadd.f32 %v3948, %v3964
        %v3981 = vadd.f32 %v3949, %v3965
        %v3982 = vadd.f32 %v3950, %v3966
        %v3983 = vadd.f32 %v3951, %v3967
        %v3984 = vadd.f32 %v3952, %v3968
        %v3985 = vadd.f32 %v3953, %v3969
        %v3986 = vadd.f32 %v3954, %v3970
        %v3987 = vadd.f32 %v3955, %v3971
        %v3988 = vadd.f32 %v3956, %v3972
        %v3989 = vld [vmem:[%s2476 + $0xb] sm:$0xff]
        %v3990 = vld [vmem:[%s2476 + $0x13] sm:$0xff]
        %v3991 = vld [vmem:[%s2476 + $0x2b] sm:$0xff]
        %v3992 = vld [vmem:[%s2476 + $0x33] sm:$0xff]
        %v3993 = vld [vmem:[%s2476 + $0x4b] sm:$0xff]
        %v3994 = vld [vmem:[%s2476 + $0x53] sm:$0xff]
        %v3995 = vld [vmem:[%s2476 + $0x6b] sm:$0xff]
        %v3996 = vld [vmem:[%s2476 + $0x73] sm:$0xff]
        %v3997 = vld [vmem:[%s2476 + $0x8b] sm:$0xff]
        %v3998 = vld [vmem:[%s2476 + $0x93] sm:$0xff]
        %v3999 = vld [vmem:[%s2476 + $0xab] sm:$0xff]
        %v4000 = vld [vmem:[%s2476 + $0xb3] sm:$0xff]
        %v4001 = vld [vmem:[%s2476 + $0xcb] sm:$0xff]
        %v4002 = vld [vmem:[%s2476 + $0xd3] sm:$0xff]
        %v4003 = vld [vmem:[%s2476 + $0xeb] sm:$0xff]
        %v4004 = vld [vmem:[%s2476 + $0xf3] sm:$0xff]
        %v4005 = vld [vmem:[%s2476 + $0x10b] sm:$0xff]
        %v4006 = vld [vmem:[%s2476 + $0x113] sm:$0xff]
        %v4007 = vld [vmem:[%s2476 + $0x12b] sm:$0xff]
        %v4008 = vld [vmem:[%s2476 + $0x133] sm:$0xff]
        %v4009 = vld [vmem:[%s2476 + $0x14b] sm:$0xff]
        %v4010 = vld [vmem:[%s2476 + $0x153] sm:$0xff]
        %v4011 = vld [vmem:[%s2476 + $0x16b] sm:$0xff]
        %v4012 = vld [vmem:[%s2476 + $0x173] sm:$0xff]
        %v4013 = vld [vmem:[%s2476 + $0x18b] sm:$0xff]
        %v4014 = vld [vmem:[%s2476 + $0x193] sm:$0xff]
        %v4015 = vld [vmem:[%s2476 + $0x1ab] sm:$0xff]
        %v4016 = vld [vmem:[%s2476 + $0x1b3] sm:$0xff]
        %v4017 = vmul.f32 %v3989, %v2142
        %v4018 = vmul.f32 %v3990, %v2142
        %v4019 = vmul.f32 %v3991, %v2142
        %v4020 = vmul.f32 %v3992, %v2142
        %v4021 = vmul.f32 %v3993, %v2142
        %v4022 = vmul.f32 %v3994, %v2142
        %v4023 = vmul.f32 %v3995, %v2142
        %v4024 = vmul.f32 %v3996, %v2142
        %v4025 = vmul.f32 %v3997, %v2142
        %v4026 = vmul.f32 %v3998, %v2142
        %v4027 = vmul.f32 %v3999, %v2142
        %v4028 = vmul.f32 %v4000, %v2142
        %v4029 = vmul.f32 %v4001, %v2142
        %v4030 = vmul.f32 %v4002, %v2142
        %v4031 = vmul.f32 %v4003, %v2142
        %v4032 = vmul.f32 %v4004, %v2142
        %v4033 = vadd.f32 %v3973, %v4017
        %v4034 = vadd.f32 %v3974, %v4018
        %v4035 = vadd.f32 %v3975, %v4019
        %v4036 = vadd.f32 %v3976, %v4020
        %v4037 = vadd.f32 %v3977, %v4021
        %v4038 = vadd.f32 %v3978, %v4022
        %v4039 = vadd.f32 %v3979, %v4023
        %v4040 = vadd.f32 %v3980, %v4024
        %v4041 = vadd.f32 %v3981, %v4025
        %v4042 = vadd.f32 %v3982, %v4026
        %v4043 = vadd.f32 %v3983, %v4027
        %v4044 = vadd.f32 %v3984, %v4028
        %v4045 = vadd.f32 %v3985, %v4029
        %v4046 = vadd.f32 %v3986, %v4030
        %v4047 = vadd.f32 %v3987, %v4031
        %v4048 = vadd.f32 %v3988, %v4032
        %v4049 = vmul.f32 %v3991, %v2175
        %v4050 = vmul.f32 %v3992, %v2175
        %v4051 = vmul.f32 %v3993, %v2175
        %v4052 = vmul.f32 %v3994, %v2175
        %v4053 = vmul.f32 %v3995, %v2175
        %v4054 = vmul.f32 %v3996, %v2175
        %v4055 = vmul.f32 %v3997, %v2175
        %v4056 = vmul.f32 %v3998, %v2175
        %v4057 = vmul.f32 %v3999, %v2175
        %v4058 = vmul.f32 %v4000, %v2175
        %v4059 = vmul.f32 %v4001, %v2175
        %v4060 = vmul.f32 %v4002, %v2175
        %v4061 = vmul.f32 %v4003, %v2175
        %v4062 = vmul.f32 %v4004, %v2175
        %v4063 = vmul.f32 %v4005, %v2175
        %v4064 = vmul.f32 %v4006, %v2175
        %v4065 = vadd.f32 %v4033, %v4049
        %v4066 = vadd.f32 %v4034, %v4050
        %v4067 = vadd.f32 %v4035, %v4051
        %v4068 = vadd.f32 %v4036, %v4052
        %v4069 = vadd.f32 %v4037, %v4053
        %v4070 = vadd.f32 %v4038, %v4054
        %v4071 = vadd.f32 %v4039, %v4055
        %v4072 = vadd.f32 %v4040, %v4056
        %v4073 = vadd.f32 %v4041, %v4057
        %v4074 = vadd.f32 %v4042, %v4058
        %v4075 = vadd.f32 %v4043, %v4059
        %v4076 = vadd.f32 %v4044, %v4060
        %v4077 = vadd.f32 %v4045, %v4061
        %v4078 = vadd.f32 %v4046, %v4062
        %v4079 = vadd.f32 %v4047, %v4063
        %v4080 = vadd.f32 %v4048, %v4064
        %v4081 = vmul.f32 %v3993, %v2208
        %v4082 = vmul.f32 %v3994, %v2208
        %v4083 = vmul.f32 %v3995, %v2208
        %v4084 = vmul.f32 %v3996, %v2208
        %v4085 = vmul.f32 %v3997, %v2208
        %v4086 = vmul.f32 %v3998, %v2208
        %v4087 = vmul.f32 %v3999, %v2208
        %v4088 = vmul.f32 %v4000, %v2208
        %v4089 = vmul.f32 %v4001, %v2208
        %v4090 = vmul.f32 %v4002, %v2208
        %v4091 = vmul.f32 %v4003, %v2208
        %v4092 = vmul.f32 %v4004, %v2208
        %v4093 = vmul.f32 %v4005, %v2208
        %v4094 = vmul.f32 %v4006, %v2208
        %v4095 = vmul.f32 %v4007, %v2208
        %v4096 = vmul.f32 %v4008, %v2208
        %v4097 = vadd.f32 %v4065, %v4081
        %v4098 = vadd.f32 %v4066, %v4082
        %v4099 = vadd.f32 %v4067, %v4083
        %v4100 = vadd.f32 %v4068, %v4084
        %v4101 = vadd.f32 %v4069, %v4085
        %v4102 = vadd.f32 %v4070, %v4086
        %v4103 = vadd.f32 %v4071, %v4087
        %v4104 = vadd.f32 %v4072, %v4088
        %v4105 = vadd.f32 %v4073, %v4089
        %v4106 = vadd.f32 %v4074, %v4090
        %v4107 = vadd.f32 %v4075, %v4091
        %v4108 = vadd.f32 %v4076, %v4092
        %v4109 = vadd.f32 %v4077, %v4093
        %v4110 = vadd.f32 %v4078, %v4094
        %v4111 = vadd.f32 %v4079, %v4095
        %v4112 = vadd.f32 %v4080, %v4096
        %v4113 = vmul.f32 %v3995, %v2241
        %v4114 = vmul.f32 %v3996, %v2241
        %v4115 = vmul.f32 %v3997, %v2241
        %v4116 = vmul.f32 %v3998, %v2241
        %v4117 = vmul.f32 %v3999, %v2241
        %v4118 = vmul.f32 %v4000, %v2241
        %v4119 = vmul.f32 %v4001, %v2241
        %v4120 = vmul.f32 %v4002, %v2241
        %v4121 = vmul.f32 %v4003, %v2241
        %v4122 = vmul.f32 %v4004, %v2241
        %v4123 = vmul.f32 %v4005, %v2241
        %v4124 = vmul.f32 %v4006, %v2241
        %v4125 = vmul.f32 %v4007, %v2241
        %v4126 = vmul.f32 %v4008, %v2241
        %v4127 = vmul.f32 %v4009, %v2241
        %v4128 = vmul.f32 %v4010, %v2241
        %v4129 = vadd.f32 %v4097, %v4113
        %v4130 = vadd.f32 %v4098, %v4114
        %v4131 = vadd.f32 %v4099, %v4115
        %v4132 = vadd.f32 %v4100, %v4116
        %v4133 = vadd.f32 %v4101, %v4117
        %v4134 = vadd.f32 %v4102, %v4118
        %v4135 = vadd.f32 %v4103, %v4119
        %v4136 = vadd.f32 %v4104, %v4120
        %v4137 = vadd.f32 %v4105, %v4121
        %v4138 = vadd.f32 %v4106, %v4122
        %v4139 = vadd.f32 %v4107, %v4123
        %v4140 = vadd.f32 %v4108, %v4124
        %v4141 = vadd.f32 %v4109, %v4125
        %v4142 = vadd.f32 %v4110, %v4126
        %v4143 = vadd.f32 %v4111, %v4127
        %v4144 = vadd.f32 %v4112, %v4128
        %v4145 = vmul.f32 %v3997, %v2274
        %v4146 = vmul.f32 %v3998, %v2274
        %v4147 = vmul.f32 %v3999, %v2274
        %v4148 = vmul.f32 %v4000, %v2274
        %v4149 = vmul.f32 %v4001, %v2274
        %v4150 = vmul.f32 %v4002, %v2274
        %v4151 = vmul.f32 %v4003, %v2274
        %v4152 = vmul.f32 %v4004, %v2274
        %v4153 = vmul.f32 %v4005, %v2274
        %v4154 = vmul.f32 %v4006, %v2274
        %v4155 = vmul.f32 %v4007, %v2274
        %v4156 = vmul.f32 %v4008, %v2274
        %v4157 = vmul.f32 %v4009, %v2274
        %v4158 = vmul.f32 %v4010, %v2274
        %v4159 = vmul.f32 %v4011, %v2274
        %v4160 = vmul.f32 %v4012, %v2274
        %v4161 = vadd.f32 %v4129, %v4145
        %v4162 = vadd.f32 %v4130, %v4146
        %v4163 = vadd.f32 %v4131, %v4147
        %v4164 = vadd.f32 %v4132, %v4148
        %v4165 = vadd.f32 %v4133, %v4149
        %v4166 = vadd.f32 %v4134, %v4150
        %v4167 = vadd.f32 %v4135, %v4151
        %v4168 = vadd.f32 %v4136, %v4152
        %v4169 = vadd.f32 %v4137, %v4153
        %v4170 = vadd.f32 %v4138, %v4154
        %v4171 = vadd.f32 %v4139, %v4155
        %v4172 = vadd.f32 %v4140, %v4156
        %v4173 = vadd.f32 %v4141, %v4157
        %v4174 = vadd.f32 %v4142, %v4158
        %v4175 = vadd.f32 %v4143, %v4159
        %v4176 = vadd.f32 %v4144, %v4160
        %v4177 = vmul.f32 %v3999, %v2307
        %v4178 = vmul.f32 %v4000, %v2307
        %v4179 = vmul.f32 %v4001, %v2307
        %v4180 = vmul.f32 %v4002, %v2307
        %v4181 = vmul.f32 %v4003, %v2307
        %v4182 = vmul.f32 %v4004, %v2307
        %v4183 = vmul.f32 %v4005, %v2307
        %v4184 = vmul.f32 %v4006, %v2307
        %v4185 = vmul.f32 %v4007, %v2307
        %v4186 = vmul.f32 %v4008, %v2307
        %v4187 = vmul.f32 %v4009, %v2307
        %v4188 = vmul.f32 %v4010, %v2307
        %v4189 = vmul.f32 %v4011, %v2307
        %v4190 = vmul.f32 %v4012, %v2307
        %v4191 = vmul.f32 %v4013, %v2307
        %v4192 = vmul.f32 %v4014, %v2307
        %v4193 = vadd.f32 %v4161, %v4177
        %v4194 = vadd.f32 %v4162, %v4178
        %v4195 = vadd.f32 %v4163, %v4179
        %v4196 = vadd.f32 %v4164, %v4180
        %v4197 = vadd.f32 %v4165, %v4181
        %v4198 = vadd.f32 %v4166, %v4182
        %v4199 = vadd.f32 %v4167, %v4183
        %v4200 = vadd.f32 %v4168, %v4184
        %v4201 = vadd.f32 %v4169, %v4185
        %v4202 = vadd.f32 %v4170, %v4186
        %v4203 = vadd.f32 %v4171, %v4187
        %v4204 = vadd.f32 %v4172, %v4188
        %v4205 = vadd.f32 %v4173, %v4189
        %v4206 = vadd.f32 %v4174, %v4190
        %v4207 = vadd.f32 %v4175, %v4191
        %v4208 = vadd.f32 %v4176, %v4192
        %v4209 = vmul.f32 %v4001, %v2340
        %v4210 = vmul.f32 %v4002, %v2340
        %v4211 = vmul.f32 %v4003, %v2340
        %v4212 = vmul.f32 %v4004, %v2340
        %v4213 = vmul.f32 %v4005, %v2340
        %v4214 = vmul.f32 %v4006, %v2340
        %v4215 = vmul.f32 %v4007, %v2340
        %v4216 = vmul.f32 %v4008, %v2340
        %v4217 = vmul.f32 %v4009, %v2340
        %v4218 = vmul.f32 %v4010, %v2340
        %v4219 = vmul.f32 %v4011, %v2340
        %v4220 = vmul.f32 %v4012, %v2340
        %v4221 = vmul.f32 %v4013, %v2340
        %v4222 = vmul.f32 %v4014, %v2340
        %v4223 = vmul.f32 %v4015, %v2340
        %v4224 = vmul.f32 %v4016, %v2340
        %v4225 = vadd.f32 %v4193, %v4209
        %v4226 = vadd.f32 %v4194, %v4210
        %v4227 = vadd.f32 %v4195, %v4211
        %v4228 = vadd.f32 %v4196, %v4212
        %v4229 = vadd.f32 %v4197, %v4213
        %v4230 = vadd.f32 %v4198, %v4214
        %v4231 = vadd.f32 %v4199, %v4215
        %v4232 = vadd.f32 %v4200, %v4216
        %v4233 = vadd.f32 %v4201, %v4217
        %v4234 = vadd.f32 %v4202, %v4218
        %v4235 = vadd.f32 %v4203, %v4219
        %v4236 = vadd.f32 %v4204, %v4220
        %v4237 = vadd.f32 %v4205, %v4221
        %v4238 = vadd.f32 %v4206, %v4222
        %v4239 = vadd.f32 %v4207, %v4223
        %v4240 = vadd.f32 %v4208, %v4224
        %v4241 = vadd.f32 %v4225, %v2374
        %v4242 = vadd.f32 %v4226, %v2374
        %v4243 = vadd.f32 %v4227, %v2374
        %v4244 = vadd.f32 %v4228, %v2374
        %v4245 = vadd.f32 %v4229, %v2374
        %v4246 = vadd.f32 %v4230, %v2374
        %v4247 = vadd.f32 %v4231, %v2374
        %v4248 = vadd.f32 %v4232, %v2374
        %v4249 = vadd.f32 %v4233, %v2374
        %v4250 = vadd.f32 %v4234, %v2374
        %v4251 = vadd.f32 %v4235, %v2374
        %v4252 = vadd.f32 %v4236, %v2374
        %v4253 = vadd.f32 %v4237, %v2374
        %v4254 = vadd.f32 %v4238, %v2374
        %v4255 = vadd.f32 %v4239, %v2374
        %v4256 = vadd.f32 %v4240, %v2374
        %s4257 = scalar_lea.vmem [#allocation3], 128
        %4258 = vst [vmem:[%s4257] sm:$0xff] %v4241
        %4259 = vst [vmem:[%s4257 + $0x8] sm:$0xff] %v4242
        %4260 = vst [vmem:[%s4257 + $0x10] sm:$0xff] %v4243
        %4261 = vst [vmem:[%s4257 + $0x18] sm:$0xff] %v4244
        %4262 = vst [vmem:[%s4257 + $0x20] sm:$0xff] %v4245
        %4263 = vst [vmem:[%s4257 + $0x28] sm:$0xff] %v4246
        %4264 = vst [vmem:[%s4257 + $0x30] sm:$0xff] %v4247
        %4265 = vst [vmem:[%s4257 + $0x38] sm:$0xff] %v4248
        %4266 = vst [vmem:[%s4257 + $0x40] sm:$0xff] %v4249
        %4267 = vst [vmem:[%s4257 + $0x48] sm:$0xff] %v4250
        %4268 = vst [vmem:[%s4257 + $0x50] sm:$0xff] %v4251
        %4269 = vst [vmem:[%s4257 + $0x58] sm:$0xff] %v4252
        %4270 = vst [vmem:[%s4257 + $0x60] sm:$0xff] %v4253
        %4271 = vst [vmem:[%s4257 + $0x68] sm:$0xff] %v4254
        %4272 = vst [vmem:[%s4257 + $0x70] sm:$0xff] %v4255
        %4273 = vst [vmem:[%s4257 + $0x78] sm:$0xff] %v4256
        %v4274 = vadd.f32 %v4241, %v4243
        %v4275 = vadd.f32 %v4274, %v4245
        %v4276 = vadd.f32 %v4275, %v4247
        %v4277 = vadd.f32 %v4276, %v4249
        %v4278 = vadd.f32 %v4277, %v4251
        %v4279 = vadd.f32 %v4278, %v4253
        %v4280 = vadd.f32 %v4279, %v4255
        %v4281 = vadd.f32 %v4242, %v4244
        %v4282 = vadd.f32 %v4281, %v4246
        %v4283 = vadd.f32 %v4282, %v4248
        %v4284 = vadd.f32 %v4283, %v4250
        %v4285 = vadd.f32 %v4284, %v4252
        %v4286 = vadd.f32 %v4285, %v4254
        %v4287 = vadd.f32 %v4286, %v4256
        %v4288 = vadd.f32 %v4280, %v4287
        %4289 = vadd.xlane.f32.xlu0 %v4288
        %v4290 = vpop.xlane.xlu0 %4289
        %v4291 = vrot.slane %v4290, 4
        %v4292 = vadd.f32 %v4290, %v4291
        %v4293 = vrot.slane %v4292, 2
        %v4294 = vadd.f32 %v4292, %v4293
        %v4295 = vrot.slane %v4294, 1
        %v4296 = vadd.f32 %v4294, %v4295
        %s4297 = vtos %v4296
        %v4298 = vstv %s4297
        %v4299 = vadd.f32 %v2433, %v4298
        %v4300 = vmul.f32 %v4241, %v4241
        %v4301 = vmul.f32 %v4242, %v4242
        %v4302 = vmul.f32 %v4243, %v4243
        %v4303 = vmul.f32 %v4244, %v4244
        %v4304 = vmul.f32 %v4245, %v4245
        %v4305 = vmul.f32 %v4246, %v4246
        %v4306 = vmul.f32 %v4247, %v4247
        %v4307 = vmul.f32 %v4248, %v4248
        %v4308 = vmul.f32 %v4249, %v4249
        %v4309 = vmul.f32 %v4250, %v4250
        %v4310 = vmul.f32 %v4251, %v4251
        %v4311 = vmul.f32 %v4252, %v4252
        %v4312 = vmul.f32 %v4253, %v4253
        %v4313 = vmul.f32 %v4254, %v4254
        %v4314 = vmul.f32 %v4255, %v4255
        %v4315 = vmul.f32 %v4256, %v4256
        %v4316 = vadd.f32 %v4300, %v4302
        %v4317 = vadd.f32 %v4316, %v4304
        %v4318 = vadd.f32 %v4317, %v4306
        %v4319 = vadd.f32 %v4318, %v4308
        %v4320 = vadd.f32 %v4319, %v4310
        %v4321 = vadd.f32 %v4320, %v4312
        %v4322 = vadd.f32 %v4321, %v4314
        %v4323 = vadd.f32 %v4301, %v4303
        %v4324 = vadd.f32 %v4323, %v4305
        %v4325 = vadd.f32 %v4324, %v4307
        %v4326 = vadd.f32 %v4325, %v4309
        %v4327 = vadd.f32 %v4326, %v4311
        %v4328 = vadd.f32 %v4327, %v4313
        %v4329 = vadd.f32 %v4328, %v4315
        %v4330 = vadd.f32 %v4322, %v4329
        %4331 = vadd.xlane.f32.xlu0 %v4330
        %v4332 = vpop.xlane.xlu0 %4331
        %v4333 = vrot.slane %v4332, 4
        %v4334 = vadd.f32 %v4332, %v4333
        %v4335 = vrot.slane %v4334, 2
        %v4336 = vadd.f32 %v4334, %v4335
        %v4337 = vrot.slane %v4336, 1
        %v4338 = vadd.f32 %v4336, %v4337
        %s4339 = vtos %v4338
        %v4340 = vstv %s4339
        %v4341 = vadd.f32 %v2475, %v4340
        %v4342 = vrcp.pop 2048.0
        %v4343 = vmul.f32 2048.0, %v4342
        %v4344 = vsub.f32 1.0, %v4343
        %v4345 = vmul.f32 %v4342, %v4344
        %v4346 = vadd.f32 %v4342, %v4345
        %vm4347 = vweird.f32 %v4342
        %v4348 = vsel %vm4347, %v4342, %v4346
        %v4349 = vmul.f32 %v4299, %v4348
        %v4350 = vmul.f32 %v4341, %v4348
        %v4351 = vmul.f32 %v4349, %v4349
        %v4352 = vsub.f32 %v4350, %v4351
        %v4353 = vadd.f32 %v4352, 1e-05
        %v4354 = vrsqrt.pop %v4353
        %v4355 = vmul.f32 %v4354, %v4353
        %v4356 = vmul.f32 %v4355, %v4354
        %v4357 = vmul.f32 0.5, %v4356
        %v4358 = vsub.f32 1.5, %v4357
        %v4359 = vmul.f32 %v4354, %v4358
        %vm4360 = vweird.f32 %v4353
        %vm4361 = vweird.f32 %v4354
        %vm4362 = vmor %vm4360, %vm4361
        %v4363 = vsel %vm4362, %v4354, %v4359
        %v4364 = vld [vmem:[%s3] sm:$0x1]
        %v4365 = vmul.f32 %v4364, %v4363
        %v4366 = vld [vmem:[%s4] sm:$0x1]
        %v4367 = vmul.f32 %v4349, %v4365
        %v4368 = vsub.f32 %v4366, %v4367
        %v4369 = vld [vmem:[#allocation9] sm:$0xf]
        %v4370 = vld [vmem:[#allocation9 + $0x4] sm:$0xf]
        %v4371 = vld [vmem:[#allocation9 + $0x8] sm:$0xf]
        %v4372 = vld [vmem:[#allocation9 + $0xc] sm:$0xf]
        %v4373 = vld [vmem:[#allocation9 + $0x10] sm:$0xf]
        %v4374 = vld [vmem:[#allocation9 + $0x14] sm:$0xf]
        %v4375 = vld [vmem:[#allocation9 + $0x18] sm:$0xf]
        %v4376 = vld [vmem:[#allocation9 + $0x1c] sm:$0xf]
        %v4377 = vld [vmem:[#allocation9 + $0x20] sm:$0xf]
        %v4378 = vld [vmem:[#allocation9 + $0x24] sm:$0xf]
        %v4379 = vld [vmem:[#allocation9 + $0x28] sm:$0xf]
        %v4380 = vld [vmem:[#allocation9 + $0x2c] sm:$0xf]
        %v4381 = vld [vmem:[#allocation9 + $0x30] sm:$0xf]
        %v4382 = vld [vmem:[#allocation9 + $0x34] sm:$0xf]
        %v4383 = vld [vmem:[#allocation9 + $0x38] sm:$0xf]
        %v4384 = vld [vmem:[#allocation9 + $0x3c] sm:$0xf]
        %v4385 = vld [vmem:[%s6] sm:$0x1]
        %v4386 = vld [vmem:[#allocation10] sm:$0xf]
        %v4387 = vld [vmem:[#allocation10 + $0x4] sm:$0xf]
        %v4388 = vld [vmem:[#allocation10 + $0x8] sm:$0xf]
        %v4389 = vld [vmem:[#allocation10 + $0xc] sm:$0xf]
        %v4390 = vld [vmem:[#allocation10 + $0x10] sm:$0xf]
        %v4391 = vld [vmem:[#allocation10 + $0x14] sm:$0xf]
        %v4392 = vld [vmem:[#allocation10 + $0x18] sm:$0xf]
        %v4393 = vld [vmem:[#allocation10 + $0x1c] sm:$0xf]
        %v4394 = vld [vmem:[#allocation10 + $0x20] sm:$0xf]
        %v4395 = vld [vmem:[#allocation10 + $0x24] sm:$0xf]
        %v4396 = vld [vmem:[#allocation10 + $0x28] sm:$0xf]
        %v4397 = vld [vmem:[#allocation10 + $0x2c] sm:$0xf]
        %v4398 = vld [vmem:[#allocation10 + $0x30] sm:$0xf]
        %v4399 = vld [vmem:[#allocation10 + $0x34] sm:$0xf]
        %v4400 = vld [vmem:[#allocation10 + $0x38] sm:$0xf]
        %v4401 = vld [vmem:[#allocation10 + $0x3c] sm:$0xf]
        %v4402 = vld [vmem:[%s8] sm:$0x1]
        %v4403 = vld [vmem:[%s9] sm:$0x1]
        %v4404 = vld [vmem:[#allocation3] sm:$0xff]
        %v4405 = vld [vmem:[#allocation3 + $0x8] sm:$0xff]
        %v4406 = vld [vmem:[#allocation3 + $0x10] sm:$0xff]
        %v4407 = vld [vmem:[#allocation3 + $0x18] sm:$0xff]
        %v4408 = vld [vmem:[#allocation3 + $0x20] sm:$0xff]
        %v4409 = vld [vmem:[#allocation3 + $0x28] sm:$0xff]
        %v4410 = vld [vmem:[#allocation3 + $0x30] sm:$0xff]
        %v4411 = vld [vmem:[#allocation3 + $0x38] sm:$0xff]
        %v4412 = vld [vmem:[#allocation3 + $0x40] sm:$0xff]
        %v4413 = vld [vmem:[#allocation3 + $0x48] sm:$0xff]
        %v4414 = vld [vmem:[#allocation3 + $0x50] sm:$0xff]
        %v4415 = vld [vmem:[#allocation3 + $0x58] sm:$0xff]
        %v4416 = vld [vmem:[#allocation3 + $0x60] sm:$0xff]
        %v4417 = vld [vmem:[#allocation3 + $0x68] sm:$0xff]
        %v4418 = vld [vmem:[#allocation3 + $0x70] sm:$0xff]
        %v4419 = vld [vmem:[#allocation3 + $0x78] sm:$0xff]
        %v4421 = vperm.slane %v4365, 0
        %v4423 = vmul.f32 %v4404, %v4421
        %v4424 = vmul.f32 %v4405, %v4421
        %v4425 = vmul.f32 %v4406, %v4421
        %v4426 = vmul.f32 %v4407, %v4421
        %v4427 = vmul.f32 %v4408, %v4421
        %v4428 = vmul.f32 %v4409, %v4421
        %v4429 = vmul.f32 %v4410, %v4421
        %v4430 = vmul.f32 %v4411, %v4421
        %v4431 = vmul.f32 %v4412, %v4421
        %v4432 = vmul.f32 %v4413, %v4421
        %v4433 = vmul.f32 %v4414, %v4421
        %v4434 = vmul.f32 %v4415, %v4421
        %v4435 = vmul.f32 %v4416, %v4421
        %v4436 = vmul.f32 %v4417, %v4421
        %v4437 = vmul.f32 %v4418, %v4421
        %v4438 = vmul.f32 %v4419, %v4421
        %v4440 = vperm.slane %v4368, 0
        %v4442 = vadd.f32 %v4423, %v4440
        %v4443 = vadd.f32 %v4424, %v4440
        %v4444 = vadd.f32 %v4425, %v4440
        %v4445 = vadd.f32 %v4426, %v4440
        %v4446 = vadd.f32 %v4427, %v4440
        %v4447 = vadd.f32 %v4428, %v4440
        %v4448 = vadd.f32 %v4429, %v4440
        %v4449 = vadd.f32 %v4430, %v4440
        %v4450 = vadd.f32 %v4431, %v4440
        %v4451 = vadd.f32 %v4432, %v4440
        %v4452 = vadd.f32 %v4433, %v4440
        %v4453 = vadd.f32 %v4434, %v4440
        %v4454 = vadd.f32 %v4435, %v4440
        %v4455 = vadd.f32 %v4436, %v4440
        %v4456 = vadd.f32 %v4437, %v4440
        %v4457 = vadd.f32 %v4438, %v4440
        %v4458 = vpack.c.bf16 %v4443, %v4442
        %v4459 = vpack.c.bf16 %v4445, %v4444
        %v4460 = vpack.c.bf16 %v4447, %v4446
        %v4461 = vpack.c.bf16 %v4449, %v4448
        %v4462 = vpack.c.bf16 %v4451, %v4450
        %v4463 = vpack.c.bf16 %v4453, %v4452
        %v4464 = vpack.c.bf16 %v4455, %v4454
        %v4465 = vpack.c.bf16 %v4457, %v4456
        %v4467 = vperm.slane %v4385, 0
        %v4485 = vunpack.c.l.b16 %v4369
        %v4486 = vunpack.c.l.b16 %v4370
        %v4487 = vunpack.c.l.b16 %v4371
        %v4488 = vunpack.c.l.b16 %v4372
        %v4489 = vunpack.c.l.b16 %v4373
        %v4490 = vunpack.c.l.b16 %v4374
        %v4491 = vunpack.c.l.b16 %v4375
        %v4492 = vunpack.c.l.b16 %v4376
        %v4493 = vunpack.c.l.b16 %v4377
        %v4494 = vunpack.c.l.b16 %v4378
        %v4495 = vunpack.c.l.b16 %v4379
        %v4496 = vunpack.c.l.b16 %v4380
        %v4497 = vunpack.c.l.b16 %v4381
        %v4498 = vunpack.c.l.b16 %v4382
        %v4499 = vunpack.c.l.b16 %v4383
        %v4500 = vunpack.c.l.b16 %v4384
        %v4501 = vpack.c.b16 %v4486, %v4485
        %v4502 = vpack.c.b16 %v4488, %v4487
        %v4503 = vpack.c.b16 %v4490, %v4489
        %v4504 = vpack.c.b16 %v4492, %v4491
        %v4505 = vpack.c.b16 %v4494, %v4493
        %v4506 = vpack.c.b16 %v4496, %v4495
        %v4507 = vpack.c.b16 %v4498, %v4497
        %v4508 = vpack.c.b16 %v4500, %v4499
        %4517 = vmatpush.bf16.msra.mxu0 %v4508
        %4518 = vmatpush.bf16.msra.mxu0 %v4507
        %4519 = vmatpush.bf16.msra.mxu0 %v4506
        %4520 = vmatpush.bf16.msra.mxu0 %v4505
        %4521 = vmatpush.bf16.msra.mxu0 %v4504
        %4522 = vmatpush.bf16.msra.mxu0 %v4503
        %4523 = vmatpush.bf16.msra.mxu0 %v4502
        %4524 = vmatpush.bf16.msra.mxu0 %v4501
        %4525 = vmatmul.bf16.gmra.mxu0 %v4458
        %v4526 = vpop.f32.mrf.mxu0
        %v4527 = vadd.f32 %v4467, %v4526
        %v4528 = vpop.f32.mrf.mxu0
        %v4529 = vadd.f32 %v4467, %v4528
        %4530 = vmatmul.bf16.gmra.mxu0 %v4459
        %v4531 = vpop.f32.mrf.mxu0
        %v4532 = vadd.f32 %v4467, %v4531
        %v4533 = vpop.f32.mrf.mxu0
        %v4534 = vadd.f32 %v4467, %v4533
        %4535 = vmatmul.bf16.gmra.mxu0 %v4460
        %v4536 = vpop.f32.mrf.mxu0
        %v4537 = vadd.f32 %v4467, %v4536
        %v4538 = vpop.f32.mrf.mxu0
        %v4539 = vadd.f32 %v4467, %v4538
        %4540 = vmatmul.bf16.gmra.mxu0 %v4461
        %v4541 = vpop.f32.mrf.mxu0
        %v4542 = vadd.f32 %v4467, %v4541
        %v4543 = vpop.f32.mrf.mxu0
        %v4544 = vadd.f32 %v4467, %v4543
        %4545 = vmatmul.bf16.gmra.mxu0 %v4462
        %v4546 = vpop.f32.mrf.mxu0
        %v4547 = vadd.f32 %v4467, %v4546
        %v4548 = vpop.f32.mrf.mxu0
        %v4549 = vadd.f32 %v4467, %v4548
        %4550 = vmatmul.bf16.gmra.mxu0 %v4463
        %v4551 = vpop.f32.mrf.mxu0
        %v4552 = vadd.f32 %v4467, %v4551
        %v4553 = vpop.f32.mrf.mxu0
        %v4554 = vadd.f32 %v4467, %v4553
        %4555 = vmatmul.bf16.gmra.mxu0 %v4464
        %v4556 = vpop.f32.mrf.mxu0
        %v4557 = vadd.f32 %v4467, %v4556
        %v4558 = vpop.f32.mrf.mxu0
        %v4559 = vadd.f32 %v4467, %v4558
        %4560 = vmatmul.bf16.gmra.mxu0 %v4465
        %v4561 = vpop.f32.mrf.mxu0
        %v4562 = vadd.f32 %v4467, %v4561
        %v4563 = vpop.f32.mrf.mxu0
        %v4564 = vadd.f32 %v4467, %v4563
        %4565 = vdwg.mxu0
        %v4566 = vmul.f32 %v4527, 0.5
        %v4567 = vmul.f32 %v4529, 0.5
        %v4568 = vmul.f32 %v4532, 0.5
        %v4569 = vmul.f32 %v4534, 0.5
        %v4570 = vmul.f32 %v4537, 0.5
        %v4571 = vmul.f32 %v4539, 0.5
        %v4572 = vmul.f32 %v4542, 0.5
        %v4573 = vmul.f32 %v4544, 0.5
        %v4574 = vmul.f32 %v4547, 0.5
        %v4575 = vmul.f32 %v4549, 0.5
        %v4576 = vmul.f32 %v4552, 0.5
        %v4577 = vmul.f32 %v4554, 0.5
        %v4578 = vmul.f32 %v4557, 0.5
        %v4579 = vmul.f32 %v4559, 0.5
        %v4580 = vmul.f32 %v4562, 0.5
        %v4581 = vmul.f32 %v4564, 0.5
        %v4582 = vmul.f32 %v4527, %v4527
        %v4583 = vmul.f32 %v4529, %v4529
        %v4584 = vmul.f32 %v4532, %v4532
        %v4585 = vmul.f32 %v4534, %v4534
        %v4586 = vmul.f32 %v4537, %v4537
        %v4587 = vmul.f32 %v4539, %v4539
        %v4588 = vmul.f32 %v4542, %v4542
        %v4589 = vmul.f32 %v4544, %v4544
        %v4590 = vmul.f32 %v4547, %v4547
        %v4591 = vmul.f32 %v4549, %v4549
        %v4592 = vmul.f32 %v4552, %v4552
        %v4593 = vmul.f32 %v4554, %v4554
        %v4594 = vmul.f32 %v4557, %v4557
        %v4595 = vmul.f32 %v4559, %v4559
        %v4596 = vmul.f32 %v4562, %v4562
        %v4597 = vmul.f32 %v4564, %v4564
        %v4598 = vmul.f32 %v4582, %v4527
        %v4599 = vmul.f32 %v4583, %v4529
        %v4600 = vmul.f32 %v4584, %v4532
        %v4601 = vmul.f32 %v4585, %v4534
        %v4602 = vmul.f32 %v4586, %v4537
        %v4603 = vmul.f32 %v4587, %v4539
        %v4604 = vmul.f32 %v4588, %v4542
        %v4605 = vmul.f32 %v4589, %v4544
        %v4606 = vmul.f32 %v4590, %v4547
        %v4607 = vmul.f32 %v4591, %v4549
        %v4608 = vmul.f32 %v4592, %v4552
        %v4609 = vmul.f32 %v4593, %v4554
        %v4610 = vmul.f32 %v4594, %v4557
        %v4611 = vmul.f32 %v4595, %v4559
        %v4612 = vmul.f32 %v4596, %v4562
        %v4613 = vmul.f32 %v4597, %v4564
        %v4614 = vmul.f32 %v4598, 0.044715
        %v4615 = vmul.f32 %v4599, 0.044715
        %v4616 = vmul.f32 %v4600, 0.044715
        %v4617 = vmul.f32 %v4601, 0.044715
        %v4618 = vmul.f32 %v4602, 0.044715
        %v4619 = vmul.f32 %v4603, 0.044715
        %v4620 = vmul.f32 %v4604, 0.044715
        %v4621 = vmul.f32 %v4605, 0.044715
        %v4622 = vmul.f32 %v4606, 0.044715
        %v4623 = vmul.f32 %v4607, 0.044715
        %v4624 = vmul.f32 %v4608, 0.044715
        %v4625 = vmul.f32 %v4609, 0.044715
        %v4626 = vmul.f32 %v4610, 0.044715
        %v4627 = vmul.f32 %v4611, 0.044715
        %v4628 = vmul.f32 %v4612, 0.044715
        %v4629 = vmul.f32 %v4613, 0.044715
        %v4630 = vadd.f32 %v4527, %v4614
        %v4631 = vadd.f32 %v4529, %v4615
        %v4632 = vadd.f32 %v4532, %v4616
        %v4633 = vadd.f32 %v4534, %v4617
        %v4634 = vadd.f32 %v4537, %v4618
        %v4635 = vadd.f32 %v4539, %v4619
        %v4636 = vadd.f32 %v4542, %v4620
        %v4637 = vadd.f32 %v4544, %v4621
        %v4638 = vadd.f32 %v4547, %v4622
        %v4639 = vadd.f32 %v4549, %v4623
        %v4640 = vadd.f32 %v4552, %v4624
        %v4641 = vadd.f32 %v4554, %v4625
        %v4642 = vadd.f32 %v4557, %v4626
        %v4643 = vadd.f32 %v4559, %v4627
        %v4644 = vadd.f32 %v4562, %v4628
        %v4645 = vadd.f32 %v4564, %v4629
        %v4646 = vmul.f32 %v4630, 0.7978846
        %v4647 = vmul.f32 %v4631, 0.7978846
        %v4648 = vmul.f32 %v4632, 0.7978846
        %v4649 = vmul.f32 %v4633, 0.7978846
        %v4650 = vmul.f32 %v4634, 0.7978846
        %v4651 = vmul.f32 %v4635, 0.7978846
        %v4652 = vmul.f32 %v4636, 0.7978846
        %v4653 = vmul.f32 %v4637, 0.7978846
        %v4654 = vmul.f32 %v4638, 0.7978846
        %v4655 = vmul.f32 %v4639, 0.7978846
        %v4656 = vmul.f32 %v4640, 0.7978846
        %v4657 = vmul.f32 %v4641, 0.7978846
        %v4658 = vmul.f32 %v4642, 0.7978846
        %v4659 = vmul.f32 %v4643, 0.7978846
        %v4660 = vmul.f32 %v4644, 0.7978846
        %v4661 = vmul.f32 %v4645, 0.7978846
        %v4662 = vtanh.pop %v4646
        %v4663 = vtanh.pop %v4647
        %v4664 = vtanh.pop %v4648
        %v4665 = vtanh.pop %v4649
        %v4666 = vtanh.pop %v4650
        %v4667 = vtanh.pop %v4651
        %v4668 = vtanh.pop %v4652
        %v4669 = vtanh.pop %v4653
        %v4670 = vtanh.pop %v4654
        %v4671 = vtanh.pop %v4655
        %v4672 = vtanh.pop %v4656
        %v4673 = vtanh.pop %v4657
        %v4674 = vtanh.pop %v4658
        %v4675 = vtanh.pop %v4659
        %v4676 = vtanh.pop %v4660
        %v4677 = vtanh.pop %v4661
        %v4678 = vadd.f32 %v4662, 1.0
        %v4679 = vadd.f32 %v4663, 1.0
        %v4680 = vadd.f32 %v4664, 1.0
        %v4681 = vadd.f32 %v4665, 1.0
        %v4682 = vadd.f32 %v4666, 1.0
        %v4683 = vadd.f32 %v4667, 1.0
        %v4684 = vadd.f32 %v4668, 1.0
        %v4685 = vadd.f32 %v4669, 1.0
        %v4686 = vadd.f32 %v4670, 1.0
        %v4687 = vadd.f32 %v4671, 1.0
        %v4688 = vadd.f32 %v4672, 1.0
        %v4689 = vadd.f32 %v4673, 1.0
        %v4690 = vadd.f32 %v4674, 1.0
        %v4691 = vadd.f32 %v4675, 1.0
        %v4692 = vadd.f32 %v4676, 1.0
        %v4693 = vadd.f32 %v4677, 1.0
        %v4694 = vmul.f32 %v4566, %v4678
        %v4695 = vmul.f32 %v4567, %v4679
        %v4696 = vmul.f32 %v4568, %v4680
        %v4697 = vmul.f32 %v4569, %v4681
        %v4698 = vmul.f32 %v4570, %v4682
        %v4699 = vmul.f32 %v4571, %v4683
        %v4700 = vmul.f32 %v4572, %v4684
        %v4701 = vmul.f32 %v4573, %v4685
        %v4702 = vmul.f32 %v4574, %v4686
        %v4703 = vmul.f32 %v4575, %v4687
        %v4704 = vmul.f32 %v4576, %v4688
        %v4705 = vmul.f32 %v4577, %v4689
        %v4706 = vmul.f32 %v4578, %v4690
        %v4707 = vmul.f32 %v4579, %v4691
        %v4708 = vmul.f32 %v4580, %v4692
        %v4709 = vmul.f32 %v4581, %v4693
        %v4710 = vpack.c.bf16 %v4695, %v4694
        %v4711 = vpack.c.bf16 %v4697, %v4696
        %v4712 = vpack.c.bf16 %v4699, %v4698
        %v4713 = vpack.c.bf16 %v4701, %v4700
        %v4714 = vpack.c.bf16 %v4703, %v4702
        %v4715 = vpack.c.bf16 %v4705, %v4704
        %v4716 = vpack.c.bf16 %v4707, %v4706
        %v4717 = vpack.c.bf16 %v4709, %v4708
        %v4719 = vperm.slane %v4402, 0
        %v4737 = vunpack.c.l.b16 %v4386
        %v4738 = vunpack.c.l.b16 %v4387
        %v4739 = vunpack.c.l.b16 %v4388
        %v4740 = vunpack.c.l.b16 %v4389
        %v4741 = vunpack.c.l.b16 %v4390
        %v4742 = vunpack.c.l.b16 %v4391
        %v4743 = vunpack.c.l.b16 %v4392
        %v4744 = vunpack.c.l.b16 %v4393
        %v4745 = vunpack.c.l.b16 %v4394
        %v4746 = vunpack.c.l.b16 %v4395
        %v4747 = vunpack.c.l.b16 %v4396
        %v4748 = vunpack.c.l.b16 %v4397
        %v4749 = vunpack.c.l.b16 %v4398
        %v4750 = vunpack.c.l.b16 %v4399
        %v4751 = vunpack.c.l.b16 %v4400
        %v4752 = vunpack.c.l.b16 %v4401
        %v4753 = vpack.c.b16 %v4738, %v4737
        %v4754 = vpack.c.b16 %v4740, %v4739
        %v4755 = vpack.c.b16 %v4742, %v4741
        %v4756 = vpack.c.b16 %v4744, %v4743
        %v4757 = vpack.c.b16 %v4746, %v4745
        %v4758 = vpack.c.b16 %v4748, %v4747
        %v4759 = vpack.c.b16 %v4750, %v4749
        %v4760 = vpack.c.b16 %v4752, %v4751
        %4769 = vmatpush.bf16.msra.mxu0 %v4760
        %4770 = vmatpush.bf16.msra.mxu0 %v4759
        %4771 = vmatpush.bf16.msra.mxu0 %v4758
        %4772 = vmatpush.bf16.msra.mxu0 %v4757
        %4773 = vmatpush.bf16.msra.mxu0 %v4756
        %4774 = vmatpush.bf16.msra.mxu0 %v4755
        %4775 = vmatpush.bf16.msra.mxu0 %v4754
        %4776 = vmatpush.bf16.msra.mxu0 %v4753
        %4777 = vmatmul.bf16.gmra.mxu0 %v4710
        %v4778 = vpop.f32.mrf.mxu0
        %v4779 = vadd.f32 %v4719, %v4778
        %v4780 = vpop.f32.mrf.mxu0
        %v4781 = vadd.f32 %v4719, %v4780
        %4782 = vmatmul.bf16.gmra.mxu0 %v4711
        %v4783 = vpop.f32.mrf.mxu0
        %v4784 = vadd.f32 %v4719, %v4783
        %v4785 = vpop.f32.mrf.mxu0
        %v4786 = vadd.f32 %v4719, %v4785
        %4787 = vmatmul.bf16.gmra.mxu0 %v4712
        %v4788 = vpop.f32.mrf.mxu0
        %v4789 = vadd.f32 %v4719, %v4788
        %v4790 = vpop.f32.mrf.mxu0
        %v4791 = vadd.f32 %v4719, %v4790
        %4792 = vmatmul.bf16.gmra.mxu0 %v4713
        %v4793 = vpop.f32.mrf.mxu0
        %v4794 = vadd.f32 %v4719, %v4793
        %v4795 = vpop.f32.mrf.mxu0
        %v4796 = vadd.f32 %v4719, %v4795
        %4797 = vmatmul.bf16.gmra.mxu0 %v4714
        %v4798 = vpop.f32.mrf.mxu0
        %v4799 = vadd.f32 %v4719, %v4798
        %v4800 = vpop.f32.mrf.mxu0
        %v4801 = vadd.f32 %v4719, %v4800
        %4802 = vmatmul.bf16.gmra.mxu0 %v4715
        %v4803 = vpop.f32.mrf.mxu0
        %v4804 = vadd.f32 %v4719, %v4803
        %v4805 = vpop.f32.mrf.mxu0
        %v4806 = vadd.f32 %v4719, %v4805
        %4807 = vmatmul.bf16.gmra.mxu0 %v4716
        %v4808 = vpop.f32.mrf.mxu0
        %v4809 = vadd.f32 %v4719, %v4808
        %v4810 = vpop.f32.mrf.mxu0
        %v4811 = vadd.f32 %v4719, %v4810
        %4812 = vmatmul.bf16.gmra.mxu0 %v4717
        %v4813 = vpop.f32.mrf.mxu0
        %v4814 = vadd.f32 %v4719, %v4813
        %v4815 = vpop.f32.mrf.mxu0
        %v4816 = vadd.f32 %v4719, %v4815
        %4817 = vdwg.mxu0
        %v4819 = vperm.slane %v4403, 0
        %v4821 = vmul.f32 %v4779, %v4819
        %v4822 = vmul.f32 %v4781, %v4819
        %v4823 = vmul.f32 %v4784, %v4819
        %v4824 = vmul.f32 %v4786, %v4819
        %v4825 = vmul.f32 %v4789, %v4819
        %v4826 = vmul.f32 %v4791, %v4819
        %v4827 = vmul.f32 %v4794, %v4819
        %v4828 = vmul.f32 %v4796, %v4819
        %v4829 = vmul.f32 %v4799, %v4819
        %v4830 = vmul.f32 %v4801, %v4819
        %v4831 = vmul.f32 %v4804, %v4819
        %v4832 = vmul.f32 %v4806, %v4819
        %v4833 = vmul.f32 %v4809, %v4819
        %v4834 = vmul.f32 %v4811, %v4819
        %v4835 = vmul.f32 %v4814, %v4819
        %v4836 = vmul.f32 %v4816, %v4819
        %v4837 = vld [vmem:[%s377] sm:$0xff]
        %v4838 = vld [vmem:[%s377 + $0x8] sm:$0xff]
        %v4839 = vld [vmem:[%s377 + $0x10] sm:$0xff]
        %v4840 = vld [vmem:[%s377 + $0x18] sm:$0xff]
        %v4841 = vld [vmem:[%s377 + $0x20] sm:$0xff]
        %v4842 = vld [vmem:[%s377 + $0x28] sm:$0xff]
        %v4843 = vld [vmem:[%s377 + $0x30] sm:$0xff]
        %v4844 = vld [vmem:[%s377 + $0x38] sm:$0xff]
        %v4845 = vld [vmem:[%s377 + $0x40] sm:$0xff]
        %v4846 = vld [vmem:[%s377 + $0x48] sm:$0xff]
        %v4847 = vld [vmem:[%s377 + $0x50] sm:$0xff]
        %v4848 = vld [vmem:[%s377 + $0x58] sm:$0xff]
        %v4849 = vld [vmem:[%s377 + $0x60] sm:$0xff]
        %v4850 = vld [vmem:[%s377 + $0x68] sm:$0xff]
        %v4851 = vld [vmem:[%s377 + $0x70] sm:$0xff]
        %v4852 = vld [vmem:[%s377 + $0x78] sm:$0xff]
        %v4853 = vadd.f32 %v4837, %v4821
        %v4854 = vadd.f32 %v4838, %v4822
        %v4855 = vadd.f32 %v4839, %v4823
        %v4856 = vadd.f32 %v4840, %v4824
        %v4857 = vadd.f32 %v4841, %v4825
        %v4858 = vadd.f32 %v4842, %v4826
        %v4859 = vadd.f32 %v4843, %v4827
        %v4860 = vadd.f32 %v4844, %v4828
        %v4861 = vadd.f32 %v4845, %v4829
        %v4862 = vadd.f32 %v4846, %v4830
        %v4863 = vadd.f32 %v4847, %v4831
        %v4864 = vadd.f32 %v4848, %v4832
        %v4865 = vadd.f32 %v4849, %v4833
        %v4866 = vadd.f32 %v4850, %v4834
        %v4867 = vadd.f32 %v4851, %v4835
        %v4868 = vadd.f32 %v4852, %v4836
        %4869 = vst [vmem:[%s429] sm:$0xff] %v4853
        %4870 = vst [vmem:[%s429 + $0x8] sm:$0xff] %v4854
        %4871 = vst [vmem:[%s429 + $0x10] sm:$0xff] %v4855
        %4872 = vst [vmem:[%s429 + $0x18] sm:$0xff] %v4856
        %4873 = vst [vmem:[%s429 + $0x20] sm:$0xff] %v4857
        %4874 = vst [vmem:[%s429 + $0x28] sm:$0xff] %v4858
        %4875 = vst [vmem:[%s429 + $0x30] sm:$0xff] %v4859
        %4876 = vst [vmem:[%s429 + $0x38] sm:$0xff] %v4860
        %4877 = vst [vmem:[%s429 + $0x40] sm:$0xff] %v4861
        %4878 = vst [vmem:[%s429 + $0x48] sm:$0xff] %v4862
        %4879 = vst [vmem:[%s429 + $0x50] sm:$0xff] %v4863
        %4880 = vst [vmem:[%s429 + $0x58] sm:$0xff] %v4864
        %4881 = vst [vmem:[%s429 + $0x60] sm:$0xff] %v4865
        %4882 = vst [vmem:[%s429 + $0x68] sm:$0xff] %v4866
        %4883 = vst [vmem:[%s429 + $0x70] sm:$0xff] %v4867
        %4884 = vst [vmem:[%s429 + $0x78] sm:$0xff] %v4868
        %v4885 = vld [vmem:[%s4257] sm:$0xff]
        %v4886 = vld [vmem:[%s4257 + $0x8] sm:$0xff]
        %v4887 = vld [vmem:[%s4257 + $0x10] sm:$0xff]
        %v4888 = vld [vmem:[%s4257 + $0x18] sm:$0xff]
        %v4889 = vld [vmem:[%s4257 + $0x20] sm:$0xff]
        %v4890 = vld [vmem:[%s4257 + $0x28] sm:$0xff]
        %v4891 = vld [vmem:[%s4257 + $0x30] sm:$0xff]
        %v4892 = vld [vmem:[%s4257 + $0x38] sm:$0xff]
        %v4893 = vld [vmem:[%s4257 + $0x40] sm:$0xff]
        %v4894 = vld [vmem:[%s4257 + $0x48] sm:$0xff]
        %v4895 = vld [vmem:[%s4257 + $0x50] sm:$0xff]
        %v4896 = vld [vmem:[%s4257 + $0x58] sm:$0xff]
        %v4897 = vld [vmem:[%s4257 + $0x60] sm:$0xff]
        %v4898 = vld [vmem:[%s4257 + $0x68] sm:$0xff]
        %v4899 = vld [vmem:[%s4257 + $0x70] sm:$0xff]
        %v4900 = vld [vmem:[%s4257 + $0x78] sm:$0xff]
        %v4901 = vmul.f32 %v4885, %v4421
        %v4902 = vmul.f32 %v4886, %v4421
        %v4903 = vmul.f32 %v4887, %v4421
        %v4904 = vmul.f32 %v4888, %v4421
        %v4905 = vmul.f32 %v4889, %v4421
        %v4906 = vmul.f32 %v4890, %v4421
        %v4907 = vmul.f32 %v4891, %v4421
        %v4908 = vmul.f32 %v4892, %v4421
        %v4909 = vmul.f32 %v4893, %v4421
        %v4910 = vmul.f32 %v4894, %v4421
        %v4911 = vmul.f32 %v4895, %v4421
        %v4912 = vmul.f32 %v4896, %v4421
        %v4913 = vmul.f32 %v4897, %v4421
        %v4914 = vmul.f32 %v4898, %v4421
        %v4915 = vmul.f32 %v4899, %v4421
        %v4916 = vmul.f32 %v4900, %v4421
        %v4917 = vadd.f32 %v4901, %v4440
        %v4918 = vadd.f32 %v4902, %v4440
        %v4919 = vadd.f32 %v4903, %v4440
        %v4920 = vadd.f32 %v4904, %v4440
        %v4921 = vadd.f32 %v4905, %v4440
        %v4922 = vadd.f32 %v4906, %v4440
        %v4923 = vadd.f32 %v4907, %v4440
        %v4924 = vadd.f32 %v4908, %v4440
        %v4925 = vadd.f32 %v4909, %v4440
        %v4926 = vadd.f32 %v4910, %v4440
        %v4927 = vadd.f32 %v4911, %v4440
        %v4928 = vadd.f32 %v4912, %v4440
        %v4929 = vadd.f32 %v4913, %v4440
        %v4930 = vadd.f32 %v4914, %v4440
        %v4931 = vadd.f32 %v4915, %v4440
        %v4932 = vadd.f32 %v4916, %v4440
        %v4933 = vpack.c.bf16 %v4918, %v4917
        %v4934 = vpack.c.bf16 %v4920, %v4919
        %v4935 = vpack.c.bf16 %v4922, %v4921
        %v4936 = vpack.c.bf16 %v4924, %v4923
        %v4937 = vpack.c.bf16 %v4926, %v4925
        %v4938 = vpack.c.bf16 %v4928, %v4927
        %v4939 = vpack.c.bf16 %v4930, %v4929
        %v4940 = vpack.c.bf16 %v4932, %v4931
        %4941 = vmatpush.bf16.msra.mxu0 %v4508
        %4942 = vmatpush.bf16.msra.mxu0 %v4507
        %4943 = vmatpush.bf16.msra.mxu0 %v4506
        %4944 = vmatpush.bf16.msra.mxu0 %v4505
        %4945 = vmatpush.bf16.msra.mxu0 %v4504
        %4946 = vmatpush.bf16.msra.mxu0 %v4503
        %4947 = vmatpush.bf16.msra.mxu0 %v4502
        %4948 = vmatpush.bf16.msra.mxu0 %v4501
        %4949 = vmatmul.bf16.gmra.mxu0 %v4933
        %v4950 = vpop.f32.mrf.mxu0
        %v4951 = vadd.f32 %v4467, %v4950
        %v4952 = vpop.f32.mrf.mxu0
        %v4953 = vadd.f32 %v4467, %v4952
        %4954 = vmatmul.bf16.gmra.mxu0 %v4934
        %v4955 = vpop.f32.mrf.mxu0
        %v4956 = vadd.f32 %v4467, %v4955
        %v4957 = vpop.f32.mrf.mxu0
        %v4958 = vadd.f32 %v4467, %v4957
        %4959 = vmatmul.bf16.gmra.mxu0 %v4935
        %v4960 = vpop.f32.mrf.mxu0
        %v4961 = vadd.f32 %v4467, %v4960
        %v4962 = vpop.f32.mrf.mxu0
        %v4963 = vadd.f32 %v4467, %v4962
        %4964 = vmatmul.bf16.gmra.mxu0 %v4936
        %v4965 = vpop.f32.mrf.mxu0
        %v4966 = vadd.f32 %v4467, %v4965
        %v4967 = vpop.f32.mrf.mxu0
        %v4968 = vadd.f32 %v4467, %v4967
        %4969 = vmatmul.bf16.gmra.mxu0 %v4937
        %v4970 = vpop.f32.mrf.mxu0
        %v4971 = vadd.f32 %v4467, %v4970
        %v4972 = vpop.f32.mrf.mxu0
        %v4973 = vadd.f32 %v4467, %v4972
        %4974 = vmatmul.bf16.gmra.mxu0 %v4938
        %v4975 = vpop.f32.mrf.mxu0
        %v4976 = vadd.f32 %v4467, %v4975
        %v4977 = vpop.f32.mrf.mxu0
        %v4978 = vadd.f32 %v4467, %v4977
        %4979 = vmatmul.bf16.gmra.mxu0 %v4939
        %v4980 = vpop.f32.mrf.mxu0
        %v4981 = vadd.f32 %v4467, %v4980
        %v4982 = vpop.f32.mrf.mxu0
        %v4983 = vadd.f32 %v4467, %v4982
        %4984 = vmatmul.bf16.gmra.mxu0 %v4940
        %v4985 = vpop.f32.mrf.mxu0
        %v4986 = vadd.f32 %v4467, %v4985
        %v4987 = vpop.f32.mrf.mxu0
        %v4988 = vadd.f32 %v4467, %v4987
        %4989 = vdwg.mxu0
        %v4990 = vmul.f32 %v4951, 0.5
        %v4991 = vmul.f32 %v4953, 0.5
        %v4992 = vmul.f32 %v4956, 0.5
        %v4993 = vmul.f32 %v4958, 0.5
        %v4994 = vmul.f32 %v4961, 0.5
        %v4995 = vmul.f32 %v4963, 0.5
        %v4996 = vmul.f32 %v4966, 0.5
        %v4997 = vmul.f32 %v4968, 0.5
        %v4998 = vmul.f32 %v4971, 0.5
        %v4999 = vmul.f32 %v4973, 0.5
        %v5000 = vmul.f32 %v4976, 0.5
        %v5001 = vmul.f32 %v4978, 0.5
        %v5002 = vmul.f32 %v4981, 0.5
        %v5003 = vmul.f32 %v4983, 0.5
        %v5004 = vmul.f32 %v4986, 0.5
        %v5005 = vmul.f32 %v4988, 0.5
        %v5006 = vmul.f32 %v4951, %v4951
        %v5007 = vmul.f32 %v4953, %v4953
        %v5008 = vmul.f32 %v4956, %v4956
        %v5009 = vmul.f32 %v4958, %v4958
        %v5010 = vmul.f32 %v4961, %v4961
        %v5011 = vmul.f32 %v4963, %v4963
        %v5012 = vmul.f32 %v4966, %v4966
        %v5013 = vmul.f32 %v4968, %v4968
        %v5014 = vmul.f32 %v4971, %v4971
        %v5015 = vmul.f32 %v4973, %v4973
        %v5016 = vmul.f32 %v4976, %v4976
        %v5017 = vmul.f32 %v4978, %v4978
        %v5018 = vmul.f32 %v4981, %v4981
        %v5019 = vmul.f32 %v4983, %v4983
        %v5020 = vmul.f32 %v4986, %v4986
        %v5021 = vmul.f32 %v4988, %v4988
        %v5022 = vmul.f32 %v5006, %v4951
        %v5023 = vmul.f32 %v5007, %v4953
        %v5024 = vmul.f32 %v5008, %v4956
        %v5025 = vmul.f32 %v5009, %v4958
        %v5026 = vmul.f32 %v5010, %v4961
        %v5027 = vmul.f32 %v5011, %v4963
        %v5028 = vmul.f32 %v5012, %v4966
        %v5029 = vmul.f32 %v5013, %v4968
        %v5030 = vmul.f32 %v5014, %v4971
        %v5031 = vmul.f32 %v5015, %v4973
        %v5032 = vmul.f32 %v5016, %v4976
        %v5033 = vmul.f32 %v5017, %v4978
        %v5034 = vmul.f32 %v5018, %v4981
        %v5035 = vmul.f32 %v5019, %v4983
        %v5036 = vmul.f32 %v5020, %v4986
        %v5037 = vmul.f32 %v5021, %v4988
        %v5038 = vmul.f32 %v5022, 0.044715
        %v5039 = vmul.f32 %v5023, 0.044715
        %v5040 = vmul.f32 %v5024, 0.044715
        %v5041 = vmul.f32 %v5025, 0.044715
        %v5042 = vmul.f32 %v5026, 0.044715
        %v5043 = vmul.f32 %v5027, 0.044715
        %v5044 = vmul.f32 %v5028, 0.044715
        %v5045 = vmul.f32 %v5029, 0.044715
        %v5046 = vmul.f32 %v5030, 0.044715
        %v5047 = vmul.f32 %v5031, 0.044715
        %v5048 = vmul.f32 %v5032, 0.044715
        %v5049 = vmul.f32 %v5033, 0.044715
        %v5050 = vmul.f32 %v5034, 0.044715
        %v5051 = vmul.f32 %v5035, 0.044715
        %v5052 = vmul.f32 %v5036, 0.044715
        %v5053 = vmul.f32 %v5037, 0.044715
        %v5054 = vadd.f32 %v4951, %v5038
        %v5055 = vadd.f32 %v4953, %v5039
        %v5056 = vadd.f32 %v4956, %v5040
        %v5057 = vadd.f32 %v4958, %v5041
        %v5058 = vadd.f32 %v4961, %v5042
        %v5059 = vadd.f32 %v4963, %v5043
        %v5060 = vadd.f32 %v4966, %v5044
        %v5061 = vadd.f32 %v4968, %v5045
        %v5062 = vadd.f32 %v4971, %v5046
        %v5063 = vadd.f32 %v4973, %v5047
        %v5064 = vadd.f32 %v4976, %v5048
        %v5065 = vadd.f32 %v4978, %v5049
        %v5066 = vadd.f32 %v4981, %v5050
        %v5067 = vadd.f32 %v4983, %v5051
        %v5068 = vadd.f32 %v4986, %v5052
        %v5069 = vadd.f32 %v4988, %v5053
        %v5070 = vmul.f32 %v5054, 0.7978846
        %v5071 = vmul.f32 %v5055, 0.7978846
        %v5072 = vmul.f32 %v5056, 0.7978846
        %v5073 = vmul.f32 %v5057, 0.7978846
        %v5074 = vmul.f32 %v5058, 0.7978846
        %v5075 = vmul.f32 %v5059, 0.7978846
        %v5076 = vmul.f32 %v5060, 0.7978846
        %v5077 = vmul.f32 %v5061, 0.7978846
        %v5078 = vmul.f32 %v5062, 0.7978846
        %v5079 = vmul.f32 %v5063, 0.7978846
        %v5080 = vmul.f32 %v5064, 0.7978846
        %v5081 = vmul.f32 %v5065, 0.7978846
        %v5082 = vmul.f32 %v5066, 0.7978846
        %v5083 = vmul.f32 %v5067, 0.7978846
        %v5084 = vmul.f32 %v5068, 0.7978846
        %v5085 = vmul.f32 %v5069, 0.7978846
        %v5086 = vtanh.pop %v5070
        %v5087 = vtanh.pop %v5071
        %v5088 = vtanh.pop %v5072
        %v5089 = vtanh.pop %v5073
        %v5090 = vtanh.pop %v5074
        %v5091 = vtanh.pop %v5075
        %v5092 = vtanh.pop %v5076
        %v5093 = vtanh.pop %v5077
        %v5094 = vtanh.pop %v5078
        %v5095 = vtanh.pop %v5079
        %v5096 = vtanh.pop %v5080
        %v5097 = vtanh.pop %v5081
        %v5098 = vtanh.pop %v5082
        %v5099 = vtanh.pop %v5083
        %v5100 = vtanh.pop %v5084
        %v5101 = vtanh.pop %v5085
        %v5102 = vadd.f32 %v5086, 1.0
        %v5103 = vadd.f32 %v5087, 1.0
        %v5104 = vadd.f32 %v5088, 1.0
        %v5105 = vadd.f32 %v5089, 1.0
        %v5106 = vadd.f32 %v5090, 1.0
        %v5107 = vadd.f32 %v5091, 1.0
        %v5108 = vadd.f32 %v5092, 1.0
        %v5109 = vadd.f32 %v5093, 1.0
        %v5110 = vadd.f32 %v5094, 1.0
        %v5111 = vadd.f32 %v5095, 1.0
        %v5112 = vadd.f32 %v5096, 1.0
        %v5113 = vadd.f32 %v5097, 1.0
        %v5114 = vadd.f32 %v5098, 1.0
        %v5115 = vadd.f32 %v5099, 1.0
        %v5116 = vadd.f32 %v5100, 1.0
        %v5117 = vadd.f32 %v5101, 1.0
        %v5118 = vmul.f32 %v4990, %v5102
        %v5119 = vmul.f32 %v4991, %v5103
        %v5120 = vmul.f32 %v4992, %v5104
        %v5121 = vmul.f32 %v4993, %v5105
        %v5122 = vmul.f32 %v4994, %v5106
        %v5123 = vmul.f32 %v4995, %v5107
        %v5124 = vmul.f32 %v4996, %v5108
        %v5125 = vmul.f32 %v4997, %v5109
        %v5126 = vmul.f32 %v4998, %v5110
        %v5127 = vmul.f32 %v4999, %v5111
        %v5128 = vmul.f32 %v5000, %v5112
        %v5129 = vmul.f32 %v5001, %v5113
        %v5130 = vmul.f32 %v5002, %v5114
        %v5131 = vmul.f32 %v5003, %v5115
        %v5132 = vmul.f32 %v5004, %v5116
        %v5133 = vmul.f32 %v5005, %v5117
        %v5134 = vpack.c.bf16 %v5119, %v5118
        %v5135 = vpack.c.bf16 %v5121, %v5120
        %v5136 = vpack.c.bf16 %v5123, %v5122
        %v5137 = vpack.c.bf16 %v5125, %v5124
        %v5138 = vpack.c.bf16 %v5127, %v5126
        %v5139 = vpack.c.bf16 %v5129, %v5128
        %v5140 = vpack.c.bf16 %v5131, %v5130
        %v5141 = vpack.c.bf16 %v5133, %v5132
        %5142 = vmatpush.bf16.msra.mxu0 %v4760
        %5143 = vmatpush.bf16.msra.mxu0 %v4759
        %5144 = vmatpush.bf16.msra.mxu0 %v4758
        %5145 = vmatpush.bf16.msra.mxu0 %v4757
        %5146 = vmatpush.bf16.msra.mxu0 %v4756
        %5147 = vmatpush.bf16.msra.mxu0 %v4755
        %5148 = vmatpush.bf16.msra.mxu0 %v4754
        %5149 = vmatpush.bf16.msra.mxu0 %v4753
        %5150 = vmatmul.bf16.gmra.mxu0 %v5134
        %v5151 = vpop.f32.mrf.mxu0
        %v5152 = vadd.f32 %v4719, %v5151
        %v5153 = vpop.f32.mrf.mxu0
        %v5154 = vadd.f32 %v4719, %v5153
        %5155 = vmatmul.bf16.gmra.mxu0 %v5135
        %v5156 = vpop.f32.mrf.mxu0
        %v5157 = vadd.f32 %v4719, %v5156
        %v5158 = vpop.f32.mrf.mxu0
        %v5159 = vadd.f32 %v4719, %v5158
        %5160 = vmatmul.bf16.gmra.mxu0 %v5136
        %v5161 = vpop.f32.mrf.mxu0
        %v5162 = vadd.f32 %v4719, %v5161
        %v5163 = vpop.f32.mrf.mxu0
        %v5164 = vadd.f32 %v4719, %v5163
        %5165 = vmatmul.bf16.gmra.mxu0 %v5137
        %v5166 = vpop.f32.mrf.mxu0
        %v5167 = vadd.f32 %v4719, %v5166
        %v5168 = vpop.f32.mrf.mxu0
        %v5169 = vadd.f32 %v4719, %v5168
        %5170 = vmatmul.bf16.gmra.mxu0 %v5138
        %v5171 = vpop.f32.mrf.mxu0
        %v5172 = vadd.f32 %v4719, %v5171
        %v5173 = vpop.f32.mrf.mxu0
        %v5174 = vadd.f32 %v4719, %v5173
        %5175 = vmatmul.bf16.gmra.mxu0 %v5139
        %v5176 = vpop.f32.mrf.mxu0
        %v5177 = vadd.f32 %v4719, %v5176
        %v5178 = vpop.f32.mrf.mxu0
        %v5179 = vadd.f32 %v4719, %v5178
        %5180 = vmatmul.bf16.gmra.mxu0 %v5140
        %v5181 = vpop.f32.mrf.mxu0
        %v5182 = vadd.f32 %v4719, %v5181
        %v5183 = vpop.f32.mrf.mxu0
        %v5184 = vadd.f32 %v4719, %v5183
        %5185 = vmatmul.bf16.gmra.mxu0 %v5141
        %v5186 = vpop.f32.mrf.mxu0
        %v5187 = vadd.f32 %v4719, %v5186
        %v5188 = vpop.f32.mrf.mxu0
        %v5189 = vadd.f32 %v4719, %v5188
        %5190 = vdwg.mxu0
        %v5191 = vmul.f32 %v5152, %v4819
        %v5192 = vmul.f32 %v5154, %v4819
        %v5193 = vmul.f32 %v5157, %v4819
        %v5194 = vmul.f32 %v5159, %v4819
        %v5195 = vmul.f32 %v5162, %v4819
        %v5196 = vmul.f32 %v5164, %v4819
        %v5197 = vmul.f32 %v5167, %v4819
        %v5198 = vmul.f32 %v5169, %v4819
        %v5199 = vmul.f32 %v5172, %v4819
        %v5200 = vmul.f32 %v5174, %v4819
        %v5201 = vmul.f32 %v5177, %v4819
        %v5202 = vmul.f32 %v5179, %v4819
        %v5203 = vmul.f32 %v5182, %v4819
        %v5204 = vmul.f32 %v5184, %v4819
        %v5205 = vmul.f32 %v5187, %v4819
        %v5206 = vmul.f32 %v5189, %v4819
        %s5207 = scalar_lea.vmem %s377, 128 [#allocation4]
        %v5208 = vld [vmem:[%s5207] sm:$0xff]
        %v5209 = vld [vmem:[%s5207 + $0x8] sm:$0xff]
        %v5210 = vld [vmem:[%s5207 + $0x10] sm:$0xff]
        %v5211 = vld [vmem:[%s5207 + $0x18] sm:$0xff]
        %v5212 = vld [vmem:[%s5207 + $0x20] sm:$0xff]
        %v5213 = vld [vmem:[%s5207 + $0x28] sm:$0xff]
        %v5214 = vld [vmem:[%s5207 + $0x30] sm:$0xff]
        %v5215 = vld [vmem:[%s5207 + $0x38] sm:$0xff]
        %v5216 = vld [vmem:[%s5207 + $0x40] sm:$0xff]
        %v5217 = vld [vmem:[%s5207 + $0x48] sm:$0xff]
        %v5218 = vld [vmem:[%s5207 + $0x50] sm:$0xff]
        %v5219 = vld [vmem:[%s5207 + $0x58] sm:$0xff]
        %v5220 = vld [vmem:[%s5207 + $0x60] sm:$0xff]
        %v5221 = vld [vmem:[%s5207 + $0x68] sm:$0xff]
        %v5222 = vld [vmem:[%s5207 + $0x70] sm:$0xff]
        %v5223 = vld [vmem:[%s5207 + $0x78] sm:$0xff]
        %v5224 = vadd.f32 %v5208, %v5191
        %v5225 = vadd.f32 %v5209, %v5192
        %v5226 = vadd.f32 %v5210, %v5193
        %v5227 = vadd.f32 %v5211, %v5194
        %v5228 = vadd.f32 %v5212, %v5195
        %v5229 = vadd.f32 %v5213, %v5196
        %v5230 = vadd.f32 %v5214, %v5197
        %v5231 = vadd.f32 %v5215, %v5198
        %v5232 = vadd.f32 %v5216, %v5199
        %v5233 = vadd.f32 %v5217, %v5200
        %v5234 = vadd.f32 %v5218, %v5201
        %v5235 = vadd.f32 %v5219, %v5202
        %v5236 = vadd.f32 %v5220, %v5203
        %v5237 = vadd.f32 %v5221, %v5204
        %v5238 = vadd.f32 %v5222, %v5205
        %v5239 = vadd.f32 %v5223, %v5206
        %s5240 = scalar_lea.vmem %s429, 128 [#allocation12]
        %5241 = vst [vmem:[%s5240] sm:$0xff] %v5224
        %5242 = vst [vmem:[%s5240 + $0x8] sm:$0xff] %v5225
        %5243 = vst [vmem:[%s5240 + $0x10] sm:$0xff] %v5226
        %5244 = vst [vmem:[%s5240 + $0x18] sm:$0xff] %v5227
        %5245 = vst [vmem:[%s5240 + $0x20] sm:$0xff] %v5228
        %5246 = vst [vmem:[%s5240 + $0x28] sm:$0xff] %v5229
        %5247 = vst [vmem:[%s5240 + $0x30] sm:$0xff] %v5230
        %5248 = vst [vmem:[%s5240 + $0x38] sm:$0xff] %v5231
        %5249 = vst [vmem:[%s5240 + $0x40] sm:$0xff] %v5232
        %5250 = vst [vmem:[%s5240 + $0x48] sm:$0xff] %v5233
        %5251 = vst [vmem:[%s5240 + $0x50] sm:$0xff] %v5234
        %5252 = vst [vmem:[%s5240 + $0x58] sm:$0xff] %v5235
        %5253 = vst [vmem:[%s5240 + $0x60] sm:$0xff] %v5236
        %5254 = vst [vmem:[%s5240 + $0x68] sm:$0xff] %v5237
        %5255 = vst [vmem:[%s5240 + $0x70] sm:$0xff] %v5238
        %5256 = vst [vmem:[%s5240 + $0x78] sm:$0xff] %v5239
        %s5257 = sand.u32 %s252, 1
        %s5258 = scalar_lea.sflag [#allocation6], %s5257
        %s5259 = sand.u32 %s252, 1
        %s5260 = smul.addr %s5259, 256
        %s5261 = scalar_lea.vmem [#allocation12], %s5260
        // Predicated region
        $region77: #{tpu_custom_call.1} parent=59 // pred_check
          %p5262 = pneg %p262
        $region78: #{tpu_custom_call.1} parent=59 // pred_check_branch
          %5264 = sbr.rel (%p5262) target = $region80
        $region79: #{tpu_custom_call.1} parent=59 // pred_region
          %5266 = vsyncadd %s5258, 0
          %s5267 = smul.addr %s29, 32
          %s5268 = smul.addr %s5267, 8
          %s5269 = scalar_lea.hbm %s10, %s5268
          %s5270 = sshll.u32 %s5261, 4
          %s5271 = int_to_ptr.vmem [resolvable:$true] %s5270
          %s5272 = sshll.u32 %s5269, 4
          %s5273 = int_to_ptr.hbm [resolvable:$true] %s5272
          %5278 = dma.vmem_to_hbm [thread:$0]  %s5271, 4096, %s5273, %s5258, 128, 128, 8
        $region80: #{tpu_custom_call.1} parent=59 // pred_fallthru
          _
      $region60: #{tpu_custom_call.1} parent=5 // pred_fallthru
        _
      %p5279 = scmp.le.s32.totalorder 2, %s24
      // Predicated region
      $region81: #{tpu_custom_call.1} parent=5 // pred_check
        %p5280 = pneg %p5279
      $region82: #{tpu_custom_call.1} parent=5 // pred_check_branch
        %5282 = sbr.rel (%p5280) target = $region84
      $region83: #{tpu_custom_call.1} parent=5 // pred_region
        %s5283 = ssub.s32 %s24, 2
        // Predicated region
        $region85: #{tpu_custom_call.1} parent=83 // pred_check
          %p5284 = pneg %p268
        $region86: #{tpu_custom_call.1} parent=83 // pred_check_branch
          %5286 = sbr.rel (%p5284) target = $region88
        $region87: #{tpu_custom_call.1} parent=83 // pred_region
          %s5287 = sand.u32 %s253, 1
          %s5288 = scalar_lea.sflag [#allocation6], %s5287
          %s5289 = sand.u32 %s253, 1
          %s5290 = smul.addr %s5289, 256
          %s5291 = scalar_lea.vmem [#allocation12], %s5290
          %5293 = dma.done %s5288, 4096
        $region88: #{tpu_custom_call.1} parent=83 // pred_fallthru
          _
      $region84: #{tpu_custom_call.1} parent=5 // pred_fallthru
        _
    $region6: #{tpu_custom_call.1} parent=1 // loop_footer
      %s28 = sadd.s32 1, %s24
    $region7: #{tpu_custom_call.1} parent=1 // loop_footer_branch
      %23 = sbr.rel target = $region3
    $region8: #{tpu_custom_call.1} parent=1 // loop_exit
      _
    %5294 = vsyncpa [#allocation5], 1
    %s5295 = scalar_lea.sflag [#allocation5], 1
    %5296 = vsyncpa %s5295, 1
    %5297 = vsyncpa [#allocation8], 1
    %5298 = vsyncpa [#allocation11], 1
    %5299 = vsyncpa [#allocation6], 1
    %s5300 = scalar_lea.sflag [#allocation6], 1
    %5301 = vsyncpa %s5300, 1

</llo_original>
